<compile_context>
chip_gen: v6e
topology: v6e:2x2x1
jax: 0.10.0
libtpu: 0.0.40
codegen_flags: <defaults>
</compile_context>

<pallas_src>
import functools

import jax
import jax.numpy as jnp
from jax import lax
from jax.experimental import pallas as pl
from jax.experimental.pallas import tpu as pltpu


def _conv3x3_lane_dense(planes, w_ref, b_ref, mask_dx0, mask_dx2, *, C, H, W):
    """3x3 same-conv on flat per-channel planes via VPU scalar-broadcast MACs.

    planes   : list of C (TN, H*W) float32 lane-dense channel planes
    w_ref    : (C*C*9,) SMEM scalars, PyTorch OIHW order flattened
    b_ref    : (C,)     SMEM scalars
    mask_dx0 : (1, H*W) f32, 0.0 where w == 0      (kills contaminated dx==0 taps)
    mask_dx2 : (1, H*W) f32, 0.0 where w == W - 1  (kills contaminated dx==2 taps)
    returns  : list of C (TN, H*W) float32 pre-activation planes
    """
    HW = H * W
    PAD = W + 1
    TN = planes[0].shape[0]
    zpad = jnp.zeros((TN, PAD), jnp.float32)

    accs = [jnp.full((TN, HW), b_ref[co], jnp.float32) for co in range(C)]
    for ci in range(C):
        # Zero-extend the flat plane by one image row (+1 px) on each side;
        # every tap is then a static lane-offset slice (no (H, W) reshape, and
        # the top/bottom zero-padding rows come for free from the extension).
        wide = jnp.concatenate([zpad, planes[ci], zpad], axis=1)
        for dy in range(3):
            for dx in range(3):
                s = (dy - 1) * W + (dx - 1)
                tap = wide[:, PAD + s:PAD + s + HW]
                # Left/right image borders: a dx != 1 tap at w == 0 / w == W-1
                # would read a pixel of the neighbouring image row; zero it.
                if dx == 0:
                    tap = tap * mask_dx0
                elif dx == 2:
                    tap = tap * mask_dx2
                # One tap reused across all C output channels (small live set:
                # C accumulators + this tap).
                for co in range(C):
                    wv = w_ref[((co * C + ci) * 3 + dy) * 3 + dx]
                    accs[co] = accs[co] + tap * wv
    return accs


def _process_block_kernel(x_ref, w1_ref, b1_ref, w2_ref, b2_ref, o_ref,
                          *, C, H, W):
    """One grid step processes TN full images, entirely lane-dense.

    x_ref  : (TN, C, H*W)   input block
    w*_ref : (C*C*9,) SMEM  conv weights (OIHW flattened)
    b*_ref : (C,)     SMEM  conv biases
    o_ref  : (TN, C, H*W)   output block
    """
    HW = H * W

    lrelu = lambda v: jnp.where(v > 0, v, 0.1 * v)

    # Column masks for the left/right image borders; built once, shared by
    # both convs, broadcast over the TN sublanes.
    col = lax.broadcasted_iota(jnp.int32, (1, HW), 1) % W
    mask_dx0 = (col != 0).astype(jnp.float32)       # zero outputs at w == 0
    mask_dx2 = (col != W - 1).astype(jnp.float32)   # zero outputs at w == W-1

    # Single dense (unmasked, full-lane) load; per-channel planes are
    # value-level slices, reused for the residual at the end.
    x = x_ref[...].astype(jnp.float32)               # (TN, C, HW)
    x_planes = [x[:, ci, :] for ci in range(C)]      # C x (TN, HW)

    # conv1 + LeakyReLU(0.1); the intermediate stays in registers /
    # compiler-managed VMEM temporaries (no scratch store/reload).
    y1 = [lrelu(v) for v in _conv3x3_lane_dense(
        x_planes, w1_ref, b1_ref, mask_dx0, mask_dx2, C=C, H=H, W=W)]

    # conv2 + LeakyReLU(0.1)
    y2 = [lrelu(v) for v in _conv3x3_lane_dense(
        y1, w2_ref, b2_ref, mask_dx0, mask_dx2, C=C, H=H, W=W)]

    # Residual add against the input planes; one dense lane-wide store.
    out = jnp.stack([y2[c] + x_planes[c] for c in range(C)], axis=1)
    o_ref[...] = out.astype(o_ref.dtype)


def _pick_images_per_step(N, C, HW, itemsize, target_block_bytes=1 << 20):
    """Images per grid step: large enough to amortize the ~0.35 us/step
    overhead, small enough to keep accumulator live sets and double-buffered
    blocks comfortable, and leaving >= 2 steps when N > 1 so the 'parallel'
    batch axis can split across TensorCores."""
    per_img = max(1, C * HW * itemsize)
    tn = max(1, min(N, target_block_bytes // per_img))
    if N > 1:
        tn = max(1, min(tn, N // 2))
    while N % tn:
        tn -= 1
    return int(tn)


def process_block(x_nchw, w1, b1, w2, b2):
    """x_nchw: (N, C, H, W) float32; w: (C, C, 3, 3) OIHW; b: (C,).

    Returns (N, C, H, W)."""
    N, C, H, W = x_nchw.shape
    HW = H * W

    x_flat = x_nchw.reshape(N, C, HW)          # free (contiguous) reshape
    w1f = w1.reshape(-1)
    w2f = w2.reshape(-1)
    b1f = b1.reshape(-1)
    b2f = b2.reshape(-1)

    TN = _pick_images_per_step(N, C, HW, x_nchw.dtype.itemsize)

    # Generation-specific VMEM budget (~3/4 of physical VMEM).
    try:
        vmem_cap = int(pltpu.get_tpu_info().vmem_capacity_bytes)
    except Exception:
        vmem_cap = 64 * 1024 * 1024            # conservative (v7x) fallback
    vmem_limit = int(min(vmem_cap * 3 // 4, 100 * 1024 * 1024))

    kernel = functools.partial(_process_block_kernel, C=C, H=H, W=W)

    out_flat = pl.pallas_call(
        kernel,
        out_shape=jax.ShapeDtypeStruct((N, C, HW), x_nchw.dtype),
        grid_spec=pltpu.PrefetchScalarGridSpec(
            num_scalar_prefetch=0,
            grid=(N // TN,),
            in_specs=[
                pl.BlockSpec((TN, C, HW), lambda n: (n, 0, 0)),
                pl.BlockSpec(memory_space=pltpu.MemorySpace.SMEM),  # w1
                pl.BlockSpec(memory_space=pltpu.MemorySpace.SMEM),  # b1
                pl.BlockSpec(memory_space=pltpu.MemorySpace.SMEM),  # w2
                pl.BlockSpec(memory_space=pltpu.MemorySpace.SMEM),  # b2
            ],
            out_specs=pl.BlockSpec((TN, C, HW), lambda n: (n, 0, 0)),
        ),
        compiler_params=pltpu.CompilerParams(
            dimension_semantics=("parallel",),
            vmem_limit_bytes=vmem_limit),
    )(x_flat, w1f, b1f, w2f, b2f)

    return out_flat.reshape(N, C, H, W)


def _reference(x, w1, b1, w2, b2):
    """Plain-JAX reference mirroring the PyTorch forward (NCHW / OIHW)."""
    def conv(z, w, b):
        y = lax.conv_general_dilated(
            z, w, window_strides=(1, 1), padding="SAME",
            dimension_numbers=("NCHW", "OIHW", "NCHW"))
        return y + b.reshape(1, -1, 1, 1)

    y = conv(x, w1, b1)
    y = jnp.where(y > 0, y, 0.1 * y)
    y = conv(y, w2, b2)
    y = jnp.where(y > 0, y, 0.1 * y)
    return y + x


if __name__ == "__main__":
    key = jax.random.PRNGKey(0)
    N, C, H, W = 2, 4, 16, 16
    k1, k2, k3, k4, k5 = jax.random.split(key, 5)

    # deterministic synthetic parameters (nc = nc_out = C, 3x3 convs, pad 1)
    x = jax.random.normal(k1, (N, C, H, W), jnp.float32)
    w1 = jax.random.normal(k2, (C, C, 3, 3), jnp.float32) * 0.1   # OIHW
    b1 = jax.random.normal(k3, (C,), jnp.float32) * 0.1
    w2 = jax.random.normal(k4, (C, C, 3, 3), jnp.float32) * 0.1
    b2 = jax.random.normal(k5, (C,), jnp.float32) * 0.1

    out = jax.block_until_ready(process_block(x, w1, b1, w2, b2))
    ref = _reference(x, w1, b1, w2, b2)

    assert out.shape == (N, C, H, W)
    assert jnp.allclose(out, ref, atol=1e-4, rtol=1e-4), "mismatch vs reference"

    print("KERNEL_OK")
</pallas_src>

<mosaic_0001>
module attributes {stable_mosaic.version = 11 : i64} {
  func.func @_process_block_kernel(%arg0: i32, %arg1: memref<1x4x256xf32, #tpu.memory_space<vmem>>, %arg2: memref<144xf32, #tpu.memory_space<smem>>, %arg3: memref<4xf32, #tpu.memory_space<smem>>, %arg4: memref<144xf32, #tpu.memory_space<smem>>, %arg5: memref<4xf32, #tpu.memory_space<smem>>, %arg6: memref<1x4x256xf32, #tpu.memory_space<vmem>>) attributes {dimension_semantics = [#tpu.dimension_semantics<parallel>], iteration_bounds = array<i64: 2>, scalar_prefetch = 0 : i64, scratch_operands = 0 : i64, tpu.core_type = #tpu.core_type<tc>, window_params = [{transform_indices = @transform_0, window_bounds = array<i64: 1, 4, 256>}, {transform_indices = @transform_1, window_bounds = array<i64: 144>}, {transform_indices = @transform_2, window_bounds = array<i64: 4>}, {transform_indices = @transform_3, window_bounds = array<i64: 144>}, {transform_indices = @transform_4, window_bounds = array<i64: 4>}, {transform_indices = @transform_5, window_bounds = array<i64: 1, 4, 256>}]} {
    %0 = tpu.iota {dimensions = array<i32: 1>} : vector<1x256xi32>
    %c16_i32 = arith.constant 16 : i32
    %c0_i32 = arith.constant 0 : i32
    %1 = arith.cmpi eq, %c16_i32, %c0_i32 : i32
    %c1_i32 = arith.constant 1 : i32
    %2 = arith.select %1, %c1_i32, %c16_i32 : i32
    %3 = vector.broadcast %2 : i32 to vector<1x256xi32>
    %4 = arith.remsi %0, %3 : vector<1x256xi32>
    %c0_i32_0 = arith.constant 0 : i32
    %5 = vector.broadcast %c0_i32_0 : i32 to vector<1x256xi32>
    %6 = arith.cmpi ne, %4, %5 : vector<1x256xi32>
    %c0_i32_1 = arith.constant 0 : i32
    %7 = vector.broadcast %c0_i32_1 : i32 to vector<1x256xi32>
    %8 = arith.cmpi slt, %4, %7 : vector<1x256xi32>
    %c0_i32_2 = arith.constant 0 : i32
    %9 = arith.cmpi slt, %2, %c0_i32_2 : i32
    %10 = vector.broadcast %9 : i1 to vector<1x256xi1>
    %11 = vector.broadcast %10 : vector<1x256xi1> to vector<1x256xi1>
    %12 = arith.xori %8, %11 : vector<1x256xi1>
    %13 = arith.andi %12, %6 : vector<1x256xi1>
    %14 = vector.broadcast %2 : i32 to vector<1x256xi32>
    %15 = arith.addi %4, %14 : vector<1x256xi32>
    %16 = arith.select %13, %15, %4 : vector<1x256xi1>, vector<1x256xi32>
    %c0_i32_3 = arith.constant 0 : i32
    %17 = vector.broadcast %c0_i32_3 : i32 to vector<1x256xi32>
    %18 = arith.cmpi ne, %16, %17 : vector<1x256xi32>
    %19 = arith.extui %18 : vector<1x256xi1> to vector<1x256xi32>
    %20 = arith.sitofp %19 : vector<1x256xi32> to vector<1x256xf32>
    %c15_i32 = arith.constant 15 : i32
    %21 = vector.broadcast %c15_i32 : i32 to vector<1x256xi32>
    %22 = arith.cmpi ne, %16, %21 : vector<1x256xi32>
    %23 = arith.extui %22 : vector<1x256xi1> to vector<1x256xi32>
    %24 = arith.sitofp %23 : vector<1x256xi32> to vector<1x256xf32>
    %c0 = arith.constant 0 : index
    %c0_4 = arith.constant 0 : index
    %c0_5 = arith.constant 0 : index
    %25 = vector.load %arg1[%c0, %c0_4, %c0_5] : memref<1x4x256xf32, #tpu.memory_space<vmem>>, vector<1x4x256xf32>
    %26 = vector.extract_strided_slice %25 {offsets = [0, 0, 0], sizes = [1, 1, 256], strides = [1, 1, 1]} : vector<1x4x256xf32> to vector<1x1x256xf32>
    %27 = vector.shape_cast %26 : vector<1x1x256xf32> to vector<1x256xf32>
    %28 = vector.extract_strided_slice %25 {offsets = [0, 1, 0], sizes = [1, 1, 256], strides = [1, 1, 1]} : vector<1x4x256xf32> to vector<1x1x256xf32>
    %29 = vector.shape_cast %28 : vector<1x1x256xf32> to vector<1x256xf32>
    %30 = vector.extract_strided_slice %25 {offsets = [0, 2, 0], sizes = [1, 1, 256], strides = [1, 1, 1]} : vector<1x4x256xf32> to vector<1x1x256xf32>
    %31 = vector.shape_cast %30 : vector<1x1x256xf32> to vector<1x256xf32>
    %32 = vector.extract_strided_slice %25 {offsets = [0, 3, 0], sizes = [1, 1, 256], strides = [1, 1, 1]} : vector<1x4x256xf32> to vector<1x1x256xf32>
    %33 = vector.shape_cast %32 : vector<1x1x256xf32> to vector<1x256xf32>
    %cst = arith.constant 0.000000e+00 : f32
    %34 = vector.broadcast %cst : f32 to vector<1x17xf32>
    %c0_6 = arith.constant 0 : index
    %35 = memref.load %arg3[%c0_6] : memref<4xf32, #tpu.memory_space<smem>>
    %36 = vector.broadcast %35 : f32 to vector<1x256xf32>
    %c1 = arith.constant 1 : index
    %37 = memref.load %arg3[%c1] : memref<4xf32, #tpu.memory_space<smem>>
    %38 = vector.broadcast %37 : f32 to vector<1x256xf32>
    %c2 = arith.constant 2 : index
    %39 = memref.load %arg3[%c2] : memref<4xf32, #tpu.memory_space<smem>>
    %40 = vector.broadcast %39 : f32 to vector<1x256xf32>
    %c3 = arith.constant 3 : index
    %41 = memref.load %arg3[%c3] : memref<4xf32, #tpu.memory_space<smem>>
    %42 = vector.broadcast %41 : f32 to vector<1x256xf32>
    %43 = tpu.concatenate %34, %27, %34 in 1 : vector<1x17xf32>, vector<1x256xf32>, vector<1x17xf32> -> vector<1x290xf32>
    %44 = vector.extract_strided_slice %43 {offsets = [0, 0], sizes = [1, 256], strides = [1, 1]} : vector<1x290xf32> to vector<1x256xf32>
    %45 = arith.mulf %44, %20 : vector<1x256xf32>
    %c0_7 = arith.constant 0 : index
    %46 = memref.load %arg2[%c0_7] : memref<144xf32, #tpu.memory_space<smem>>
    %47 = vector.broadcast %46 : f32 to vector<1x256xf32>
    %48 = arith.mulf %45, %47 : vector<1x256xf32>
    %49 = arith.addf %36, %48 : vector<1x256xf32>
    %c36 = arith.constant 36 : index
    %50 = memref.load %arg2[%c36] : memref<144xf32, #tpu.memory_space<smem>>
    %51 = vector.broadcast %50 : f32 to vector<1x256xf32>
    %52 = arith.mulf %45, %51 : vector<1x256xf32>
    %53 = arith.addf %38, %52 : vector<1x256xf32>
    %c72 = arith.constant 72 : index
    %54 = memref.load %arg2[%c72] : memref<144xf32, #tpu.memory_space<smem>>
    %55 = vector.broadcast %54 : f32 to vector<1x256xf32>
    %56 = arith.mulf %45, %55 : vector<1x256xf32>
    %57 = arith.addf %40, %56 : vector<1x256xf32>
    %c108 = arith.constant 108 : index
    %58 = memref.load %arg2[%c108] : memref<144xf32, #tpu.memory_space<smem>>
    %59 = vector.broadcast %58 : f32 to vector<1x256xf32>
    %60 = arith.mulf %45, %59 : vector<1x256xf32>
    %61 = arith.addf %42, %60 : vector<1x256xf32>
    %62 = vector.extract_strided_slice %43 {offsets = [0, 1], sizes = [1, 256], strides = [1, 1]} : vector<1x290xf32> to vector<1x256xf32>
    %c1_8 = arith.constant 1 : index
    %63 = memref.load %arg2[%c1_8] : memref<144xf32, #tpu.memory_space<smem>>
    %64 = vector.broadcast %63 : f32 to vector<1x256xf32>
    %65 = arith.mulf %62, %64 : vector<1x256xf32>
    %66 = arith.addf %49, %65 : vector<1x256xf32>
    %c37 = arith.constant 37 : index
    %67 = memref.load %arg2[%c37] : memref<144xf32, #tpu.memory_space<smem>>
    %68 = vector.broadcast %67 : f32 to vector<1x256xf32>
    %69 = arith.mulf %62, %68 : vector<1x256xf32>
    %70 = arith.addf %53, %69 : vector<1x256xf32>
    %c73 = arith.constant 73 : index
    %71 = memref.load %arg2[%c73] : memref<144xf32, #tpu.memory_space<smem>>
    %72 = vector.broadcast %71 : f32 to vector<1x256xf32>
    %73 = arith.mulf %62, %72 : vector<1x256xf32>
    %74 = arith.addf %57, %73 : vector<1x256xf32>
    %c109 = arith.constant 109 : index
    %75 = memref.load %arg2[%c109] : memref<144xf32, #tpu.memory_space<smem>>
    %76 = vector.broadcast %75 : f32 to vector<1x256xf32>
    %77 = arith.mulf %62, %76 : vector<1x256xf32>
    %78 = arith.addf %61, %77 : vector<1x256xf32>
    %79 = vector.extract_strided_slice %43 {offsets = [0, 2], sizes = [1, 256], strides = [1, 1]} : vector<1x290xf32> to vector<1x256xf32>
    %80 = arith.mulf %79, %24 : vector<1x256xf32>
    %c2_9 = arith.constant 2 : index
    %81 = memref.load %arg2[%c2_9] : memref<144xf32, #tpu.memory_space<smem>>
    %82 = vector.broadcast %81 : f32 to vector<1x256xf32>
    %83 = arith.mulf %80, %82 : vector<1x256xf32>
    %84 = arith.addf %66, %83 : vector<1x256xf32>
    %c38 = arith.constant 38 : index
    %85 = memref.load %arg2[%c38] : memref<144xf32, #tpu.memory_space<smem>>
    %86 = vector.broadcast %85 : f32 to vector<1x256xf32>
    %87 = arith.mulf %80, %86 : vector<1x256xf32>
    %88 = arith.addf %70, %87 : vector<1x256xf32>
    %c74 = arith.constant 74 : index
    %89 = memref.load %arg2[%c74] : memref<144xf32, #tpu.memory_space<smem>>
    %90 = vector.broadcast %89 : f32 to vector<1x256xf32>
    %91 = arith.mulf %80, %90 : vector<1x256xf32>
    %92 = arith.addf %74, %91 : vector<1x256xf32>
    %c110 = arith.constant 110 : index
    %93 = memref.load %arg2[%c110] : memref<144xf32, #tpu.memory_space<smem>>
    %94 = vector.broadcast %93 : f32 to vector<1x256xf32>
    %95 = arith.mulf %80, %94 : vector<1x256xf32>
    %96 = arith.addf %78, %95 : vector<1x256xf32>
    %97 = vector.extract_strided_slice %43 {offsets = [0, 16], sizes = [1, 256], strides = [1, 1]} : vector<1x290xf32> to vector<1x256xf32>
    %98 = arith.mulf %97, %20 : vector<1x256xf32>
    %c3_10 = arith.constant 3 : index
    %99 = memref.load %arg2[%c3_10] : memref<144xf32, #tpu.memory_space<smem>>
    %100 = vector.broadcast %99 : f32 to vector<1x256xf32>
    %101 = arith.mulf %98, %100 : vector<1x256xf32>
    %102 = arith.addf %84, %101 : vector<1x256xf32>
    %c39 = arith.constant 39 : index
    %103 = memref.load %arg2[%c39] : memref<144xf32, #tpu.memory_space<smem>>
    %104 = vector.broadcast %103 : f32 to vector<1x256xf32>
    %105 = arith.mulf %98, %104 : vector<1x256xf32>
    %106 = arith.addf %88, %105 : vector<1x256xf32>
    %c75 = arith.constant 75 : index
    %107 = memref.load %arg2[%c75] : memref<144xf32, #tpu.memory_space<smem>>
    %108 = vector.broadcast %107 : f32 to vector<1x256xf32>
    %109 = arith.mulf %98, %108 : vector<1x256xf32>
    %110 = arith.addf %92, %109 : vector<1x256xf32>
    %c111 = arith.constant 111 : index
    %111 = memref.load %arg2[%c111] : memref<144xf32, #tpu.memory_space<smem>>
    %112 = vector.broadcast %111 : f32 to vector<1x256xf32>
    %113 = arith.mulf %98, %112 : vector<1x256xf32>
    %114 = arith.addf %96, %113 : vector<1x256xf32>
    %115 = vector.extract_strided_slice %43 {offsets = [0, 17], sizes = [1, 256], strides = [1, 1]} : vector<1x290xf32> to vector<1x256xf32>
    %c4 = arith.constant 4 : index
    %116 = memref.load %arg2[%c4] : memref<144xf32, #tpu.memory_space<smem>>
    %117 = vector.broadcast %116 : f32 to vector<1x256xf32>
    %118 = arith.mulf %115, %117 : vector<1x256xf32>
    %119 = arith.addf %102, %118 : vector<1x256xf32>
    %c40 = arith.constant 40 : index
    %120 = memref.load %arg2[%c40] : memref<144xf32, #tpu.memory_space<smem>>
    %121 = vector.broadcast %120 : f32 to vector<1x256xf32>
    %122 = arith.mulf %115, %121 : vector<1x256xf32>
    %123 = arith.addf %106, %122 : vector<1x256xf32>
    %c76 = arith.constant 76 : index
    %124 = memref.load %arg2[%c76] : memref<144xf32, #tpu.memory_space<smem>>
    %125 = vector.broadcast %124 : f32 to vector<1x256xf32>
    %126 = arith.mulf %115, %125 : vector<1x256xf32>
    %127 = arith.addf %110, %126 : vector<1x256xf32>
    %c112 = arith.constant 112 : index
    %128 = memref.load %arg2[%c112] : memref<144xf32, #tpu.memory_space<smem>>
    %129 = vector.broadcast %128 : f32 to vector<1x256xf32>
    %130 = arith.mulf %115, %129 : vector<1x256xf32>
    %131 = arith.addf %114, %130 : vector<1x256xf32>
    %132 = vector.extract_strided_slice %43 {offsets = [0, 18], sizes = [1, 256], strides = [1, 1]} : vector<1x290xf32> to vector<1x256xf32>
    %133 = arith.mulf %132, %24 : vector<1x256xf32>
    %c5 = arith.constant 5 : index
    %134 = memref.load %arg2[%c5] : memref<144xf32, #tpu.memory_space<smem>>
    %135 = vector.broadcast %134 : f32 to vector<1x256xf32>
    %136 = arith.mulf %133, %135 : vector<1x256xf32>
    %137 = arith.addf %119, %136 : vector<1x256xf32>
    %c41 = arith.constant 41 : index
    %138 = memref.load %arg2[%c41] : memref<144xf32, #tpu.memory_space<smem>>
    %139 = vector.broadcast %138 : f32 to vector<1x256xf32>
    %140 = arith.mulf %133, %139 : vector<1x256xf32>
    %141 = arith.addf %123, %140 : vector<1x256xf32>
    %c77 = arith.constant 77 : index
    %142 = memref.load %arg2[%c77] : memref<144xf32, #tpu.memory_space<smem>>
    %143 = vector.broadcast %142 : f32 to vector<1x256xf32>
    %144 = arith.mulf %133, %143 : vector<1x256xf32>
    %145 = arith.addf %127, %144 : vector<1x256xf32>
    %c113 = arith.constant 113 : index
    %146 = memref.load %arg2[%c113] : memref<144xf32, #tpu.memory_space<smem>>
    %147 = vector.broadcast %146 : f32 to vector<1x256xf32>
    %148 = arith.mulf %133, %147 : vector<1x256xf32>
    %149 = arith.addf %131, %148 : vector<1x256xf32>
    %150 = vector.extract_strided_slice %43 {offsets = [0, 32], sizes = [1, 256], strides = [1, 1]} : vector<1x290xf32> to vector<1x256xf32>
    %151 = arith.mulf %150, %20 : vector<1x256xf32>
    %c6 = arith.constant 6 : index
    %152 = memref.load %arg2[%c6] : memref<144xf32, #tpu.memory_space<smem>>
    %153 = vector.broadcast %152 : f32 to vector<1x256xf32>
    %154 = arith.mulf %151, %153 : vector<1x256xf32>
    %155 = arith.addf %137, %154 : vector<1x256xf32>
    %c42 = arith.constant 42 : index
    %156 = memref.load %arg2[%c42] : memref<144xf32, #tpu.memory_space<smem>>
    %157 = vector.broadcast %156 : f32 to vector<1x256xf32>
    %158 = arith.mulf %151, %157 : vector<1x256xf32>
    %159 = arith.addf %141, %158 : vector<1x256xf32>
    %c78 = arith.constant 78 : index
    %160 = memref.load %arg2[%c78] : memref<144xf32, #tpu.memory_space<smem>>
    %161 = vector.broadcast %160 : f32 to vector<1x256xf32>
    %162 = arith.mulf %151, %161 : vector<1x256xf32>
    %163 = arith.addf %145, %162 : vector<1x256xf32>
    %c114 = arith.constant 114 : index
    %164 = memref.load %arg2[%c114] : memref<144xf32, #tpu.memory_space<smem>>
    %165 = vector.broadcast %164 : f32 to vector<1x256xf32>
    %166 = arith.mulf %151, %165 : vector<1x256xf32>
    %167 = arith.addf %149, %166 : vector<1x256xf32>
    %168 = vector.extract_strided_slice %43 {offsets = [0, 33], sizes = [1, 256], strides = [1, 1]} : vector<1x290xf32> to vector<1x256xf32>
    %c7 = arith.constant 7 : index
    %169 = memref.load %arg2[%c7] : memref<144xf32, #tpu.memory_space<smem>>
    %170 = vector.broadcast %169 : f32 to vector<1x256xf32>
    %171 = arith.mulf %168, %170 : vector<1x256xf32>
    %172 = arith.addf %155, %171 : vector<1x256xf32>
    %c43 = arith.constant 43 : index
    %173 = memref.load %arg2[%c43] : memref<144xf32, #tpu.memory_space<smem>>
    %174 = vector.broadcast %173 : f32 to vector<1x256xf32>
    %175 = arith.mulf %168, %174 : vector<1x256xf32>
    %176 = arith.addf %159, %175 : vector<1x256xf32>
    %c79 = arith.constant 79 : index
    %177 = memref.load %arg2[%c79] : memref<144xf32, #tpu.memory_space<smem>>
    %178 = vector.broadcast %177 : f32 to vector<1x256xf32>
    %179 = arith.mulf %168, %178 : vector<1x256xf32>
    %180 = arith.addf %163, %179 : vector<1x256xf32>
    %c115 = arith.constant 115 : index
    %181 = memref.load %arg2[%c115] : memref<144xf32, #tpu.memory_space<smem>>
    %182 = vector.broadcast %181 : f32 to vector<1x256xf32>
    %183 = arith.mulf %168, %182 : vector<1x256xf32>
    %184 = arith.addf %167, %183 : vector<1x256xf32>
    %185 = vector.extract_strided_slice %43 {offsets = [0, 34], sizes = [1, 256], strides = [1, 1]} : vector<1x290xf32> to vector<1x256xf32>
    %186 = arith.mulf %185, %24 : vector<1x256xf32>
    %c8 = arith.constant 8 : index
    %187 = memref.load %arg2[%c8] : memref<144xf32, #tpu.memory_space<smem>>
    %188 = vector.broadcast %187 : f32 to vector<1x256xf32>
    %189 = arith.mulf %186, %188 : vector<1x256xf32>
    %190 = arith.addf %172, %189 : vector<1x256xf32>
    %c44 = arith.constant 44 : index
    %191 = memref.load %arg2[%c44] : memref<144xf32, #tpu.memory_space<smem>>
    %192 = vector.broadcast %191 : f32 to vector<1x256xf32>
    %193 = arith.mulf %186, %192 : vector<1x256xf32>
    %194 = arith.addf %176, %193 : vector<1x256xf32>
    %c80 = arith.constant 80 : index
    %195 = memref.load %arg2[%c80] : memref<144xf32, #tpu.memory_space<smem>>
    %196 = vector.broadcast %195 : f32 to vector<1x256xf32>
    %197 = arith.mulf %186, %196 : vector<1x256xf32>
    %198 = arith.addf %180, %197 : vector<1x256xf32>
    %c116 = arith.constant 116 : index
    %199 = memref.load %arg2[%c116] : memref<144xf32, #tpu.memory_space<smem>>
    %200 = vector.broadcast %199 : f32 to vector<1x256xf32>
    %201 = arith.mulf %186, %200 : vector<1x256xf32>
    %202 = arith.addf %184, %201 : vector<1x256xf32>
    %203 = tpu.concatenate %34, %29, %34 in 1 : vector<1x17xf32>, vector<1x256xf32>, vector<1x17xf32> -> vector<1x290xf32>
    %204 = vector.extract_strided_slice %203 {offsets = [0, 0], sizes = [1, 256], strides = [1, 1]} : vector<1x290xf32> to vector<1x256xf32>
    %205 = arith.mulf %204, %20 : vector<1x256xf32>
    %c9 = arith.constant 9 : index
    %206 = memref.load %arg2[%c9] : memref<144xf32, #tpu.memory_space<smem>>
    %207 = vector.broadcast %206 : f32 to vector<1x256xf32>
    %208 = arith.mulf %205, %207 : vector<1x256xf32>
    %209 = arith.addf %190, %208 : vector<1x256xf32>
    %c45 = arith.constant 45 : index
    %210 = memref.load %arg2[%c45] : memref<144xf32, #tpu.memory_space<smem>>
    %211 = vector.broadcast %210 : f32 to vector<1x256xf32>
    %212 = arith.mulf %205, %211 : vector<1x256xf32>
    %213 = arith.addf %194, %212 : vector<1x256xf32>
    %c81 = arith.constant 81 : index
    %214 = memref.load %arg2[%c81] : memref<144xf32, #tpu.memory_space<smem>>
    %215 = vector.broadcast %214 : f32 to vector<1x256xf32>
    %216 = arith.mulf %205, %215 : vector<1x256xf32>
    %217 = arith.addf %198, %216 : vector<1x256xf32>
    %c117 = arith.constant 117 : index
    %218 = memref.load %arg2[%c117] : memref<144xf32, #tpu.memory_space<smem>>
    %219 = vector.broadcast %218 : f32 to vector<1x256xf32>
    %220 = arith.mulf %205, %219 : vector<1x256xf32>
    %221 = arith.addf %202, %220 : vector<1x256xf32>
    %222 = vector.extract_strided_slice %203 {offsets = [0, 1], sizes = [1, 256], strides = [1, 1]} : vector<1x290xf32> to vector<1x256xf32>
    %c10 = arith.constant 10 : index
    %223 = memref.load %arg2[%c10] : memref<144xf32, #tpu.memory_space<smem>>
    %224 = vector.broadcast %223 : f32 to vector<1x256xf32>
    %225 = arith.mulf %222, %224 : vector<1x256xf32>
    %226 = arith.addf %209, %225 : vector<1x256xf32>
    %c46 = arith.constant 46 : index
    %227 = memref.load %arg2[%c46] : memref<144xf32, #tpu.memory_space<smem>>
    %228 = vector.broadcast %227 : f32 to vector<1x256xf32>
    %229 = arith.mulf %222, %228 : vector<1x256xf32>
    %230 = arith.addf %213, %229 : vector<1x256xf32>
    %c82 = arith.constant 82 : index
    %231 = memref.load %arg2[%c82] : memref<144xf32, #tpu.memory_space<smem>>
    %232 = vector.broadcast %231 : f32 to vector<1x256xf32>
    %233 = arith.mulf %222, %232 : vector<1x256xf32>
    %234 = arith.addf %217, %233 : vector<1x256xf32>
    %c118 = arith.constant 118 : index
    %235 = memref.load %arg2[%c118] : memref<144xf32, #tpu.memory_space<smem>>
    %236 = vector.broadcast %235 : f32 to vector<1x256xf32>
    %237 = arith.mulf %222, %236 : vector<1x256xf32>
    %238 = arith.addf %221, %237 : vector<1x256xf32>
    %239 = vector.extract_strided_slice %203 {offsets = [0, 2], sizes = [1, 256], strides = [1, 1]} : vector<1x290xf32> to vector<1x256xf32>
    %240 = arith.mulf %239, %24 : vector<1x256xf32>
    %c11 = arith.constant 11 : index
    %241 = memref.load %arg2[%c11] : memref<144xf32, #tpu.memory_space<smem>>
    %242 = vector.broadcast %241 : f32 to vector<1x256xf32>
    %243 = arith.mulf %240, %242 : vector<1x256xf32>
    %244 = arith.addf %226, %243 : vector<1x256xf32>
    %c47 = arith.constant 47 : index
    %245 = memref.load %arg2[%c47] : memref<144xf32, #tpu.memory_space<smem>>
    %246 = vector.broadcast %245 : f32 to vector<1x256xf32>
    %247 = arith.mulf %240, %246 : vector<1x256xf32>
    %248 = arith.addf %230, %247 : vector<1x256xf32>
    %c83 = arith.constant 83 : index
    %249 = memref.load %arg2[%c83] : memref<144xf32, #tpu.memory_space<smem>>
    %250 = vector.broadcast %249 : f32 to vector<1x256xf32>
    %251 = arith.mulf %240, %250 : vector<1x256xf32>
    %252 = arith.addf %234, %251 : vector<1x256xf32>
    %c119 = arith.constant 119 : index
    %253 = memref.load %arg2[%c119] : memref<144xf32, #tpu.memory_space<smem>>
    %254 = vector.broadcast %253 : f32 to vector<1x256xf32>
    %255 = arith.mulf %240, %254 : vector<1x256xf32>
    %256 = arith.addf %238, %255 : vector<1x256xf32>
    %257 = vector.extract_strided_slice %203 {offsets = [0, 16], sizes = [1, 256], strides = [1, 1]} : vector<1x290xf32> to vector<1x256xf32>
    %258 = arith.mulf %257, %20 : vector<1x256xf32>
    %c12 = arith.constant 12 : index
    %259 = memref.load %arg2[%c12] : memref<144xf32, #tpu.memory_space<smem>>
    %260 = vector.broadcast %259 : f32 to vector<1x256xf32>
    %261 = arith.mulf %258, %260 : vector<1x256xf32>
    %262 = arith.addf %244, %261 : vector<1x256xf32>
    %c48 = arith.constant 48 : index
    %263 = memref.load %arg2[%c48] : memref<144xf32, #tpu.memory_space<smem>>
    %264 = vector.broadcast %263 : f32 to vector<1x256xf32>
    %265 = arith.mulf %258, %264 : vector<1x256xf32>
    %266 = arith.addf %248, %265 : vector<1x256xf32>
    %c84 = arith.constant 84 : index
    %267 = memref.load %arg2[%c84] : memref<144xf32, #tpu.memory_space<smem>>
    %268 = vector.broadcast %267 : f32 to vector<1x256xf32>
    %269 = arith.mulf %258, %268 : vector<1x256xf32>
    %270 = arith.addf %252, %269 : vector<1x256xf32>
    %c120 = arith.constant 120 : index
    %271 = memref.load %arg2[%c120] : memref<144xf32, #tpu.memory_space<smem>>
    %272 = vector.broadcast %271 : f32 to vector<1x256xf32>
    %273 = arith.mulf %258, %272 : vector<1x256xf32>
    %274 = arith.addf %256, %273 : vector<1x256xf32>
    %275 = vector.extract_strided_slice %203 {offsets = [0, 17], sizes = [1, 256], strides = [1, 1]} : vector<1x290xf32> to vector<1x256xf32>
    %c13 = arith.constant 13 : index
    %276 = memref.load %arg2[%c13] : memref<144xf32, #tpu.memory_space<smem>>
    %277 = vector.broadcast %276 : f32 to vector<1x256xf32>
    %278 = arith.mulf %275, %277 : vector<1x256xf32>
    %279 = arith.addf %262, %278 : vector<1x256xf32>
    %c49 = arith.constant 49 : index
    %280 = memref.load %arg2[%c49] : memref<144xf32, #tpu.memory_space<smem>>
    %281 = vector.broadcast %280 : f32 to vector<1x256xf32>
    %282 = arith.mulf %275, %281 : vector<1x256xf32>
    %283 = arith.addf %266, %282 : vector<1x256xf32>
    %c85 = arith.constant 85 : index
    %284 = memref.load %arg2[%c85] : memref<144xf32, #tpu.memory_space<smem>>
    %285 = vector.broadcast %284 : f32 to vector<1x256xf32>
    %286 = arith.mulf %275, %285 : vector<1x256xf32>
    %287 = arith.addf %270, %286 : vector<1x256xf32>
    %c121 = arith.constant 121 : index
    %288 = memref.load %arg2[%c121] : memref<144xf32, #tpu.memory_space<smem>>
    %289 = vector.broadcast %288 : f32 to vector<1x256xf32>
    %290 = arith.mulf %275, %289 : vector<1x256xf32>
    %291 = arith.addf %274, %290 : vector<1x256xf32>
    %292 = vector.extract_strided_slice %203 {offsets = [0, 18], sizes = [1, 256], strides = [1, 1]} : vector<1x290xf32> to vector<1x256xf32>
    %293 = arith.mulf %292, %24 : vector<1x256xf32>
    %c14 = arith.constant 14 : index
    %294 = memref.load %arg2[%c14] : memref<144xf32, #tpu.memory_space<smem>>
    %295 = vector.broadcast %294 : f32 to vector<1x256xf32>
    %296 = arith.mulf %293, %295 : vector<1x256xf32>
    %297 = arith.addf %279, %296 : vector<1x256xf32>
    %c50 = arith.constant 50 : index
    %298 = memref.load %arg2[%c50] : memref<144xf32, #tpu.memory_space<smem>>
    %299 = vector.broadcast %298 : f32 to vector<1x256xf32>
    %300 = arith.mulf %293, %299 : vector<1x256xf32>
    %301 = arith.addf %283, %300 : vector<1x256xf32>
    %c86 = arith.constant 86 : index
    %302 = memref.load %arg2[%c86] : memref<144xf32, #tpu.memory_space<smem>>
    %303 = vector.broadcast %302 : f32 to vector<1x256xf32>
    %304 = arith.mulf %293, %303 : vector<1x256xf32>
    %305 = arith.addf %287, %304 : vector<1x256xf32>
    %c122 = arith.constant 122 : index
    %306 = memref.load %arg2[%c122] : memref<144xf32, #tpu.memory_space<smem>>
    %307 = vector.broadcast %306 : f32 to vector<1x256xf32>
    %308 = arith.mulf %293, %307 : vector<1x256xf32>
    %309 = arith.addf %291, %308 : vector<1x256xf32>
    %310 = vector.extract_strided_slice %203 {offsets = [0, 32], sizes = [1, 256], strides = [1, 1]} : vector<1x290xf32> to vector<1x256xf32>
    %311 = arith.mulf %310, %20 : vector<1x256xf32>
    %c15 = arith.constant 15 : index
    %312 = memref.load %arg2[%c15] : memref<144xf32, #tpu.memory_space<smem>>
    %313 = vector.broadcast %312 : f32 to vector<1x256xf32>
    %314 = arith.mulf %311, %313 : vector<1x256xf32>
    %315 = arith.addf %297, %314 : vector<1x256xf32>
    %c51 = arith.constant 51 : index
    %316 = memref.load %arg2[%c51] : memref<144xf32, #tpu.memory_space<smem>>
    %317 = vector.broadcast %316 : f32 to vector<1x256xf32>
    %318 = arith.mulf %311, %317 : vector<1x256xf32>
    %319 = arith.addf %301, %318 : vector<1x256xf32>
    %c87 = arith.constant 87 : index
    %320 = memref.load %arg2[%c87] : memref<144xf32, #tpu.memory_space<smem>>
    %321 = vector.broadcast %320 : f32 to vector<1x256xf32>
    %322 = arith.mulf %311, %321 : vector<1x256xf32>
    %323 = arith.addf %305, %322 : vector<1x256xf32>
    %c123 = arith.constant 123 : index
    %324 = memref.load %arg2[%c123] : memref<144xf32, #tpu.memory_space<smem>>
    %325 = vector.broadcast %324 : f32 to vector<1x256xf32>
    %326 = arith.mulf %311, %325 : vector<1x256xf32>
    %327 = arith.addf %309, %326 : vector<1x256xf32>
    %328 = vector.extract_strided_slice %203 {offsets = [0, 33], sizes = [1, 256], strides = [1, 1]} : vector<1x290xf32> to vector<1x256xf32>
    %c16 = arith.constant 16 : index
    %329 = memref.load %arg2[%c16] : memref<144xf32, #tpu.memory_space<smem>>
    %330 = vector.broadcast %329 : f32 to vector<1x256xf32>
    %331 = arith.mulf %328, %330 : vector<1x256xf32>
    %332 = arith.addf %315, %331 : vector<1x256xf32>
    %c52 = arith.constant 52 : index
    %333 = memref.load %arg2[%c52] : memref<144xf32, #tpu.memory_space<smem>>
    %334 = vector.broadcast %333 : f32 to vector<1x256xf32>
    %335 = arith.mulf %328, %334 : vector<1x256xf32>
    %336 = arith.addf %319, %335 : vector<1x256xf32>
    %c88 = arith.constant 88 : index
    %337 = memref.load %arg2[%c88] : memref<144xf32, #tpu.memory_space<smem>>
    %338 = vector.broadcast %337 : f32 to vector<1x256xf32>
    %339 = arith.mulf %328, %338 : vector<1x256xf32>
    %340 = arith.addf %323, %339 : vector<1x256xf32>
    %c124 = arith.constant 124 : index
    %341 = memref.load %arg2[%c124] : memref<144xf32, #tpu.memory_space<smem>>
    %342 = vector.broadcast %341 : f32 to vector<1x256xf32>
    %343 = arith.mulf %328, %342 : vector<1x256xf32>
    %344 = arith.addf %327, %343 : vector<1x256xf32>
    %345 = vector.extract_strided_slice %203 {offsets = [0, 34], sizes = [1, 256], strides = [1, 1]} : vector<1x290xf32> to vector<1x256xf32>
    %346 = arith.mulf %345, %24 : vector<1x256xf32>
    %c17 = arith.constant 17 : index
    %347 = memref.load %arg2[%c17] : memref<144xf32, #tpu.memory_space<smem>>
    %348 = vector.broadcast %347 : f32 to vector<1x256xf32>
    %349 = arith.mulf %346, %348 : vector<1x256xf32>
    %350 = arith.addf %332, %349 : vector<1x256xf32>
    %c53 = arith.constant 53 : index
    %351 = memref.load %arg2[%c53] : memref<144xf32, #tpu.memory_space<smem>>
    %352 = vector.broadcast %351 : f32 to vector<1x256xf32>
    %353 = arith.mulf %346, %352 : vector<1x256xf32>
    %354 = arith.addf %336, %353 : vector<1x256xf32>
    %c89 = arith.constant 89 : index
    %355 = memref.load %arg2[%c89] : memref<144xf32, #tpu.memory_space<smem>>
    %356 = vector.broadcast %355 : f32 to vector<1x256xf32>
    %357 = arith.mulf %346, %356 : vector<1x256xf32>
    %358 = arith.addf %340, %357 : vector<1x256xf32>
    %c125 = arith.constant 125 : index
    %359 = memref.load %arg2[%c125] : memref<144xf32, #tpu.memory_space<smem>>
    %360 = vector.broadcast %359 : f32 to vector<1x256xf32>
    %361 = arith.mulf %346, %360 : vector<1x256xf32>
    %362 = arith.addf %344, %361 : vector<1x256xf32>
    %363 = tpu.concatenate %34, %31, %34 in 1 : vector<1x17xf32>, vector<1x256xf32>, vector<1x17xf32> -> vector<1x290xf32>
    %364 = vector.extract_strided_slice %363 {offsets = [0, 0], sizes = [1, 256], strides = [1, 1]} : vector<1x290xf32> to vector<1x256xf32>
    %365 = arith.mulf %364, %20 : vector<1x256xf32>
    %c18 = arith.constant 18 : index
    %366 = memref.load %arg2[%c18] : memref<144xf32, #tpu.memory_space<smem>>
    %367 = vector.broadcast %366 : f32 to vector<1x256xf32>
    %368 = arith.mulf %365, %367 : vector<1x256xf32>
    %369 = arith.addf %350, %368 : vector<1x256xf32>
    %c54 = arith.constant 54 : index
    %370 = memref.load %arg2[%c54] : memref<144xf32, #tpu.memory_space<smem>>
    %371 = vector.broadcast %370 : f32 to vector<1x256xf32>
    %372 = arith.mulf %365, %371 : vector<1x256xf32>
    %373 = arith.addf %354, %372 : vector<1x256xf32>
    %c90 = arith.constant 90 : index
    %374 = memref.load %arg2[%c90] : memref<144xf32, #tpu.memory_space<smem>>
    %375 = vector.broadcast %374 : f32 to vector<1x256xf32>
    %376 = arith.mulf %365, %375 : vector<1x256xf32>
    %377 = arith.addf %358, %376 : vector<1x256xf32>
    %c126 = arith.constant 126 : index
    %378 = memref.load %arg2[%c126] : memref<144xf32, #tpu.memory_space<smem>>
    %379 = vector.broadcast %378 : f32 to vector<1x256xf32>
    %380 = arith.mulf %365, %379 : vector<1x256xf32>
    %381 = arith.addf %362, %380 : vector<1x256xf32>
    %382 = vector.extract_strided_slice %363 {offsets = [0, 1], sizes = [1, 256], strides = [1, 1]} : vector<1x290xf32> to vector<1x256xf32>
    %c19 = arith.constant 19 : index
    %383 = memref.load %arg2[%c19] : memref<144xf32, #tpu.memory_space<smem>>
    %384 = vector.broadcast %383 : f32 to vector<1x256xf32>
    %385 = arith.mulf %382, %384 : vector<1x256xf32>
    %386 = arith.addf %369, %385 : vector<1x256xf32>
    %c55 = arith.constant 55 : index
    %387 = memref.load %arg2[%c55] : memref<144xf32, #tpu.memory_space<smem>>
    %388 = vector.broadcast %387 : f32 to vector<1x256xf32>
    %389 = arith.mulf %382, %388 : vector<1x256xf32>
    %390 = arith.addf %373, %389 : vector<1x256xf32>
    %c91 = arith.constant 91 : index
    %391 = memref.load %arg2[%c91] : memref<144xf32, #tpu.memory_space<smem>>
    %392 = vector.broadcast %391 : f32 to vector<1x256xf32>
    %393 = arith.mulf %382, %392 : vector<1x256xf32>
    %394 = arith.addf %377, %393 : vector<1x256xf32>
    %c127 = arith.constant 127 : index
    %395 = memref.load %arg2[%c127] : memref<144xf32, #tpu.memory_space<smem>>
    %396 = vector.broadcast %395 : f32 to vector<1x256xf32>
    %397 = arith.mulf %382, %396 : vector<1x256xf32>
    %398 = arith.addf %381, %397 : vector<1x256xf32>
    %399 = vector.extract_strided_slice %363 {offsets = [0, 2], sizes = [1, 256], strides = [1, 1]} : vector<1x290xf32> to vector<1x256xf32>
    %400 = arith.mulf %399, %24 : vector<1x256xf32>
    %c20 = arith.constant 20 : index
    %401 = memref.load %arg2[%c20] : memref<144xf32, #tpu.memory_space<smem>>
    %402 = vector.broadcast %401 : f32 to vector<1x256xf32>
    %403 = arith.mulf %400, %402 : vector<1x256xf32>
    %404 = arith.addf %386, %403 : vector<1x256xf32>
    %c56 = arith.constant 56 : index
    %405 = memref.load %arg2[%c56] : memref<144xf32, #tpu.memory_space<smem>>
    %406 = vector.broadcast %405 : f32 to vector<1x256xf32>
    %407 = arith.mulf %400, %406 : vector<1x256xf32>
    %408 = arith.addf %390, %407 : vector<1x256xf32>
    %c92 = arith.constant 92 : index
    %409 = memref.load %arg2[%c92] : memref<144xf32, #tpu.memory_space<smem>>
    %410 = vector.broadcast %409 : f32 to vector<1x256xf32>
    %411 = arith.mulf %400, %410 : vector<1x256xf32>
    %412 = arith.addf %394, %411 : vector<1x256xf32>
    %c128 = arith.constant 128 : index
    %413 = memref.load %arg2[%c128] : memref<144xf32, #tpu.memory_space<smem>>
    %414 = vector.broadcast %413 : f32 to vector<1x256xf32>
    %415 = arith.mulf %400, %414 : vector<1x256xf32>
    %416 = arith.addf %398, %415 : vector<1x256xf32>
    %417 = vector.extract_strided_slice %363 {offsets = [0, 16], sizes = [1, 256], strides = [1, 1]} : vector<1x290xf32> to vector<1x256xf32>
    %418 = arith.mulf %417, %20 : vector<1x256xf32>
    %c21 = arith.constant 21 : index
    %419 = memref.load %arg2[%c21] : memref<144xf32, #tpu.memory_space<smem>>
    %420 = vector.broadcast %419 : f32 to vector<1x256xf32>
    %421 = arith.mulf %418, %420 : vector<1x256xf32>
    %422 = arith.addf %404, %421 : vector<1x256xf32>
    %c57 = arith.constant 57 : index
    %423 = memref.load %arg2[%c57] : memref<144xf32, #tpu.memory_space<smem>>
    %424 = vector.broadcast %423 : f32 to vector<1x256xf32>
    %425 = arith.mulf %418, %424 : vector<1x256xf32>
    %426 = arith.addf %408, %425 : vector<1x256xf32>
    %c93 = arith.constant 93 : index
    %427 = memref.load %arg2[%c93] : memref<144xf32, #tpu.memory_space<smem>>
    %428 = vector.broadcast %427 : f32 to vector<1x256xf32>
    %429 = arith.mulf %418, %428 : vector<1x256xf32>
    %430 = arith.addf %412, %429 : vector<1x256xf32>
    %c129 = arith.constant 129 : index
    %431 = memref.load %arg2[%c129] : memref<144xf32, #tpu.memory_space<smem>>
    %432 = vector.broadcast %431 : f32 to vector<1x256xf32>
    %433 = arith.mulf %418, %432 : vector<1x256xf32>
    %434 = arith.addf %416, %433 : vector<1x256xf32>
    %435 = vector.extract_strided_slice %363 {offsets = [0, 17], sizes = [1, 256], strides = [1, 1]} : vector<1x290xf32> to vector<1x256xf32>
    %c22 = arith.constant 22 : index
    %436 = memref.load %arg2[%c22] : memref<144xf32, #tpu.memory_space<smem>>
    %437 = vector.broadcast %436 : f32 to vector<1x256xf32>
    %438 = arith.mulf %435, %437 : vector<1x256xf32>
    %439 = arith.addf %422, %438 : vector<1x256xf32>
    %c58 = arith.constant 58 : index
    %440 = memref.load %arg2[%c58] : memref<144xf32, #tpu.memory_space<smem>>
    %441 = vector.broadcast %440 : f32 to vector<1x256xf32>
    %442 = arith.mulf %435, %441 : vector<1x256xf32>
    %443 = arith.addf %426, %442 : vector<1x256xf32>
    %c94 = arith.constant 94 : index
    %444 = memref.load %arg2[%c94] : memref<144xf32, #tpu.memory_space<smem>>
    %445 = vector.broadcast %444 : f32 to vector<1x256xf32>
    %446 = arith.mulf %435, %445 : vector<1x256xf32>
    %447 = arith.addf %430, %446 : vector<1x256xf32>
    %c130 = arith.constant 130 : index
    %448 = memref.load %arg2[%c130] : memref<144xf32, #tpu.memory_space<smem>>
    %449 = vector.broadcast %448 : f32 to vector<1x256xf32>
    %450 = arith.mulf %435, %449 : vector<1x256xf32>
    %451 = arith.addf %434, %450 : vector<1x256xf32>
    %452 = vector.extract_strided_slice %363 {offsets = [0, 18], sizes = [1, 256], strides = [1, 1]} : vector<1x290xf32> to vector<1x256xf32>
    %453 = arith.mulf %452, %24 : vector<1x256xf32>
    %c23 = arith.constant 23 : index
    %454 = memref.load %arg2[%c23] : memref<144xf32, #tpu.memory_space<smem>>
    %455 = vector.broadcast %454 : f32 to vector<1x256xf32>
    %456 = arith.mulf %453, %455 : vector<1x256xf32>
    %457 = arith.addf %439, %456 : vector<1x256xf32>
    %c59 = arith.constant 59 : index
    %458 = memref.load %arg2[%c59] : memref<144xf32, #tpu.memory_space<smem>>
    %459 = vector.broadcast %458 : f32 to vector<1x256xf32>
    %460 = arith.mulf %453, %459 : vector<1x256xf32>
    %461 = arith.addf %443, %460 : vector<1x256xf32>
    %c95 = arith.constant 95 : index
    %462 = memref.load %arg2[%c95] : memref<144xf32, #tpu.memory_space<smem>>
    %463 = vector.broadcast %462 : f32 to vector<1x256xf32>
    %464 = arith.mulf %453, %463 : vector<1x256xf32>
    %465 = arith.addf %447, %464 : vector<1x256xf32>
    %c131 = arith.constant 131 : index
    %466 = memref.load %arg2[%c131] : memref<144xf32, #tpu.memory_space<smem>>
    %467 = vector.broadcast %466 : f32 to vector<1x256xf32>
    %468 = arith.mulf %453, %467 : vector<1x256xf32>
    %469 = arith.addf %451, %468 : vector<1x256xf32>
    %470 = vector.extract_strided_slice %363 {offsets = [0, 32], sizes = [1, 256], strides = [1, 1]} : vector<1x290xf32> to vector<1x256xf32>
    %471 = arith.mulf %470, %20 : vector<1x256xf32>
    %c24 = arith.constant 24 : index
    %472 = memref.load %arg2[%c24] : memref<144xf32, #tpu.memory_space<smem>>
    %473 = vector.broadcast %472 : f32 to vector<1x256xf32>
    %474 = arith.mulf %471, %473 : vector<1x256xf32>
    %475 = arith.addf %457, %474 : vector<1x256xf32>
    %c60 = arith.constant 60 : index
    %476 = memref.load %arg2[%c60] : memref<144xf32, #tpu.memory_space<smem>>
    %477 = vector.broadcast %476 : f32 to vector<1x256xf32>
    %478 = arith.mulf %471, %477 : vector<1x256xf32>
    %479 = arith.addf %461, %478 : vector<1x256xf32>
    %c96 = arith.constant 96 : index
    %480 = memref.load %arg2[%c96] : memref<144xf32, #tpu.memory_space<smem>>
    %481 = vector.broadcast %480 : f32 to vector<1x256xf32>
    %482 = arith.mulf %471, %481 : vector<1x256xf32>
    %483 = arith.addf %465, %482 : vector<1x256xf32>
    %c132 = arith.constant 132 : index
    %484 = memref.load %arg2[%c132] : memref<144xf32, #tpu.memory_space<smem>>
    %485 = vector.broadcast %484 : f32 to vector<1x256xf32>
    %486 = arith.mulf %471, %485 : vector<1x256xf32>
    %487 = arith.addf %469, %486 : vector<1x256xf32>
    %488 = vector.extract_strided_slice %363 {offsets = [0, 33], sizes = [1, 256], strides = [1, 1]} : vector<1x290xf32> to vector<1x256xf32>
    %c25 = arith.constant 25 : index
    %489 = memref.load %arg2[%c25] : memref<144xf32, #tpu.memory_space<smem>>
    %490 = vector.broadcast %489 : f32 to vector<1x256xf32>
    %491 = arith.mulf %488, %490 : vector<1x256xf32>
    %492 = arith.addf %475, %491 : vector<1x256xf32>
    %c61 = arith.constant 61 : index
    %493 = memref.load %arg2[%c61] : memref<144xf32, #tpu.memory_space<smem>>
    %494 = vector.broadcast %493 : f32 to vector<1x256xf32>
    %495 = arith.mulf %488, %494 : vector<1x256xf32>
    %496 = arith.addf %479, %495 : vector<1x256xf32>
    %c97 = arith.constant 97 : index
    %497 = memref.load %arg2[%c97] : memref<144xf32, #tpu.memory_space<smem>>
    %498 = vector.broadcast %497 : f32 to vector<1x256xf32>
    %499 = arith.mulf %488, %498 : vector<1x256xf32>
    %500 = arith.addf %483, %499 : vector<1x256xf32>
    %c133 = arith.constant 133 : index
    %501 = memref.load %arg2[%c133] : memref<144xf32, #tpu.memory_space<smem>>
    %502 = vector.broadcast %501 : f32 to vector<1x256xf32>
    %503 = arith.mulf %488, %502 : vector<1x256xf32>
    %504 = arith.addf %487, %503 : vector<1x256xf32>
    %505 = vector.extract_strided_slice %363 {offsets = [0, 34], sizes = [1, 256], strides = [1, 1]} : vector<1x290xf32> to vector<1x256xf32>
    %506 = arith.mulf %505, %24 : vector<1x256xf32>
    %c26 = arith.constant 26 : index
    %507 = memref.load %arg2[%c26] : memref<144xf32, #tpu.memory_space<smem>>
    %508 = vector.broadcast %507 : f32 to vector<1x256xf32>
    %509 = arith.mulf %506, %508 : vector<1x256xf32>
    %510 = arith.addf %492, %509 : vector<1x256xf32>
    %c62 = arith.constant 62 : index
    %511 = memref.load %arg2[%c62] : memref<144xf32, #tpu.memory_space<smem>>
    %512 = vector.broadcast %511 : f32 to vector<1x256xf32>
    %513 = arith.mulf %506, %512 : vector<1x256xf32>
    %514 = arith.addf %496, %513 : vector<1x256xf32>
    %c98 = arith.constant 98 : index
    %515 = memref.load %arg2[%c98] : memref<144xf32, #tpu.memory_space<smem>>
    %516 = vector.broadcast %515 : f32 to vector<1x256xf32>
    %517 = arith.mulf %506, %516 : vector<1x256xf32>
    %518 = arith.addf %500, %517 : vector<1x256xf32>
    %c134 = arith.constant 134 : index
    %519 = memref.load %arg2[%c134] : memref<144xf32, #tpu.memory_space<smem>>
    %520 = vector.broadcast %519 : f32 to vector<1x256xf32>
    %521 = arith.mulf %506, %520 : vector<1x256xf32>
    %522 = arith.addf %504, %521 : vector<1x256xf32>
    %523 = tpu.concatenate %34, %33, %34 in 1 : vector<1x17xf32>, vector<1x256xf32>, vector<1x17xf32> -> vector<1x290xf32>
    %524 = vector.extract_strided_slice %523 {offsets = [0, 0], sizes = [1, 256], strides = [1, 1]} : vector<1x290xf32> to vector<1x256xf32>
    %525 = arith.mulf %524, %20 : vector<1x256xf32>
    %c27 = arith.constant 27 : index
    %526 = memref.load %arg2[%c27] : memref<144xf32, #tpu.memory_space<smem>>
    %527 = vector.broadcast %526 : f32 to vector<1x256xf32>
    %528 = arith.mulf %525, %527 : vector<1x256xf32>
    %529 = arith.addf %510, %528 : vector<1x256xf32>
    %c63 = arith.constant 63 : index
    %530 = memref.load %arg2[%c63] : memref<144xf32, #tpu.memory_space<smem>>
    %531 = vector.broadcast %530 : f32 to vector<1x256xf32>
    %532 = arith.mulf %525, %531 : vector<1x256xf32>
    %533 = arith.addf %514, %532 : vector<1x256xf32>
    %c99 = arith.constant 99 : index
    %534 = memref.load %arg2[%c99] : memref<144xf32, #tpu.memory_space<smem>>
    %535 = vector.broadcast %534 : f32 to vector<1x256xf32>
    %536 = arith.mulf %525, %535 : vector<1x256xf32>
    %537 = arith.addf %518, %536 : vector<1x256xf32>
    %c135 = arith.constant 135 : index
    %538 = memref.load %arg2[%c135] : memref<144xf32, #tpu.memory_space<smem>>
    %539 = vector.broadcast %538 : f32 to vector<1x256xf32>
    %540 = arith.mulf %525, %539 : vector<1x256xf32>
    %541 = arith.addf %522, %540 : vector<1x256xf32>
    %542 = vector.extract_strided_slice %523 {offsets = [0, 1], sizes = [1, 256], strides = [1, 1]} : vector<1x290xf32> to vector<1x256xf32>
    %c28 = arith.constant 28 : index
    %543 = memref.load %arg2[%c28] : memref<144xf32, #tpu.memory_space<smem>>
    %544 = vector.broadcast %543 : f32 to vector<1x256xf32>
    %545 = arith.mulf %542, %544 : vector<1x256xf32>
    %546 = arith.addf %529, %545 : vector<1x256xf32>
    %c64 = arith.constant 64 : index
    %547 = memref.load %arg2[%c64] : memref<144xf32, #tpu.memory_space<smem>>
    %548 = vector.broadcast %547 : f32 to vector<1x256xf32>
    %549 = arith.mulf %542, %548 : vector<1x256xf32>
    %550 = arith.addf %533, %549 : vector<1x256xf32>
    %c100 = arith.constant 100 : index
    %551 = memref.load %arg2[%c100] : memref<144xf32, #tpu.memory_space<smem>>
    %552 = vector.broadcast %551 : f32 to vector<1x256xf32>
    %553 = arith.mulf %542, %552 : vector<1x256xf32>
    %554 = arith.addf %537, %553 : vector<1x256xf32>
    %c136 = arith.constant 136 : index
    %555 = memref.load %arg2[%c136] : memref<144xf32, #tpu.memory_space<smem>>
    %556 = vector.broadcast %555 : f32 to vector<1x256xf32>
    %557 = arith.mulf %542, %556 : vector<1x256xf32>
    %558 = arith.addf %541, %557 : vector<1x256xf32>
    %559 = vector.extract_strided_slice %523 {offsets = [0, 2], sizes = [1, 256], strides = [1, 1]} : vector<1x290xf32> to vector<1x256xf32>
    %560 = arith.mulf %559, %24 : vector<1x256xf32>
    %c29 = arith.constant 29 : index
    %561 = memref.load %arg2[%c29] : memref<144xf32, #tpu.memory_space<smem>>
    %562 = vector.broadcast %561 : f32 to vector<1x256xf32>
    %563 = arith.mulf %560, %562 : vector<1x256xf32>
    %564 = arith.addf %546, %563 : vector<1x256xf32>
    %c65 = arith.constant 65 : index
    %565 = memref.load %arg2[%c65] : memref<144xf32, #tpu.memory_space<smem>>
    %566 = vector.broadcast %565 : f32 to vector<1x256xf32>
    %567 = arith.mulf %560, %566 : vector<1x256xf32>
    %568 = arith.addf %550, %567 : vector<1x256xf32>
    %c101 = arith.constant 101 : index
    %569 = memref.load %arg2[%c101] : memref<144xf32, #tpu.memory_space<smem>>
    %570 = vector.broadcast %569 : f32 to vector<1x256xf32>
    %571 = arith.mulf %560, %570 : vector<1x256xf32>
    %572 = arith.addf %554, %571 : vector<1x256xf32>
    %c137 = arith.constant 137 : index
    %573 = memref.load %arg2[%c137] : memref<144xf32, #tpu.memory_space<smem>>
    %574 = vector.broadcast %573 : f32 to vector<1x256xf32>
    %575 = arith.mulf %560, %574 : vector<1x256xf32>
    %576 = arith.addf %558, %575 : vector<1x256xf32>
    %577 = vector.extract_strided_slice %523 {offsets = [0, 16], sizes = [1, 256], strides = [1, 1]} : vector<1x290xf32> to vector<1x256xf32>
    %578 = arith.mulf %577, %20 : vector<1x256xf32>
    %c30 = arith.constant 30 : index
    %579 = memref.load %arg2[%c30] : memref<144xf32, #tpu.memory_space<smem>>
    %580 = vector.broadcast %579 : f32 to vector<1x256xf32>
    %581 = arith.mulf %578, %580 : vector<1x256xf32>
    %582 = arith.addf %564, %581 : vector<1x256xf32>
    %c66 = arith.constant 66 : index
    %583 = memref.load %arg2[%c66] : memref<144xf32, #tpu.memory_space<smem>>
    %584 = vector.broadcast %583 : f32 to vector<1x256xf32>
    %585 = arith.mulf %578, %584 : vector<1x256xf32>
    %586 = arith.addf %568, %585 : vector<1x256xf32>
    %c102 = arith.constant 102 : index
    %587 = memref.load %arg2[%c102] : memref<144xf32, #tpu.memory_space<smem>>
    %588 = vector.broadcast %587 : f32 to vector<1x256xf32>
    %589 = arith.mulf %578, %588 : vector<1x256xf32>
    %590 = arith.addf %572, %589 : vector<1x256xf32>
    %c138 = arith.constant 138 : index
    %591 = memref.load %arg2[%c138] : memref<144xf32, #tpu.memory_space<smem>>
    %592 = vector.broadcast %591 : f32 to vector<1x256xf32>
    %593 = arith.mulf %578, %592 : vector<1x256xf32>
    %594 = arith.addf %576, %593 : vector<1x256xf32>
    %595 = vector.extract_strided_slice %523 {offsets = [0, 17], sizes = [1, 256], strides = [1, 1]} : vector<1x290xf32> to vector<1x256xf32>
    %c31 = arith.constant 31 : index
    %596 = memref.load %arg2[%c31] : memref<144xf32, #tpu.memory_space<smem>>
    %597 = vector.broadcast %596 : f32 to vector<1x256xf32>
    %598 = arith.mulf %595, %597 : vector<1x256xf32>
    %599 = arith.addf %582, %598 : vector<1x256xf32>
    %c67 = arith.constant 67 : index
    %600 = memref.load %arg2[%c67] : memref<144xf32, #tpu.memory_space<smem>>
    %601 = vector.broadcast %600 : f32 to vector<1x256xf32>
    %602 = arith.mulf %595, %601 : vector<1x256xf32>
    %603 = arith.addf %586, %602 : vector<1x256xf32>
    %c103 = arith.constant 103 : index
    %604 = memref.load %arg2[%c103] : memref<144xf32, #tpu.memory_space<smem>>
    %605 = vector.broadcast %604 : f32 to vector<1x256xf32>
    %606 = arith.mulf %595, %605 : vector<1x256xf32>
    %607 = arith.addf %590, %606 : vector<1x256xf32>
    %c139 = arith.constant 139 : index
    %608 = memref.load %arg2[%c139] : memref<144xf32, #tpu.memory_space<smem>>
    %609 = vector.broadcast %608 : f32 to vector<1x256xf32>
    %610 = arith.mulf %595, %609 : vector<1x256xf32>
    %611 = arith.addf %594, %610 : vector<1x256xf32>
    %612 = vector.extract_strided_slice %523 {offsets = [0, 18], sizes = [1, 256], strides = [1, 1]} : vector<1x290xf32> to vector<1x256xf32>
    %613 = arith.mulf %612, %24 : vector<1x256xf32>
    %c32 = arith.constant 32 : index
    %614 = memref.load %arg2[%c32] : memref<144xf32, #tpu.memory_space<smem>>
    %615 = vector.broadcast %614 : f32 to vector<1x256xf32>
    %616 = arith.mulf %613, %615 : vector<1x256xf32>
    %617 = arith.addf %599, %616 : vector<1x256xf32>
    %c68 = arith.constant 68 : index
    %618 = memref.load %arg2[%c68] : memref<144xf32, #tpu.memory_space<smem>>
    %619 = vector.broadcast %618 : f32 to vector<1x256xf32>
    %620 = arith.mulf %613, %619 : vector<1x256xf32>
    %621 = arith.addf %603, %620 : vector<1x256xf32>
    %c104 = arith.constant 104 : index
    %622 = memref.load %arg2[%c104] : memref<144xf32, #tpu.memory_space<smem>>
    %623 = vector.broadcast %622 : f32 to vector<1x256xf32>
    %624 = arith.mulf %613, %623 : vector<1x256xf32>
    %625 = arith.addf %607, %624 : vector<1x256xf32>
    %c140 = arith.constant 140 : index
    %626 = memref.load %arg2[%c140] : memref<144xf32, #tpu.memory_space<smem>>
    %627 = vector.broadcast %626 : f32 to vector<1x256xf32>
    %628 = arith.mulf %613, %627 : vector<1x256xf32>
    %629 = arith.addf %611, %628 : vector<1x256xf32>
    %630 = vector.extract_strided_slice %523 {offsets = [0, 32], sizes = [1, 256], strides = [1, 1]} : vector<1x290xf32> to vector<1x256xf32>
    %631 = arith.mulf %630, %20 : vector<1x256xf32>
    %c33 = arith.constant 33 : index
    %632 = memref.load %arg2[%c33] : memref<144xf32, #tpu.memory_space<smem>>
    %633 = vector.broadcast %632 : f32 to vector<1x256xf32>
    %634 = arith.mulf %631, %633 : vector<1x256xf32>
    %635 = arith.addf %617, %634 : vector<1x256xf32>
    %c69 = arith.constant 69 : index
    %636 = memref.load %arg2[%c69] : memref<144xf32, #tpu.memory_space<smem>>
    %637 = vector.broadcast %636 : f32 to vector<1x256xf32>
    %638 = arith.mulf %631, %637 : vector<1x256xf32>
    %639 = arith.addf %621, %638 : vector<1x256xf32>
    %c105 = arith.constant 105 : index
    %640 = memref.load %arg2[%c105] : memref<144xf32, #tpu.memory_space<smem>>
    %641 = vector.broadcast %640 : f32 to vector<1x256xf32>
    %642 = arith.mulf %631, %641 : vector<1x256xf32>
    %643 = arith.addf %625, %642 : vector<1x256xf32>
    %c141 = arith.constant 141 : index
    %644 = memref.load %arg2[%c141] : memref<144xf32, #tpu.memory_space<smem>>
    %645 = vector.broadcast %644 : f32 to vector<1x256xf32>
    %646 = arith.mulf %631, %645 : vector<1x256xf32>
    %647 = arith.addf %629, %646 : vector<1x256xf32>
    %648 = vector.extract_strided_slice %523 {offsets = [0, 33], sizes = [1, 256], strides = [1, 1]} : vector<1x290xf32> to vector<1x256xf32>
    %c34 = arith.constant 34 : index
    %649 = memref.load %arg2[%c34] : memref<144xf32, #tpu.memory_space<smem>>
    %650 = vector.broadcast %649 : f32 to vector<1x256xf32>
    %651 = arith.mulf %648, %650 : vector<1x256xf32>
    %652 = arith.addf %635, %651 : vector<1x256xf32>
    %c70 = arith.constant 70 : index
    %653 = memref.load %arg2[%c70] : memref<144xf32, #tpu.memory_space<smem>>
    %654 = vector.broadcast %653 : f32 to vector<1x256xf32>
    %655 = arith.mulf %648, %654 : vector<1x256xf32>
    %656 = arith.addf %639, %655 : vector<1x256xf32>
    %c106 = arith.constant 106 : index
    %657 = memref.load %arg2[%c106] : memref<144xf32, #tpu.memory_space<smem>>
    %658 = vector.broadcast %657 : f32 to vector<1x256xf32>
    %659 = arith.mulf %648, %658 : vector<1x256xf32>
    %660 = arith.addf %643, %659 : vector<1x256xf32>
    %c142 = arith.constant 142 : index
    %661 = memref.load %arg2[%c142] : memref<144xf32, #tpu.memory_space<smem>>
    %662 = vector.broadcast %661 : f32 to vector<1x256xf32>
    %663 = arith.mulf %648, %662 : vector<1x256xf32>
    %664 = arith.addf %647, %663 : vector<1x256xf32>
    %665 = vector.extract_strided_slice %523 {offsets = [0, 34], sizes = [1, 256], strides = [1, 1]} : vector<1x290xf32> to vector<1x256xf32>
    %666 = arith.mulf %665, %24 : vector<1x256xf32>
    %c35 = arith.constant 35 : index
    %667 = memref.load %arg2[%c35] : memref<144xf32, #tpu.memory_space<smem>>
    %668 = vector.broadcast %667 : f32 to vector<1x256xf32>
    %669 = arith.mulf %666, %668 : vector<1x256xf32>
    %670 = arith.addf %652, %669 : vector<1x256xf32>
    %c71 = arith.constant 71 : index
    %671 = memref.load %arg2[%c71] : memref<144xf32, #tpu.memory_space<smem>>
    %672 = vector.broadcast %671 : f32 to vector<1x256xf32>
    %673 = arith.mulf %666, %672 : vector<1x256xf32>
    %674 = arith.addf %656, %673 : vector<1x256xf32>
    %c107 = arith.constant 107 : index
    %675 = memref.load %arg2[%c107] : memref<144xf32, #tpu.memory_space<smem>>
    %676 = vector.broadcast %675 : f32 to vector<1x256xf32>
    %677 = arith.mulf %666, %676 : vector<1x256xf32>
    %678 = arith.addf %660, %677 : vector<1x256xf32>
    %c143 = arith.constant 143 : index
    %679 = memref.load %arg2[%c143] : memref<144xf32, #tpu.memory_space<smem>>
    %680 = vector.broadcast %679 : f32 to vector<1x256xf32>
    %681 = arith.mulf %666, %680 : vector<1x256xf32>
    %682 = arith.addf %664, %681 : vector<1x256xf32>
    %cst_11 = arith.constant 0.000000e+00 : f32
    %683 = vector.broadcast %cst_11 : f32 to vector<1x256xf32>
    %684 = arith.cmpf ogt, %670, %683 : vector<1x256xf32>
    %cst_12 = arith.constant 1.000000e-01 : f32
    %685 = vector.broadcast %cst_12 : f32 to vector<1x256xf32>
    %686 = arith.mulf %685, %670 : vector<1x256xf32>
    %687 = arith.select %684, %670, %686 : vector<1x256xi1>, vector<1x256xf32>
    %cst_13 = arith.constant 0.000000e+00 : f32
    %688 = vector.broadcast %cst_13 : f32 to vector<1x256xf32>
    %689 = arith.cmpf ogt, %674, %688 : vector<1x256xf32>
    %cst_14 = arith.constant 1.000000e-01 : f32
    %690 = vector.broadcast %cst_14 : f32 to vector<1x256xf32>
    %691 = arith.mulf %690, %674 : vector<1x256xf32>
    %692 = arith.select %689, %674, %691 : vector<1x256xi1>, vector<1x256xf32>
    %cst_15 = arith.constant 0.000000e+00 : f32
    %693 = vector.broadcast %cst_15 : f32 to vector<1x256xf32>
    %694 = arith.cmpf ogt, %678, %693 : vector<1x256xf32>
    %cst_16 = arith.constant 1.000000e-01 : f32
    %695 = vector.broadcast %cst_16 : f32 to vector<1x256xf32>
    %696 = arith.mulf %695, %678 : vector<1x256xf32>
    %697 = arith.select %694, %678, %696 : vector<1x256xi1>, vector<1x256xf32>
    %cst_17 = arith.constant 0.000000e+00 : f32
    %698 = vector.broadcast %cst_17 : f32 to vector<1x256xf32>
    %699 = arith.cmpf ogt, %682, %698 : vector<1x256xf32>
    %cst_18 = arith.constant 1.000000e-01 : f32
    %700 = vector.broadcast %cst_18 : f32 to vector<1x256xf32>
    %701 = arith.mulf %700, %682 : vector<1x256xf32>
    %702 = arith.select %699, %682, %701 : vector<1x256xi1>, vector<1x256xf32>
    %cst_19 = arith.constant 0.000000e+00 : f32
    %703 = vector.broadcast %cst_19 : f32 to vector<1x17xf32>
    %c0_20 = arith.constant 0 : index
    %704 = memref.load %arg5[%c0_20] : memref<4xf32, #tpu.memory_space<smem>>
    %705 = vector.broadcast %704 : f32 to vector<1x256xf32>
    %c1_21 = arith.constant 1 : index
    %706 = memref.load %arg5[%c1_21] : memref<4xf32, #tpu.memory_space<smem>>
    %707 = vector.broadcast %706 : f32 to vector<1x256xf32>
    %c2_22 = arith.constant 2 : index
    %708 = memref.load %arg5[%c2_22] : memref<4xf32, #tpu.memory_space<smem>>
    %709 = vector.broadcast %708 : f32 to vector<1x256xf32>
    %c3_23 = arith.constant 3 : index
    %710 = memref.load %arg5[%c3_23] : memref<4xf32, #tpu.memory_space<smem>>
    %711 = vector.broadcast %710 : f32 to vector<1x256xf32>
    %712 = tpu.concatenate %703, %687, %703 in 1 : vector<1x17xf32>, vector<1x256xf32>, vector<1x17xf32> -> vector<1x290xf32>
    %713 = vector.extract_strided_slice %712 {offsets = [0, 0], sizes = [1, 256], strides = [1, 1]} : vector<1x290xf32> to vector<1x256xf32>
    %714 = arith.mulf %713, %20 : vector<1x256xf32>
    %c0_24 = arith.constant 0 : index
    %715 = memref.load %arg4[%c0_24] : memref<144xf32, #tpu.memory_space<smem>>
    %716 = vector.broadcast %715 : f32 to vector<1x256xf32>
    %717 = arith.mulf %714, %716 : vector<1x256xf32>
    %718 = arith.addf %705, %717 : vector<1x256xf32>
    %c36_25 = arith.constant 36 : index
    %719 = memref.load %arg4[%c36_25] : memref<144xf32, #tpu.memory_space<smem>>
    %720 = vector.broadcast %719 : f32 to vector<1x256xf32>
    %721 = arith.mulf %714, %720 : vector<1x256xf32>
    %722 = arith.addf %707, %721 : vector<1x256xf32>
    %c72_26 = arith.constant 72 : index
    %723 = memref.load %arg4[%c72_26] : memref<144xf32, #tpu.memory_space<smem>>
    %724 = vector.broadcast %723 : f32 to vector<1x256xf32>
    %725 = arith.mulf %714, %724 : vector<1x256xf32>
    %726 = arith.addf %709, %725 : vector<1x256xf32>
    %c108_27 = arith.constant 108 : index
    %727 = memref.load %arg4[%c108_27] : memref<144xf32, #tpu.memory_space<smem>>
    %728 = vector.broadcast %727 : f32 to vector<1x256xf32>
    %729 = arith.mulf %714, %728 : vector<1x256xf32>
    %730 = arith.addf %711, %729 : vector<1x256xf32>
    %731 = vector.extract_strided_slice %712 {offsets = [0, 1], sizes = [1, 256], strides = [1, 1]} : vector<1x290xf32> to vector<1x256xf32>
    %c1_28 = arith.constant 1 : index
    %732 = memref.load %arg4[%c1_28] : memref<144xf32, #tpu.memory_space<smem>>
    %733 = vector.broadcast %732 : f32 to vector<1x256xf32>
    %734 = arith.mulf %731, %733 : vector<1x256xf32>
    %735 = arith.addf %718, %734 : vector<1x256xf32>
    %c37_29 = arith.constant 37 : index
    %736 = memref.load %arg4[%c37_29] : memref<144xf32, #tpu.memory_space<smem>>
    %737 = vector.broadcast %736 : f32 to vector<1x256xf32>
    %738 = arith.mulf %731, %737 : vector<1x256xf32>
    %739 = arith.addf %722, %738 : vector<1x256xf32>
    %c73_30 = arith.constant 73 : index
    %740 = memref.load %arg4[%c73_30] : memref<144xf32, #tpu.memory_space<smem>>
    %741 = vector.broadcast %740 : f32 to vector<1x256xf32>
    %742 = arith.mulf %731, %741 : vector<1x256xf32>
    %743 = arith.addf %726, %742 : vector<1x256xf32>
    %c109_31 = arith.constant 109 : index
    %744 = memref.load %arg4[%c109_31] : memref<144xf32, #tpu.memory_space<smem>>
    %745 = vector.broadcast %744 : f32 to vector<1x256xf32>
    %746 = arith.mulf %731, %745 : vector<1x256xf32>
    %747 = arith.addf %730, %746 : vector<1x256xf32>
    %748 = vector.extract_strided_slice %712 {offsets = [0, 2], sizes = [1, 256], strides = [1, 1]} : vector<1x290xf32> to vector<1x256xf32>
    %749 = arith.mulf %748, %24 : vector<1x256xf32>
    %c2_32 = arith.constant 2 : index
    %750 = memref.load %arg4[%c2_32] : memref<144xf32, #tpu.memory_space<smem>>
    %751 = vector.broadcast %750 : f32 to vector<1x256xf32>
    %752 = arith.mulf %749, %751 : vector<1x256xf32>
    %753 = arith.addf %735, %752 : vector<1x256xf32>
    %c38_33 = arith.constant 38 : index
    %754 = memref.load %arg4[%c38_33] : memref<144xf32, #tpu.memory_space<smem>>
    %755 = vector.broadcast %754 : f32 to vector<1x256xf32>
    %756 = arith.mulf %749, %755 : vector<1x256xf32>
    %757 = arith.addf %739, %756 : vector<1x256xf32>
    %c74_34 = arith.constant 74 : index
    %758 = memref.load %arg4[%c74_34] : memref<144xf32, #tpu.memory_space<smem>>
    %759 = vector.broadcast %758 : f32 to vector<1x256xf32>
    %760 = arith.mulf %749, %759 : vector<1x256xf32>
    %761 = arith.addf %743, %760 : vector<1x256xf32>
    %c110_35 = arith.constant 110 : index
    %762 = memref.load %arg4[%c110_35] : memref<144xf32, #tpu.memory_space<smem>>
    %763 = vector.broadcast %762 : f32 to vector<1x256xf32>
    %764 = arith.mulf %749, %763 : vector<1x256xf32>
    %765 = arith.addf %747, %764 : vector<1x256xf32>
    %766 = vector.extract_strided_slice %712 {offsets = [0, 16], sizes = [1, 256], strides = [1, 1]} : vector<1x290xf32> to vector<1x256xf32>
    %767 = arith.mulf %766, %20 : vector<1x256xf32>
    %c3_36 = arith.constant 3 : index
    %768 = memref.load %arg4[%c3_36] : memref<144xf32, #tpu.memory_space<smem>>
    %769 = vector.broadcast %768 : f32 to vector<1x256xf32>
    %770 = arith.mulf %767, %769 : vector<1x256xf32>
    %771 = arith.addf %753, %770 : vector<1x256xf32>
    %c39_37 = arith.constant 39 : index
    %772 = memref.load %arg4[%c39_37] : memref<144xf32, #tpu.memory_space<smem>>
    %773 = vector.broadcast %772 : f32 to vector<1x256xf32>
    %774 = arith.mulf %767, %773 : vector<1x256xf32>
    %775 = arith.addf %757, %774 : vector<1x256xf32>
    %c75_38 = arith.constant 75 : index
    %776 = memref.load %arg4[%c75_38] : memref<144xf32, #tpu.memory_space<smem>>
    %777 = vector.broadcast %776 : f32 to vector<1x256xf32>
    %778 = arith.mulf %767, %777 : vector<1x256xf32>
    %779 = arith.addf %761, %778 : vector<1x256xf32>
    %c111_39 = arith.constant 111 : index
    %780 = memref.load %arg4[%c111_39] : memref<144xf32, #tpu.memory_space<smem>>
    %781 = vector.broadcast %780 : f32 to vector<1x256xf32>
    %782 = arith.mulf %767, %781 : vector<1x256xf32>
    %783 = arith.addf %765, %782 : vector<1x256xf32>
    %784 = vector.extract_strided_slice %712 {offsets = [0, 17], sizes = [1, 256], strides = [1, 1]} : vector<1x290xf32> to vector<1x256xf32>
    %c4_40 = arith.constant 4 : index
    %785 = memref.load %arg4[%c4_40] : memref<144xf32, #tpu.memory_space<smem>>
    %786 = vector.broadcast %785 : f32 to vector<1x256xf32>
    %787 = arith.mulf %784, %786 : vector<1x256xf32>
    %788 = arith.addf %771, %787 : vector<1x256xf32>
    %c40_41 = arith.constant 40 : index
    %789 = memref.load %arg4[%c40_41] : memref<144xf32, #tpu.memory_space<smem>>
    %790 = vector.broadcast %789 : f32 to vector<1x256xf32>
    %791 = arith.mulf %784, %790 : vector<1x256xf32>
    %792 = arith.addf %775, %791 : vector<1x256xf32>
    %c76_42 = arith.constant 76 : index
    %793 = memref.load %arg4[%c76_42] : memref<144xf32, #tpu.memory_space<smem>>
    %794 = vector.broadcast %793 : f32 to vector<1x256xf32>
    %795 = arith.mulf %784, %794 : vector<1x256xf32>
    %796 = arith.addf %779, %795 : vector<1x256xf32>
    %c112_43 = arith.constant 112 : index
    %797 = memref.load %arg4[%c112_43] : memref<144xf32, #tpu.memory_space<smem>>
    %798 = vector.broadcast %797 : f32 to vector<1x256xf32>
    %799 = arith.mulf %784, %798 : vector<1x256xf32>
    %800 = arith.addf %783, %799 : vector<1x256xf32>
    %801 = vector.extract_strided_slice %712 {offsets = [0, 18], sizes = [1, 256], strides = [1, 1]} : vector<1x290xf32> to vector<1x256xf32>
    %802 = arith.mulf %801, %24 : vector<1x256xf32>
    %c5_44 = arith.constant 5 : index
    %803 = memref.load %arg4[%c5_44] : memref<144xf32, #tpu.memory_space<smem>>
    %804 = vector.broadcast %803 : f32 to vector<1x256xf32>
    %805 = arith.mulf %802, %804 : vector<1x256xf32>
    %806 = arith.addf %788, %805 : vector<1x256xf32>
    %c41_45 = arith.constant 41 : index
    %807 = memref.load %arg4[%c41_45] : memref<144xf32, #tpu.memory_space<smem>>
    %808 = vector.broadcast %807 : f32 to vector<1x256xf32>
    %809 = arith.mulf %802, %808 : vector<1x256xf32>
    %810 = arith.addf %792, %809 : vector<1x256xf32>
    %c77_46 = arith.constant 77 : index
    %811 = memref.load %arg4[%c77_46] : memref<144xf32, #tpu.memory_space<smem>>
    %812 = vector.broadcast %811 : f32 to vector<1x256xf32>
    %813 = arith.mulf %802, %812 : vector<1x256xf32>
    %814 = arith.addf %796, %813 : vector<1x256xf32>
    %c113_47 = arith.constant 113 : index
    %815 = memref.load %arg4[%c113_47] : memref<144xf32, #tpu.memory_space<smem>>
    %816 = vector.broadcast %815 : f32 to vector<1x256xf32>
    %817 = arith.mulf %802, %816 : vector<1x256xf32>
    %818 = arith.addf %800, %817 : vector<1x256xf32>
    %819 = vector.extract_strided_slice %712 {offsets = [0, 32], sizes = [1, 256], strides = [1, 1]} : vector<1x290xf32> to vector<1x256xf32>
    %820 = arith.mulf %819, %20 : vector<1x256xf32>
    %c6_48 = arith.constant 6 : index
    %821 = memref.load %arg4[%c6_48] : memref<144xf32, #tpu.memory_space<smem>>
    %822 = vector.broadcast %821 : f32 to vector<1x256xf32>
    %823 = arith.mulf %820, %822 : vector<1x256xf32>
    %824 = arith.addf %806, %823 : vector<1x256xf32>
    %c42_49 = arith.constant 42 : index
    %825 = memref.load %arg4[%c42_49] : memref<144xf32, #tpu.memory_space<smem>>
    %826 = vector.broadcast %825 : f32 to vector<1x256xf32>
    %827 = arith.mulf %820, %826 : vector<1x256xf32>
    %828 = arith.addf %810, %827 : vector<1x256xf32>
    %c78_50 = arith.constant 78 : index
    %829 = memref.load %arg4[%c78_50] : memref<144xf32, #tpu.memory_space<smem>>
    %830 = vector.broadcast %829 : f32 to vector<1x256xf32>
    %831 = arith.mulf %820, %830 : vector<1x256xf32>
    %832 = arith.addf %814, %831 : vector<1x256xf32>
    %c114_51 = arith.constant 114 : index
    %833 = memref.load %arg4[%c114_51] : memref<144xf32, #tpu.memory_space<smem>>
    %834 = vector.broadcast %833 : f32 to vector<1x256xf32>
    %835 = arith.mulf %820, %834 : vector<1x256xf32>
    %836 = arith.addf %818, %835 : vector<1x256xf32>
    %837 = vector.extract_strided_slice %712 {offsets = [0, 33], sizes = [1, 256], strides = [1, 1]} : vector<1x290xf32> to vector<1x256xf32>
    %c7_52 = arith.constant 7 : index
    %838 = memref.load %arg4[%c7_52] : memref<144xf32, #tpu.memory_space<smem>>
    %839 = vector.broadcast %838 : f32 to vector<1x256xf32>
    %840 = arith.mulf %837, %839 : vector<1x256xf32>
    %841 = arith.addf %824, %840 : vector<1x256xf32>
    %c43_53 = arith.constant 43 : index
    %842 = memref.load %arg4[%c43_53] : memref<144xf32, #tpu.memory_space<smem>>
    %843 = vector.broadcast %842 : f32 to vector<1x256xf32>
    %844 = arith.mulf %837, %843 : vector<1x256xf32>
    %845 = arith.addf %828, %844 : vector<1x256xf32>
    %c79_54 = arith.constant 79 : index
    %846 = memref.load %arg4[%c79_54] : memref<144xf32, #tpu.memory_space<smem>>
    %847 = vector.broadcast %846 : f32 to vector<1x256xf32>
    %848 = arith.mulf %837, %847 : vector<1x256xf32>
    %849 = arith.addf %832, %848 : vector<1x256xf32>
    %c115_55 = arith.constant 115 : index
    %850 = memref.load %arg4[%c115_55] : memref<144xf32, #tpu.memory_space<smem>>
    %851 = vector.broadcast %850 : f32 to vector<1x256xf32>
    %852 = arith.mulf %837, %851 : vector<1x256xf32>
    %853 = arith.addf %836, %852 : vector<1x256xf32>
    %854 = vector.extract_strided_slice %712 {offsets = [0, 34], sizes = [1, 256], strides = [1, 1]} : vector<1x290xf32> to vector<1x256xf32>
    %855 = arith.mulf %854, %24 : vector<1x256xf32>
    %c8_56 = arith.constant 8 : index
    %856 = memref.load %arg4[%c8_56] : memref<144xf32, #tpu.memory_space<smem>>
    %857 = vector.broadcast %856 : f32 to vector<1x256xf32>
    %858 = arith.mulf %855, %857 : vector<1x256xf32>
    %859 = arith.addf %841, %858 : vector<1x256xf32>
    %c44_57 = arith.constant 44 : index
    %860 = memref.load %arg4[%c44_57] : memref<144xf32, #tpu.memory_space<smem>>
    %861 = vector.broadcast %860 : f32 to vector<1x256xf32>
    %862 = arith.mulf %855, %861 : vector<1x256xf32>
    %863 = arith.addf %845, %862 : vector<1x256xf32>
    %c80_58 = arith.constant 80 : index
    %864 = memref.load %arg4[%c80_58] : memref<144xf32, #tpu.memory_space<smem>>
    %865 = vector.broadcast %864 : f32 to vector<1x256xf32>
    %866 = arith.mulf %855, %865 : vector<1x256xf32>
    %867 = arith.addf %849, %866 : vector<1x256xf32>
    %c116_59 = arith.constant 116 : index
    %868 = memref.load %arg4[%c116_59] : memref<144xf32, #tpu.memory_space<smem>>
    %869 = vector.broadcast %868 : f32 to vector<1x256xf32>
    %870 = arith.mulf %855, %869 : vector<1x256xf32>
    %871 = arith.addf %853, %870 : vector<1x256xf32>
    %872 = tpu.concatenate %703, %692, %703 in 1 : vector<1x17xf32>, vector<1x256xf32>, vector<1x17xf32> -> vector<1x290xf32>
    %873 = vector.extract_strided_slice %872 {offsets = [0, 0], sizes = [1, 256], strides = [1, 1]} : vector<1x290xf32> to vector<1x256xf32>
    %874 = arith.mulf %873, %20 : vector<1x256xf32>
    %c9_60 = arith.constant 9 : index
    %875 = memref.load %arg4[%c9_60] : memref<144xf32, #tpu.memory_space<smem>>
    %876 = vector.broadcast %875 : f32 to vector<1x256xf32>
    %877 = arith.mulf %874, %876 : vector<1x256xf32>
    %878 = arith.addf %859, %877 : vector<1x256xf32>
    %c45_61 = arith.constant 45 : index
    %879 = memref.load %arg4[%c45_61] : memref<144xf32, #tpu.memory_space<smem>>
    %880 = vector.broadcast %879 : f32 to vector<1x256xf32>
    %881 = arith.mulf %874, %880 : vector<1x256xf32>
    %882 = arith.addf %863, %881 : vector<1x256xf32>
    %c81_62 = arith.constant 81 : index
    %883 = memref.load %arg4[%c81_62] : memref<144xf32, #tpu.memory_space<smem>>
    %884 = vector.broadcast %883 : f32 to vector<1x256xf32>
    %885 = arith.mulf %874, %884 : vector<1x256xf32>
    %886 = arith.addf %867, %885 : vector<1x256xf32>
    %c117_63 = arith.constant 117 : index
    %887 = memref.load %arg4[%c117_63] : memref<144xf32, #tpu.memory_space<smem>>
    %888 = vector.broadcast %887 : f32 to vector<1x256xf32>
    %889 = arith.mulf %874, %888 : vector<1x256xf32>
    %890 = arith.addf %871, %889 : vector<1x256xf32>
    %891 = vector.extract_strided_slice %872 {offsets = [0, 1], sizes = [1, 256], strides = [1, 1]} : vector<1x290xf32> to vector<1x256xf32>
    %c10_64 = arith.constant 10 : index
    %892 = memref.load %arg4[%c10_64] : memref<144xf32, #tpu.memory_space<smem>>
    %893 = vector.broadcast %892 : f32 to vector<1x256xf32>
    %894 = arith.mulf %891, %893 : vector<1x256xf32>
    %895 = arith.addf %878, %894 : vector<1x256xf32>
    %c46_65 = arith.constant 46 : index
    %896 = memref.load %arg4[%c46_65] : memref<144xf32, #tpu.memory_space<smem>>
    %897 = vector.broadcast %896 : f32 to vector<1x256xf32>
    %898 = arith.mulf %891, %897 : vector<1x256xf32>
    %899 = arith.addf %882, %898 : vector<1x256xf32>
    %c82_66 = arith.constant 82 : index
    %900 = memref.load %arg4[%c82_66] : memref<144xf32, #tpu.memory_space<smem>>
    %901 = vector.broadcast %900 : f32 to vector<1x256xf32>
    %902 = arith.mulf %891, %901 : vector<1x256xf32>
    %903 = arith.addf %886, %902 : vector<1x256xf32>
    %c118_67 = arith.constant 118 : index
    %904 = memref.load %arg4[%c118_67] : memref<144xf32, #tpu.memory_space<smem>>
    %905 = vector.broadcast %904 : f32 to vector<1x256xf32>
    %906 = arith.mulf %891, %905 : vector<1x256xf32>
    %907 = arith.addf %890, %906 : vector<1x256xf32>
    %908 = vector.extract_strided_slice %872 {offsets = [0, 2], sizes = [1, 256], strides = [1, 1]} : vector<1x290xf32> to vector<1x256xf32>
    %909 = arith.mulf %908, %24 : vector<1x256xf32>
    %c11_68 = arith.constant 11 : index
    %910 = memref.load %arg4[%c11_68] : memref<144xf32, #tpu.memory_space<smem>>
    %911 = vector.broadcast %910 : f32 to vector<1x256xf32>
    %912 = arith.mulf %909, %911 : vector<1x256xf32>
    %913 = arith.addf %895, %912 : vector<1x256xf32>
    %c47_69 = arith.constant 47 : index
    %914 = memref.load %arg4[%c47_69] : memref<144xf32, #tpu.memory_space<smem>>
    %915 = vector.broadcast %914 : f32 to vector<1x256xf32>
    %916 = arith.mulf %909, %915 : vector<1x256xf32>
    %917 = arith.addf %899, %916 : vector<1x256xf32>
    %c83_70 = arith.constant 83 : index
    %918 = memref.load %arg4[%c83_70] : memref<144xf32, #tpu.memory_space<smem>>
    %919 = vector.broadcast %918 : f32 to vector<1x256xf32>
    %920 = arith.mulf %909, %919 : vector<1x256xf32>
    %921 = arith.addf %903, %920 : vector<1x256xf32>
    %c119_71 = arith.constant 119 : index
    %922 = memref.load %arg4[%c119_71] : memref<144xf32, #tpu.memory_space<smem>>
    %923 = vector.broadcast %922 : f32 to vector<1x256xf32>
    %924 = arith.mulf %909, %923 : vector<1x256xf32>
    %925 = arith.addf %907, %924 : vector<1x256xf32>
    %926 = vector.extract_strided_slice %872 {offsets = [0, 16], sizes = [1, 256], strides = [1, 1]} : vector<1x290xf32> to vector<1x256xf32>
    %927 = arith.mulf %926, %20 : vector<1x256xf32>
    %c12_72 = arith.constant 12 : index
    %928 = memref.load %arg4[%c12_72] : memref<144xf32, #tpu.memory_space<smem>>
    %929 = vector.broadcast %928 : f32 to vector<1x256xf32>
    %930 = arith.mulf %927, %929 : vector<1x256xf32>
    %931 = arith.addf %913, %930 : vector<1x256xf32>
    %c48_73 = arith.constant 48 : index
    %932 = memref.load %arg4[%c48_73] : memref<144xf32, #tpu.memory_space<smem>>
    %933 = vector.broadcast %932 : f32 to vector<1x256xf32>
    %934 = arith.mulf %927, %933 : vector<1x256xf32>
    %935 = arith.addf %917, %934 : vector<1x256xf32>
    %c84_74 = arith.constant 84 : index
    %936 = memref.load %arg4[%c84_74] : memref<144xf32, #tpu.memory_space<smem>>
    %937 = vector.broadcast %936 : f32 to vector<1x256xf32>
    %938 = arith.mulf %927, %937 : vector<1x256xf32>
    %939 = arith.addf %921, %938 : vector<1x256xf32>
    %c120_75 = arith.constant 120 : index
    %940 = memref.load %arg4[%c120_75] : memref<144xf32, #tpu.memory_space<smem>>
    %941 = vector.broadcast %940 : f32 to vector<1x256xf32>
    %942 = arith.mulf %927, %941 : vector<1x256xf32>
    %943 = arith.addf %925, %942 : vector<1x256xf32>
    %944 = vector.extract_strided_slice %872 {offsets = [0, 17], sizes = [1, 256], strides = [1, 1]} : vector<1x290xf32> to vector<1x256xf32>
    %c13_76 = arith.constant 13 : index
    %945 = memref.load %arg4[%c13_76] : memref<144xf32, #tpu.memory_space<smem>>
    %946 = vector.broadcast %945 : f32 to vector<1x256xf32>
    %947 = arith.mulf %944, %946 : vector<1x256xf32>
    %948 = arith.addf %931, %947 : vector<1x256xf32>
    %c49_77 = arith.constant 49 : index
    %949 = memref.load %arg4[%c49_77] : memref<144xf32, #tpu.memory_space<smem>>
    %950 = vector.broadcast %949 : f32 to vector<1x256xf32>
    %951 = arith.mulf %944, %950 : vector<1x256xf32>
    %952 = arith.addf %935, %951 : vector<1x256xf32>
    %c85_78 = arith.constant 85 : index
    %953 = memref.load %arg4[%c85_78] : memref<144xf32, #tpu.memory_space<smem>>
    %954 = vector.broadcast %953 : f32 to vector<1x256xf32>
    %955 = arith.mulf %944, %954 : vector<1x256xf32>
    %956 = arith.addf %939, %955 : vector<1x256xf32>
    %c121_79 = arith.constant 121 : index
    %957 = memref.load %arg4[%c121_79] : memref<144xf32, #tpu.memory_space<smem>>
    %958 = vector.broadcast %957 : f32 to vector<1x256xf32>
    %959 = arith.mulf %944, %958 : vector<1x256xf32>
    %960 = arith.addf %943, %959 : vector<1x256xf32>
    %961 = vector.extract_strided_slice %872 {offsets = [0, 18], sizes = [1, 256], strides = [1, 1]} : vector<1x290xf32> to vector<1x256xf32>
    %962 = arith.mulf %961, %24 : vector<1x256xf32>
    %c14_80 = arith.constant 14 : index
    %963 = memref.load %arg4[%c14_80] : memref<144xf32, #tpu.memory_space<smem>>
    %964 = vector.broadcast %963 : f32 to vector<1x256xf32>
    %965 = arith.mulf %962, %964 : vector<1x256xf32>
    %966 = arith.addf %948, %965 : vector<1x256xf32>
    %c50_81 = arith.constant 50 : index
    %967 = memref.load %arg4[%c50_81] : memref<144xf32, #tpu.memory_space<smem>>
    %968 = vector.broadcast %967 : f32 to vector<1x256xf32>
    %969 = arith.mulf %962, %968 : vector<1x256xf32>
    %970 = arith.addf %952, %969 : vector<1x256xf32>
    %c86_82 = arith.constant 86 : index
    %971 = memref.load %arg4[%c86_82] : memref<144xf32, #tpu.memory_space<smem>>
    %972 = vector.broadcast %971 : f32 to vector<1x256xf32>
    %973 = arith.mulf %962, %972 : vector<1x256xf32>
    %974 = arith.addf %956, %973 : vector<1x256xf32>
    %c122_83 = arith.constant 122 : index
    %975 = memref.load %arg4[%c122_83] : memref<144xf32, #tpu.memory_space<smem>>
    %976 = vector.broadcast %975 : f32 to vector<1x256xf32>
    %977 = arith.mulf %962, %976 : vector<1x256xf32>
    %978 = arith.addf %960, %977 : vector<1x256xf32>
    %979 = vector.extract_strided_slice %872 {offsets = [0, 32], sizes = [1, 256], strides = [1, 1]} : vector<1x290xf32> to vector<1x256xf32>
    %980 = arith.mulf %979, %20 : vector<1x256xf32>
    %c15_84 = arith.constant 15 : index
    %981 = memref.load %arg4[%c15_84] : memref<144xf32, #tpu.memory_space<smem>>
    %982 = vector.broadcast %981 : f32 to vector<1x256xf32>
    %983 = arith.mulf %980, %982 : vector<1x256xf32>
    %984 = arith.addf %966, %983 : vector<1x256xf32>
    %c51_85 = arith.constant 51 : index
    %985 = memref.load %arg4[%c51_85] : memref<144xf32, #tpu.memory_space<smem>>
    %986 = vector.broadcast %985 : f32 to vector<1x256xf32>
    %987 = arith.mulf %980, %986 : vector<1x256xf32>
    %988 = arith.addf %970, %987 : vector<1x256xf32>
    %c87_86 = arith.constant 87 : index
    %989 = memref.load %arg4[%c87_86] : memref<144xf32, #tpu.memory_space<smem>>
    %990 = vector.broadcast %989 : f32 to vector<1x256xf32>
    %991 = arith.mulf %980, %990 : vector<1x256xf32>
    %992 = arith.addf %974, %991 : vector<1x256xf32>
    %c123_87 = arith.constant 123 : index
    %993 = memref.load %arg4[%c123_87] : memref<144xf32, #tpu.memory_space<smem>>
    %994 = vector.broadcast %993 : f32 to vector<1x256xf32>
    %995 = arith.mulf %980, %994 : vector<1x256xf32>
    %996 = arith.addf %978, %995 : vector<1x256xf32>
    %997 = vector.extract_strided_slice %872 {offsets = [0, 33], sizes = [1, 256], strides = [1, 1]} : vector<1x290xf32> to vector<1x256xf32>
    %c16_88 = arith.constant 16 : index
    %998 = memref.load %arg4[%c16_88] : memref<144xf32, #tpu.memory_space<smem>>
    %999 = vector.broadcast %998 : f32 to vector<1x256xf32>
    %1000 = arith.mulf %997, %999 : vector<1x256xf32>
    %1001 = arith.addf %984, %1000 : vector<1x256xf32>
    %c52_89 = arith.constant 52 : index
    %1002 = memref.load %arg4[%c52_89] : memref<144xf32, #tpu.memory_space<smem>>
    %1003 = vector.broadcast %1002 : f32 to vector<1x256xf32>
    %1004 = arith.mulf %997, %1003 : vector<1x256xf32>
    %1005 = arith.addf %988, %1004 : vector<1x256xf32>
    %c88_90 = arith.constant 88 : index
    %1006 = memref.load %arg4[%c88_90] : memref<144xf32, #tpu.memory_space<smem>>
    %1007 = vector.broadcast %1006 : f32 to vector<1x256xf32>
    %1008 = arith.mulf %997, %1007 : vector<1x256xf32>
    %1009 = arith.addf %992, %1008 : vector<1x256xf32>
    %c124_91 = arith.constant 124 : index
    %1010 = memref.load %arg4[%c124_91] : memref<144xf32, #tpu.memory_space<smem>>
    %1011 = vector.broadcast %1010 : f32 to vector<1x256xf32>
    %1012 = arith.mulf %997, %1011 : vector<1x256xf32>
    %1013 = arith.addf %996, %1012 : vector<1x256xf32>
    %1014 = vector.extract_strided_slice %872 {offsets = [0, 34], sizes = [1, 256], strides = [1, 1]} : vector<1x290xf32> to vector<1x256xf32>
    %1015 = arith.mulf %1014, %24 : vector<1x256xf32>
    %c17_92 = arith.constant 17 : index
    %1016 = memref.load %arg4[%c17_92] : memref<144xf32, #tpu.memory_space<smem>>
    %1017 = vector.broadcast %1016 : f32 to vector<1x256xf32>
    %1018 = arith.mulf %1015, %1017 : vector<1x256xf32>
    %1019 = arith.addf %1001, %1018 : vector<1x256xf32>
    %c53_93 = arith.constant 53 : index
    %1020 = memref.load %arg4[%c53_93] : memref<144xf32, #tpu.memory_space<smem>>
    %1021 = vector.broadcast %1020 : f32 to vector<1x256xf32>
    %1022 = arith.mulf %1015, %1021 : vector<1x256xf32>
    %1023 = arith.addf %1005, %1022 : vector<1x256xf32>
    %c89_94 = arith.constant 89 : index
    %1024 = memref.load %arg4[%c89_94] : memref<144xf32, #tpu.memory_space<smem>>
    %1025 = vector.broadcast %1024 : f32 to vector<1x256xf32>
    %1026 = arith.mulf %1015, %1025 : vector<1x256xf32>
    %1027 = arith.addf %1009, %1026 : vector<1x256xf32>
    %c125_95 = arith.constant 125 : index
    %1028 = memref.load %arg4[%c125_95] : memref<144xf32, #tpu.memory_space<smem>>
    %1029 = vector.broadcast %1028 : f32 to vector<1x256xf32>
    %1030 = arith.mulf %1015, %1029 : vector<1x256xf32>
    %1031 = arith.addf %1013, %1030 : vector<1x256xf32>
    %1032 = tpu.concatenate %703, %697, %703 in 1 : vector<1x17xf32>, vector<1x256xf32>, vector<1x17xf32> -> vector<1x290xf32>
    %1033 = vector.extract_strided_slice %1032 {offsets = [0, 0], sizes = [1, 256], strides = [1, 1]} : vector<1x290xf32> to vector<1x256xf32>
    %1034 = arith.mulf %1033, %20 : vector<1x256xf32>
    %c18_96 = arith.constant 18 : index
    %1035 = memref.load %arg4[%c18_96] : memref<144xf32, #tpu.memory_space<smem>>
    %1036 = vector.broadcast %1035 : f32 to vector<1x256xf32>
    %1037 = arith.mulf %1034, %1036 : vector<1x256xf32>
    %1038 = arith.addf %1019, %1037 : vector<1x256xf32>
    %c54_97 = arith.constant 54 : index
    %1039 = memref.load %arg4[%c54_97] : memref<144xf32, #tpu.memory_space<smem>>
    %1040 = vector.broadcast %1039 : f32 to vector<1x256xf32>
    %1041 = arith.mulf %1034, %1040 : vector<1x256xf32>
    %1042 = arith.addf %1023, %1041 : vector<1x256xf32>
    %c90_98 = arith.constant 90 : index
    %1043 = memref.load %arg4[%c90_98] : memref<144xf32, #tpu.memory_space<smem>>
    %1044 = vector.broadcast %1043 : f32 to vector<1x256xf32>
    %1045 = arith.mulf %1034, %1044 : vector<1x256xf32>
    %1046 = arith.addf %1027, %1045 : vector<1x256xf32>
    %c126_99 = arith.constant 126 : index
    %1047 = memref.load %arg4[%c126_99] : memref<144xf32, #tpu.memory_space<smem>>
    %1048 = vector.broadcast %1047 : f32 to vector<1x256xf32>
    %1049 = arith.mulf %1034, %1048 : vector<1x256xf32>
    %1050 = arith.addf %1031, %1049 : vector<1x256xf32>
    %1051 = vector.extract_strided_slice %1032 {offsets = [0, 1], sizes = [1, 256], strides = [1, 1]} : vector<1x290xf32> to vector<1x256xf32>
    %c19_100 = arith.constant 19 : index
    %1052 = memref.load %arg4[%c19_100] : memref<144xf32, #tpu.memory_space<smem>>
    %1053 = vector.broadcast %1052 : f32 to vector<1x256xf32>
    %1054 = arith.mulf %1051, %1053 : vector<1x256xf32>
    %1055 = arith.addf %1038, %1054 : vector<1x256xf32>
    %c55_101 = arith.constant 55 : index
    %1056 = memref.load %arg4[%c55_101] : memref<144xf32, #tpu.memory_space<smem>>
    %1057 = vector.broadcast %1056 : f32 to vector<1x256xf32>
    %1058 = arith.mulf %1051, %1057 : vector<1x256xf32>
    %1059 = arith.addf %1042, %1058 : vector<1x256xf32>
    %c91_102 = arith.constant 91 : index
    %1060 = memref.load %arg4[%c91_102] : memref<144xf32, #tpu.memory_space<smem>>
    %1061 = vector.broadcast %1060 : f32 to vector<1x256xf32>
    %1062 = arith.mulf %1051, %1061 : vector<1x256xf32>
    %1063 = arith.addf %1046, %1062 : vector<1x256xf32>
    %c127_103 = arith.constant 127 : index
    %1064 = memref.load %arg4[%c127_103] : memref<144xf32, #tpu.memory_space<smem>>
    %1065 = vector.broadcast %1064 : f32 to vector<1x256xf32>
    %1066 = arith.mulf %1051, %1065 : vector<1x256xf32>
    %1067 = arith.addf %1050, %1066 : vector<1x256xf32>
    %1068 = vector.extract_strided_slice %1032 {offsets = [0, 2], sizes = [1, 256], strides = [1, 1]} : vector<1x290xf32> to vector<1x256xf32>
    %1069 = arith.mulf %1068, %24 : vector<1x256xf32>
    %c20_104 = arith.constant 20 : index
    %1070 = memref.load %arg4[%c20_104] : memref<144xf32, #tpu.memory_space<smem>>
    %1071 = vector.broadcast %1070 : f32 to vector<1x256xf32>
    %1072 = arith.mulf %1069, %1071 : vector<1x256xf32>
    %1073 = arith.addf %1055, %1072 : vector<1x256xf32>
    %c56_105 = arith.constant 56 : index
    %1074 = memref.load %arg4[%c56_105] : memref<144xf32, #tpu.memory_space<smem>>
    %1075 = vector.broadcast %1074 : f32 to vector<1x256xf32>
    %1076 = arith.mulf %1069, %1075 : vector<1x256xf32>
    %1077 = arith.addf %1059, %1076 : vector<1x256xf32>
    %c92_106 = arith.constant 92 : index
    %1078 = memref.load %arg4[%c92_106] : memref<144xf32, #tpu.memory_space<smem>>
    %1079 = vector.broadcast %1078 : f32 to vector<1x256xf32>
    %1080 = arith.mulf %1069, %1079 : vector<1x256xf32>
    %1081 = arith.addf %1063, %1080 : vector<1x256xf32>
    %c128_107 = arith.constant 128 : index
    %1082 = memref.load %arg4[%c128_107] : memref<144xf32, #tpu.memory_space<smem>>
    %1083 = vector.broadcast %1082 : f32 to vector<1x256xf32>
    %1084 = arith.mulf %1069, %1083 : vector<1x256xf32>
    %1085 = arith.addf %1067, %1084 : vector<1x256xf32>
    %1086 = vector.extract_strided_slice %1032 {offsets = [0, 16], sizes = [1, 256], strides = [1, 1]} : vector<1x290xf32> to vector<1x256xf32>
    %1087 = arith.mulf %1086, %20 : vector<1x256xf32>
    %c21_108 = arith.constant 21 : index
    %1088 = memref.load %arg4[%c21_108] : memref<144xf32, #tpu.memory_space<smem>>
    %1089 = vector.broadcast %1088 : f32 to vector<1x256xf32>
    %1090 = arith.mulf %1087, %1089 : vector<1x256xf32>
    %1091 = arith.addf %1073, %1090 : vector<1x256xf32>
    %c57_109 = arith.constant 57 : index
    %1092 = memref.load %arg4[%c57_109] : memref<144xf32, #tpu.memory_space<smem>>
    %1093 = vector.broadcast %1092 : f32 to vector<1x256xf32>
    %1094 = arith.mulf %1087, %1093 : vector<1x256xf32>
    %1095 = arith.addf %1077, %1094 : vector<1x256xf32>
    %c93_110 = arith.constant 93 : index
    %1096 = memref.load %arg4[%c93_110] : memref<144xf32, #tpu.memory_space<smem>>
    %1097 = vector.broadcast %1096 : f32 to vector<1x256xf32>
    %1098 = arith.mulf %1087, %1097 : vector<1x256xf32>
    %1099 = arith.addf %1081, %1098 : vector<1x256xf32>
    %c129_111 = arith.constant 129 : index
    %1100 = memref.load %arg4[%c129_111] : memref<144xf32, #tpu.memory_space<smem>>
    %1101 = vector.broadcast %1100 : f32 to vector<1x256xf32>
    %1102 = arith.mulf %1087, %1101 : vector<1x256xf32>
    %1103 = arith.addf %1085, %1102 : vector<1x256xf32>
    %1104 = vector.extract_strided_slice %1032 {offsets = [0, 17], sizes = [1, 256], strides = [1, 1]} : vector<1x290xf32> to vector<1x256xf32>
    %c22_112 = arith.constant 22 : index
    %1105 = memref.load %arg4[%c22_112] : memref<144xf32, #tpu.memory_space<smem>>
    %1106 = vector.broadcast %1105 : f32 to vector<1x256xf32>
    %1107 = arith.mulf %1104, %1106 : vector<1x256xf32>
    %1108 = arith.addf %1091, %1107 : vector<1x256xf32>
    %c58_113 = arith.constant 58 : index
    %1109 = memref.load %arg4[%c58_113] : memref<144xf32, #tpu.memory_space<smem>>
    %1110 = vector.broadcast %1109 : f32 to vector<1x256xf32>
    %1111 = arith.mulf %1104, %1110 : vector<1x256xf32>
    %1112 = arith.addf %1095, %1111 : vector<1x256xf32>
    %c94_114 = arith.constant 94 : index
    %1113 = memref.load %arg4[%c94_114] : memref<144xf32, #tpu.memory_space<smem>>
    %1114 = vector.broadcast %1113 : f32 to vector<1x256xf32>
    %1115 = arith.mulf %1104, %1114 : vector<1x256xf32>
    %1116 = arith.addf %1099, %1115 : vector<1x256xf32>
    %c130_115 = arith.constant 130 : index
    %1117 = memref.load %arg4[%c130_115] : memref<144xf32, #tpu.memory_space<smem>>
    %1118 = vector.broadcast %1117 : f32 to vector<1x256xf32>
    %1119 = arith.mulf %1104, %1118 : vector<1x256xf32>
    %1120 = arith.addf %1103, %1119 : vector<1x256xf32>
    %1121 = vector.extract_strided_slice %1032 {offsets = [0, 18], sizes = [1, 256], strides = [1, 1]} : vector<1x290xf32> to vector<1x256xf32>
    %1122 = arith.mulf %1121, %24 : vector<1x256xf32>
    %c23_116 = arith.constant 23 : index
    %1123 = memref.load %arg4[%c23_116] : memref<144xf32, #tpu.memory_space<smem>>
    %1124 = vector.broadcast %1123 : f32 to vector<1x256xf32>
    %1125 = arith.mulf %1122, %1124 : vector<1x256xf32>
    %1126 = arith.addf %1108, %1125 : vector<1x256xf32>
    %c59_117 = arith.constant 59 : index
    %1127 = memref.load %arg4[%c59_117] : memref<144xf32, #tpu.memory_space<smem>>
    %1128 = vector.broadcast %1127 : f32 to vector<1x256xf32>
    %1129 = arith.mulf %1122, %1128 : vector<1x256xf32>
    %1130 = arith.addf %1112, %1129 : vector<1x256xf32>
    %c95_118 = arith.constant 95 : index
    %1131 = memref.load %arg4[%c95_118] : memref<144xf32, #tpu.memory_space<smem>>
    %1132 = vector.broadcast %1131 : f32 to vector<1x256xf32>
    %1133 = arith.mulf %1122, %1132 : vector<1x256xf32>
    %1134 = arith.addf %1116, %1133 : vector<1x256xf32>
    %c131_119 = arith.constant 131 : index
    %1135 = memref.load %arg4[%c131_119] : memref<144xf32, #tpu.memory_space<smem>>
    %1136 = vector.broadcast %1135 : f32 to vector<1x256xf32>
    %1137 = arith.mulf %1122, %1136 : vector<1x256xf32>
    %1138 = arith.addf %1120, %1137 : vector<1x256xf32>
    %1139 = vector.extract_strided_slice %1032 {offsets = [0, 32], sizes = [1, 256], strides = [1, 1]} : vector<1x290xf32> to vector<1x256xf32>
    %1140 = arith.mulf %1139, %20 : vector<1x256xf32>
    %c24_120 = arith.constant 24 : index
    %1141 = memref.load %arg4[%c24_120] : memref<144xf32, #tpu.memory_space<smem>>
    %1142 = vector.broadcast %1141 : f32 to vector<1x256xf32>
    %1143 = arith.mulf %1140, %1142 : vector<1x256xf32>
    %1144 = arith.addf %1126, %1143 : vector<1x256xf32>
    %c60_121 = arith.constant 60 : index
    %1145 = memref.load %arg4[%c60_121] : memref<144xf32, #tpu.memory_space<smem>>
    %1146 = vector.broadcast %1145 : f32 to vector<1x256xf32>
    %1147 = arith.mulf %1140, %1146 : vector<1x256xf32>
    %1148 = arith.addf %1130, %1147 : vector<1x256xf32>
    %c96_122 = arith.constant 96 : index
    %1149 = memref.load %arg4[%c96_122] : memref<144xf32, #tpu.memory_space<smem>>
    %1150 = vector.broadcast %1149 : f32 to vector<1x256xf32>
    %1151 = arith.mulf %1140, %1150 : vector<1x256xf32>
    %1152 = arith.addf %1134, %1151 : vector<1x256xf32>
    %c132_123 = arith.constant 132 : index
    %1153 = memref.load %arg4[%c132_123] : memref<144xf32, #tpu.memory_space<smem>>
    %1154 = vector.broadcast %1153 : f32 to vector<1x256xf32>
    %1155 = arith.mulf %1140, %1154 : vector<1x256xf32>
    %1156 = arith.addf %1138, %1155 : vector<1x256xf32>
    %1157 = vector.extract_strided_slice %1032 {offsets = [0, 33], sizes = [1, 256], strides = [1, 1]} : vector<1x290xf32> to vector<1x256xf32>
    %c25_124 = arith.constant 25 : index
    %1158 = memref.load %arg4[%c25_124] : memref<144xf32, #tpu.memory_space<smem>>
    %1159 = vector.broadcast %1158 : f32 to vector<1x256xf32>
    %1160 = arith.mulf %1157, %1159 : vector<1x256xf32>
    %1161 = arith.addf %1144, %1160 : vector<1x256xf32>
    %c61_125 = arith.constant 61 : index
    %1162 = memref.load %arg4[%c61_125] : memref<144xf32, #tpu.memory_space<smem>>
    %1163 = vector.broadcast %1162 : f32 to vector<1x256xf32>
    %1164 = arith.mulf %1157, %1163 : vector<1x256xf32>
    %1165 = arith.addf %1148, %1164 : vector<1x256xf32>
    %c97_126 = arith.constant 97 : index
    %1166 = memref.load %arg4[%c97_126] : memref<144xf32, #tpu.memory_space<smem>>
    %1167 = vector.broadcast %1166 : f32 to vector<1x256xf32>
    %1168 = arith.mulf %1157, %1167 : vector<1x256xf32>
    %1169 = arith.addf %1152, %1168 : vector<1x256xf32>
    %c133_127 = arith.constant 133 : index
    %1170 = memref.load %arg4[%c133_127] : memref<144xf32, #tpu.memory_space<smem>>
    %1171 = vector.broadcast %1170 : f32 to vector<1x256xf32>
    %1172 = arith.mulf %1157, %1171 : vector<1x256xf32>
    %1173 = arith.addf %1156, %1172 : vector<1x256xf32>
    %1174 = vector.extract_strided_slice %1032 {offsets = [0, 34], sizes = [1, 256], strides = [1, 1]} : vector<1x290xf32> to vector<1x256xf32>
    %1175 = arith.mulf %1174, %24 : vector<1x256xf32>
    %c26_128 = arith.constant 26 : index
    %1176 = memref.load %arg4[%c26_128] : memref<144xf32, #tpu.memory_space<smem>>
    %1177 = vector.broadcast %1176 : f32 to vector<1x256xf32>
    %1178 = arith.mulf %1175, %1177 : vector<1x256xf32>
    %1179 = arith.addf %1161, %1178 : vector<1x256xf32>
    %c62_129 = arith.constant 62 : index
    %1180 = memref.load %arg4[%c62_129] : memref<144xf32, #tpu.memory_space<smem>>
    %1181 = vector.broadcast %1180 : f32 to vector<1x256xf32>
    %1182 = arith.mulf %1175, %1181 : vector<1x256xf32>
    %1183 = arith.addf %1165, %1182 : vector<1x256xf32>
    %c98_130 = arith.constant 98 : index
    %1184 = memref.load %arg4[%c98_130] : memref<144xf32, #tpu.memory_space<smem>>
    %1185 = vector.broadcast %1184 : f32 to vector<1x256xf32>
    %1186 = arith.mulf %1175, %1185 : vector<1x256xf32>
    %1187 = arith.addf %1169, %1186 : vector<1x256xf32>
    %c134_131 = arith.constant 134 : index
    %1188 = memref.load %arg4[%c134_131] : memref<144xf32, #tpu.memory_space<smem>>
    %1189 = vector.broadcast %1188 : f32 to vector<1x256xf32>
    %1190 = arith.mulf %1175, %1189 : vector<1x256xf32>
    %1191 = arith.addf %1173, %1190 : vector<1x256xf32>
    %1192 = tpu.concatenate %703, %702, %703 in 1 : vector<1x17xf32>, vector<1x256xf32>, vector<1x17xf32> -> vector<1x290xf32>
    %1193 = vector.extract_strided_slice %1192 {offsets = [0, 0], sizes = [1, 256], strides = [1, 1]} : vector<1x290xf32> to vector<1x256xf32>
    %1194 = arith.mulf %1193, %20 : vector<1x256xf32>
    %c27_132 = arith.constant 27 : index
    %1195 = memref.load %arg4[%c27_132] : memref<144xf32, #tpu.memory_space<smem>>
    %1196 = vector.broadcast %1195 : f32 to vector<1x256xf32>
    %1197 = arith.mulf %1194, %1196 : vector<1x256xf32>
    %1198 = arith.addf %1179, %1197 : vector<1x256xf32>
    %c63_133 = arith.constant 63 : index
    %1199 = memref.load %arg4[%c63_133] : memref<144xf32, #tpu.memory_space<smem>>
    %1200 = vector.broadcast %1199 : f32 to vector<1x256xf32>
    %1201 = arith.mulf %1194, %1200 : vector<1x256xf32>
    %1202 = arith.addf %1183, %1201 : vector<1x256xf32>
    %c99_134 = arith.constant 99 : index
    %1203 = memref.load %arg4[%c99_134] : memref<144xf32, #tpu.memory_space<smem>>
    %1204 = vector.broadcast %1203 : f32 to vector<1x256xf32>
    %1205 = arith.mulf %1194, %1204 : vector<1x256xf32>
    %1206 = arith.addf %1187, %1205 : vector<1x256xf32>
    %c135_135 = arith.constant 135 : index
    %1207 = memref.load %arg4[%c135_135] : memref<144xf32, #tpu.memory_space<smem>>
    %1208 = vector.broadcast %1207 : f32 to vector<1x256xf32>
    %1209 = arith.mulf %1194, %1208 : vector<1x256xf32>
    %1210 = arith.addf %1191, %1209 : vector<1x256xf32>
    %1211 = vector.extract_strided_slice %1192 {offsets = [0, 1], sizes = [1, 256], strides = [1, 1]} : vector<1x290xf32> to vector<1x256xf32>
    %c28_136 = arith.constant 28 : index
    %1212 = memref.load %arg4[%c28_136] : memref<144xf32, #tpu.memory_space<smem>>
    %1213 = vector.broadcast %1212 : f32 to vector<1x256xf32>
    %1214 = arith.mulf %1211, %1213 : vector<1x256xf32>
    %1215 = arith.addf %1198, %1214 : vector<1x256xf32>
    %c64_137 = arith.constant 64 : index
    %1216 = memref.load %arg4[%c64_137] : memref<144xf32, #tpu.memory_space<smem>>
    %1217 = vector.broadcast %1216 : f32 to vector<1x256xf32>
    %1218 = arith.mulf %1211, %1217 : vector<1x256xf32>
    %1219 = arith.addf %1202, %1218 : vector<1x256xf32>
    %c100_138 = arith.constant 100 : index
    %1220 = memref.load %arg4[%c100_138] : memref<144xf32, #tpu.memory_space<smem>>
    %1221 = vector.broadcast %1220 : f32 to vector<1x256xf32>
    %1222 = arith.mulf %1211, %1221 : vector<1x256xf32>
    %1223 = arith.addf %1206, %1222 : vector<1x256xf32>
    %c136_139 = arith.constant 136 : index
    %1224 = memref.load %arg4[%c136_139] : memref<144xf32, #tpu.memory_space<smem>>
    %1225 = vector.broadcast %1224 : f32 to vector<1x256xf32>
    %1226 = arith.mulf %1211, %1225 : vector<1x256xf32>
    %1227 = arith.addf %1210, %1226 : vector<1x256xf32>
    %1228 = vector.extract_strided_slice %1192 {offsets = [0, 2], sizes = [1, 256], strides = [1, 1]} : vector<1x290xf32> to vector<1x256xf32>
    %1229 = arith.mulf %1228, %24 : vector<1x256xf32>
    %c29_140 = arith.constant 29 : index
    %1230 = memref.load %arg4[%c29_140] : memref<144xf32, #tpu.memory_space<smem>>
    %1231 = vector.broadcast %1230 : f32 to vector<1x256xf32>
    %1232 = arith.mulf %1229, %1231 : vector<1x256xf32>
    %1233 = arith.addf %1215, %1232 : vector<1x256xf32>
    %c65_141 = arith.constant 65 : index
    %1234 = memref.load %arg4[%c65_141] : memref<144xf32, #tpu.memory_space<smem>>
    %1235 = vector.broadcast %1234 : f32 to vector<1x256xf32>
    %1236 = arith.mulf %1229, %1235 : vector<1x256xf32>
    %1237 = arith.addf %1219, %1236 : vector<1x256xf32>
    %c101_142 = arith.constant 101 : index
    %1238 = memref.load %arg4[%c101_142] : memref<144xf32, #tpu.memory_space<smem>>
    %1239 = vector.broadcast %1238 : f32 to vector<1x256xf32>
    %1240 = arith.mulf %1229, %1239 : vector<1x256xf32>
    %1241 = arith.addf %1223, %1240 : vector<1x256xf32>
    %c137_143 = arith.constant 137 : index
    %1242 = memref.load %arg4[%c137_143] : memref<144xf32, #tpu.memory_space<smem>>
    %1243 = vector.broadcast %1242 : f32 to vector<1x256xf32>
    %1244 = arith.mulf %1229, %1243 : vector<1x256xf32>
    %1245 = arith.addf %1227, %1244 : vector<1x256xf32>
    %1246 = vector.extract_strided_slice %1192 {offsets = [0, 16], sizes = [1, 256], strides = [1, 1]} : vector<1x290xf32> to vector<1x256xf32>
    %1247 = arith.mulf %1246, %20 : vector<1x256xf32>
    %c30_144 = arith.constant 30 : index
    %1248 = memref.load %arg4[%c30_144] : memref<144xf32, #tpu.memory_space<smem>>
    %1249 = vector.broadcast %1248 : f32 to vector<1x256xf32>
    %1250 = arith.mulf %1247, %1249 : vector<1x256xf32>
    %1251 = arith.addf %1233, %1250 : vector<1x256xf32>
    %c66_145 = arith.constant 66 : index
    %1252 = memref.load %arg4[%c66_145] : memref<144xf32, #tpu.memory_space<smem>>
    %1253 = vector.broadcast %1252 : f32 to vector<1x256xf32>
    %1254 = arith.mulf %1247, %1253 : vector<1x256xf32>
    %1255 = arith.addf %1237, %1254 : vector<1x256xf32>
    %c102_146 = arith.constant 102 : index
    %1256 = memref.load %arg4[%c102_146] : memref<144xf32, #tpu.memory_space<smem>>
    %1257 = vector.broadcast %1256 : f32 to vector<1x256xf32>
    %1258 = arith.mulf %1247, %1257 : vector<1x256xf32>
    %1259 = arith.addf %1241, %1258 : vector<1x256xf32>
    %c138_147 = arith.constant 138 : index
    %1260 = memref.load %arg4[%c138_147] : memref<144xf32, #tpu.memory_space<smem>>
    %1261 = vector.broadcast %1260 : f32 to vector<1x256xf32>
    %1262 = arith.mulf %1247, %1261 : vector<1x256xf32>
    %1263 = arith.addf %1245, %1262 : vector<1x256xf32>
    %1264 = vector.extract_strided_slice %1192 {offsets = [0, 17], sizes = [1, 256], strides = [1, 1]} : vector<1x290xf32> to vector<1x256xf32>
    %c31_148 = arith.constant 31 : index
    %1265 = memref.load %arg4[%c31_148] : memref<144xf32, #tpu.memory_space<smem>>
    %1266 = vector.broadcast %1265 : f32 to vector<1x256xf32>
    %1267 = arith.mulf %1264, %1266 : vector<1x256xf32>
    %1268 = arith.addf %1251, %1267 : vector<1x256xf32>
    %c67_149 = arith.constant 67 : index
    %1269 = memref.load %arg4[%c67_149] : memref<144xf32, #tpu.memory_space<smem>>
    %1270 = vector.broadcast %1269 : f32 to vector<1x256xf32>
    %1271 = arith.mulf %1264, %1270 : vector<1x256xf32>
    %1272 = arith.addf %1255, %1271 : vector<1x256xf32>
    %c103_150 = arith.constant 103 : index
    %1273 = memref.load %arg4[%c103_150] : memref<144xf32, #tpu.memory_space<smem>>
    %1274 = vector.broadcast %1273 : f32 to vector<1x256xf32>
    %1275 = arith.mulf %1264, %1274 : vector<1x256xf32>
    %1276 = arith.addf %1259, %1275 : vector<1x256xf32>
    %c139_151 = arith.constant 139 : index
    %1277 = memref.load %arg4[%c139_151] : memref<144xf32, #tpu.memory_space<smem>>
    %1278 = vector.broadcast %1277 : f32 to vector<1x256xf32>
    %1279 = arith.mulf %1264, %1278 : vector<1x256xf32>
    %1280 = arith.addf %1263, %1279 : vector<1x256xf32>
    %1281 = vector.extract_strided_slice %1192 {offsets = [0, 18], sizes = [1, 256], strides = [1, 1]} : vector<1x290xf32> to vector<1x256xf32>
    %1282 = arith.mulf %1281, %24 : vector<1x256xf32>
    %c32_152 = arith.constant 32 : index
    %1283 = memref.load %arg4[%c32_152] : memref<144xf32, #tpu.memory_space<smem>>
    %1284 = vector.broadcast %1283 : f32 to vector<1x256xf32>
    %1285 = arith.mulf %1282, %1284 : vector<1x256xf32>
    %1286 = arith.addf %1268, %1285 : vector<1x256xf32>
    %c68_153 = arith.constant 68 : index
    %1287 = memref.load %arg4[%c68_153] : memref<144xf32, #tpu.memory_space<smem>>
    %1288 = vector.broadcast %1287 : f32 to vector<1x256xf32>
    %1289 = arith.mulf %1282, %1288 : vector<1x256xf32>
    %1290 = arith.addf %1272, %1289 : vector<1x256xf32>
    %c104_154 = arith.constant 104 : index
    %1291 = memref.load %arg4[%c104_154] : memref<144xf32, #tpu.memory_space<smem>>
    %1292 = vector.broadcast %1291 : f32 to vector<1x256xf32>
    %1293 = arith.mulf %1282, %1292 : vector<1x256xf32>
    %1294 = arith.addf %1276, %1293 : vector<1x256xf32>
    %c140_155 = arith.constant 140 : index
    %1295 = memref.load %arg4[%c140_155] : memref<144xf32, #tpu.memory_space<smem>>
    %1296 = vector.broadcast %1295 : f32 to vector<1x256xf32>
    %1297 = arith.mulf %1282, %1296 : vector<1x256xf32>
    %1298 = arith.addf %1280, %1297 : vector<1x256xf32>
    %1299 = vector.extract_strided_slice %1192 {offsets = [0, 32], sizes = [1, 256], strides = [1, 1]} : vector<1x290xf32> to vector<1x256xf32>
    %1300 = arith.mulf %1299, %20 : vector<1x256xf32>
    %c33_156 = arith.constant 33 : index
    %1301 = memref.load %arg4[%c33_156] : memref<144xf32, #tpu.memory_space<smem>>
    %1302 = vector.broadcast %1301 : f32 to vector<1x256xf32>
    %1303 = arith.mulf %1300, %1302 : vector<1x256xf32>
    %1304 = arith.addf %1286, %1303 : vector<1x256xf32>
    %c69_157 = arith.constant 69 : index
    %1305 = memref.load %arg4[%c69_157] : memref<144xf32, #tpu.memory_space<smem>>
    %1306 = vector.broadcast %1305 : f32 to vector<1x256xf32>
    %1307 = arith.mulf %1300, %1306 : vector<1x256xf32>
    %1308 = arith.addf %1290, %1307 : vector<1x256xf32>
    %c105_158 = arith.constant 105 : index
    %1309 = memref.load %arg4[%c105_158] : memref<144xf32, #tpu.memory_space<smem>>
    %1310 = vector.broadcast %1309 : f32 to vector<1x256xf32>
    %1311 = arith.mulf %1300, %1310 : vector<1x256xf32>
    %1312 = arith.addf %1294, %1311 : vector<1x256xf32>
    %c141_159 = arith.constant 141 : index
    %1313 = memref.load %arg4[%c141_159] : memref<144xf32, #tpu.memory_space<smem>>
    %1314 = vector.broadcast %1313 : f32 to vector<1x256xf32>
    %1315 = arith.mulf %1300, %1314 : vector<1x256xf32>
    %1316 = arith.addf %1298, %1315 : vector<1x256xf32>
    %1317 = vector.extract_strided_slice %1192 {offsets = [0, 33], sizes = [1, 256], strides = [1, 1]} : vector<1x290xf32> to vector<1x256xf32>
    %c34_160 = arith.constant 34 : index
    %1318 = memref.load %arg4[%c34_160] : memref<144xf32, #tpu.memory_space<smem>>
    %1319 = vector.broadcast %1318 : f32 to vector<1x256xf32>
    %1320 = arith.mulf %1317, %1319 : vector<1x256xf32>
    %1321 = arith.addf %1304, %1320 : vector<1x256xf32>
    %c70_161 = arith.constant 70 : index
    %1322 = memref.load %arg4[%c70_161] : memref<144xf32, #tpu.memory_space<smem>>
    %1323 = vector.broadcast %1322 : f32 to vector<1x256xf32>
    %1324 = arith.mulf %1317, %1323 : vector<1x256xf32>
    %1325 = arith.addf %1308, %1324 : vector<1x256xf32>
    %c106_162 = arith.constant 106 : index
    %1326 = memref.load %arg4[%c106_162] : memref<144xf32, #tpu.memory_space<smem>>
    %1327 = vector.broadcast %1326 : f32 to vector<1x256xf32>
    %1328 = arith.mulf %1317, %1327 : vector<1x256xf32>
    %1329 = arith.addf %1312, %1328 : vector<1x256xf32>
    %c142_163 = arith.constant 142 : index
    %1330 = memref.load %arg4[%c142_163] : memref<144xf32, #tpu.memory_space<smem>>
    %1331 = vector.broadcast %1330 : f32 to vector<1x256xf32>
    %1332 = arith.mulf %1317, %1331 : vector<1x256xf32>
    %1333 = arith.addf %1316, %1332 : vector<1x256xf32>
    %1334 = vector.extract_strided_slice %1192 {offsets = [0, 34], sizes = [1, 256], strides = [1, 1]} : vector<1x290xf32> to vector<1x256xf32>
    %1335 = arith.mulf %1334, %24 : vector<1x256xf32>
    %c35_164 = arith.constant 35 : index
    %1336 = memref.load %arg4[%c35_164] : memref<144xf32, #tpu.memory_space<smem>>
    %1337 = vector.broadcast %1336 : f32 to vector<1x256xf32>
    %1338 = arith.mulf %1335, %1337 : vector<1x256xf32>
    %1339 = arith.addf %1321, %1338 : vector<1x256xf32>
    %c71_165 = arith.constant 71 : index
    %1340 = memref.load %arg4[%c71_165] : memref<144xf32, #tpu.memory_space<smem>>
    %1341 = vector.broadcast %1340 : f32 to vector<1x256xf32>
    %1342 = arith.mulf %1335, %1341 : vector<1x256xf32>
    %1343 = arith.addf %1325, %1342 : vector<1x256xf32>
    %c107_166 = arith.constant 107 : index
    %1344 = memref.load %arg4[%c107_166] : memref<144xf32, #tpu.memory_space<smem>>
    %1345 = vector.broadcast %1344 : f32 to vector<1x256xf32>
    %1346 = arith.mulf %1335, %1345 : vector<1x256xf32>
    %1347 = arith.addf %1329, %1346 : vector<1x256xf32>
    %c143_167 = arith.constant 143 : index
    %1348 = memref.load %arg4[%c143_167] : memref<144xf32, #tpu.memory_space<smem>>
    %1349 = vector.broadcast %1348 : f32 to vector<1x256xf32>
    %1350 = arith.mulf %1335, %1349 : vector<1x256xf32>
    %1351 = arith.addf %1333, %1350 : vector<1x256xf32>
    %cst_168 = arith.constant 0.000000e+00 : f32
    %1352 = vector.broadcast %cst_168 : f32 to vector<1x256xf32>
    %1353 = arith.cmpf ogt, %1339, %1352 : vector<1x256xf32>
    %cst_169 = arith.constant 1.000000e-01 : f32
    %1354 = vector.broadcast %cst_169 : f32 to vector<1x256xf32>
    %1355 = arith.mulf %1354, %1339 : vector<1x256xf32>
    %1356 = arith.select %1353, %1339, %1355 : vector<1x256xi1>, vector<1x256xf32>
    %cst_170 = arith.constant 0.000000e+00 : f32
    %1357 = vector.broadcast %cst_170 : f32 to vector<1x256xf32>
    %1358 = arith.cmpf ogt, %1343, %1357 : vector<1x256xf32>
    %cst_171 = arith.constant 1.000000e-01 : f32
    %1359 = vector.broadcast %cst_171 : f32 to vector<1x256xf32>
    %1360 = arith.mulf %1359, %1343 : vector<1x256xf32>
    %1361 = arith.select %1358, %1343, %1360 : vector<1x256xi1>, vector<1x256xf32>
    %cst_172 = arith.constant 0.000000e+00 : f32
    %1362 = vector.broadcast %cst_172 : f32 to vector<1x256xf32>
    %1363 = arith.cmpf ogt, %1347, %1362 : vector<1x256xf32>
    %cst_173 = arith.constant 1.000000e-01 : f32
    %1364 = vector.broadcast %cst_173 : f32 to vector<1x256xf32>
    %1365 = arith.mulf %1364, %1347 : vector<1x256xf32>
    %1366 = arith.select %1363, %1347, %1365 : vector<1x256xi1>, vector<1x256xf32>
    %cst_174 = arith.constant 0.000000e+00 : f32
    %1367 = vector.broadcast %cst_174 : f32 to vector<1x256xf32>
    %1368 = arith.cmpf ogt, %1351, %1367 : vector<1x256xf32>
    %cst_175 = arith.constant 1.000000e-01 : f32
    %1369 = vector.broadcast %cst_175 : f32 to vector<1x256xf32>
    %1370 = arith.mulf %1369, %1351 : vector<1x256xf32>
    %1371 = arith.select %1368, %1351, %1370 : vector<1x256xi1>, vector<1x256xf32>
    %1372 = arith.addf %1356, %27 : vector<1x256xf32>
    %1373 = arith.addf %1361, %29 : vector<1x256xf32>
    %1374 = arith.addf %1366, %31 : vector<1x256xf32>
    %1375 = arith.addf %1371, %33 : vector<1x256xf32>
    %1376 = vector.shape_cast %1372 : vector<1x256xf32> to vector<1x1x256xf32>
    %1377 = vector.shape_cast %1373 : vector<1x256xf32> to vector<1x1x256xf32>
    %1378 = vector.shape_cast %1374 : vector<1x256xf32> to vector<1x1x256xf32>
    %1379 = vector.shape_cast %1375 : vector<1x256xf32> to vector<1x1x256xf32>
    %1380 = tpu.concatenate %1376, %1377, %1378, %1379 in 1 : vector<1x1x256xf32>, vector<1x1x256xf32>, vector<1x1x256xf32>, vector<1x1x256xf32> -> vector<1x4x256xf32>
    %c0_176 = arith.constant 0 : index
    %c0_177 = arith.constant 0 : index
    %c0_178 = arith.constant 0 : index
    %1381 = vector.load %arg6[%c0_176, %c0_177, %c0_178] : memref<1x4x256xf32, #tpu.memory_space<vmem>>, vector<1x4x256xf32>
    tpu.vector_store %arg6[%c0_176, %c0_177, %c0_178], %1380 {strides = array<i32>} : memref<1x4x256xf32, #tpu.memory_space<vmem>>, vector<1x4x256xf32>,
    return
  }
  func.func @transform_0(%arg0: i32) -> (i32, i32, i32) {
    %c0_i32 = arith.constant 0 : i32
    %c0_i32_0 = arith.constant 0 : i32
    %c0_i32_1 = arith.constant 0 : i32
    return %arg0, %c0_i32, %c0_i32_0 : i32, i32, i32
  }
  func.func @transform_1(%arg0: i32) -> i32 {
    %c0_i32 = arith.constant 0 : i32
    %c0_i32_0 = arith.constant 0 : i32
    return %c0_i32 : i32
  }
  func.func @transform_2(%arg0: i32) -> i32 {
    %c0_i32 = arith.constant 0 : i32
    %c0_i32_0 = arith.constant 0 : i32
    return %c0_i32 : i32
  }
  func.func @transform_3(%arg0: i32) -> i32 {
    %c0_i32 = arith.constant 0 : i32
    %c0_i32_0 = arith.constant 0 : i32
    return %c0_i32 : i32
  }
  func.func @transform_4(%arg0: i32) -> i32 {
    %c0_i32 = arith.constant 0 : i32
    %c0_i32_0 = arith.constant 0 : i32
    return %c0_i32 : i32
  }
  func.func @transform_5(%arg0: i32) -> (i32, i32, i32) {
    %c0_i32 = arith.constant 0 : i32
    %c0_i32_0 = arith.constant 0 : i32
    %c0_i32_1 = arith.constant 0 : i32
    return %arg0, %c0_i32, %c0_i32_0 : i32, i32, i32
  }
}

</mosaic_0001>

<llo_original>
// kernel: tpu_custom_call.1
$region0: #{tpu_custom_call.1}
  #allocation0 [shape = 'u32[]', space=smem, size = 0x4, offset = 0x4, fixed_abs, tag = 'smem constant byte address 0x4 - core index']
  #allocation1 [shape = 'u32[144,128]{1,0:T(1,128)}', space=vmem, size = 0x12000, scoped, tag = 'internal scratch']
  %s0 = inlined_call_operand.hbm [shape: f32[2,4,256], index: 0, kind: input, shape index: {}]
  %s1 = inlined_call_operand.hbm [shape: f32[144], index: 1, kind: input, shape index: {}]
  %s2 = inlined_call_operand.vmem [shape: f32[4], index: 2, kind: input, shape index: {}]
  %s3 = inlined_call_operand.vmem [shape: f32[144], index: 3, kind: input, shape index: {}]
  %s4 = inlined_call_operand.vmem [shape: f32[4], index: 4, kind: input, shape index: {}]
  %s5 = inlined_call_operand.hbm [shape: f32[2,4,256], index: 5, kind: output, shape index: {}]
  %s6 = sld [smem:[#allocation0]]
  $region73: #{tpu_custom_call.1} parent=0
    _
  %s8 = ssub.s32 1, %s6
  %s9 = scalar_select 0, %s8, %s6
  $region1: #{tpu_custom_call.1} parent=0
    #allocation2 [shape = 'u8[8192]{0}', space=vmem, size = 0x2000, scoped, tag = 'input window, operand 0']
    #allocation3 [shape = 's32[2]{0}', space=sflag, size = 0x8, scoped, tag = 'scoped memory for tpu_custom_call.1']
    #allocation4 [shape = 's32[2]{0}', space=sflag, size = 0x8, scoped, tag = 'scoped memory for tpu_custom_call.1']
    #allocation5 [shape = 's32[2]{0}', space=sflag, size = 0x8, scoped, tag = 'scoped memory for tpu_custom_call.1']
    #allocation6 [shape = 's32[2]{0}', space=sflag, size = 0x8, scoped, tag = 'scoped memory for tpu_custom_call.1']
    #allocation7 [shape = 'u8[1024]{0}', space=smem, size = 0x400, scoped, tag = 'input window, operand 1, single buffered']
    #allocation8 [shape = 'u8[512]{0}', space=smem, size = 0x200, scoped, tag = 'input window, operand 2, single buffered']
    #allocation9 [shape = 'u8[1024]{0}', space=smem, size = 0x400, scoped, tag = 'input window, operand 3, single buffered']
    #allocation10 [shape = 's32[1]{0}', space=sflag, size = 0x4, scoped, tag = 'scoped memory for tpu_custom_call.1']
    #allocation11 [shape = 'u8[512]{0}', space=smem, size = 0x200, scoped, tag = 'input window, operand 4, single buffered']
    #allocation12 [shape = 'u8[8192]{0}', space=vmem, size = 0x2000, scoped, tag = 'output window, operand 0']
    %10 = vsyncpa [#allocation3], 0
    %s11 = scalar_lea.sflag [#allocation3], 1
    %12 = vsyncpa %s11, 0
    %13 = vsyncpa [#allocation5], 0
    %14 = vsyncpa [#allocation6], 0
    %15 = vsyncpa [#allocation10], 0
    %16 = vsyncpa [#allocation4], 0
    %s17 = scalar_lea.sflag [#allocation4], 1
    %18 = vsyncpa %s17, 0
    loop: start=0, step=1, limit=4
    $region2: #{tpu_custom_call.1} parent=1 // loop_pre_header
      _
    $region3: #{tpu_custom_call.1} parent=1 // loop_header
      %s20 = sphi 0, %s24
      %p21 = scmp.ge.s32.totalorder %s20, 4
      %s30 = sphi 0, %s32
      %s33 = sphi 0, %s30
      %s34 = sphi 0, %s33
      %s50 = sphi 0, %s34
      %s54 = sphi 0, %s54
      %s56 = sphi 0, %s54
      %s57 = sphi 0, %s56
      %s71 = sphi 0, %s57
      %s75 = sphi 0, %s75
      %s77 = sphi 0, %s75
      %s78 = sphi 0, %s77
      %s92 = sphi 0, %s78
      %s96 = sphi 0, %s96
      %s98 = sphi 0, %s96
      %s99 = sphi 0, %s98
      %s113 = sphi 0, %s99
      %s117 = sphi 0, %s117
      %s119 = sphi 0, %s117
      %s120 = sphi 0, %s119
      %s134 = sphi 0, %s120
      %s140 = sphi 0, %s142
      %s143 = sphi 0, %s140
      %s144 = sphi 0, %s143
      %s160 = sphi 0, %s144
    $region4: #{tpu_custom_call.1} parent=1 // loop_header_branch
      %23 = sbr.rel (%p21) target = $region8
    $region5: #{tpu_custom_call.1} parent=1 // loop_body
      %s25 = ssub.s32 %s20, 1
      %s26 = ssub.s32 %s20, 2
      %s27 = sadd.s32 %s20, 1
      %s28 = ssub.s32 %s20, %s27
      %p29 = scmp.eq.s32.totalorder %s28, 0
      %s31 = sadd.s32 %s30, 1
      %s32 = scalar_select %p29, %s30, %s31
      %p35 = pneg %p29
      %p36 = scmp.eq.s32.totalorder %s20, 1
      %p37 = por %p35, %p36
      %p38 = scmp.ne.s32.totalorder %s30, %s33
      %p39 = scmp.eq.s32.totalorder %s20, 0
      %p40 = por %p38, %p39
      %p41 = scmp.ne.s32.totalorder %s30, %s33
      %p42 = scmp.eq.s32.totalorder %s25, 1
      %p43 = por %p41, %p42
      %p44 = scmp.ne.s32.totalorder %s33, %s34
      %p45 = scmp.eq.s32.totalorder %s25, 0
      %p46 = por %p44, %p45
      %p47 = scmp.ne.s32.totalorder %s33, %s34
      %p48 = scmp.eq.s32.totalorder %s26, 1
      %p49 = por %p47, %p48
      %p51 = scmp.ne.s32.totalorder %s34, %s50
      %p52 = scmp.eq.s32.totalorder %s26, 0
      %p53 = por %p51, %p52
      %s55 = sadd.s32 %s54, 1
      %p58 = scmp.eq.s32.totalorder %s20, 1
      %p59 = scmp.ne.s32.totalorder %s54, %s56
      %p60 = scmp.eq.s32.totalorder %s20, 0
      %p61 = por %p59, %p60
      %p62 = scmp.ne.s32.totalorder %s54, %s56
      %p63 = scmp.eq.s32.totalorder %s25, 1
      %p64 = por %p62, %p63
      %p65 = scmp.ne.s32.totalorder %s56, %s57
      %p66 = scmp.eq.s32.totalorder %s25, 0
      %p67 = por %p65, %p66
      %p68 = scmp.ne.s32.totalorder %s56, %s57
      %p69 = scmp.eq.s32.totalorder %s26, 1
      %p70 = por %p68, %p69
      %p72 = scmp.ne.s32.totalorder %s57, %s71
      %p73 = scmp.eq.s32.totalorder %s26, 0
      %p74 = por %p72, %p73
      %s76 = sadd.s32 %s75, 1
      %p79 = scmp.eq.s32.totalorder %s20, 1
      %p80 = scmp.ne.s32.totalorder %s75, %s77
      %p81 = scmp.eq.s32.totalorder %s20, 0
      %p82 = por %p80, %p81
      %p83 = scmp.ne.s32.totalorder %s75, %s77
      %p84 = scmp.eq.s32.totalorder %s25, 1
      %p85 = por %p83, %p84
      %p86 = scmp.ne.s32.totalorder %s77, %s78
      %p87 = scmp.eq.s32.totalorder %s25, 0
      %p88 = por %p86, %p87
      %p89 = scmp.ne.s32.totalorder %s77, %s78
      %p90 = scmp.eq.s32.totalorder %s26, 1
      %p91 = por %p89, %p90
      %p93 = scmp.ne.s32.totalorder %s78, %s92
      %p94 = scmp.eq.s32.totalorder %s26, 0
      %p95 = por %p93, %p94
      %s97 = sadd.s32 %s96, 1
      %p100 = scmp.eq.s32.totalorder %s20, 1
      %p101 = scmp.ne.s32.totalorder %s96, %s98
      %p102 = scmp.eq.s32.totalorder %s20, 0
      %p103 = por %p101, %p102
      %p104 = scmp.ne.s32.totalorder %s96, %s98
      %p105 = scmp.eq.s32.totalorder %s25, 1
      %p106 = por %p104, %p105
      %p107 = scmp.ne.s32.totalorder %s98, %s99
      %p108 = scmp.eq.s32.totalorder %s25, 0
      %p109 = por %p107, %p108
      %p110 = scmp.ne.s32.totalorder %s98, %s99
      %p111 = scmp.eq.s32.totalorder %s26, 1
      %p112 = por %p110, %p111
      %p114 = scmp.ne.s32.totalorder %s99, %s113
      %p115 = scmp.eq.s32.totalorder %s26, 0
      %p116 = por %p114, %p115
      %s118 = sadd.s32 %s117, 1
      %p121 = scmp.eq.s32.totalorder %s20, 1
      %p122 = scmp.ne.s32.totalorder %s117, %s119
      %p123 = scmp.eq.s32.totalorder %s20, 0
      %p124 = por %p122, %p123
      %p125 = scmp.ne.s32.totalorder %s117, %s119
      %p126 = scmp.eq.s32.totalorder %s25, 1
      %p127 = por %p125, %p126
      %p128 = scmp.ne.s32.totalorder %s119, %s120
      %p129 = scmp.eq.s32.totalorder %s25, 0
      %p130 = por %p128, %p129
      %p131 = scmp.ne.s32.totalorder %s119, %s120
      %p132 = scmp.eq.s32.totalorder %s26, 1
      %p133 = por %p131, %p132
      %p135 = scmp.ne.s32.totalorder %s120, %s134
      %p136 = scmp.eq.s32.totalorder %s26, 0
      %p137 = por %p135, %p136
      %s138 = ssub.s32 %s20, %s27
      %p139 = scmp.eq.s32.totalorder %s138, 0
      %s141 = sadd.s32 %s140, 1
      %s142 = scalar_select %p139, %s140, %s141
      %p145 = pneg %p139
      %p146 = scmp.eq.s32.totalorder %s20, 1
      %p147 = por %p145, %p146
      %p148 = scmp.ne.s32.totalorder %s140, %s143
      %p149 = scmp.eq.s32.totalorder %s20, 0
      %p150 = por %p148, %p149
      %p151 = scmp.ne.s32.totalorder %s140, %s143
      %p152 = scmp.eq.s32.totalorder %s25, 1
      %p153 = por %p151, %p152
      %p154 = scmp.ne.s32.totalorder %s143, %s144
      %p155 = scmp.eq.s32.totalorder %s25, 0
      %p156 = por %p154, %p155
      %p157 = scmp.ne.s32.totalorder %s143, %s144
      %p158 = scmp.eq.s32.totalorder %s26, 1
      %p159 = por %p157, %p158
      %p161 = scmp.ne.s32.totalorder %s144, %s160
      %p162 = scmp.eq.s32.totalorder %s26, 0
      %p163 = por %p161, %p162
      %p164 = scmp.le.s32.totalorder 1, %s20
      %p165 = scmp.lt.s32.totalorder %s20, 3
      %p166 = pnand %p164, %p165
      %p167 = pneg %p166
      // Predicated region
      $region9: #{tpu_custom_call.1} parent=5 // pred_check
        _
      $region10: #{tpu_custom_call.1} parent=5 // pred_check_branch
        %169 = sbr.rel (%p166) target = $region12
      $region11: #{tpu_custom_call.1} parent=5 // pred_region
        %s170 = ssub.s32 %s20, 1
        // Predicated region
        $region13: #{tpu_custom_call.1} parent=11 // pred_check
          %p171 = pneg %p67
        $region14: #{tpu_custom_call.1} parent=11 // pred_check_branch
          %173 = sbr.rel (%p171) target = $region16
        $region15: #{tpu_custom_call.1} parent=11 // pred_region
          %s175 = ssub.s32 32, 32
          %176 = vsyncadd [#allocation5], %s175
          %179 = dma.hbm_to_smem %s1, 32, [#allocation7], [#allocation5]
        $region16: #{tpu_custom_call.1} parent=11 // pred_fallthru
          _
        // Predicated region
        $region17: #{tpu_custom_call.1} parent=11 // pred_check
          %p180 = pneg %p88
        $region18: #{tpu_custom_call.1} parent=11 // pred_check_branch
          %182 = sbr.rel (%p180) target = $region20
        $region19: #{tpu_custom_call.1} parent=11 // pred_region
          %s184 = ssub.s32 16, 16
          %185 = vsyncadd [#allocation6], %s184
          %s187 = sshll.u32 %s2, 4
          %s188 = int_to_ptr.vmem [resolvable:$true] %s187
          %190 = dma.vmem_to_smem %s188, 16, [#allocation8], [#allocation6]
        $region20: #{tpu_custom_call.1} parent=11 // pred_fallthru
          _
        // Predicated region
        $region21: #{tpu_custom_call.1} parent=11 // pred_check
          %p191 = pneg %p109
        $region22: #{tpu_custom_call.1} parent=11 // pred_check_branch
          %193 = sbr.rel (%p191) target = $region24
        $region23: #{tpu_custom_call.1} parent=11 // pred_region
          %s195 = ssub.s32 32, 32
          %196 = vsyncadd [#allocation10], %s195
          %s198 = sshll.u32 %s3, 4
          %s199 = int_to_ptr.vmem [resolvable:$true] %s198
          %201 = dma.vmem_to_smem %s199, 32, [#allocation9], [#allocation10]
        $region24: #{tpu_custom_call.1} parent=11 // pred_fallthru
          _
        // Predicated region
        $region25: #{tpu_custom_call.1} parent=11 // pred_check
          %p202 = pneg %p130
        $region26: #{tpu_custom_call.1} parent=11 // pred_check_branch
          %204 = sbr.rel (%p202) target = $region28
        $region27: #{tpu_custom_call.1} parent=11 // pred_region
          %s206 = ssub.s32 16, 16
          %207 = vsyncadd [#allocation10], %s206
          %s209 = sshll.u32 %s4, 4
          %s210 = int_to_ptr.vmem [resolvable:$true] %s209
          %212 = dma.vmem_to_smem %s210, 16, [#allocation11], [#allocation10]
        $region28: #{tpu_custom_call.1} parent=11 // pred_fallthru
          _
      $region12: #{tpu_custom_call.1} parent=5 // pred_fallthru
        _
      %p213 = scmp.lt.s32.totalorder %s20, 2
      // Predicated region
      $region29: #{tpu_custom_call.1} parent=5 // pred_check
        %p214 = pneg %p213
      $region30: #{tpu_custom_call.1} parent=5 // pred_check_branch
        %216 = sbr.rel (%p214) target = $region32
      $region31: #{tpu_custom_call.1} parent=5 // pred_region
        // Predicated region
        $region33: #{tpu_custom_call.1} parent=31 // pred_check
          %p217 = pneg %p40
        $region34: #{tpu_custom_call.1} parent=31 // pred_check_branch
          %219 = sbr.rel (%p217) target = $region36
        $region35: #{tpu_custom_call.1} parent=31 // pred_region
          %s220 = sand.u32 %s30, 1
          %s221 = scalar_lea.sflag [#allocation3], %s220
          %s222 = sand.u32 %s30, 1
          %s223 = smul.addr %s222, 8
          %s224 = scalar_lea.vmem [#allocation2], %s223
          %s226 = ssub.s32 128, 128
          %227 = vsyncadd %s221, %s226
          %s228 = smul.addr %s20, 2
          %s229 = smul.addr %s228, 64
          %s230 = scalar_lea.hbm %s0, %s229
          %s232 = sshll.u32 %s224, 4
          %s233 = int_to_ptr.vmem [resolvable:$true] %s232
          %235 = dma.hbm_to_vmem [thread:$0]  %s230, 128, %s233, %s221
        $region36: #{tpu_custom_call.1} parent=31 // pred_fallthru
          _
      $region32: #{tpu_custom_call.1} parent=5 // pred_fallthru
        _
      %p236 = scmp.le.s32.totalorder 1, %s20
      %p237 = scmp.lt.s32.totalorder %s20, 3
      %p238 = pnand %p236, %p237
      %p239 = pneg %p238
      // Predicated region
      $region37: #{tpu_custom_call.1} parent=5 // pred_check
        _
      $region38: #{tpu_custom_call.1} parent=5 // pred_check_branch
        %241 = sbr.rel (%p238) target = $region40
      $region39: #{tpu_custom_call.1} parent=5 // pred_region
        %s242 = ssub.s32 %s20, 1
        %s243 = sand.u32 %s33, 1
        %s244 = scalar_lea.sflag [#allocation3], %s243
        %s245 = sand.u32 %s33, 1
        %s246 = smul.addr %s245, 8
        %s247 = scalar_lea.vmem [#allocation2], %s246
        // Predicated region
        $region41: #{tpu_custom_call.1} parent=39 // pred_check
          %p248 = pneg %p46
        $region42: #{tpu_custom_call.1} parent=39 // pred_check_branch
          %250 = sbr.rel (%p248) target = $region44
        $region43: #{tpu_custom_call.1} parent=39 // pred_region
          %251 = dma.done %s244, 128
        $region44: #{tpu_custom_call.1} parent=39 // pred_fallthru
          _
        // Predicated region
        $region45: #{tpu_custom_call.1} parent=39 // pred_check
          %p252 = pneg %p67
        $region46: #{tpu_custom_call.1} parent=39 // pred_check_branch
          %254 = sbr.rel (%p252) target = $region48
        $region47: #{tpu_custom_call.1} parent=39 // pred_region
          %255 = dma.done [#allocation5], 32
        $region48: #{tpu_custom_call.1} parent=39 // pred_fallthru
          _
        // Predicated region
        $region49: #{tpu_custom_call.1} parent=39 // pred_check
          %p256 = pneg %p88
        $region50: #{tpu_custom_call.1} parent=39 // pred_check_branch
          %258 = sbr.rel (%p256) target = $region52
        $region51: #{tpu_custom_call.1} parent=39 // pred_region
          %259 = dma.done [#allocation6], 16
        $region52: #{tpu_custom_call.1} parent=39 // pred_fallthru
          _
        // Predicated region
        $region53: #{tpu_custom_call.1} parent=39 // pred_check
          %p260 = pneg %p109
        $region54: #{tpu_custom_call.1} parent=39 // pred_check_branch
          %262 = sbr.rel (%p260) target = $region56
        $region55: #{tpu_custom_call.1} parent=39 // pred_region
          %263 = dma.done [#allocation10], 32
        $region56: #{tpu_custom_call.1} parent=39 // pred_fallthru
          _
        // Predicated region
        $region57: #{tpu_custom_call.1} parent=39 // pred_check
          %p264 = pneg %p130
        $region58: #{tpu_custom_call.1} parent=39 // pred_check_branch
          %266 = sbr.rel (%p264) target = $region60
        $region59: #{tpu_custom_call.1} parent=39 // pred_region
          %267 = dma.done [#allocation10], 16
        $region60: #{tpu_custom_call.1} parent=39 // pred_fallthru
          _
        %268 = sfence
        %s269 = sand.u32 %s33, 1
        %s270 = scalar_lea.sflag [#allocation3], %s269
        %s271 = sand.u32 %s33, 1
        %s272 = smul.addr %s271, 8
        %s273 = scalar_lea.vmem [#allocation2], %s272
        %p274 = pneg %p46
        %p275 = pneg %p43
        %p276 = pneg %p67
        %p277 = pneg %p64
        %p278 = pneg %p88
        %p279 = pneg %p85
        %p280 = pneg %p109
        %p281 = pneg %p106
        %p282 = pneg %p130
        %p283 = pneg %p127
        %p284 = pneg %p156
        %p285 = pneg %p153
        %s286 = sand.u32 %s143, 1
        %s287 = scalar_lea.sflag [#allocation4], %s286
        %s288 = sand.u32 %s143, 1
        %s289 = smul.addr %s288, 8
        %s290 = scalar_lea.vmem [#allocation12], %s289
        %v291 = vlaneseq
        %v292 = vand.u32 %v291, 127
        %v293 = vadd.s32 %v292, 128
        %vm294 = vcmp.lt.s32.totalorder %v292, 0
        %v295 = vsub.s32 0, %v292
        %v296 = vsel %vm294, %v295, %v292
        %v297 = vshrl.u32 %v296, 4
        %v298 = vand.u32 %v296, 15
        %v299 = vsub.s32 0, %v298
        %v300 = vsel %vm294, %v299, %v298
        %vm301 = vcmp.lt.s32.totalorder %v293, 0
        %v302 = vsub.s32 0, %v293
        %v303 = vsel %vm301, %v302, %v293
        %v304 = vshrl.u32 %v303, 4
        %v305 = vand.u32 %v303, 15
        %v306 = vsub.s32 0, %v305
        %v307 = vsel %vm301, %v306, %v305
        %vm308 = vcmp.ne.s32.totalorder %v300, 0
        %vm309 = vcmp.ne.s32.totalorder %v307, 0
        %vm310 = vcmp.lt.s32.totalorder %v300, 0
        %vm311 = vcmp.lt.s32.totalorder %v307, 0
        %vm312 = vmand %vm310, %vm308
        %vm313 = vmand %vm311, %vm309
        %v314 = vadd.s32 %v300, 16
        %v315 = vadd.s32 %v307, 16
        %v316 = vsel %vm312, %v314, %v300
        %v317 = vsel %vm313, %v315, %v307
        %vm318 = vcmp.ne.s32.totalorder %v316, 0
        %vm319 = vcmp.ne.s32.totalorder %v317, 0
        %v320 = vsel %vm318, 1, 0
        %v321 = vsel %vm319, 1, 0
        %v322 = vcvt.s32.f32 %v320
        %v323 = vcvt.s32.f32 %v321
        %vm324 = vcmp.ne.s32.totalorder %v316, 15
        %vm325 = vcmp.ne.s32.totalorder %v317, 15
        %v326 = vsel %vm324, 1, 0
        %v327 = vsel %vm325, 1, 0
        %v328 = vcvt.s32.f32 %v326
        %v329 = vcvt.s32.f32 %v327
        %v330 = vld [vmem:[%s247] sm:$0xff]
        %s331 = sld [smem:[#allocation8]]
        %v332 = vstv %s331
        %s333 = sld [smem:[#allocation8 + $0x1]]
        %v334 = vstv %s333
        %s335 = sld [smem:[#allocation8 + $0x2]]
        %v336 = vstv %s335
        %s337 = sld [smem:[#allocation8 + $0x3]]
        %v338 = vstv %s337
        %v340 = vlaneseq
        %v341 = vshrl.u32 %v340, 7
        %v342 = vsub.s32 0, %v341
        %v343 = vrot.slane %v330, %v342
        %v344 = vlaneseq
        %v345 = vshrl.u32 %v344, 7
        %v346 = vsub.s32 4, %v345
        %v347 = vrot.slane %v330, %v346
        %348 = vrot.lane.b32.xlu0 %v343, 17
        %v349 = vpop.permute.xlu0 %348
        %350 = vrot.lane.b32.xlu0 %v347, 17
        %v351 = vpop.permute.xlu0 %350
        %vm352 = vcmask 138240
        %v353 = vsel %vm352, %v349, %v351
        %v357 = vsel %vm352, 0.0, %v349
        %v358 = vsel %vm352, %v351, 0.0
        %v359 = vmul.f32 %v357, %v322
        %v360 = vmul.f32 %v353, %v323
        %s361 = sld [smem:[#allocation7]]
        %v362 = vstv %s361
        %v363 = vmul.f32 %v359, %v362
        %v364 = vmul.f32 %v360, %v362
        %v365 = vadd.f32 %v332, %v363
        %v366 = vadd.f32 %v332, %v364
        %s367 = sld [smem:[#allocation7 + $0x24]]
        %v368 = vstv %s367
        %v369 = vmul.f32 %v359, %v368
        %v370 = vmul.f32 %v360, %v368
        %v371 = vadd.f32 %v334, %v369
        %v372 = vadd.f32 %v334, %v370
        %s373 = sld [smem:[#allocation7 + $0x48]]
        %v374 = vstv %s373
        %v375 = vmul.f32 %v359, %v374
        %v376 = vmul.f32 %v360, %v374
        %v377 = vadd.f32 %v336, %v375
        %v378 = vadd.f32 %v336, %v376
        %s379 = sld [smem:[#allocation7 + $0x6c]]
        %v380 = vstv %s379
        %v381 = vmul.f32 %v359, %v380
        %v382 = vmul.f32 %v360, %v380
        %v383 = vadd.f32 %v338, %v381
        %v384 = vadd.f32 %v338, %v382
        %s385 = sld [smem:[#allocation7 + $0x1]]
        %v386 = vstv %s385
        %v387 = vmul.f32 %v357, %v386
        %v388 = vmul.f32 %v353, %v386
        %v389 = vmul.f32 %v358, %v386
        %393 = vrot.lane.b32.xlu0 %v387, 127
        %v394 = vpop.permute.xlu0 %393
        %395 = vrot.lane.b32.xlu0 %v388, 127
        %v396 = vpop.permute.xlu0 %395
        %397 = vrot.lane.b32.xlu0 %v389, 127
        %v398 = vpop.permute.xlu0 %397
        %vm399 = vcmask 1039360
        %v400 = vsel %vm399, %v394, %v396
        %v401 = vsel %vm399, %v396, %v398
        %v404 = vadd.f32 %v365, %v400
        %v405 = vadd.f32 %v366, %v401
        %s406 = sld [smem:[#allocation7 + $0x25]]
        %v407 = vstv %s406
        %v408 = vmul.f32 %v357, %v407
        %v409 = vmul.f32 %v353, %v407
        %v410 = vmul.f32 %v358, %v407
        %414 = vrot.lane.b32.xlu0 %v408, 127
        %v415 = vpop.permute.xlu0 %414
        %416 = vrot.lane.b32.xlu0 %v409, 127
        %v417 = vpop.permute.xlu0 %416
        %418 = vrot.lane.b32.xlu0 %v410, 127
        %v419 = vpop.permute.xlu0 %418
        %v420 = vsel %vm399, %v415, %v417
        %v421 = vsel %vm399, %v417, %v419
        %v424 = vadd.f32 %v371, %v420
        %v425 = vadd.f32 %v372, %v421
        %s426 = sld [smem:[#allocation7 + $0x49]]
        %v427 = vstv %s426
        %v428 = vmul.f32 %v357, %v427
        %v429 = vmul.f32 %v353, %v427
        %v430 = vmul.f32 %v358, %v427
        %434 = vrot.lane.b32.xlu0 %v428, 127
        %v435 = vpop.permute.xlu0 %434
        %436 = vrot.lane.b32.xlu0 %v429, 127
        %v437 = vpop.permute.xlu0 %436
        %438 = vrot.lane.b32.xlu0 %v430, 127
        %v439 = vpop.permute.xlu0 %438
        %v440 = vsel %vm399, %v435, %v437
        %v441 = vsel %vm399, %v437, %v439
        %v444 = vadd.f32 %v377, %v440
        %v445 = vadd.f32 %v378, %v441
        %s446 = sld [smem:[#allocation7 + $0x6d]]
        %v447 = vstv %s446
        %v448 = vmul.f32 %v357, %v447
        %v449 = vmul.f32 %v353, %v447
        %v450 = vmul.f32 %v358, %v447
        %454 = vrot.lane.b32.xlu0 %v448, 127
        %v455 = vpop.permute.xlu0 %454
        %456 = vrot.lane.b32.xlu0 %v449, 127
        %v457 = vpop.permute.xlu0 %456
        %458 = vrot.lane.b32.xlu0 %v450, 127
        %v459 = vpop.permute.xlu0 %458
        %v460 = vsel %vm399, %v455, %v457
        %v461 = vsel %vm399, %v457, %v459
        %v464 = vadd.f32 %v383, %v460
        %v465 = vadd.f32 %v384, %v461
        %468 = vrot.lane.b32.xlu0 %v328, 2
        %v469 = vpop.permute.xlu0 %468
        %470 = vrot.lane.b32.xlu0 %v329, 2
        %v471 = vpop.permute.xlu0 %470
        %vm472 = vcmask 15360
        %v473 = vsel %vm472, %v469, %v471
        %v477 = vmul.f32 %v357, %v469
        %v478 = vmul.f32 %v353, %v473
        %v479 = vmul.f32 %v358, %v471
        %s480 = sld [smem:[#allocation7 + $0x2]]
        %v481 = vstv %s480
        %v482 = vmul.f32 %v477, %v481
        %v483 = vmul.f32 %v478, %v481
        %v484 = vmul.f32 %v479, %v481
        %488 = vrot.lane.b32.xlu0 %v482, 126
        %v489 = vpop.permute.xlu0 %488
        %490 = vrot.lane.b32.xlu0 %v483, 126
        %v491 = vpop.permute.xlu0 %490
        %492 = vrot.lane.b32.xlu0 %v484, 126
        %v493 = vpop.permute.xlu0 %492
        %vm494 = vcmask 1031168
        %v495 = vsel %vm494, %v489, %v491
        %v496 = vsel %vm494, %v491, %v493
        %v499 = vadd.f32 %v404, %v495
        %v500 = vadd.f32 %v405, %v496
        %s501 = sld [smem:[#allocation7 + $0x26]]
        %v502 = vstv %s501
        %v503 = vmul.f32 %v477, %v502
        %v504 = vmul.f32 %v478, %v502
        %v505 = vmul.f32 %v479, %v502
        %509 = vrot.lane.b32.xlu0 %v503, 126
        %v510 = vpop.permute.xlu0 %509
        %511 = vrot.lane.b32.xlu0 %v504, 126
        %v512 = vpop.permute.xlu0 %511
        %513 = vrot.lane.b32.xlu0 %v505, 126
        %v514 = vpop.permute.xlu0 %513
        %v515 = vsel %vm494, %v510, %v512
        %v516 = vsel %vm494, %v512, %v514
        %v519 = vadd.f32 %v424, %v515
        %v520 = vadd.f32 %v425, %v516
        %s521 = sld [smem:[#allocation7 + $0x4a]]
        %v522 = vstv %s521
        %v523 = vmul.f32 %v477, %v522
        %v524 = vmul.f32 %v478, %v522
        %v525 = vmul.f32 %v479, %v522
        %529 = vrot.lane.b32.xlu0 %v523, 126
        %v530 = vpop.permute.xlu0 %529
        %531 = vrot.lane.b32.xlu0 %v524, 126
        %v532 = vpop.permute.xlu0 %531
        %533 = vrot.lane.b32.xlu0 %v525, 126
        %v534 = vpop.permute.xlu0 %533
        %v535 = vsel %vm494, %v530, %v532
        %v536 = vsel %vm494, %v532, %v534
        %v539 = vadd.f32 %v444, %v535
        %v540 = vadd.f32 %v445, %v536
        %s541 = sld [smem:[#allocation7 + $0x6e]]
        %v542 = vstv %s541
        %v543 = vmul.f32 %v477, %v542
        %v544 = vmul.f32 %v478, %v542
        %v545 = vmul.f32 %v479, %v542
        %549 = vrot.lane.b32.xlu0 %v543, 126
        %v550 = vpop.permute.xlu0 %549
        %551 = vrot.lane.b32.xlu0 %v544, 126
        %v552 = vpop.permute.xlu0 %551
        %553 = vrot.lane.b32.xlu0 %v545, 126
        %v554 = vpop.permute.xlu0 %553
        %v555 = vsel %vm494, %v550, %v552
        %v556 = vsel %vm494, %v552, %v554
        %v559 = vadd.f32 %v464, %v555
        %v560 = vadd.f32 %v465, %v556
        %563 = vrot.lane.b32.xlu0 %v322, 16
        %v564 = vpop.permute.xlu0 %563
        %565 = vrot.lane.b32.xlu0 %v323, 16
        %v566 = vpop.permute.xlu0 %565
        %vm567 = vcmask 130048
        %v568 = vsel %vm567, %v564, %v566
        %v572 = vmul.f32 %v357, %v564
        %v573 = vmul.f32 %v353, %v568
        %v574 = vmul.f32 %v358, %v566
        %s575 = sld [smem:[#allocation7 + $0x3]]
        %v576 = vstv %s575
        %v577 = vmul.f32 %v572, %v576
        %v578 = vmul.f32 %v573, %v576
        %v579 = vmul.f32 %v574, %v576
        %583 = vrot.lane.b32.xlu0 %v577, 112
        %v584 = vpop.permute.xlu0 %583
        %585 = vrot.lane.b32.xlu0 %v578, 112
        %v586 = vpop.permute.xlu0 %585
        %587 = vrot.lane.b32.xlu0 %v579, 112
        %v588 = vpop.permute.xlu0 %587
        %vm589 = vcmask 916480
        %v590 = vsel %vm589, %v584, %v586
        %v591 = vsel %vm589, %v586, %v588
        %v594 = vadd.f32 %v499, %v590
        %v595 = vadd.f32 %v500, %v591
        %s596 = sld [smem:[#allocation7 + $0x27]]
        %v597 = vstv %s596
        %v598 = vmul.f32 %v572, %v597
        %v599 = vmul.f32 %v573, %v597
        %v600 = vmul.f32 %v574, %v597
        %604 = vrot.lane.b32.xlu0 %v598, 112
        %v605 = vpop.permute.xlu0 %604
        %606 = vrot.lane.b32.xlu0 %v599, 112
        %v607 = vpop.permute.xlu0 %606
        %608 = vrot.lane.b32.xlu0 %v600, 112
        %v609 = vpop.permute.xlu0 %608
        %v610 = vsel %vm589, %v605, %v607
        %v611 = vsel %vm589, %v607, %v609
        %v614 = vadd.f32 %v519, %v610
        %v615 = vadd.f32 %v520, %v611
        %s616 = sld [smem:[#allocation7 + $0x4b]]
        %v617 = vstv %s616
        %v618 = vmul.f32 %v572, %v617
        %v619 = vmul.f32 %v573, %v617
        %v620 = vmul.f32 %v574, %v617
        %624 = vrot.lane.b32.xlu0 %v618, 112
        %v625 = vpop.permute.xlu0 %624
        %626 = vrot.lane.b32.xlu0 %v619, 112
        %v627 = vpop.permute.xlu0 %626
        %628 = vrot.lane.b32.xlu0 %v620, 112
        %v629 = vpop.permute.xlu0 %628
        %v630 = vsel %vm589, %v625, %v627
        %v631 = vsel %vm589, %v627, %v629
        %v634 = vadd.f32 %v539, %v630
        %v635 = vadd.f32 %v540, %v631
        %s636 = sld [smem:[#allocation7 + $0x6f]]
        %v637 = vstv %s636
        %v638 = vmul.f32 %v572, %v637
        %v639 = vmul.f32 %v573, %v637
        %v640 = vmul.f32 %v574, %v637
        %644 = vrot.lane.b32.xlu0 %v638, 112
        %v645 = vpop.permute.xlu0 %644
        %646 = vrot.lane.b32.xlu0 %v639, 112
        %v647 = vpop.permute.xlu0 %646
        %648 = vrot.lane.b32.xlu0 %v640, 112
        %v649 = vpop.permute.xlu0 %648
        %v650 = vsel %vm589, %v645, %v647
        %v651 = vsel %vm589, %v647, %v649
        %v654 = vadd.f32 %v559, %v650
        %v655 = vadd.f32 %v560, %v651
        %s656 = sld [smem:[#allocation7 + $0x4]]
        %v657 = vstv %s656
        %v658 = vmul.f32 %v357, %v657
        %v659 = vmul.f32 %v353, %v657
        %v660 = vmul.f32 %v358, %v657
        %664 = vrot.lane.b32.xlu0 %v658, 111
        %v665 = vpop.permute.xlu0 %664
        %666 = vrot.lane.b32.xlu0 %v659, 111
        %v667 = vpop.permute.xlu0 %666
        %668 = vrot.lane.b32.xlu0 %v660, 111
        %v669 = vpop.permute.xlu0 %668
        %vm670 = vcmask 908288
        %v671 = vsel %vm670, %v665, %v667
        %v672 = vsel %vm670, %v667, %v669
        %v675 = vadd.f32 %v594, %v671
        %v676 = vadd.f32 %v595, %v672
        %s677 = sld [smem:[#allocation7 + $0x28]]
        %v678 = vstv %s677
        %v679 = vmul.f32 %v357, %v678
        %v680 = vmul.f32 %v353, %v678
        %v681 = vmul.f32 %v358, %v678
        %685 = vrot.lane.b32.xlu0 %v679, 111
        %v686 = vpop.permute.xlu0 %685
        %687 = vrot.lane.b32.xlu0 %v680, 111
        %v688 = vpop.permute.xlu0 %687
        %689 = vrot.lane.b32.xlu0 %v681, 111
        %v690 = vpop.permute.xlu0 %689
        %v691 = vsel %vm670, %v686, %v688
        %v692 = vsel %vm670, %v688, %v690
        %v695 = vadd.f32 %v614, %v691
        %v696 = vadd.f32 %v615, %v692
        %s697 = sld [smem:[#allocation7 + $0x4c]]
        %v698 = vstv %s697
        %v699 = vmul.f32 %v357, %v698
        %v700 = vmul.f32 %v353, %v698
        %v701 = vmul.f32 %v358, %v698
        %705 = vrot.lane.b32.xlu0 %v699, 111
        %v706 = vpop.permute.xlu0 %705
        %707 = vrot.lane.b32.xlu0 %v700, 111
        %v708 = vpop.permute.xlu0 %707
        %709 = vrot.lane.b32.xlu0 %v701, 111
        %v710 = vpop.permute.xlu0 %709
        %v711 = vsel %vm670, %v706, %v708
        %v712 = vsel %vm670, %v708, %v710
        %v715 = vadd.f32 %v634, %v711
        %v716 = vadd.f32 %v635, %v712
        %s717 = sld [smem:[#allocation7 + $0x70]]
        %v718 = vstv %s717
        %v719 = vmul.f32 %v357, %v718
        %v720 = vmul.f32 %v353, %v718
        %v721 = vmul.f32 %v358, %v718
        %725 = vrot.lane.b32.xlu0 %v719, 111
        %v726 = vpop.permute.xlu0 %725
        %727 = vrot.lane.b32.xlu0 %v720, 111
        %v728 = vpop.permute.xlu0 %727
        %729 = vrot.lane.b32.xlu0 %v721, 111
        %v730 = vpop.permute.xlu0 %729
        %v731 = vsel %vm670, %v726, %v728
        %v732 = vsel %vm670, %v728, %v730
        %v735 = vadd.f32 %v654, %v731
        %v736 = vadd.f32 %v655, %v732
        %737 = vrot.lane.b32.xlu0 %v328, 18
        %v738 = vpop.permute.xlu0 %737
        %739 = vrot.lane.b32.xlu0 %v329, 18
        %v740 = vpop.permute.xlu0 %739
        %vm741 = vcmask 146432
        %v742 = vsel %vm741, %v738, %v740
        %v746 = vmul.f32 %v357, %v738
        %v747 = vmul.f32 %v353, %v742
        %v748 = vmul.f32 %v358, %v740
        %s749 = sld [smem:[#allocation7 + $0x5]]
        %v750 = vstv %s749
        %v751 = vmul.f32 %v746, %v750
        %v752 = vmul.f32 %v747, %v750
        %v753 = vmul.f32 %v748, %v750
        %757 = vrot.lane.b32.xlu0 %v751, 110
        %v758 = vpop.permute.xlu0 %757
        %759 = vrot.lane.b32.xlu0 %v752, 110
        %v760 = vpop.permute.xlu0 %759
        %761 = vrot.lane.b32.xlu0 %v753, 110
        %v762 = vpop.permute.xlu0 %761
        %vm763 = vcmask 900096
        %v764 = vsel %vm763, %v758, %v760
        %v765 = vsel %vm763, %v760, %v762
        %v768 = vadd.f32 %v675, %v764
        %v769 = vadd.f32 %v676, %v765
        %s770 = sld [smem:[#allocation7 + $0x29]]
        %v771 = vstv %s770
        %v772 = vmul.f32 %v746, %v771
        %v773 = vmul.f32 %v747, %v771
        %v774 = vmul.f32 %v748, %v771
        %778 = vrot.lane.b32.xlu0 %v772, 110
        %v779 = vpop.permute.xlu0 %778
        %780 = vrot.lane.b32.xlu0 %v773, 110
        %v781 = vpop.permute.xlu0 %780
        %782 = vrot.lane.b32.xlu0 %v774, 110
        %v783 = vpop.permute.xlu0 %782
        %v784 = vsel %vm763, %v779, %v781
        %v785 = vsel %vm763, %v781, %v783
        %v788 = vadd.f32 %v695, %v784
        %v789 = vadd.f32 %v696, %v785
        %s790 = sld [smem:[#allocation7 + $0x4d]]
        %v791 = vstv %s790
        %v792 = vmul.f32 %v746, %v791
        %v793 = vmul.f32 %v747, %v791
        %v794 = vmul.f32 %v748, %v791
        %798 = vrot.lane.b32.xlu0 %v792, 110
        %v799 = vpop.permute.xlu0 %798
        %800 = vrot.lane.b32.xlu0 %v793, 110
        %v801 = vpop.permute.xlu0 %800
        %802 = vrot.lane.b32.xlu0 %v794, 110
        %v803 = vpop.permute.xlu0 %802
        %v804 = vsel %vm763, %v799, %v801
        %v805 = vsel %vm763, %v801, %v803
        %v808 = vadd.f32 %v715, %v804
        %v809 = vadd.f32 %v716, %v805
        %s810 = sld [smem:[#allocation7 + $0x71]]
        %v811 = vstv %s810
        %v812 = vmul.f32 %v746, %v811
        %v813 = vmul.f32 %v747, %v811
        %v814 = vmul.f32 %v748, %v811
        %818 = vrot.lane.b32.xlu0 %v812, 110
        %v819 = vpop.permute.xlu0 %818
        %820 = vrot.lane.b32.xlu0 %v813, 110
        %v821 = vpop.permute.xlu0 %820
        %822 = vrot.lane.b32.xlu0 %v814, 110
        %v823 = vpop.permute.xlu0 %822
        %v824 = vsel %vm763, %v819, %v821
        %v825 = vsel %vm763, %v821, %v823
        %v828 = vadd.f32 %v735, %v824
        %v829 = vadd.f32 %v736, %v825
        %830 = vrot.lane.b32.xlu0 %v322, 32
        %v831 = vpop.permute.xlu0 %830
        %832 = vrot.lane.b32.xlu0 %v323, 32
        %v833 = vpop.permute.xlu0 %832
        %vm834 = vcmask 261120
        %v835 = vsel %vm834, %v831, %v833
        %v839 = vmul.f32 %v357, %v831
        %v840 = vmul.f32 %v353, %v835
        %v841 = vmul.f32 %v358, %v833
        %s842 = sld [smem:[#allocation7 + $0x6]]
        %v843 = vstv %s842
        %v844 = vmul.f32 %v839, %v843
        %v845 = vmul.f32 %v840, %v843
        %v846 = vmul.f32 %v841, %v843
        %850 = vrot.lane.b32.xlu0 %v844, 96
        %v851 = vpop.permute.xlu0 %850
        %852 = vrot.lane.b32.xlu0 %v845, 96
        %v853 = vpop.permute.xlu0 %852
        %854 = vrot.lane.b32.xlu0 %v846, 96
        %v855 = vpop.permute.xlu0 %854
        %vm856 = vcmask 785408
        %v857 = vsel %vm856, %v851, %v853
        %v858 = vsel %vm856, %v853, %v855
        %v861 = vadd.f32 %v768, %v857
        %v862 = vadd.f32 %v769, %v858
        %s863 = sld [smem:[#allocation7 + $0x2a]]
        %v864 = vstv %s863
        %v865 = vmul.f32 %v839, %v864
        %v866 = vmul.f32 %v840, %v864
        %v867 = vmul.f32 %v841, %v864
        %871 = vrot.lane.b32.xlu0 %v865, 96
        %v872 = vpop.permute.xlu0 %871
        %873 = vrot.lane.b32.xlu0 %v866, 96
        %v874 = vpop.permute.xlu0 %873
        %875 = vrot.lane.b32.xlu0 %v867, 96
        %v876 = vpop.permute.xlu0 %875
        %v877 = vsel %vm856, %v872, %v874
        %v878 = vsel %vm856, %v874, %v876
        %v881 = vadd.f32 %v788, %v877
        %v882 = vadd.f32 %v789, %v878
        %s883 = sld [smem:[#allocation7 + $0x4e]]
        %v884 = vstv %s883
        %v885 = vmul.f32 %v839, %v884
        %v886 = vmul.f32 %v840, %v884
        %v887 = vmul.f32 %v841, %v884
        %891 = vrot.lane.b32.xlu0 %v885, 96
        %v892 = vpop.permute.xlu0 %891
        %893 = vrot.lane.b32.xlu0 %v886, 96
        %v894 = vpop.permute.xlu0 %893
        %895 = vrot.lane.b32.xlu0 %v887, 96
        %v896 = vpop.permute.xlu0 %895
        %v897 = vsel %vm856, %v892, %v894
        %v898 = vsel %vm856, %v894, %v896
        %v901 = vadd.f32 %v808, %v897
        %v902 = vadd.f32 %v809, %v898
        %s903 = sld [smem:[#allocation7 + $0x72]]
        %v904 = vstv %s903
        %v905 = vmul.f32 %v839, %v904
        %v906 = vmul.f32 %v840, %v904
        %v907 = vmul.f32 %v841, %v904
        %911 = vrot.lane.b32.xlu0 %v905, 96
        %v912 = vpop.permute.xlu0 %911
        %913 = vrot.lane.b32.xlu0 %v906, 96
        %v914 = vpop.permute.xlu0 %913
        %915 = vrot.lane.b32.xlu0 %v907, 96
        %v916 = vpop.permute.xlu0 %915
        %v917 = vsel %vm856, %v912, %v914
        %v918 = vsel %vm856, %v914, %v916
        %v921 = vadd.f32 %v828, %v917
        %v922 = vadd.f32 %v829, %v918
        %s923 = sld [smem:[#allocation7 + $0x7]]
        %v924 = vstv %s923
        %v925 = vmul.f32 %v357, %v924
        %v926 = vmul.f32 %v353, %v924
        %v927 = vmul.f32 %v358, %v924
        %931 = vrot.lane.b32.xlu0 %v925, 95
        %v932 = vpop.permute.xlu0 %931
        %933 = vrot.lane.b32.xlu0 %v926, 95
        %v934 = vpop.permute.xlu0 %933
        %935 = vrot.lane.b32.xlu0 %v927, 95
        %v936 = vpop.permute.xlu0 %935
        %vm937 = vcmask 777216
        %v938 = vsel %vm937, %v932, %v934
        %v939 = vsel %vm937, %v934, %v936
        %v942 = vadd.f32 %v861, %v938
        %v943 = vadd.f32 %v862, %v939
        %s944 = sld [smem:[#allocation7 + $0x2b]]
        %v945 = vstv %s944
        %v946 = vmul.f32 %v357, %v945
        %v947 = vmul.f32 %v353, %v945
        %v948 = vmul.f32 %v358, %v945
        %952 = vrot.lane.b32.xlu0 %v946, 95
        %v953 = vpop.permute.xlu0 %952
        %954 = vrot.lane.b32.xlu0 %v947, 95
        %v955 = vpop.permute.xlu0 %954
        %956 = vrot.lane.b32.xlu0 %v948, 95
        %v957 = vpop.permute.xlu0 %956
        %v958 = vsel %vm937, %v953, %v955
        %v959 = vsel %vm937, %v955, %v957
        %v962 = vadd.f32 %v881, %v958
        %v963 = vadd.f32 %v882, %v959
        %s964 = sld [smem:[#allocation7 + $0x4f]]
        %v965 = vstv %s964
        %v966 = vmul.f32 %v357, %v965
        %v967 = vmul.f32 %v353, %v965
        %v968 = vmul.f32 %v358, %v965
        %972 = vrot.lane.b32.xlu0 %v966, 95
        %v973 = vpop.permute.xlu0 %972
        %974 = vrot.lane.b32.xlu0 %v967, 95
        %v975 = vpop.permute.xlu0 %974
        %976 = vrot.lane.b32.xlu0 %v968, 95
        %v977 = vpop.permute.xlu0 %976
        %v978 = vsel %vm937, %v973, %v975
        %v979 = vsel %vm937, %v975, %v977
        %v982 = vadd.f32 %v901, %v978
        %v983 = vadd.f32 %v902, %v979
        %s984 = sld [smem:[#allocation7 + $0x73]]
        %v985 = vstv %s984
        %v986 = vmul.f32 %v357, %v985
        %v987 = vmul.f32 %v353, %v985
        %v988 = vmul.f32 %v358, %v985
        %992 = vrot.lane.b32.xlu0 %v986, 95
        %v993 = vpop.permute.xlu0 %992
        %994 = vrot.lane.b32.xlu0 %v987, 95
        %v995 = vpop.permute.xlu0 %994
        %996 = vrot.lane.b32.xlu0 %v988, 95
        %v997 = vpop.permute.xlu0 %996
        %v998 = vsel %vm937, %v993, %v995
        %v999 = vsel %vm937, %v995, %v997
        %v1002 = vadd.f32 %v921, %v998
        %v1003 = vadd.f32 %v922, %v999
        %1004 = vrot.lane.b32.xlu0 %v328, 34
        %v1005 = vpop.permute.xlu0 %1004
        %1006 = vrot.lane.b32.xlu0 %v329, 34
        %v1007 = vpop.permute.xlu0 %1006
        %vm1008 = vcmask 277504
        %v1009 = vsel %vm1008, %v1005, %v1007
        %v1013 = vmul.f32 %v357, %v1005
        %v1014 = vmul.f32 %v353, %v1009
        %v1015 = vmul.f32 %v358, %v1007
        %s1016 = sld [smem:[#allocation7 + $0x8]]
        %v1017 = vstv %s1016
        %v1018 = vmul.f32 %v1013, %v1017
        %v1019 = vmul.f32 %v1014, %v1017
        %v1020 = vmul.f32 %v1015, %v1017
        %1024 = vrot.lane.b32.xlu0 %v1018, 94
        %v1025 = vpop.permute.xlu0 %1024
        %1026 = vrot.lane.b32.xlu0 %v1019, 94
        %v1027 = vpop.permute.xlu0 %1026
        %1028 = vrot.lane.b32.xlu0 %v1020, 94
        %v1029 = vpop.permute.xlu0 %1028
        %vm1030 = vcmask 769024
        %v1031 = vsel %vm1030, %v1025, %v1027
        %v1032 = vsel %vm1030, %v1027, %v1029
        %v1035 = vadd.f32 %v942, %v1031
        %v1036 = vadd.f32 %v943, %v1032
        %s1037 = sld [smem:[#allocation7 + $0x2c]]
        %v1038 = vstv %s1037
        %v1039 = vmul.f32 %v1013, %v1038
        %v1040 = vmul.f32 %v1014, %v1038
        %v1041 = vmul.f32 %v1015, %v1038
        %1045 = vrot.lane.b32.xlu0 %v1039, 94
        %v1046 = vpop.permute.xlu0 %1045
        %1047 = vrot.lane.b32.xlu0 %v1040, 94
        %v1048 = vpop.permute.xlu0 %1047
        %1049 = vrot.lane.b32.xlu0 %v1041, 94
        %v1050 = vpop.permute.xlu0 %1049
        %v1051 = vsel %vm1030, %v1046, %v1048
        %v1052 = vsel %vm1030, %v1048, %v1050
        %v1055 = vadd.f32 %v962, %v1051
        %v1056 = vadd.f32 %v963, %v1052
        %s1057 = sld [smem:[#allocation7 + $0x50]]
        %v1058 = vstv %s1057
        %v1059 = vmul.f32 %v1013, %v1058
        %v1060 = vmul.f32 %v1014, %v1058
        %v1061 = vmul.f32 %v1015, %v1058
        %1065 = vrot.lane.b32.xlu0 %v1059, 94
        %v1066 = vpop.permute.xlu0 %1065
        %1067 = vrot.lane.b32.xlu0 %v1060, 94
        %v1068 = vpop.permute.xlu0 %1067
        %1069 = vrot.lane.b32.xlu0 %v1061, 94
        %v1070 = vpop.permute.xlu0 %1069
        %v1071 = vsel %vm1030, %v1066, %v1068
        %v1072 = vsel %vm1030, %v1068, %v1070
        %v1075 = vadd.f32 %v982, %v1071
        %v1076 = vadd.f32 %v983, %v1072
        %s1077 = sld [smem:[#allocation7 + $0x74]]
        %v1078 = vstv %s1077
        %v1079 = vmul.f32 %v1013, %v1078
        %v1080 = vmul.f32 %v1014, %v1078
        %v1081 = vmul.f32 %v1015, %v1078
        %1085 = vrot.lane.b32.xlu0 %v1079, 94
        %v1086 = vpop.permute.xlu0 %1085
        %1087 = vrot.lane.b32.xlu0 %v1080, 94
        %v1088 = vpop.permute.xlu0 %1087
        %1089 = vrot.lane.b32.xlu0 %v1081, 94
        %v1090 = vpop.permute.xlu0 %1089
        %v1091 = vsel %vm1030, %v1086, %v1088
        %v1092 = vsel %vm1030, %v1088, %v1090
        %v1095 = vadd.f32 %v1002, %v1091
        %v1096 = vadd.f32 %v1003, %v1092
        %v1097 = vlaneseq
        %v1098 = vshrl.u32 %v1097, 7
        %v1099 = vsub.s32 1, %v1098
        %v1100 = vrot.slane %v330, %v1099
        %v1101 = vlaneseq
        %v1102 = vshrl.u32 %v1101, 7
        %v1103 = vsub.s32 5, %v1102
        %v1104 = vrot.slane %v330, %v1103
        %1105 = vrot.lane.b32.xlu0 %v1100, 17
        %v1106 = vpop.permute.xlu0 %1105
        %1107 = vrot.lane.b32.xlu0 %v1104, 17
        %v1108 = vpop.permute.xlu0 %1107
        %v1109 = vsel %vm352, %v1106, %v1108
        %v1113 = vsel %vm352, 0.0, %v1106
        %v1114 = vsel %vm352, %v1108, 0.0
        %v1115 = vmul.f32 %v1113, %v322
        %v1116 = vmul.f32 %v1109, %v323
        %s1117 = sld [smem:[#allocation7 + $0x9]]
        %v1118 = vstv %s1117
        %v1119 = vmul.f32 %v1115, %v1118
        %v1120 = vmul.f32 %v1116, %v1118
        %v1121 = vadd.f32 %v1035, %v1119
        %v1122 = vadd.f32 %v1036, %v1120
        %s1123 = sld [smem:[#allocation7 + $0x2d]]
        %v1124 = vstv %s1123
        %v1125 = vmul.f32 %v1115, %v1124
        %v1126 = vmul.f32 %v1116, %v1124
        %v1127 = vadd.f32 %v1055, %v1125
        %v1128 = vadd.f32 %v1056, %v1126
        %s1129 = sld [smem:[#allocation7 + $0x51]]
        %v1130 = vstv %s1129
        %v1131 = vmul.f32 %v1115, %v1130
        %v1132 = vmul.f32 %v1116, %v1130
        %v1133 = vadd.f32 %v1075, %v1131
        %v1134 = vadd.f32 %v1076, %v1132
        %s1135 = sld [smem:[#allocation7 + $0x75]]
        %v1136 = vstv %s1135
        %v1137 = vmul.f32 %v1115, %v1136
        %v1138 = vmul.f32 %v1116, %v1136
        %v1139 = vadd.f32 %v1095, %v1137
        %v1140 = vadd.f32 %v1096, %v1138
        %s1141 = sld [smem:[#allocation7 + $0xa]]
        %v1142 = vstv %s1141
        %v1143 = vmul.f32 %v1113, %v1142
        %v1144 = vmul.f32 %v1109, %v1142
        %v1145 = vmul.f32 %v1114, %v1142
        %1149 = vrot.lane.b32.xlu0 %v1143, 127
        %v1150 = vpop.permute.xlu0 %1149
        %1151 = vrot.lane.b32.xlu0 %v1144, 127
        %v1152 = vpop.permute.xlu0 %1151
        %1153 = vrot.lane.b32.xlu0 %v1145, 127
        %v1154 = vpop.permute.xlu0 %1153
        %v1155 = vsel %vm399, %v1150, %v1152
        %v1156 = vsel %vm399, %v1152, %v1154
        %v1159 = vadd.f32 %v1121, %v1155
        %v1160 = vadd.f32 %v1122, %v1156
        %s1161 = sld [smem:[#allocation7 + $0x2e]]
        %v1162 = vstv %s1161
        %v1163 = vmul.f32 %v1113, %v1162
        %v1164 = vmul.f32 %v1109, %v1162
        %v1165 = vmul.f32 %v1114, %v1162
        %1169 = vrot.lane.b32.xlu0 %v1163, 127
        %v1170 = vpop.permute.xlu0 %1169
        %1171 = vrot.lane.b32.xlu0 %v1164, 127
        %v1172 = vpop.permute.xlu0 %1171
        %1173 = vrot.lane.b32.xlu0 %v1165, 127
        %v1174 = vpop.permute.xlu0 %1173
        %v1175 = vsel %vm399, %v1170, %v1172
        %v1176 = vsel %vm399, %v1172, %v1174
        %v1179 = vadd.f32 %v1127, %v1175
        %v1180 = vadd.f32 %v1128, %v1176
        %s1181 = sld [smem:[#allocation7 + $0x52]]
        %v1182 = vstv %s1181
        %v1183 = vmul.f32 %v1113, %v1182
        %v1184 = vmul.f32 %v1109, %v1182
        %v1185 = vmul.f32 %v1114, %v1182
        %1189 = vrot.lane.b32.xlu0 %v1183, 127
        %v1190 = vpop.permute.xlu0 %1189
        %1191 = vrot.lane.b32.xlu0 %v1184, 127
        %v1192 = vpop.permute.xlu0 %1191
        %1193 = vrot.lane.b32.xlu0 %v1185, 127
        %v1194 = vpop.permute.xlu0 %1193
        %v1195 = vsel %vm399, %v1190, %v1192
        %v1196 = vsel %vm399, %v1192, %v1194
        %v1199 = vadd.f32 %v1133, %v1195
        %v1200 = vadd.f32 %v1134, %v1196
        %s1201 = sld [smem:[#allocation7 + $0x76]]
        %v1202 = vstv %s1201
        %v1203 = vmul.f32 %v1113, %v1202
        %v1204 = vmul.f32 %v1109, %v1202
        %v1205 = vmul.f32 %v1114, %v1202
        %1209 = vrot.lane.b32.xlu0 %v1203, 127
        %v1210 = vpop.permute.xlu0 %1209
        %1211 = vrot.lane.b32.xlu0 %v1204, 127
        %v1212 = vpop.permute.xlu0 %1211
        %1213 = vrot.lane.b32.xlu0 %v1205, 127
        %v1214 = vpop.permute.xlu0 %1213
        %v1215 = vsel %vm399, %v1210, %v1212
        %v1216 = vsel %vm399, %v1212, %v1214
        %v1219 = vadd.f32 %v1139, %v1215
        %v1220 = vadd.f32 %v1140, %v1216
        %v1221 = vmul.f32 %v1113, %v469
        %v1222 = vmul.f32 %v1109, %v473
        %v1223 = vmul.f32 %v1114, %v471
        %s1224 = sld [smem:[#allocation7 + $0xb]]
        %v1225 = vstv %s1224
        %v1226 = vmul.f32 %v1221, %v1225
        %v1227 = vmul.f32 %v1222, %v1225
        %v1228 = vmul.f32 %v1223, %v1225
        %1232 = vrot.lane.b32.xlu0 %v1226, 126
        %v1233 = vpop.permute.xlu0 %1232
        %1234 = vrot.lane.b32.xlu0 %v1227, 126
        %v1235 = vpop.permute.xlu0 %1234
        %1236 = vrot.lane.b32.xlu0 %v1228, 126
        %v1237 = vpop.permute.xlu0 %1236
        %v1238 = vsel %vm494, %v1233, %v1235
        %v1239 = vsel %vm494, %v1235, %v1237
        %v1242 = vadd.f32 %v1159, %v1238
        %v1243 = vadd.f32 %v1160, %v1239
        %s1244 = sld [smem:[#allocation7 + $0x2f]]
        %v1245 = vstv %s1244
        %v1246 = vmul.f32 %v1221, %v1245
        %v1247 = vmul.f32 %v1222, %v1245
        %v1248 = vmul.f32 %v1223, %v1245
        %1252 = vrot.lane.b32.xlu0 %v1246, 126
        %v1253 = vpop.permute.xlu0 %1252
        %1254 = vrot.lane.b32.xlu0 %v1247, 126
        %v1255 = vpop.permute.xlu0 %1254
        %1256 = vrot.lane.b32.xlu0 %v1248, 126
        %v1257 = vpop.permute.xlu0 %1256
        %v1258 = vsel %vm494, %v1253, %v1255
        %v1259 = vsel %vm494, %v1255, %v1257
        %v1262 = vadd.f32 %v1179, %v1258
        %v1263 = vadd.f32 %v1180, %v1259
        %s1264 = sld [smem:[#allocation7 + $0x53]]
        %v1265 = vstv %s1264
        %v1266 = vmul.f32 %v1221, %v1265
        %v1267 = vmul.f32 %v1222, %v1265
        %v1268 = vmul.f32 %v1223, %v1265
        %1272 = vrot.lane.b32.xlu0 %v1266, 126
        %v1273 = vpop.permute.xlu0 %1272
        %1274 = vrot.lane.b32.xlu0 %v1267, 126
        %v1275 = vpop.permute.xlu0 %1274
        %1276 = vrot.lane.b32.xlu0 %v1268, 126
        %v1277 = vpop.permute.xlu0 %1276
        %v1278 = vsel %vm494, %v1273, %v1275
        %v1279 = vsel %vm494, %v1275, %v1277
        %v1282 = vadd.f32 %v1199, %v1278
        %v1283 = vadd.f32 %v1200, %v1279
        %s1284 = sld [smem:[#allocation7 + $0x77]]
        %v1285 = vstv %s1284
        %v1286 = vmul.f32 %v1221, %v1285
        %v1287 = vmul.f32 %v1222, %v1285
        %v1288 = vmul.f32 %v1223, %v1285
        %1292 = vrot.lane.b32.xlu0 %v1286, 126
        %v1293 = vpop.permute.xlu0 %1292
        %1294 = vrot.lane.b32.xlu0 %v1287, 126
        %v1295 = vpop.permute.xlu0 %1294
        %1296 = vrot.lane.b32.xlu0 %v1288, 126
        %v1297 = vpop.permute.xlu0 %1296
        %v1298 = vsel %vm494, %v1293, %v1295
        %v1299 = vsel %vm494, %v1295, %v1297
        %v1302 = vadd.f32 %v1219, %v1298
        %v1303 = vadd.f32 %v1220, %v1299
        %v1304 = vmul.f32 %v1113, %v564
        %v1305 = vmul.f32 %v1109, %v568
        %v1306 = vmul.f32 %v1114, %v566
        %s1307 = sld [smem:[#allocation7 + $0xc]]
        %v1308 = vstv %s1307
        %v1309 = vmul.f32 %v1304, %v1308
        %v1310 = vmul.f32 %v1305, %v1308
        %v1311 = vmul.f32 %v1306, %v1308
        %1315 = vrot.lane.b32.xlu0 %v1309, 112
        %v1316 = vpop.permute.xlu0 %1315
        %1317 = vrot.lane.b32.xlu0 %v1310, 112
        %v1318 = vpop.permute.xlu0 %1317
        %1319 = vrot.lane.b32.xlu0 %v1311, 112
        %v1320 = vpop.permute.xlu0 %1319
        %v1321 = vsel %vm589, %v1316, %v1318
        %v1322 = vsel %vm589, %v1318, %v1320
        %v1325 = vadd.f32 %v1242, %v1321
        %v1326 = vadd.f32 %v1243, %v1322
        %s1327 = sld [smem:[#allocation7 + $0x30]]
        %v1328 = vstv %s1327
        %v1329 = vmul.f32 %v1304, %v1328
        %v1330 = vmul.f32 %v1305, %v1328
        %v1331 = vmul.f32 %v1306, %v1328
        %1335 = vrot.lane.b32.xlu0 %v1329, 112
        %v1336 = vpop.permute.xlu0 %1335
        %1337 = vrot.lane.b32.xlu0 %v1330, 112
        %v1338 = vpop.permute.xlu0 %1337
        %1339 = vrot.lane.b32.xlu0 %v1331, 112
        %v1340 = vpop.permute.xlu0 %1339
        %v1341 = vsel %vm589, %v1336, %v1338
        %v1342 = vsel %vm589, %v1338, %v1340
        %v1345 = vadd.f32 %v1262, %v1341
        %v1346 = vadd.f32 %v1263, %v1342
        %s1347 = sld [smem:[#allocation7 + $0x54]]
        %v1348 = vstv %s1347
        %v1349 = vmul.f32 %v1304, %v1348
        %v1350 = vmul.f32 %v1305, %v1348
        %v1351 = vmul.f32 %v1306, %v1348
        %1355 = vrot.lane.b32.xlu0 %v1349, 112
        %v1356 = vpop.permute.xlu0 %1355
        %1357 = vrot.lane.b32.xlu0 %v1350, 112
        %v1358 = vpop.permute.xlu0 %1357
        %1359 = vrot.lane.b32.xlu0 %v1351, 112
        %v1360 = vpop.permute.xlu0 %1359
        %v1361 = vsel %vm589, %v1356, %v1358
        %v1362 = vsel %vm589, %v1358, %v1360
        %v1365 = vadd.f32 %v1282, %v1361
        %v1366 = vadd.f32 %v1283, %v1362
        %s1367 = sld [smem:[#allocation7 + $0x78]]
        %v1368 = vstv %s1367
        %v1369 = vmul.f32 %v1304, %v1368
        %v1370 = vmul.f32 %v1305, %v1368
        %v1371 = vmul.f32 %v1306, %v1368
        %1375 = vrot.lane.b32.xlu0 %v1369, 112
        %v1376 = vpop.permute.xlu0 %1375
        %1377 = vrot.lane.b32.xlu0 %v1370, 112
        %v1378 = vpop.permute.xlu0 %1377
        %1379 = vrot.lane.b32.xlu0 %v1371, 112
        %v1380 = vpop.permute.xlu0 %1379
        %v1381 = vsel %vm589, %v1376, %v1378
        %v1382 = vsel %vm589, %v1378, %v1380
        %v1385 = vadd.f32 %v1302, %v1381
        %v1386 = vadd.f32 %v1303, %v1382
        %s1387 = sld [smem:[#allocation7 + $0xd]]
        %v1388 = vstv %s1387
        %v1389 = vmul.f32 %v1113, %v1388
        %v1390 = vmul.f32 %v1109, %v1388
        %v1391 = vmul.f32 %v1114, %v1388
        %1395 = vrot.lane.b32.xlu0 %v1389, 111
        %v1396 = vpop.permute.xlu0 %1395
        %1397 = vrot.lane.b32.xlu0 %v1390, 111
        %v1398 = vpop.permute.xlu0 %1397
        %1399 = vrot.lane.b32.xlu0 %v1391, 111
        %v1400 = vpop.permute.xlu0 %1399
        %v1401 = vsel %vm670, %v1396, %v1398
        %v1402 = vsel %vm670, %v1398, %v1400
        %v1405 = vadd.f32 %v1325, %v1401
        %v1406 = vadd.f32 %v1326, %v1402
        %s1407 = sld [smem:[#allocation7 + $0x31]]
        %v1408 = vstv %s1407
        %v1409 = vmul.f32 %v1113, %v1408
        %v1410 = vmul.f32 %v1109, %v1408
        %v1411 = vmul.f32 %v1114, %v1408
        %1415 = vrot.lane.b32.xlu0 %v1409, 111
        %v1416 = vpop.permute.xlu0 %1415
        %1417 = vrot.lane.b32.xlu0 %v1410, 111
        %v1418 = vpop.permute.xlu0 %1417
        %1419 = vrot.lane.b32.xlu0 %v1411, 111
        %v1420 = vpop.permute.xlu0 %1419
        %v1421 = vsel %vm670, %v1416, %v1418
        %v1422 = vsel %vm670, %v1418, %v1420
        %v1425 = vadd.f32 %v1345, %v1421
        %v1426 = vadd.f32 %v1346, %v1422
        %s1427 = sld [smem:[#allocation7 + $0x55]]
        %v1428 = vstv %s1427
        %v1429 = vmul.f32 %v1113, %v1428
        %v1430 = vmul.f32 %v1109, %v1428
        %v1431 = vmul.f32 %v1114, %v1428
        %1435 = vrot.lane.b32.xlu0 %v1429, 111
        %v1436 = vpop.permute.xlu0 %1435
        %1437 = vrot.lane.b32.xlu0 %v1430, 111
        %v1438 = vpop.permute.xlu0 %1437
        %1439 = vrot.lane.b32.xlu0 %v1431, 111
        %v1440 = vpop.permute.xlu0 %1439
        %v1441 = vsel %vm670, %v1436, %v1438
        %v1442 = vsel %vm670, %v1438, %v1440
        %v1445 = vadd.f32 %v1365, %v1441
        %v1446 = vadd.f32 %v1366, %v1442
        %s1447 = sld [smem:[#allocation7 + $0x79]]
        %v1448 = vstv %s1447
        %v1449 = vmul.f32 %v1113, %v1448
        %v1450 = vmul.f32 %v1109, %v1448
        %v1451 = vmul.f32 %v1114, %v1448
        %1455 = vrot.lane.b32.xlu0 %v1449, 111
        %v1456 = vpop.permute.xlu0 %1455
        %1457 = vrot.lane.b32.xlu0 %v1450, 111
        %v1458 = vpop.permute.xlu0 %1457
        %1459 = vrot.lane.b32.xlu0 %v1451, 111
        %v1460 = vpop.permute.xlu0 %1459
        %v1461 = vsel %vm670, %v1456, %v1458
        %v1462 = vsel %vm670, %v1458, %v1460
        %v1465 = vadd.f32 %v1385, %v1461
        %v1466 = vadd.f32 %v1386, %v1462
        %v1467 = vmul.f32 %v1113, %v738
        %v1468 = vmul.f32 %v1109, %v742
        %v1469 = vmul.f32 %v1114, %v740
        %s1470 = sld [smem:[#allocation7 + $0xe]]
        %v1471 = vstv %s1470
        %v1472 = vmul.f32 %v1467, %v1471
        %v1473 = vmul.f32 %v1468, %v1471
        %v1474 = vmul.f32 %v1469, %v1471
        %1478 = vrot.lane.b32.xlu0 %v1472, 110
        %v1479 = vpop.permute.xlu0 %1478
        %1480 = vrot.lane.b32.xlu0 %v1473, 110
        %v1481 = vpop.permute.xlu0 %1480
        %1482 = vrot.lane.b32.xlu0 %v1474, 110
        %v1483 = vpop.permute.xlu0 %1482
        %v1484 = vsel %vm763, %v1479, %v1481
        %v1485 = vsel %vm763, %v1481, %v1483
        %v1488 = vadd.f32 %v1405, %v1484
        %v1489 = vadd.f32 %v1406, %v1485
        %s1490 = sld [smem:[#allocation7 + $0x32]]
        %v1491 = vstv %s1490
        %v1492 = vmul.f32 %v1467, %v1491
        %v1493 = vmul.f32 %v1468, %v1491
        %v1494 = vmul.f32 %v1469, %v1491
        %1498 = vrot.lane.b32.xlu0 %v1492, 110
        %v1499 = vpop.permute.xlu0 %1498
        %1500 = vrot.lane.b32.xlu0 %v1493, 110
        %v1501 = vpop.permute.xlu0 %1500
        %1502 = vrot.lane.b32.xlu0 %v1494, 110
        %v1503 = vpop.permute.xlu0 %1502
        %v1504 = vsel %vm763, %v1499, %v1501
        %v1505 = vsel %vm763, %v1501, %v1503
        %v1508 = vadd.f32 %v1425, %v1504
        %v1509 = vadd.f32 %v1426, %v1505
        %s1510 = sld [smem:[#allocation7 + $0x56]]
        %v1511 = vstv %s1510
        %v1512 = vmul.f32 %v1467, %v1511
        %v1513 = vmul.f32 %v1468, %v1511
        %v1514 = vmul.f32 %v1469, %v1511
        %1518 = vrot.lane.b32.xlu0 %v1512, 110
        %v1519 = vpop.permute.xlu0 %1518
        %1520 = vrot.lane.b32.xlu0 %v1513, 110
        %v1521 = vpop.permute.xlu0 %1520
        %1522 = vrot.lane.b32.xlu0 %v1514, 110
        %v1523 = vpop.permute.xlu0 %1522
        %v1524 = vsel %vm763, %v1519, %v1521
        %v1525 = vsel %vm763, %v1521, %v1523
        %v1528 = vadd.f32 %v1445, %v1524
        %v1529 = vadd.f32 %v1446, %v1525
        %s1530 = sld [smem:[#allocation7 + $0x7a]]
        %v1531 = vstv %s1530
        %v1532 = vmul.f32 %v1467, %v1531
        %v1533 = vmul.f32 %v1468, %v1531
        %v1534 = vmul.f32 %v1469, %v1531
        %1538 = vrot.lane.b32.xlu0 %v1532, 110
        %v1539 = vpop.permute.xlu0 %1538
        %1540 = vrot.lane.b32.xlu0 %v1533, 110
        %v1541 = vpop.permute.xlu0 %1540
        %1542 = vrot.lane.b32.xlu0 %v1534, 110
        %v1543 = vpop.permute.xlu0 %1542
        %v1544 = vsel %vm763, %v1539, %v1541
        %v1545 = vsel %vm763, %v1541, %v1543
        %v1548 = vadd.f32 %v1465, %v1544
        %v1549 = vadd.f32 %v1466, %v1545
        %v1550 = vmul.f32 %v1113, %v831
        %v1551 = vmul.f32 %v1109, %v835
        %v1552 = vmul.f32 %v1114, %v833
        %s1553 = sld [smem:[#allocation7 + $0xf]]
        %v1554 = vstv %s1553
        %v1555 = vmul.f32 %v1550, %v1554
        %v1556 = vmul.f32 %v1551, %v1554
        %v1557 = vmul.f32 %v1552, %v1554
        %1561 = vrot.lane.b32.xlu0 %v1555, 96
        %v1562 = vpop.permute.xlu0 %1561
        %1563 = vrot.lane.b32.xlu0 %v1556, 96
        %v1564 = vpop.permute.xlu0 %1563
        %1565 = vrot.lane.b32.xlu0 %v1557, 96
        %v1566 = vpop.permute.xlu0 %1565
        %v1567 = vsel %vm856, %v1562, %v1564
        %v1568 = vsel %vm856, %v1564, %v1566
        %v1571 = vadd.f32 %v1488, %v1567
        %v1572 = vadd.f32 %v1489, %v1568
        %s1573 = sld [smem:[#allocation7 + $0x33]]
        %v1574 = vstv %s1573
        %v1575 = vmul.f32 %v1550, %v1574
        %v1576 = vmul.f32 %v1551, %v1574
        %v1577 = vmul.f32 %v1552, %v1574
        %1581 = vrot.lane.b32.xlu0 %v1575, 96
        %v1582 = vpop.permute.xlu0 %1581
        %1583 = vrot.lane.b32.xlu0 %v1576, 96
        %v1584 = vpop.permute.xlu0 %1583
        %1585 = vrot.lane.b32.xlu0 %v1577, 96
        %v1586 = vpop.permute.xlu0 %1585
        %v1587 = vsel %vm856, %v1582, %v1584
        %v1588 = vsel %vm856, %v1584, %v1586
        %v1591 = vadd.f32 %v1508, %v1587
        %v1592 = vadd.f32 %v1509, %v1588
        %s1593 = sld [smem:[#allocation7 + $0x57]]
        %v1594 = vstv %s1593
        %v1595 = vmul.f32 %v1550, %v1594
        %v1596 = vmul.f32 %v1551, %v1594
        %v1597 = vmul.f32 %v1552, %v1594
        %1601 = vrot.lane.b32.xlu0 %v1595, 96
        %v1602 = vpop.permute.xlu0 %1601
        %1603 = vrot.lane.b32.xlu0 %v1596, 96
        %v1604 = vpop.permute.xlu0 %1603
        %1605 = vrot.lane.b32.xlu0 %v1597, 96
        %v1606 = vpop.permute.xlu0 %1605
        %v1607 = vsel %vm856, %v1602, %v1604
        %v1608 = vsel %vm856, %v1604, %v1606
        %v1611 = vadd.f32 %v1528, %v1607
        %v1612 = vadd.f32 %v1529, %v1608
        %s1613 = sld [smem:[#allocation7 + $0x7b]]
        %v1614 = vstv %s1613
        %v1615 = vmul.f32 %v1550, %v1614
        %v1616 = vmul.f32 %v1551, %v1614
        %v1617 = vmul.f32 %v1552, %v1614
        %1621 = vrot.lane.b32.xlu0 %v1615, 96
        %v1622 = vpop.permute.xlu0 %1621
        %1623 = vrot.lane.b32.xlu0 %v1616, 96
        %v1624 = vpop.permute.xlu0 %1623
        %1625 = vrot.lane.b32.xlu0 %v1617, 96
        %v1626 = vpop.permute.xlu0 %1625
        %v1627 = vsel %vm856, %v1622, %v1624
        %v1628 = vsel %vm856, %v1624, %v1626
        %v1631 = vadd.f32 %v1548, %v1627
        %v1632 = vadd.f32 %v1549, %v1628
        %s1633 = sld [smem:[#allocation7 + $0x10]]
        %v1634 = vstv %s1633
        %v1635 = vmul.f32 %v1113, %v1634
        %v1636 = vmul.f32 %v1109, %v1634
        %v1637 = vmul.f32 %v1114, %v1634
        %1641 = vrot.lane.b32.xlu0 %v1635, 95
        %v1642 = vpop.permute.xlu0 %1641
        %1643 = vrot.lane.b32.xlu0 %v1636, 95
        %v1644 = vpop.permute.xlu0 %1643
        %1645 = vrot.lane.b32.xlu0 %v1637, 95
        %v1646 = vpop.permute.xlu0 %1645
        %v1647 = vsel %vm937, %v1642, %v1644
        %v1648 = vsel %vm937, %v1644, %v1646
        %v1651 = vadd.f32 %v1571, %v1647
        %v1652 = vadd.f32 %v1572, %v1648
        %s1653 = sld [smem:[#allocation7 + $0x34]]
        %v1654 = vstv %s1653
        %v1655 = vmul.f32 %v1113, %v1654
        %v1656 = vmul.f32 %v1109, %v1654
        %v1657 = vmul.f32 %v1114, %v1654
        %1661 = vrot.lane.b32.xlu0 %v1655, 95
        %v1662 = vpop.permute.xlu0 %1661
        %1663 = vrot.lane.b32.xlu0 %v1656, 95
        %v1664 = vpop.permute.xlu0 %1663
        %1665 = vrot.lane.b32.xlu0 %v1657, 95
        %v1666 = vpop.permute.xlu0 %1665
        %v1667 = vsel %vm937, %v1662, %v1664
        %v1668 = vsel %vm937, %v1664, %v1666
        %v1671 = vadd.f32 %v1591, %v1667
        %v1672 = vadd.f32 %v1592, %v1668
        %s1673 = sld [smem:[#allocation7 + $0x58]]
        %v1674 = vstv %s1673
        %v1675 = vmul.f32 %v1113, %v1674
        %v1676 = vmul.f32 %v1109, %v1674
        %v1677 = vmul.f32 %v1114, %v1674
        %1681 = vrot.lane.b32.xlu0 %v1675, 95
        %v1682 = vpop.permute.xlu0 %1681
        %1683 = vrot.lane.b32.xlu0 %v1676, 95
        %v1684 = vpop.permute.xlu0 %1683
        %1685 = vrot.lane.b32.xlu0 %v1677, 95
        %v1686 = vpop.permute.xlu0 %1685
        %v1687 = vsel %vm937, %v1682, %v1684
        %v1688 = vsel %vm937, %v1684, %v1686
        %v1691 = vadd.f32 %v1611, %v1687
        %v1692 = vadd.f32 %v1612, %v1688
        %s1693 = sld [smem:[#allocation7 + $0x7c]]
        %v1694 = vstv %s1693
        %v1695 = vmul.f32 %v1113, %v1694
        %v1696 = vmul.f32 %v1109, %v1694
        %v1697 = vmul.f32 %v1114, %v1694
        %1701 = vrot.lane.b32.xlu0 %v1695, 95
        %v1702 = vpop.permute.xlu0 %1701
        %1703 = vrot.lane.b32.xlu0 %v1696, 95
        %v1704 = vpop.permute.xlu0 %1703
        %1705 = vrot.lane.b32.xlu0 %v1697, 95
        %v1706 = vpop.permute.xlu0 %1705
        %v1707 = vsel %vm937, %v1702, %v1704
        %v1708 = vsel %vm937, %v1704, %v1706
        %v1711 = vadd.f32 %v1631, %v1707
        %v1712 = vadd.f32 %v1632, %v1708
        %v1713 = vmul.f32 %v1113, %v1005
        %v1714 = vmul.f32 %v1109, %v1009
        %v1715 = vmul.f32 %v1114, %v1007
        %s1716 = sld [smem:[#allocation7 + $0x11]]
        %v1717 = vstv %s1716
        %v1718 = vmul.f32 %v1713, %v1717
        %v1719 = vmul.f32 %v1714, %v1717
        %v1720 = vmul.f32 %v1715, %v1717
        %1724 = vrot.lane.b32.xlu0 %v1718, 94
        %v1725 = vpop.permute.xlu0 %1724
        %1726 = vrot.lane.b32.xlu0 %v1719, 94
        %v1727 = vpop.permute.xlu0 %1726
        %1728 = vrot.lane.b32.xlu0 %v1720, 94
        %v1729 = vpop.permute.xlu0 %1728
        %v1730 = vsel %vm1030, %v1725, %v1727
        %v1731 = vsel %vm1030, %v1727, %v1729
        %v1734 = vadd.f32 %v1651, %v1730
        %v1735 = vadd.f32 %v1652, %v1731
        %s1736 = sld [smem:[#allocation7 + $0x35]]
        %v1737 = vstv %s1736
        %v1738 = vmul.f32 %v1713, %v1737
        %v1739 = vmul.f32 %v1714, %v1737
        %v1740 = vmul.f32 %v1715, %v1737
        %1744 = vrot.lane.b32.xlu0 %v1738, 94
        %v1745 = vpop.permute.xlu0 %1744
        %1746 = vrot.lane.b32.xlu0 %v1739, 94
        %v1747 = vpop.permute.xlu0 %1746
        %1748 = vrot.lane.b32.xlu0 %v1740, 94
        %v1749 = vpop.permute.xlu0 %1748
        %v1750 = vsel %vm1030, %v1745, %v1747
        %v1751 = vsel %vm1030, %v1747, %v1749
        %v1754 = vadd.f32 %v1671, %v1750
        %v1755 = vadd.f32 %v1672, %v1751
        %s1756 = sld [smem:[#allocation7 + $0x59]]
        %v1757 = vstv %s1756
        %v1758 = vmul.f32 %v1713, %v1757
        %v1759 = vmul.f32 %v1714, %v1757
        %v1760 = vmul.f32 %v1715, %v1757
        %1764 = vrot.lane.b32.xlu0 %v1758, 94
        %v1765 = vpop.permute.xlu0 %1764
        %1766 = vrot.lane.b32.xlu0 %v1759, 94
        %v1767 = vpop.permute.xlu0 %1766
        %1768 = vrot.lane.b32.xlu0 %v1760, 94
        %v1769 = vpop.permute.xlu0 %1768
        %v1770 = vsel %vm1030, %v1765, %v1767
        %v1771 = vsel %vm1030, %v1767, %v1769
        %v1774 = vadd.f32 %v1691, %v1770
        %v1775 = vadd.f32 %v1692, %v1771
        %s1776 = sld [smem:[#allocation7 + $0x7d]]
        %v1777 = vstv %s1776
        %v1778 = vmul.f32 %v1713, %v1777
        %v1779 = vmul.f32 %v1714, %v1777
        %v1780 = vmul.f32 %v1715, %v1777
        %1784 = vrot.lane.b32.xlu0 %v1778, 94
        %v1785 = vpop.permute.xlu0 %1784
        %1786 = vrot.lane.b32.xlu0 %v1779, 94
        %v1787 = vpop.permute.xlu0 %1786
        %1788 = vrot.lane.b32.xlu0 %v1780, 94
        %v1789 = vpop.permute.xlu0 %1788
        %v1790 = vsel %vm1030, %v1785, %v1787
        %v1791 = vsel %vm1030, %v1787, %v1789
        %v1794 = vadd.f32 %v1711, %v1790
        %v1795 = vadd.f32 %v1712, %v1791
        %v1796 = vlaneseq
        %v1797 = vshrl.u32 %v1796, 7
        %v1798 = vsub.s32 2, %v1797
        %v1799 = vrot.slane %v330, %v1798
        %v1800 = vlaneseq
        %v1801 = vshrl.u32 %v1800, 7
        %v1802 = vsub.s32 6, %v1801
        %v1803 = vrot.slane %v330, %v1802
        %1804 = vrot.lane.b32.xlu0 %v1799, 17
        %v1805 = vpop.permute.xlu0 %1804
        %1806 = vrot.lane.b32.xlu0 %v1803, 17
        %v1807 = vpop.permute.xlu0 %1806
        %v1808 = vsel %vm352, %v1805, %v1807
        %v1812 = vsel %vm352, 0.0, %v1805
        %v1813 = vsel %vm352, %v1807, 0.0
        %v1814 = vmul.f32 %v1812, %v322
        %v1815 = vmul.f32 %v1808, %v323
        %s1816 = sld [smem:[#allocation7 + $0x12]]
        %v1817 = vstv %s1816
        %v1818 = vmul.f32 %v1814, %v1817
        %v1819 = vmul.f32 %v1815, %v1817
        %v1820 = vadd.f32 %v1734, %v1818
        %v1821 = vadd.f32 %v1735, %v1819
        %s1822 = sld [smem:[#allocation7 + $0x36]]
        %v1823 = vstv %s1822
        %v1824 = vmul.f32 %v1814, %v1823
        %v1825 = vmul.f32 %v1815, %v1823
        %v1826 = vadd.f32 %v1754, %v1824
        %v1827 = vadd.f32 %v1755, %v1825
        %s1828 = sld [smem:[#allocation7 + $0x5a]]
        %v1829 = vstv %s1828
        %v1830 = vmul.f32 %v1814, %v1829
        %v1831 = vmul.f32 %v1815, %v1829
        %v1832 = vadd.f32 %v1774, %v1830
        %v1833 = vadd.f32 %v1775, %v1831
        %s1834 = sld [smem:[#allocation7 + $0x7e]]
        %v1835 = vstv %s1834
        %v1836 = vmul.f32 %v1814, %v1835
        %v1837 = vmul.f32 %v1815, %v1835
        %v1838 = vadd.f32 %v1794, %v1836
        %v1839 = vadd.f32 %v1795, %v1837
        %s1840 = sld [smem:[#allocation7 + $0x13]]
        %v1841 = vstv %s1840
        %v1842 = vmul.f32 %v1812, %v1841
        %v1843 = vmul.f32 %v1808, %v1841
        %v1844 = vmul.f32 %v1813, %v1841
        %1848 = vrot.lane.b32.xlu0 %v1842, 127
        %v1849 = vpop.permute.xlu0 %1848
        %1850 = vrot.lane.b32.xlu0 %v1843, 127
        %v1851 = vpop.permute.xlu0 %1850
        %1852 = vrot.lane.b32.xlu0 %v1844, 127
        %v1853 = vpop.permute.xlu0 %1852
        %v1854 = vsel %vm399, %v1849, %v1851
        %v1855 = vsel %vm399, %v1851, %v1853
        %v1858 = vadd.f32 %v1820, %v1854
        %v1859 = vadd.f32 %v1821, %v1855
        %s1860 = sld [smem:[#allocation7 + $0x37]]
        %v1861 = vstv %s1860
        %v1862 = vmul.f32 %v1812, %v1861
        %v1863 = vmul.f32 %v1808, %v1861
        %v1864 = vmul.f32 %v1813, %v1861
        %1868 = vrot.lane.b32.xlu0 %v1862, 127
        %v1869 = vpop.permute.xlu0 %1868
        %1870 = vrot.lane.b32.xlu0 %v1863, 127
        %v1871 = vpop.permute.xlu0 %1870
        %1872 = vrot.lane.b32.xlu0 %v1864, 127
        %v1873 = vpop.permute.xlu0 %1872
        %v1874 = vsel %vm399, %v1869, %v1871
        %v1875 = vsel %vm399, %v1871, %v1873
        %v1878 = vadd.f32 %v1826, %v1874
        %v1879 = vadd.f32 %v1827, %v1875
        %s1880 = sld [smem:[#allocation7 + $0x5b]]
        %v1881 = vstv %s1880
        %v1882 = vmul.f32 %v1812, %v1881
        %v1883 = vmul.f32 %v1808, %v1881
        %v1884 = vmul.f32 %v1813, %v1881
        %1888 = vrot.lane.b32.xlu0 %v1882, 127
        %v1889 = vpop.permute.xlu0 %1888
        %1890 = vrot.lane.b32.xlu0 %v1883, 127
        %v1891 = vpop.permute.xlu0 %1890
        %1892 = vrot.lane.b32.xlu0 %v1884, 127
        %v1893 = vpop.permute.xlu0 %1892
        %v1894 = vsel %vm399, %v1889, %v1891
        %v1895 = vsel %vm399, %v1891, %v1893
        %v1898 = vadd.f32 %v1832, %v1894
        %v1899 = vadd.f32 %v1833, %v1895
        %s1900 = sld [smem:[#allocation7 + $0x7f]]
        %v1901 = vstv %s1900
        %v1902 = vmul.f32 %v1812, %v1901
        %v1903 = vmul.f32 %v1808, %v1901
        %v1904 = vmul.f32 %v1813, %v1901
        %1908 = vrot.lane.b32.xlu0 %v1902, 127
        %v1909 = vpop.permute.xlu0 %1908
        %1910 = vrot.lane.b32.xlu0 %v1903, 127
        %v1911 = vpop.permute.xlu0 %1910
        %1912 = vrot.lane.b32.xlu0 %v1904, 127
        %v1913 = vpop.permute.xlu0 %1912
        %v1914 = vsel %vm399, %v1909, %v1911
        %v1915 = vsel %vm399, %v1911, %v1913
        %v1918 = vadd.f32 %v1838, %v1914
        %v1919 = vadd.f32 %v1839, %v1915
        %v1920 = vmul.f32 %v1812, %v469
        %v1921 = vmul.f32 %v1808, %v473
        %v1922 = vmul.f32 %v1813, %v471
        %s1923 = sld [smem:[#allocation7 + $0x14]]
        %v1924 = vstv %s1923
        %v1925 = vmul.f32 %v1920, %v1924
        %v1926 = vmul.f32 %v1921, %v1924
        %v1927 = vmul.f32 %v1922, %v1924
        %1931 = vrot.lane.b32.xlu0 %v1925, 126
        %v1932 = vpop.permute.xlu0 %1931
        %1933 = vrot.lane.b32.xlu0 %v1926, 126
        %v1934 = vpop.permute.xlu0 %1933
        %1935 = vrot.lane.b32.xlu0 %v1927, 126
        %v1936 = vpop.permute.xlu0 %1935
        %v1937 = vsel %vm494, %v1932, %v1934
        %v1938 = vsel %vm494, %v1934, %v1936
        %v1941 = vadd.f32 %v1858, %v1937
        %v1942 = vadd.f32 %v1859, %v1938
        %s1943 = sld [smem:[#allocation7 + $0x38]]
        %v1944 = vstv %s1943
        %v1945 = vmul.f32 %v1920, %v1944
        %v1946 = vmul.f32 %v1921, %v1944
        %v1947 = vmul.f32 %v1922, %v1944
        %1951 = vrot.lane.b32.xlu0 %v1945, 126
        %v1952 = vpop.permute.xlu0 %1951
        %1953 = vrot.lane.b32.xlu0 %v1946, 126
        %v1954 = vpop.permute.xlu0 %1953
        %1955 = vrot.lane.b32.xlu0 %v1947, 126
        %v1956 = vpop.permute.xlu0 %1955
        %v1957 = vsel %vm494, %v1952, %v1954
        %v1958 = vsel %vm494, %v1954, %v1956
        %v1961 = vadd.f32 %v1878, %v1957
        %v1962 = vadd.f32 %v1879, %v1958
        %s1963 = sld [smem:[#allocation7 + $0x5c]]
        %v1964 = vstv %s1963
        %v1965 = vmul.f32 %v1920, %v1964
        %v1966 = vmul.f32 %v1921, %v1964
        %v1967 = vmul.f32 %v1922, %v1964
        %1971 = vrot.lane.b32.xlu0 %v1965, 126
        %v1972 = vpop.permute.xlu0 %1971
        %1973 = vrot.lane.b32.xlu0 %v1966, 126
        %v1974 = vpop.permute.xlu0 %1973
        %1975 = vrot.lane.b32.xlu0 %v1967, 126
        %v1976 = vpop.permute.xlu0 %1975
        %v1977 = vsel %vm494, %v1972, %v1974
        %v1978 = vsel %vm494, %v1974, %v1976
        %v1981 = vadd.f32 %v1898, %v1977
        %v1982 = vadd.f32 %v1899, %v1978
        %s1983 = sld [smem:[#allocation7 + $0x80]]
        %v1984 = vstv %s1983
        %v1985 = vmul.f32 %v1920, %v1984
        %v1986 = vmul.f32 %v1921, %v1984
        %v1987 = vmul.f32 %v1922, %v1984
        %1991 = vrot.lane.b32.xlu0 %v1985, 126
        %v1992 = vpop.permute.xlu0 %1991
        %1993 = vrot.lane.b32.xlu0 %v1986, 126
        %v1994 = vpop.permute.xlu0 %1993
        %1995 = vrot.lane.b32.xlu0 %v1987, 126
        %v1996 = vpop.permute.xlu0 %1995
        %v1997 = vsel %vm494, %v1992, %v1994
        %v1998 = vsel %vm494, %v1994, %v1996
        %v2001 = vadd.f32 %v1918, %v1997
        %v2002 = vadd.f32 %v1919, %v1998
        %v2003 = vmul.f32 %v1812, %v564
        %v2004 = vmul.f32 %v1808, %v568
        %v2005 = vmul.f32 %v1813, %v566
        %s2006 = sld [smem:[#allocation7 + $0x15]]
        %v2007 = vstv %s2006
        %v2008 = vmul.f32 %v2003, %v2007
        %v2009 = vmul.f32 %v2004, %v2007
        %v2010 = vmul.f32 %v2005, %v2007
        %2014 = vrot.lane.b32.xlu0 %v2008, 112
        %v2015 = vpop.permute.xlu0 %2014
        %2016 = vrot.lane.b32.xlu0 %v2009, 112
        %v2017 = vpop.permute.xlu0 %2016
        %2018 = vrot.lane.b32.xlu0 %v2010, 112
        %v2019 = vpop.permute.xlu0 %2018
        %v2020 = vsel %vm589, %v2015, %v2017
        %v2021 = vsel %vm589, %v2017, %v2019
        %v2024 = vadd.f32 %v1941, %v2020
        %v2025 = vadd.f32 %v1942, %v2021
        %s2026 = sld [smem:[#allocation7 + $0x39]]
        %v2027 = vstv %s2026
        %v2028 = vmul.f32 %v2003, %v2027
        %v2029 = vmul.f32 %v2004, %v2027
        %v2030 = vmul.f32 %v2005, %v2027
        %2034 = vrot.lane.b32.xlu0 %v2028, 112
        %v2035 = vpop.permute.xlu0 %2034
        %2036 = vrot.lane.b32.xlu0 %v2029, 112
        %v2037 = vpop.permute.xlu0 %2036
        %2038 = vrot.lane.b32.xlu0 %v2030, 112
        %v2039 = vpop.permute.xlu0 %2038
        %v2040 = vsel %vm589, %v2035, %v2037
        %v2041 = vsel %vm589, %v2037, %v2039
        %v2044 = vadd.f32 %v1961, %v2040
        %v2045 = vadd.f32 %v1962, %v2041
        %s2046 = sld [smem:[#allocation7 + $0x5d]]
        %v2047 = vstv %s2046
        %v2048 = vmul.f32 %v2003, %v2047
        %v2049 = vmul.f32 %v2004, %v2047
        %v2050 = vmul.f32 %v2005, %v2047
        %2054 = vrot.lane.b32.xlu0 %v2048, 112
        %v2055 = vpop.permute.xlu0 %2054
        %2056 = vrot.lane.b32.xlu0 %v2049, 112
        %v2057 = vpop.permute.xlu0 %2056
        %2058 = vrot.lane.b32.xlu0 %v2050, 112
        %v2059 = vpop.permute.xlu0 %2058
        %v2060 = vsel %vm589, %v2055, %v2057
        %v2061 = vsel %vm589, %v2057, %v2059
        %v2064 = vadd.f32 %v1981, %v2060
        %v2065 = vadd.f32 %v1982, %v2061
        %s2066 = sld [smem:[#allocation7 + $0x81]]
        %v2067 = vstv %s2066
        %v2068 = vmul.f32 %v2003, %v2067
        %v2069 = vmul.f32 %v2004, %v2067
        %v2070 = vmul.f32 %v2005, %v2067
        %2074 = vrot.lane.b32.xlu0 %v2068, 112
        %v2075 = vpop.permute.xlu0 %2074
        %2076 = vrot.lane.b32.xlu0 %v2069, 112
        %v2077 = vpop.permute.xlu0 %2076
        %2078 = vrot.lane.b32.xlu0 %v2070, 112
        %v2079 = vpop.permute.xlu0 %2078
        %v2080 = vsel %vm589, %v2075, %v2077
        %v2081 = vsel %vm589, %v2077, %v2079
        %v2084 = vadd.f32 %v2001, %v2080
        %v2085 = vadd.f32 %v2002, %v2081
        %s2086 = sld [smem:[#allocation7 + $0x16]]
        %v2087 = vstv %s2086
        %v2088 = vmul.f32 %v1812, %v2087
        %v2089 = vmul.f32 %v1808, %v2087
        %v2090 = vmul.f32 %v1813, %v2087
        %2094 = vrot.lane.b32.xlu0 %v2088, 111
        %v2095 = vpop.permute.xlu0 %2094
        %2096 = vrot.lane.b32.xlu0 %v2089, 111
        %v2097 = vpop.permute.xlu0 %2096
        %2098 = vrot.lane.b32.xlu0 %v2090, 111
        %v2099 = vpop.permute.xlu0 %2098
        %v2100 = vsel %vm670, %v2095, %v2097
        %v2101 = vsel %vm670, %v2097, %v2099
        %v2104 = vadd.f32 %v2024, %v2100
        %v2105 = vadd.f32 %v2025, %v2101
        %s2106 = sld [smem:[#allocation7 + $0x3a]]
        %v2107 = vstv %s2106
        %v2108 = vmul.f32 %v1812, %v2107
        %v2109 = vmul.f32 %v1808, %v2107
        %v2110 = vmul.f32 %v1813, %v2107
        %2114 = vrot.lane.b32.xlu0 %v2108, 111
        %v2115 = vpop.permute.xlu0 %2114
        %2116 = vrot.lane.b32.xlu0 %v2109, 111
        %v2117 = vpop.permute.xlu0 %2116
        %2118 = vrot.lane.b32.xlu0 %v2110, 111
        %v2119 = vpop.permute.xlu0 %2118
        %v2120 = vsel %vm670, %v2115, %v2117
        %v2121 = vsel %vm670, %v2117, %v2119
        %v2124 = vadd.f32 %v2044, %v2120
        %v2125 = vadd.f32 %v2045, %v2121
        %s2126 = sld [smem:[#allocation7 + $0x5e]]
        %v2127 = vstv %s2126
        %v2128 = vmul.f32 %v1812, %v2127
        %v2129 = vmul.f32 %v1808, %v2127
        %v2130 = vmul.f32 %v1813, %v2127
        %2134 = vrot.lane.b32.xlu0 %v2128, 111
        %v2135 = vpop.permute.xlu0 %2134
        %2136 = vrot.lane.b32.xlu0 %v2129, 111
        %v2137 = vpop.permute.xlu0 %2136
        %2138 = vrot.lane.b32.xlu0 %v2130, 111
        %v2139 = vpop.permute.xlu0 %2138
        %v2140 = vsel %vm670, %v2135, %v2137
        %v2141 = vsel %vm670, %v2137, %v2139
        %v2144 = vadd.f32 %v2064, %v2140
        %v2145 = vadd.f32 %v2065, %v2141
        %s2146 = sld [smem:[#allocation7 + $0x82]]
        %v2147 = vstv %s2146
        %v2148 = vmul.f32 %v1812, %v2147
        %v2149 = vmul.f32 %v1808, %v2147
        %v2150 = vmul.f32 %v1813, %v2147
        %2154 = vrot.lane.b32.xlu0 %v2148, 111
        %v2155 = vpop.permute.xlu0 %2154
        %2156 = vrot.lane.b32.xlu0 %v2149, 111
        %v2157 = vpop.permute.xlu0 %2156
        %2158 = vrot.lane.b32.xlu0 %v2150, 111
        %v2159 = vpop.permute.xlu0 %2158
        %v2160 = vsel %vm670, %v2155, %v2157
        %v2161 = vsel %vm670, %v2157, %v2159
        %v2164 = vadd.f32 %v2084, %v2160
        %v2165 = vadd.f32 %v2085, %v2161
        %v2166 = vmul.f32 %v1812, %v738
        %v2167 = vmul.f32 %v1808, %v742
        %v2168 = vmul.f32 %v1813, %v740
        %s2169 = sld [smem:[#allocation7 + $0x17]]
        %v2170 = vstv %s2169
        %v2171 = vmul.f32 %v2166, %v2170
        %v2172 = vmul.f32 %v2167, %v2170
        %v2173 = vmul.f32 %v2168, %v2170
        %2177 = vrot.lane.b32.xlu0 %v2171, 110
        %v2178 = vpop.permute.xlu0 %2177
        %2179 = vrot.lane.b32.xlu0 %v2172, 110
        %v2180 = vpop.permute.xlu0 %2179
        %2181 = vrot.lane.b32.xlu0 %v2173, 110
        %v2182 = vpop.permute.xlu0 %2181
        %v2183 = vsel %vm763, %v2178, %v2180
        %v2184 = vsel %vm763, %v2180, %v2182
        %v2187 = vadd.f32 %v2104, %v2183
        %v2188 = vadd.f32 %v2105, %v2184
        %s2189 = sld [smem:[#allocation7 + $0x3b]]
        %v2190 = vstv %s2189
        %v2191 = vmul.f32 %v2166, %v2190
        %v2192 = vmul.f32 %v2167, %v2190
        %v2193 = vmul.f32 %v2168, %v2190
        %2197 = vrot.lane.b32.xlu0 %v2191, 110
        %v2198 = vpop.permute.xlu0 %2197
        %2199 = vrot.lane.b32.xlu0 %v2192, 110
        %v2200 = vpop.permute.xlu0 %2199
        %2201 = vrot.lane.b32.xlu0 %v2193, 110
        %v2202 = vpop.permute.xlu0 %2201
        %v2203 = vsel %vm763, %v2198, %v2200
        %v2204 = vsel %vm763, %v2200, %v2202
        %v2207 = vadd.f32 %v2124, %v2203
        %v2208 = vadd.f32 %v2125, %v2204
        %s2209 = sld [smem:[#allocation7 + $0x5f]]
        %v2210 = vstv %s2209
        %v2211 = vmul.f32 %v2166, %v2210
        %v2212 = vmul.f32 %v2167, %v2210
        %v2213 = vmul.f32 %v2168, %v2210
        %2217 = vrot.lane.b32.xlu0 %v2211, 110
        %v2218 = vpop.permute.xlu0 %2217
        %2219 = vrot.lane.b32.xlu0 %v2212, 110
        %v2220 = vpop.permute.xlu0 %2219
        %2221 = vrot.lane.b32.xlu0 %v2213, 110
        %v2222 = vpop.permute.xlu0 %2221
        %v2223 = vsel %vm763, %v2218, %v2220
        %v2224 = vsel %vm763, %v2220, %v2222
        %v2227 = vadd.f32 %v2144, %v2223
        %v2228 = vadd.f32 %v2145, %v2224
        %s2229 = sld [smem:[#allocation7 + $0x83]]
        %v2230 = vstv %s2229
        %v2231 = vmul.f32 %v2166, %v2230
        %v2232 = vmul.f32 %v2167, %v2230
        %v2233 = vmul.f32 %v2168, %v2230
        %2237 = vrot.lane.b32.xlu0 %v2231, 110
        %v2238 = vpop.permute.xlu0 %2237
        %2239 = vrot.lane.b32.xlu0 %v2232, 110
        %v2240 = vpop.permute.xlu0 %2239
        %2241 = vrot.lane.b32.xlu0 %v2233, 110
        %v2242 = vpop.permute.xlu0 %2241
        %v2243 = vsel %vm763, %v2238, %v2240
        %v2244 = vsel %vm763, %v2240, %v2242
        %v2247 = vadd.f32 %v2164, %v2243
        %v2248 = vadd.f32 %v2165, %v2244
        %v2249 = vmul.f32 %v1812, %v831
        %v2250 = vmul.f32 %v1808, %v835
        %v2251 = vmul.f32 %v1813, %v833
        %s2252 = sld [smem:[#allocation7 + $0x18]]
        %v2253 = vstv %s2252
        %v2254 = vmul.f32 %v2249, %v2253
        %v2255 = vmul.f32 %v2250, %v2253
        %v2256 = vmul.f32 %v2251, %v2253
        %2260 = vrot.lane.b32.xlu0 %v2254, 96
        %v2261 = vpop.permute.xlu0 %2260
        %2262 = vrot.lane.b32.xlu0 %v2255, 96
        %v2263 = vpop.permute.xlu0 %2262
        %2264 = vrot.lane.b32.xlu0 %v2256, 96
        %v2265 = vpop.permute.xlu0 %2264
        %v2266 = vsel %vm856, %v2261, %v2263
        %v2267 = vsel %vm856, %v2263, %v2265
        %v2270 = vadd.f32 %v2187, %v2266
        %v2271 = vadd.f32 %v2188, %v2267
        %s2272 = sld [smem:[#allocation7 + $0x3c]]
        %v2273 = vstv %s2272
        %v2274 = vmul.f32 %v2249, %v2273
        %v2275 = vmul.f32 %v2250, %v2273
        %v2276 = vmul.f32 %v2251, %v2273
        %2280 = vrot.lane.b32.xlu0 %v2274, 96
        %v2281 = vpop.permute.xlu0 %2280
        %2282 = vrot.lane.b32.xlu0 %v2275, 96
        %v2283 = vpop.permute.xlu0 %2282
        %2284 = vrot.lane.b32.xlu0 %v2276, 96
        %v2285 = vpop.permute.xlu0 %2284
        %v2286 = vsel %vm856, %v2281, %v2283
        %v2287 = vsel %vm856, %v2283, %v2285
        %v2290 = vadd.f32 %v2207, %v2286
        %v2291 = vadd.f32 %v2208, %v2287
        %s2292 = sld [smem:[#allocation7 + $0x60]]
        %v2293 = vstv %s2292
        %v2294 = vmul.f32 %v2249, %v2293
        %v2295 = vmul.f32 %v2250, %v2293
        %v2296 = vmul.f32 %v2251, %v2293
        %2300 = vrot.lane.b32.xlu0 %v2294, 96
        %v2301 = vpop.permute.xlu0 %2300
        %2302 = vrot.lane.b32.xlu0 %v2295, 96
        %v2303 = vpop.permute.xlu0 %2302
        %2304 = vrot.lane.b32.xlu0 %v2296, 96
        %v2305 = vpop.permute.xlu0 %2304
        %v2306 = vsel %vm856, %v2301, %v2303
        %v2307 = vsel %vm856, %v2303, %v2305
        %v2310 = vadd.f32 %v2227, %v2306
        %v2311 = vadd.f32 %v2228, %v2307
        %s2312 = sld [smem:[#allocation7 + $0x84]]
        %v2313 = vstv %s2312
        %v2314 = vmul.f32 %v2249, %v2313
        %v2315 = vmul.f32 %v2250, %v2313
        %v2316 = vmul.f32 %v2251, %v2313
        %2320 = vrot.lane.b32.xlu0 %v2314, 96
        %v2321 = vpop.permute.xlu0 %2320
        %2322 = vrot.lane.b32.xlu0 %v2315, 96
        %v2323 = vpop.permute.xlu0 %2322
        %2324 = vrot.lane.b32.xlu0 %v2316, 96
        %v2325 = vpop.permute.xlu0 %2324
        %v2326 = vsel %vm856, %v2321, %v2323
        %v2327 = vsel %vm856, %v2323, %v2325
        %v2330 = vadd.f32 %v2247, %v2326
        %v2331 = vadd.f32 %v2248, %v2327
        %s2332 = sld [smem:[#allocation7 + $0x19]]
        %v2333 = vstv %s2332
        %v2334 = vmul.f32 %v1812, %v2333
        %v2335 = vmul.f32 %v1808, %v2333
        %v2336 = vmul.f32 %v1813, %v2333
        %2340 = vrot.lane.b32.xlu0 %v2334, 95
        %v2341 = vpop.permute.xlu0 %2340
        %2342 = vrot.lane.b32.xlu0 %v2335, 95
        %v2343 = vpop.permute.xlu0 %2342
        %2344 = vrot.lane.b32.xlu0 %v2336, 95
        %v2345 = vpop.permute.xlu0 %2344
        %v2346 = vsel %vm937, %v2341, %v2343
        %v2347 = vsel %vm937, %v2343, %v2345
        %v2350 = vadd.f32 %v2270, %v2346
        %v2351 = vadd.f32 %v2271, %v2347
        %s2352 = sld [smem:[#allocation7 + $0x3d]]
        %v2353 = vstv %s2352
        %v2354 = vmul.f32 %v1812, %v2353
        %v2355 = vmul.f32 %v1808, %v2353
        %v2356 = vmul.f32 %v1813, %v2353
        %2360 = vrot.lane.b32.xlu0 %v2354, 95
        %v2361 = vpop.permute.xlu0 %2360
        %2362 = vrot.lane.b32.xlu0 %v2355, 95
        %v2363 = vpop.permute.xlu0 %2362
        %2364 = vrot.lane.b32.xlu0 %v2356, 95
        %v2365 = vpop.permute.xlu0 %2364
        %v2366 = vsel %vm937, %v2361, %v2363
        %v2367 = vsel %vm937, %v2363, %v2365
        %v2370 = vadd.f32 %v2290, %v2366
        %v2371 = vadd.f32 %v2291, %v2367
        %s2372 = sld [smem:[#allocation7 + $0x61]]
        %v2373 = vstv %s2372
        %v2374 = vmul.f32 %v1812, %v2373
        %v2375 = vmul.f32 %v1808, %v2373
        %v2376 = vmul.f32 %v1813, %v2373
        %2380 = vrot.lane.b32.xlu0 %v2374, 95
        %v2381 = vpop.permute.xlu0 %2380
        %2382 = vrot.lane.b32.xlu0 %v2375, 95
        %v2383 = vpop.permute.xlu0 %2382
        %2384 = vrot.lane.b32.xlu0 %v2376, 95
        %v2385 = vpop.permute.xlu0 %2384
        %v2386 = vsel %vm937, %v2381, %v2383
        %v2387 = vsel %vm937, %v2383, %v2385
        %v2390 = vadd.f32 %v2310, %v2386
        %v2391 = vadd.f32 %v2311, %v2387
        %s2392 = sld [smem:[#allocation7 + $0x85]]
        %v2393 = vstv %s2392
        %v2394 = vmul.f32 %v1812, %v2393
        %v2395 = vmul.f32 %v1808, %v2393
        %v2396 = vmul.f32 %v1813, %v2393
        %2400 = vrot.lane.b32.xlu0 %v2394, 95
        %v2401 = vpop.permute.xlu0 %2400
        %2402 = vrot.lane.b32.xlu0 %v2395, 95
        %v2403 = vpop.permute.xlu0 %2402
        %2404 = vrot.lane.b32.xlu0 %v2396, 95
        %v2405 = vpop.permute.xlu0 %2404
        %v2406 = vsel %vm937, %v2401, %v2403
        %v2407 = vsel %vm937, %v2403, %v2405
        %v2410 = vadd.f32 %v2330, %v2406
        %v2411 = vadd.f32 %v2331, %v2407
        %v2412 = vmul.f32 %v1812, %v1005
        %v2413 = vmul.f32 %v1808, %v1009
        %v2414 = vmul.f32 %v1813, %v1007
        %s2415 = sld [smem:[#allocation7 + $0x1a]]
        %v2416 = vstv %s2415
        %v2417 = vmul.f32 %v2412, %v2416
        %v2418 = vmul.f32 %v2413, %v2416
        %v2419 = vmul.f32 %v2414, %v2416
        %2423 = vrot.lane.b32.xlu0 %v2417, 94
        %v2424 = vpop.permute.xlu0 %2423
        %2425 = vrot.lane.b32.xlu0 %v2418, 94
        %v2426 = vpop.permute.xlu0 %2425
        %2427 = vrot.lane.b32.xlu0 %v2419, 94
        %v2428 = vpop.permute.xlu0 %2427
        %v2429 = vsel %vm1030, %v2424, %v2426
        %v2430 = vsel %vm1030, %v2426, %v2428
        %v2433 = vadd.f32 %v2350, %v2429
        %v2434 = vadd.f32 %v2351, %v2430
        %s2435 = sld [smem:[#allocation7 + $0x3e]]
        %v2436 = vstv %s2435
        %v2437 = vmul.f32 %v2412, %v2436
        %v2438 = vmul.f32 %v2413, %v2436
        %v2439 = vmul.f32 %v2414, %v2436
        %2443 = vrot.lane.b32.xlu0 %v2437, 94
        %v2444 = vpop.permute.xlu0 %2443
        %2445 = vrot.lane.b32.xlu0 %v2438, 94
        %v2446 = vpop.permute.xlu0 %2445
        %2447 = vrot.lane.b32.xlu0 %v2439, 94
        %v2448 = vpop.permute.xlu0 %2447
        %v2449 = vsel %vm1030, %v2444, %v2446
        %v2450 = vsel %vm1030, %v2446, %v2448
        %v2453 = vadd.f32 %v2370, %v2449
        %v2454 = vadd.f32 %v2371, %v2450
        %s2455 = sld [smem:[#allocation7 + $0x62]]
        %v2456 = vstv %s2455
        %v2457 = vmul.f32 %v2412, %v2456
        %v2458 = vmul.f32 %v2413, %v2456
        %v2459 = vmul.f32 %v2414, %v2456
        %2463 = vrot.lane.b32.xlu0 %v2457, 94
        %v2464 = vpop.permute.xlu0 %2463
        %2465 = vrot.lane.b32.xlu0 %v2458, 94
        %v2466 = vpop.permute.xlu0 %2465
        %2467 = vrot.lane.b32.xlu0 %v2459, 94
        %v2468 = vpop.permute.xlu0 %2467
        %v2469 = vsel %vm1030, %v2464, %v2466
        %v2470 = vsel %vm1030, %v2466, %v2468
        %v2473 = vadd.f32 %v2390, %v2469
        %v2474 = vadd.f32 %v2391, %v2470
        %s2475 = sld [smem:[#allocation7 + $0x86]]
        %v2476 = vstv %s2475
        %v2477 = vmul.f32 %v2412, %v2476
        %v2478 = vmul.f32 %v2413, %v2476
        %v2479 = vmul.f32 %v2414, %v2476
        %2483 = vrot.lane.b32.xlu0 %v2477, 94
        %v2484 = vpop.permute.xlu0 %2483
        %2485 = vrot.lane.b32.xlu0 %v2478, 94
        %v2486 = vpop.permute.xlu0 %2485
        %2487 = vrot.lane.b32.xlu0 %v2479, 94
        %v2488 = vpop.permute.xlu0 %2487
        %v2489 = vsel %vm1030, %v2484, %v2486
        %v2490 = vsel %vm1030, %v2486, %v2488
        %v2493 = vadd.f32 %v2410, %v2489
        %v2494 = vadd.f32 %v2411, %v2490
        %v2495 = vlaneseq
        %v2496 = vshrl.u32 %v2495, 7
        %v2497 = vsub.s32 3, %v2496
        %v2498 = vrot.slane %v330, %v2497
        %v2499 = vlaneseq
        %v2500 = vshrl.u32 %v2499, 7
        %v2501 = vsub.s32 7, %v2500
        %v2502 = vrot.slane %v330, %v2501
        %2503 = vrot.lane.b32.xlu0 %v2498, 17
        %v2504 = vpop.permute.xlu0 %2503
        %2505 = vrot.lane.b32.xlu0 %v2502, 17
        %v2506 = vpop.permute.xlu0 %2505
        %v2507 = vsel %vm352, %v2504, %v2506
        %v2511 = vsel %vm352, 0.0, %v2504
        %v2512 = vsel %vm352, %v2506, 0.0
        %v2513 = vmul.f32 %v2511, %v322
        %v2514 = vmul.f32 %v2507, %v323
        %s2515 = sld [smem:[#allocation7 + $0x1b]]
        %v2516 = vstv %s2515
        %v2517 = vmul.f32 %v2513, %v2516
        %v2518 = vmul.f32 %v2514, %v2516
        %v2519 = vadd.f32 %v2433, %v2517
        %v2520 = vadd.f32 %v2434, %v2518
        %s2521 = sld [smem:[#allocation7 + $0x3f]]
        %v2522 = vstv %s2521
        %v2523 = vmul.f32 %v2513, %v2522
        %v2524 = vmul.f32 %v2514, %v2522
        %v2525 = vadd.f32 %v2453, %v2523
        %v2526 = vadd.f32 %v2454, %v2524
        %s2527 = sld [smem:[#allocation7 + $0x63]]
        %v2528 = vstv %s2527
        %v2529 = vmul.f32 %v2513, %v2528
        %v2530 = vmul.f32 %v2514, %v2528
        %v2531 = vadd.f32 %v2473, %v2529
        %v2532 = vadd.f32 %v2474, %v2530
        %s2533 = sld [smem:[#allocation7 + $0x87]]
        %v2534 = vstv %s2533
        %v2535 = vmul.f32 %v2513, %v2534
        %v2536 = vmul.f32 %v2514, %v2534
        %v2537 = vadd.f32 %v2493, %v2535
        %v2538 = vadd.f32 %v2494, %v2536
        %s2539 = sld [smem:[#allocation7 + $0x1c]]
        %v2540 = vstv %s2539
        %v2541 = vmul.f32 %v2511, %v2540
        %v2542 = vmul.f32 %v2507, %v2540
        %v2543 = vmul.f32 %v2512, %v2540
        %2547 = vrot.lane.b32.xlu0 %v2541, 127
        %v2548 = vpop.permute.xlu0 %2547
        %2549 = vrot.lane.b32.xlu0 %v2542, 127
        %v2550 = vpop.permute.xlu0 %2549
        %2551 = vrot.lane.b32.xlu0 %v2543, 127
        %v2552 = vpop.permute.xlu0 %2551
        %v2553 = vsel %vm399, %v2548, %v2550
        %v2554 = vsel %vm399, %v2550, %v2552
        %v2557 = vadd.f32 %v2519, %v2553
        %v2558 = vadd.f32 %v2520, %v2554
        %s2559 = sld [smem:[#allocation7 + $0x40]]
        %v2560 = vstv %s2559
        %v2561 = vmul.f32 %v2511, %v2560
        %v2562 = vmul.f32 %v2507, %v2560
        %v2563 = vmul.f32 %v2512, %v2560
        %2567 = vrot.lane.b32.xlu0 %v2561, 127
        %v2568 = vpop.permute.xlu0 %2567
        %2569 = vrot.lane.b32.xlu0 %v2562, 127
        %v2570 = vpop.permute.xlu0 %2569
        %2571 = vrot.lane.b32.xlu0 %v2563, 127
        %v2572 = vpop.permute.xlu0 %2571
        %v2573 = vsel %vm399, %v2568, %v2570
        %v2574 = vsel %vm399, %v2570, %v2572
        %v2577 = vadd.f32 %v2525, %v2573
        %v2578 = vadd.f32 %v2526, %v2574
        %s2579 = sld [smem:[#allocation7 + $0x64]]
        %v2580 = vstv %s2579
        %v2581 = vmul.f32 %v2511, %v2580
        %v2582 = vmul.f32 %v2507, %v2580
        %v2583 = vmul.f32 %v2512, %v2580
        %2587 = vrot.lane.b32.xlu0 %v2581, 127
        %v2588 = vpop.permute.xlu0 %2587
        %2589 = vrot.lane.b32.xlu0 %v2582, 127
        %v2590 = vpop.permute.xlu0 %2589
        %2591 = vrot.lane.b32.xlu0 %v2583, 127
        %v2592 = vpop.permute.xlu0 %2591
        %v2593 = vsel %vm399, %v2588, %v2590
        %v2594 = vsel %vm399, %v2590, %v2592
        %v2597 = vadd.f32 %v2531, %v2593
        %v2598 = vadd.f32 %v2532, %v2594
        %s2599 = sld [smem:[#allocation7 + $0x88]]
        %v2600 = vstv %s2599
        %v2601 = vmul.f32 %v2511, %v2600
        %v2602 = vmul.f32 %v2507, %v2600
        %v2603 = vmul.f32 %v2512, %v2600
        %2607 = vrot.lane.b32.xlu0 %v2601, 127
        %v2608 = vpop.permute.xlu0 %2607
        %2609 = vrot.lane.b32.xlu0 %v2602, 127
        %v2610 = vpop.permute.xlu0 %2609
        %2611 = vrot.lane.b32.xlu0 %v2603, 127
        %v2612 = vpop.permute.xlu0 %2611
        %v2613 = vsel %vm399, %v2608, %v2610
        %v2614 = vsel %vm399, %v2610, %v2612
        %v2617 = vadd.f32 %v2537, %v2613
        %v2618 = vadd.f32 %v2538, %v2614
        %v2619 = vmul.f32 %v2511, %v469
        %v2620 = vmul.f32 %v2507, %v473
        %v2621 = vmul.f32 %v2512, %v471
        %s2622 = sld [smem:[#allocation7 + $0x1d]]
        %v2623 = vstv %s2622
        %v2624 = vmul.f32 %v2619, %v2623
        %v2625 = vmul.f32 %v2620, %v2623
        %v2626 = vmul.f32 %v2621, %v2623
        %2630 = vrot.lane.b32.xlu0 %v2624, 126
        %v2631 = vpop.permute.xlu0 %2630
        %2632 = vrot.lane.b32.xlu0 %v2625, 126
        %v2633 = vpop.permute.xlu0 %2632
        %2634 = vrot.lane.b32.xlu0 %v2626, 126
        %v2635 = vpop.permute.xlu0 %2634
        %v2636 = vsel %vm494, %v2631, %v2633
        %v2637 = vsel %vm494, %v2633, %v2635
        %v2640 = vadd.f32 %v2557, %v2636
        %v2641 = vadd.f32 %v2558, %v2637
        %s2642 = sld [smem:[#allocation7 + $0x41]]
        %v2643 = vstv %s2642
        %v2644 = vmul.f32 %v2619, %v2643
        %v2645 = vmul.f32 %v2620, %v2643
        %v2646 = vmul.f32 %v2621, %v2643
        %2650 = vrot.lane.b32.xlu0 %v2644, 126
        %v2651 = vpop.permute.xlu0 %2650
        %2652 = vrot.lane.b32.xlu0 %v2645, 126
        %v2653 = vpop.permute.xlu0 %2652
        %2654 = vrot.lane.b32.xlu0 %v2646, 126
        %v2655 = vpop.permute.xlu0 %2654
        %v2656 = vsel %vm494, %v2651, %v2653
        %v2657 = vsel %vm494, %v2653, %v2655
        %v2660 = vadd.f32 %v2577, %v2656
        %v2661 = vadd.f32 %v2578, %v2657
        %s2662 = sld [smem:[#allocation7 + $0x65]]
        %v2663 = vstv %s2662
        %v2664 = vmul.f32 %v2619, %v2663
        %v2665 = vmul.f32 %v2620, %v2663
        %v2666 = vmul.f32 %v2621, %v2663
        %2670 = vrot.lane.b32.xlu0 %v2664, 126
        %v2671 = vpop.permute.xlu0 %2670
        %2672 = vrot.lane.b32.xlu0 %v2665, 126
        %v2673 = vpop.permute.xlu0 %2672
        %2674 = vrot.lane.b32.xlu0 %v2666, 126
        %v2675 = vpop.permute.xlu0 %2674
        %v2676 = vsel %vm494, %v2671, %v2673
        %v2677 = vsel %vm494, %v2673, %v2675
        %v2680 = vadd.f32 %v2597, %v2676
        %v2681 = vadd.f32 %v2598, %v2677
        %s2682 = sld [smem:[#allocation7 + $0x89]]
        %v2683 = vstv %s2682
        %v2684 = vmul.f32 %v2619, %v2683
        %v2685 = vmul.f32 %v2620, %v2683
        %v2686 = vmul.f32 %v2621, %v2683
        %2690 = vrot.lane.b32.xlu0 %v2684, 126
        %v2691 = vpop.permute.xlu0 %2690
        %2692 = vrot.lane.b32.xlu0 %v2685, 126
        %v2693 = vpop.permute.xlu0 %2692
        %2694 = vrot.lane.b32.xlu0 %v2686, 126
        %v2695 = vpop.permute.xlu0 %2694
        %v2696 = vsel %vm494, %v2691, %v2693
        %v2697 = vsel %vm494, %v2693, %v2695
        %v2700 = vadd.f32 %v2617, %v2696
        %v2701 = vadd.f32 %v2618, %v2697
        %v2702 = vmul.f32 %v2511, %v564
        %v2703 = vmul.f32 %v2507, %v568
        %v2704 = vmul.f32 %v2512, %v566
        %s2705 = sld [smem:[#allocation7 + $0x1e]]
        %v2706 = vstv %s2705
        %v2707 = vmul.f32 %v2702, %v2706
        %v2708 = vmul.f32 %v2703, %v2706
        %v2709 = vmul.f32 %v2704, %v2706
        %2713 = vrot.lane.b32.xlu0 %v2707, 112
        %v2714 = vpop.permute.xlu0 %2713
        %2715 = vrot.lane.b32.xlu0 %v2708, 112
        %v2716 = vpop.permute.xlu0 %2715
        %2717 = vrot.lane.b32.xlu0 %v2709, 112
        %v2718 = vpop.permute.xlu0 %2717
        %v2719 = vsel %vm589, %v2714, %v2716
        %v2720 = vsel %vm589, %v2716, %v2718
        %v2723 = vadd.f32 %v2640, %v2719
        %v2724 = vadd.f32 %v2641, %v2720
        %s2725 = sld [smem:[#allocation7 + $0x42]]
        %v2726 = vstv %s2725
        %v2727 = vmul.f32 %v2702, %v2726
        %v2728 = vmul.f32 %v2703, %v2726
        %v2729 = vmul.f32 %v2704, %v2726
        %2733 = vrot.lane.b32.xlu0 %v2727, 112
        %v2734 = vpop.permute.xlu0 %2733
        %2735 = vrot.lane.b32.xlu0 %v2728, 112
        %v2736 = vpop.permute.xlu0 %2735
        %2737 = vrot.lane.b32.xlu0 %v2729, 112
        %v2738 = vpop.permute.xlu0 %2737
        %v2739 = vsel %vm589, %v2734, %v2736
        %v2740 = vsel %vm589, %v2736, %v2738
        %v2743 = vadd.f32 %v2660, %v2739
        %v2744 = vadd.f32 %v2661, %v2740
        %s2745 = sld [smem:[#allocation7 + $0x66]]
        %v2746 = vstv %s2745
        %v2747 = vmul.f32 %v2702, %v2746
        %v2748 = vmul.f32 %v2703, %v2746
        %v2749 = vmul.f32 %v2704, %v2746
        %2753 = vrot.lane.b32.xlu0 %v2747, 112
        %v2754 = vpop.permute.xlu0 %2753
        %2755 = vrot.lane.b32.xlu0 %v2748, 112
        %v2756 = vpop.permute.xlu0 %2755
        %2757 = vrot.lane.b32.xlu0 %v2749, 112
        %v2758 = vpop.permute.xlu0 %2757
        %v2759 = vsel %vm589, %v2754, %v2756
        %v2760 = vsel %vm589, %v2756, %v2758
        %v2763 = vadd.f32 %v2680, %v2759
        %v2764 = vadd.f32 %v2681, %v2760
        %s2765 = sld [smem:[#allocation7 + $0x8a]]
        %v2766 = vstv %s2765
        %v2767 = vmul.f32 %v2702, %v2766
        %v2768 = vmul.f32 %v2703, %v2766
        %v2769 = vmul.f32 %v2704, %v2766
        %2773 = vrot.lane.b32.xlu0 %v2767, 112
        %v2774 = vpop.permute.xlu0 %2773
        %2775 = vrot.lane.b32.xlu0 %v2768, 112
        %v2776 = vpop.permute.xlu0 %2775
        %2777 = vrot.lane.b32.xlu0 %v2769, 112
        %v2778 = vpop.permute.xlu0 %2777
        %v2779 = vsel %vm589, %v2774, %v2776
        %v2780 = vsel %vm589, %v2776, %v2778
        %v2783 = vadd.f32 %v2700, %v2779
        %v2784 = vadd.f32 %v2701, %v2780
        %s2785 = sld [smem:[#allocation7 + $0x1f]]
        %v2786 = vstv %s2785
        %v2787 = vmul.f32 %v2511, %v2786
        %v2788 = vmul.f32 %v2507, %v2786
        %v2789 = vmul.f32 %v2512, %v2786
        %2793 = vrot.lane.b32.xlu0 %v2787, 111
        %v2794 = vpop.permute.xlu0 %2793
        %2795 = vrot.lane.b32.xlu0 %v2788, 111
        %v2796 = vpop.permute.xlu0 %2795
        %2797 = vrot.lane.b32.xlu0 %v2789, 111
        %v2798 = vpop.permute.xlu0 %2797
        %v2799 = vsel %vm670, %v2794, %v2796
        %v2800 = vsel %vm670, %v2796, %v2798
        %v2803 = vadd.f32 %v2723, %v2799
        %v2804 = vadd.f32 %v2724, %v2800
        %s2805 = sld [smem:[#allocation7 + $0x43]]
        %v2806 = vstv %s2805
        %v2807 = vmul.f32 %v2511, %v2806
        %v2808 = vmul.f32 %v2507, %v2806
        %v2809 = vmul.f32 %v2512, %v2806
        %2813 = vrot.lane.b32.xlu0 %v2807, 111
        %v2814 = vpop.permute.xlu0 %2813
        %2815 = vrot.lane.b32.xlu0 %v2808, 111
        %v2816 = vpop.permute.xlu0 %2815
        %2817 = vrot.lane.b32.xlu0 %v2809, 111
        %v2818 = vpop.permute.xlu0 %2817
        %v2819 = vsel %vm670, %v2814, %v2816
        %v2820 = vsel %vm670, %v2816, %v2818
        %v2823 = vadd.f32 %v2743, %v2819
        %v2824 = vadd.f32 %v2744, %v2820
        %s2825 = sld [smem:[#allocation7 + $0x67]]
        %v2826 = vstv %s2825
        %v2827 = vmul.f32 %v2511, %v2826
        %v2828 = vmul.f32 %v2507, %v2826
        %v2829 = vmul.f32 %v2512, %v2826
        %2833 = vrot.lane.b32.xlu0 %v2827, 111
        %v2834 = vpop.permute.xlu0 %2833
        %2835 = vrot.lane.b32.xlu0 %v2828, 111
        %v2836 = vpop.permute.xlu0 %2835
        %2837 = vrot.lane.b32.xlu0 %v2829, 111
        %v2838 = vpop.permute.xlu0 %2837
        %v2839 = vsel %vm670, %v2834, %v2836
        %v2840 = vsel %vm670, %v2836, %v2838
        %v2843 = vadd.f32 %v2763, %v2839
        %v2844 = vadd.f32 %v2764, %v2840
        %s2845 = sld [smem:[#allocation7 + $0x8b]]
        %v2846 = vstv %s2845
        %v2847 = vmul.f32 %v2511, %v2846
        %v2848 = vmul.f32 %v2507, %v2846
        %v2849 = vmul.f32 %v2512, %v2846
        %2853 = vrot.lane.b32.xlu0 %v2847, 111
        %v2854 = vpop.permute.xlu0 %2853
        %2855 = vrot.lane.b32.xlu0 %v2848, 111
        %v2856 = vpop.permute.xlu0 %2855
        %2857 = vrot.lane.b32.xlu0 %v2849, 111
        %v2858 = vpop.permute.xlu0 %2857
        %v2859 = vsel %vm670, %v2854, %v2856
        %v2860 = vsel %vm670, %v2856, %v2858
        %v2863 = vadd.f32 %v2783, %v2859
        %v2864 = vadd.f32 %v2784, %v2860
        %v2865 = vmul.f32 %v2511, %v738
        %v2866 = vmul.f32 %v2507, %v742
        %v2867 = vmul.f32 %v2512, %v740
        %s2868 = sld [smem:[#allocation7 + $0x20]]
        %v2869 = vstv %s2868
        %v2870 = vmul.f32 %v2865, %v2869
        %v2871 = vmul.f32 %v2866, %v2869
        %v2872 = vmul.f32 %v2867, %v2869
        %2876 = vrot.lane.b32.xlu0 %v2870, 110
        %v2877 = vpop.permute.xlu0 %2876
        %2878 = vrot.lane.b32.xlu0 %v2871, 110
        %v2879 = vpop.permute.xlu0 %2878
        %2880 = vrot.lane.b32.xlu0 %v2872, 110
        %v2881 = vpop.permute.xlu0 %2880
        %v2882 = vsel %vm763, %v2877, %v2879
        %v2883 = vsel %vm763, %v2879, %v2881
        %v2886 = vadd.f32 %v2803, %v2882
        %v2887 = vadd.f32 %v2804, %v2883
        %s2888 = sld [smem:[#allocation7 + $0x44]]
        %v2889 = vstv %s2888
        %v2890 = vmul.f32 %v2865, %v2889
        %v2891 = vmul.f32 %v2866, %v2889
        %v2892 = vmul.f32 %v2867, %v2889
        %2896 = vrot.lane.b32.xlu0 %v2890, 110
        %v2897 = vpop.permute.xlu0 %2896
        %2898 = vrot.lane.b32.xlu0 %v2891, 110
        %v2899 = vpop.permute.xlu0 %2898
        %2900 = vrot.lane.b32.xlu0 %v2892, 110
        %v2901 = vpop.permute.xlu0 %2900
        %v2902 = vsel %vm763, %v2897, %v2899
        %v2903 = vsel %vm763, %v2899, %v2901
        %v2906 = vadd.f32 %v2823, %v2902
        %v2907 = vadd.f32 %v2824, %v2903
        %s2908 = sld [smem:[#allocation7 + $0x68]]
        %v2909 = vstv %s2908
        %v2910 = vmul.f32 %v2865, %v2909
        %v2911 = vmul.f32 %v2866, %v2909
        %v2912 = vmul.f32 %v2867, %v2909
        %2916 = vrot.lane.b32.xlu0 %v2910, 110
        %v2917 = vpop.permute.xlu0 %2916
        %2918 = vrot.lane.b32.xlu0 %v2911, 110
        %v2919 = vpop.permute.xlu0 %2918
        %2920 = vrot.lane.b32.xlu0 %v2912, 110
        %v2921 = vpop.permute.xlu0 %2920
        %v2922 = vsel %vm763, %v2917, %v2919
        %v2923 = vsel %vm763, %v2919, %v2921
        %v2926 = vadd.f32 %v2843, %v2922
        %v2927 = vadd.f32 %v2844, %v2923
        %s2928 = sld [smem:[#allocation7 + $0x8c]]
        %v2929 = vstv %s2928
        %v2930 = vmul.f32 %v2865, %v2929
        %v2931 = vmul.f32 %v2866, %v2929
        %v2932 = vmul.f32 %v2867, %v2929
        %2936 = vrot.lane.b32.xlu0 %v2930, 110
        %v2937 = vpop.permute.xlu0 %2936
        %2938 = vrot.lane.b32.xlu0 %v2931, 110
        %v2939 = vpop.permute.xlu0 %2938
        %2940 = vrot.lane.b32.xlu0 %v2932, 110
        %v2941 = vpop.permute.xlu0 %2940
        %v2942 = vsel %vm763, %v2937, %v2939
        %v2943 = vsel %vm763, %v2939, %v2941
        %v2946 = vadd.f32 %v2863, %v2942
        %v2947 = vadd.f32 %v2864, %v2943
        %v2948 = vmul.f32 %v2511, %v831
        %v2949 = vmul.f32 %v2507, %v835
        %v2950 = vmul.f32 %v2512, %v833
        %s2951 = sld [smem:[#allocation7 + $0x21]]
        %v2952 = vstv %s2951
        %v2953 = vmul.f32 %v2948, %v2952
        %v2954 = vmul.f32 %v2949, %v2952
        %v2955 = vmul.f32 %v2950, %v2952
        %2959 = vrot.lane.b32.xlu0 %v2953, 96
        %v2960 = vpop.permute.xlu0 %2959
        %2961 = vrot.lane.b32.xlu0 %v2954, 96
        %v2962 = vpop.permute.xlu0 %2961
        %2963 = vrot.lane.b32.xlu0 %v2955, 96
        %v2964 = vpop.permute.xlu0 %2963
        %v2965 = vsel %vm856, %v2960, %v2962
        %v2966 = vsel %vm856, %v2962, %v2964
        %v2969 = vadd.f32 %v2886, %v2965
        %v2970 = vadd.f32 %v2887, %v2966
        %s2971 = sld [smem:[#allocation7 + $0x45]]
        %v2972 = vstv %s2971
        %v2973 = vmul.f32 %v2948, %v2972
        %v2974 = vmul.f32 %v2949, %v2972
        %v2975 = vmul.f32 %v2950, %v2972
        %2979 = vrot.lane.b32.xlu0 %v2973, 96
        %v2980 = vpop.permute.xlu0 %2979
        %2981 = vrot.lane.b32.xlu0 %v2974, 96
        %v2982 = vpop.permute.xlu0 %2981
        %2983 = vrot.lane.b32.xlu0 %v2975, 96
        %v2984 = vpop.permute.xlu0 %2983
        %v2985 = vsel %vm856, %v2980, %v2982
        %v2986 = vsel %vm856, %v2982, %v2984
        %v2989 = vadd.f32 %v2906, %v2985
        %v2990 = vadd.f32 %v2907, %v2986
        %s2991 = sld [smem:[#allocation7 + $0x69]]
        %v2992 = vstv %s2991
        %v2993 = vmul.f32 %v2948, %v2992
        %v2994 = vmul.f32 %v2949, %v2992
        %v2995 = vmul.f32 %v2950, %v2992
        %2999 = vrot.lane.b32.xlu0 %v2993, 96
        %v3000 = vpop.permute.xlu0 %2999
        %3001 = vrot.lane.b32.xlu0 %v2994, 96
        %v3002 = vpop.permute.xlu0 %3001
        %3003 = vrot.lane.b32.xlu0 %v2995, 96
        %v3004 = vpop.permute.xlu0 %3003
        %v3005 = vsel %vm856, %v3000, %v3002
        %v3006 = vsel %vm856, %v3002, %v3004
        %v3009 = vadd.f32 %v2926, %v3005
        %v3010 = vadd.f32 %v2927, %v3006
        %s3011 = sld [smem:[#allocation7 + $0x8d]]
        %v3012 = vstv %s3011
        %v3013 = vmul.f32 %v2948, %v3012
        %v3014 = vmul.f32 %v2949, %v3012
        %v3015 = vmul.f32 %v2950, %v3012
        %3019 = vrot.lane.b32.xlu0 %v3013, 96
        %v3020 = vpop.permute.xlu0 %3019
        %3021 = vrot.lane.b32.xlu0 %v3014, 96
        %v3022 = vpop.permute.xlu0 %3021
        %3023 = vrot.lane.b32.xlu0 %v3015, 96
        %v3024 = vpop.permute.xlu0 %3023
        %v3025 = vsel %vm856, %v3020, %v3022
        %v3026 = vsel %vm856, %v3022, %v3024
        %v3029 = vadd.f32 %v2946, %v3025
        %v3030 = vadd.f32 %v2947, %v3026
        %s3031 = sld [smem:[#allocation7 + $0x22]]
        %v3032 = vstv %s3031
        %v3033 = vmul.f32 %v2511, %v3032
        %v3034 = vmul.f32 %v2507, %v3032
        %v3035 = vmul.f32 %v2512, %v3032
        %3039 = vrot.lane.b32.xlu0 %v3033, 95
        %v3040 = vpop.permute.xlu0 %3039
        %3041 = vrot.lane.b32.xlu0 %v3034, 95
        %v3042 = vpop.permute.xlu0 %3041
        %3043 = vrot.lane.b32.xlu0 %v3035, 95
        %v3044 = vpop.permute.xlu0 %3043
        %v3045 = vsel %vm937, %v3040, %v3042
        %v3046 = vsel %vm937, %v3042, %v3044
        %v3049 = vadd.f32 %v2969, %v3045
        %v3050 = vadd.f32 %v2970, %v3046
        %s3051 = sld [smem:[#allocation7 + $0x46]]
        %v3052 = vstv %s3051
        %v3053 = vmul.f32 %v2511, %v3052
        %v3054 = vmul.f32 %v2507, %v3052
        %v3055 = vmul.f32 %v2512, %v3052
        %3059 = vrot.lane.b32.xlu0 %v3053, 95
        %v3060 = vpop.permute.xlu0 %3059
        %3061 = vrot.lane.b32.xlu0 %v3054, 95
        %v3062 = vpop.permute.xlu0 %3061
        %3063 = vrot.lane.b32.xlu0 %v3055, 95
        %v3064 = vpop.permute.xlu0 %3063
        %v3065 = vsel %vm937, %v3060, %v3062
        %v3066 = vsel %vm937, %v3062, %v3064
        %v3069 = vadd.f32 %v2989, %v3065
        %v3070 = vadd.f32 %v2990, %v3066
        %s3071 = sld [smem:[#allocation7 + $0x6a]]
        %v3072 = vstv %s3071
        %v3073 = vmul.f32 %v2511, %v3072
        %v3074 = vmul.f32 %v2507, %v3072
        %v3075 = vmul.f32 %v2512, %v3072
        %3079 = vrot.lane.b32.xlu0 %v3073, 95
        %v3080 = vpop.permute.xlu0 %3079
        %3081 = vrot.lane.b32.xlu0 %v3074, 95
        %v3082 = vpop.permute.xlu0 %3081
        %3083 = vrot.lane.b32.xlu0 %v3075, 95
        %v3084 = vpop.permute.xlu0 %3083
        %v3085 = vsel %vm937, %v3080, %v3082
        %v3086 = vsel %vm937, %v3082, %v3084
        %v3089 = vadd.f32 %v3009, %v3085
        %v3090 = vadd.f32 %v3010, %v3086
        %s3091 = sld [smem:[#allocation7 + $0x8e]]
        %v3092 = vstv %s3091
        %v3093 = vmul.f32 %v2511, %v3092
        %v3094 = vmul.f32 %v2507, %v3092
        %v3095 = vmul.f32 %v2512, %v3092
        %3099 = vrot.lane.b32.xlu0 %v3093, 95
        %v3100 = vpop.permute.xlu0 %3099
        %3101 = vrot.lane.b32.xlu0 %v3094, 95
        %v3102 = vpop.permute.xlu0 %3101
        %3103 = vrot.lane.b32.xlu0 %v3095, 95
        %v3104 = vpop.permute.xlu0 %3103
        %v3105 = vsel %vm937, %v3100, %v3102
        %v3106 = vsel %vm937, %v3102, %v3104
        %v3109 = vadd.f32 %v3029, %v3105
        %v3110 = vadd.f32 %v3030, %v3106
        %v3111 = vmul.f32 %v2511, %v1005
        %v3112 = vmul.f32 %v2507, %v1009
        %v3113 = vmul.f32 %v2512, %v1007
        %s3114 = sld [smem:[#allocation7 + $0x23]]
        %v3115 = vstv %s3114
        %v3116 = vmul.f32 %v3111, %v3115
        %v3117 = vmul.f32 %v3112, %v3115
        %v3118 = vmul.f32 %v3113, %v3115
        %3122 = vrot.lane.b32.xlu0 %v3116, 94
        %v3123 = vpop.permute.xlu0 %3122
        %3124 = vrot.lane.b32.xlu0 %v3117, 94
        %v3125 = vpop.permute.xlu0 %3124
        %3126 = vrot.lane.b32.xlu0 %v3118, 94
        %v3127 = vpop.permute.xlu0 %3126
        %v3128 = vsel %vm1030, %v3123, %v3125
        %v3129 = vsel %vm1030, %v3125, %v3127
        %v3132 = vadd.f32 %v3049, %v3128
        %v3133 = vadd.f32 %v3050, %v3129
        %s3134 = sld [smem:[#allocation7 + $0x47]]
        %v3135 = vstv %s3134
        %v3136 = vmul.f32 %v3111, %v3135
        %v3137 = vmul.f32 %v3112, %v3135
        %v3138 = vmul.f32 %v3113, %v3135
        %3142 = vrot.lane.b32.xlu0 %v3136, 94
        %v3143 = vpop.permute.xlu0 %3142
        %3144 = vrot.lane.b32.xlu0 %v3137, 94
        %v3145 = vpop.permute.xlu0 %3144
        %3146 = vrot.lane.b32.xlu0 %v3138, 94
        %v3147 = vpop.permute.xlu0 %3146
        %v3148 = vsel %vm1030, %v3143, %v3145
        %v3149 = vsel %vm1030, %v3145, %v3147
        %v3152 = vadd.f32 %v3069, %v3148
        %v3153 = vadd.f32 %v3070, %v3149
        %s3154 = sld [smem:[#allocation7 + $0x6b]]
        %v3155 = vstv %s3154
        %v3156 = vmul.f32 %v3111, %v3155
        %v3157 = vmul.f32 %v3112, %v3155
        %v3158 = vmul.f32 %v3113, %v3155
        %3162 = vrot.lane.b32.xlu0 %v3156, 94
        %v3163 = vpop.permute.xlu0 %3162
        %3164 = vrot.lane.b32.xlu0 %v3157, 94
        %v3165 = vpop.permute.xlu0 %3164
        %3166 = vrot.lane.b32.xlu0 %v3158, 94
        %v3167 = vpop.permute.xlu0 %3166
        %v3168 = vsel %vm1030, %v3163, %v3165
        %v3169 = vsel %vm1030, %v3165, %v3167
        %v3172 = vadd.f32 %v3089, %v3168
        %v3173 = vadd.f32 %v3090, %v3169
        %s3174 = sld [smem:[#allocation7 + $0x8f]]
        %v3175 = vstv %s3174
        %v3176 = vmul.f32 %v3111, %v3175
        %v3177 = vmul.f32 %v3112, %v3175
        %v3178 = vmul.f32 %v3113, %v3175
        %3182 = vrot.lane.b32.xlu0 %v3176, 94
        %v3183 = vpop.permute.xlu0 %3182
        %3184 = vrot.lane.b32.xlu0 %v3177, 94
        %v3185 = vpop.permute.xlu0 %3184
        %3186 = vrot.lane.b32.xlu0 %v3178, 94
        %v3187 = vpop.permute.xlu0 %3186
        %v3188 = vsel %vm1030, %v3183, %v3185
        %v3189 = vsel %vm1030, %v3185, %v3187
        %v3192 = vadd.f32 %v3109, %v3188
        %v3193 = vadd.f32 %v3110, %v3189
        %vm3194 = vcmp.gt.f32.partialorder %v3132, 0.0
        %vm3195 = vcmp.gt.f32.partialorder %v3133, 0.0
        %v3196 = vmul.f32 %v3132, 0.1
        %v3197 = vmul.f32 %v3133, 0.1
        %v3198 = vsel %vm3194, %v3132, %v3196
        %v3199 = vsel %vm3195, %v3133, %v3197
        %vm3200 = vcmp.gt.f32.partialorder %v3152, 0.0
        %vm3201 = vcmp.gt.f32.partialorder %v3153, 0.0
        %v3202 = vmul.f32 %v3152, 0.1
        %v3203 = vmul.f32 %v3153, 0.1
        %v3204 = vsel %vm3200, %v3152, %v3202
        %v3205 = vsel %vm3201, %v3153, %v3203
        %vm3206 = vcmp.gt.f32.partialorder %v3172, 0.0
        %vm3207 = vcmp.gt.f32.partialorder %v3173, 0.0
        %v3208 = vmul.f32 %v3172, 0.1
        %v3209 = vmul.f32 %v3173, 0.1
        %v3210 = vsel %vm3206, %v3172, %v3208
        %v3211 = vsel %vm3207, %v3173, %v3209
        %vm3212 = vcmp.gt.f32.partialorder %v3192, 0.0
        %vm3213 = vcmp.gt.f32.partialorder %v3193, 0.0
        %v3214 = vmul.f32 %v3192, 0.1
        %v3215 = vmul.f32 %v3193, 0.1
        %v3216 = vsel %vm3212, %v3192, %v3214
        %v3217 = vsel %vm3213, %v3193, %v3215
        %s3218 = sld [smem:[#allocation11]]
        %v3219 = vstv %s3218
        %s3220 = sld [smem:[#allocation11 + $0x1]]
        %v3221 = vstv %s3220
        %s3222 = sld [smem:[#allocation11 + $0x2]]
        %v3223 = vstv %s3222
        %s3224 = sld [smem:[#allocation11 + $0x3]]
        %v3225 = vstv %s3224
        %3228 = vrot.lane.b32.xlu0 %v3198, 17
        %v3229 = vpop.permute.xlu0 %3228
        %3230 = vrot.lane.b32.xlu0 %v3199, 17
        %v3231 = vpop.permute.xlu0 %3230
        %v3232 = vsel %vm352, %v3229, %v3231
        %v3236 = vsel %vm352, 0.0, %v3229
        %v3237 = vsel %vm352, %v3231, 0.0
        %v3238 = vmul.f32 %v3236, %v322
        %v3239 = vmul.f32 %v3232, %v323
        %s3240 = sld [smem:[#allocation9]]
        %v3241 = vstv %s3240
        %v3242 = vmul.f32 %v3238, %v3241
        %v3243 = vmul.f32 %v3239, %v3241
        %v3244 = vadd.f32 %v3219, %v3242
        %v3245 = vadd.f32 %v3219, %v3243
        %s3246 = sld [smem:[#allocation9 + $0x24]]
        %v3247 = vstv %s3246
        %v3248 = vmul.f32 %v3238, %v3247
        %v3249 = vmul.f32 %v3239, %v3247
        %v3250 = vadd.f32 %v3221, %v3248
        %v3251 = vadd.f32 %v3221, %v3249
        %s3252 = sld [smem:[#allocation9 + $0x48]]
        %v3253 = vstv %s3252
        %v3254 = vmul.f32 %v3238, %v3253
        %v3255 = vmul.f32 %v3239, %v3253
        %v3256 = vadd.f32 %v3223, %v3254
        %v3257 = vadd.f32 %v3223, %v3255
        %s3258 = sld [smem:[#allocation9 + $0x6c]]
        %v3259 = vstv %s3258
        %v3260 = vmul.f32 %v3238, %v3259
        %v3261 = vmul.f32 %v3239, %v3259
        %v3262 = vadd.f32 %v3225, %v3260
        %v3263 = vadd.f32 %v3225, %v3261
        %s3264 = sld [smem:[#allocation9 + $0x1]]
        %v3265 = vstv %s3264
        %v3266 = vmul.f32 %v3236, %v3265
        %v3267 = vmul.f32 %v3232, %v3265
        %v3268 = vmul.f32 %v3237, %v3265
        %3272 = vrot.lane.b32.xlu0 %v3266, 127
        %v3273 = vpop.permute.xlu0 %3272
        %3274 = vrot.lane.b32.xlu0 %v3267, 127
        %v3275 = vpop.permute.xlu0 %3274
        %3276 = vrot.lane.b32.xlu0 %v3268, 127
        %v3277 = vpop.permute.xlu0 %3276
        %v3278 = vsel %vm399, %v3273, %v3275
        %v3279 = vsel %vm399, %v3275, %v3277
        %v3282 = vadd.f32 %v3244, %v3278
        %v3283 = vadd.f32 %v3245, %v3279
        %s3284 = sld [smem:[#allocation9 + $0x25]]
        %v3285 = vstv %s3284
        %v3286 = vmul.f32 %v3236, %v3285
        %v3287 = vmul.f32 %v3232, %v3285
        %v3288 = vmul.f32 %v3237, %v3285
        %3292 = vrot.lane.b32.xlu0 %v3286, 127
        %v3293 = vpop.permute.xlu0 %3292
        %3294 = vrot.lane.b32.xlu0 %v3287, 127
        %v3295 = vpop.permute.xlu0 %3294
        %3296 = vrot.lane.b32.xlu0 %v3288, 127
        %v3297 = vpop.permute.xlu0 %3296
        %v3298 = vsel %vm399, %v3293, %v3295
        %v3299 = vsel %vm399, %v3295, %v3297
        %v3302 = vadd.f32 %v3250, %v3298
        %v3303 = vadd.f32 %v3251, %v3299
        %s3304 = sld [smem:[#allocation9 + $0x49]]
        %v3305 = vstv %s3304
        %v3306 = vmul.f32 %v3236, %v3305
        %v3307 = vmul.f32 %v3232, %v3305
        %v3308 = vmul.f32 %v3237, %v3305
        %3312 = vrot.lane.b32.xlu0 %v3306, 127
        %v3313 = vpop.permute.xlu0 %3312
        %3314 = vrot.lane.b32.xlu0 %v3307, 127
        %v3315 = vpop.permute.xlu0 %3314
        %3316 = vrot.lane.b32.xlu0 %v3308, 127
        %v3317 = vpop.permute.xlu0 %3316
        %v3318 = vsel %vm399, %v3313, %v3315
        %v3319 = vsel %vm399, %v3315, %v3317
        %v3322 = vadd.f32 %v3256, %v3318
        %v3323 = vadd.f32 %v3257, %v3319
        %s3324 = sld [smem:[#allocation9 + $0x6d]]
        %v3325 = vstv %s3324
        %v3326 = vmul.f32 %v3236, %v3325
        %v3327 = vmul.f32 %v3232, %v3325
        %v3328 = vmul.f32 %v3237, %v3325
        %3332 = vrot.lane.b32.xlu0 %v3326, 127
        %v3333 = vpop.permute.xlu0 %3332
        %3334 = vrot.lane.b32.xlu0 %v3327, 127
        %v3335 = vpop.permute.xlu0 %3334
        %3336 = vrot.lane.b32.xlu0 %v3328, 127
        %v3337 = vpop.permute.xlu0 %3336
        %v3338 = vsel %vm399, %v3333, %v3335
        %v3339 = vsel %vm399, %v3335, %v3337
        %v3342 = vadd.f32 %v3262, %v3338
        %v3343 = vadd.f32 %v3263, %v3339
        %v3344 = vmul.f32 %v3236, %v469
        %v3345 = vmul.f32 %v3232, %v473
        %v3346 = vmul.f32 %v3237, %v471
        %s3347 = sld [smem:[#allocation9 + $0x2]]
        %v3348 = vstv %s3347
        %v3349 = vmul.f32 %v3344, %v3348
        %v3350 = vmul.f32 %v3345, %v3348
        %v3351 = vmul.f32 %v3346, %v3348
        %3355 = vrot.lane.b32.xlu0 %v3349, 126
        %v3356 = vpop.permute.xlu0 %3355
        %3357 = vrot.lane.b32.xlu0 %v3350, 126
        %v3358 = vpop.permute.xlu0 %3357
        %3359 = vrot.lane.b32.xlu0 %v3351, 126
        %v3360 = vpop.permute.xlu0 %3359
        %v3361 = vsel %vm494, %v3356, %v3358
        %v3362 = vsel %vm494, %v3358, %v3360
        %v3365 = vadd.f32 %v3282, %v3361
        %v3366 = vadd.f32 %v3283, %v3362
        %s3367 = sld [smem:[#allocation9 + $0x26]]
        %v3368 = vstv %s3367
        %v3369 = vmul.f32 %v3344, %v3368
        %v3370 = vmul.f32 %v3345, %v3368
        %v3371 = vmul.f32 %v3346, %v3368
        %3375 = vrot.lane.b32.xlu0 %v3369, 126
        %v3376 = vpop.permute.xlu0 %3375
        %3377 = vrot.lane.b32.xlu0 %v3370, 126
        %v3378 = vpop.permute.xlu0 %3377
        %3379 = vrot.lane.b32.xlu0 %v3371, 126
        %v3380 = vpop.permute.xlu0 %3379
        %v3381 = vsel %vm494, %v3376, %v3378
        %v3382 = vsel %vm494, %v3378, %v3380
        %v3385 = vadd.f32 %v3302, %v3381
        %v3386 = vadd.f32 %v3303, %v3382
        %s3387 = sld [smem:[#allocation9 + $0x4a]]
        %v3388 = vstv %s3387
        %v3389 = vmul.f32 %v3344, %v3388
        %v3390 = vmul.f32 %v3345, %v3388
        %v3391 = vmul.f32 %v3346, %v3388
        %3395 = vrot.lane.b32.xlu0 %v3389, 126
        %v3396 = vpop.permute.xlu0 %3395
        %3397 = vrot.lane.b32.xlu0 %v3390, 126
        %v3398 = vpop.permute.xlu0 %3397
        %3399 = vrot.lane.b32.xlu0 %v3391, 126
        %v3400 = vpop.permute.xlu0 %3399
        %v3401 = vsel %vm494, %v3396, %v3398
        %v3402 = vsel %vm494, %v3398, %v3400
        %v3405 = vadd.f32 %v3322, %v3401
        %v3406 = vadd.f32 %v3323, %v3402
        %s3407 = sld [smem:[#allocation9 + $0x6e]]
        %v3408 = vstv %s3407
        %v3409 = vmul.f32 %v3344, %v3408
        %v3410 = vmul.f32 %v3345, %v3408
        %v3411 = vmul.f32 %v3346, %v3408
        %3415 = vrot.lane.b32.xlu0 %v3409, 126
        %v3416 = vpop.permute.xlu0 %3415
        %3417 = vrot.lane.b32.xlu0 %v3410, 126
        %v3418 = vpop.permute.xlu0 %3417
        %3419 = vrot.lane.b32.xlu0 %v3411, 126
        %v3420 = vpop.permute.xlu0 %3419
        %v3421 = vsel %vm494, %v3416, %v3418
        %v3422 = vsel %vm494, %v3418, %v3420
        %v3425 = vadd.f32 %v3342, %v3421
        %v3426 = vadd.f32 %v3343, %v3422
        %v3427 = vmul.f32 %v3236, %v564
        %v3428 = vmul.f32 %v3232, %v568
        %v3429 = vmul.f32 %v3237, %v566
        %s3430 = sld [smem:[#allocation9 + $0x3]]
        %v3431 = vstv %s3430
        %v3432 = vmul.f32 %v3427, %v3431
        %v3433 = vmul.f32 %v3428, %v3431
        %v3434 = vmul.f32 %v3429, %v3431
        %3438 = vrot.lane.b32.xlu0 %v3432, 112
        %v3439 = vpop.permute.xlu0 %3438
        %3440 = vrot.lane.b32.xlu0 %v3433, 112
        %v3441 = vpop.permute.xlu0 %3440
        %3442 = vrot.lane.b32.xlu0 %v3434, 112
        %v3443 = vpop.permute.xlu0 %3442
        %v3444 = vsel %vm589, %v3439, %v3441
        %v3445 = vsel %vm589, %v3441, %v3443
        %v3448 = vadd.f32 %v3365, %v3444
        %v3449 = vadd.f32 %v3366, %v3445
        %s3450 = sld [smem:[#allocation9 + $0x27]]
        %v3451 = vstv %s3450
        %v3452 = vmul.f32 %v3427, %v3451
        %v3453 = vmul.f32 %v3428, %v3451
        %v3454 = vmul.f32 %v3429, %v3451
        %3458 = vrot.lane.b32.xlu0 %v3452, 112
        %v3459 = vpop.permute.xlu0 %3458
        %3460 = vrot.lane.b32.xlu0 %v3453, 112
        %v3461 = vpop.permute.xlu0 %3460
        %3462 = vrot.lane.b32.xlu0 %v3454, 112
        %v3463 = vpop.permute.xlu0 %3462
        %v3464 = vsel %vm589, %v3459, %v3461
        %v3465 = vsel %vm589, %v3461, %v3463
        %v3468 = vadd.f32 %v3385, %v3464
        %v3469 = vadd.f32 %v3386, %v3465
        %s3470 = sld [smem:[#allocation9 + $0x4b]]
        %v3471 = vstv %s3470
        %v3472 = vmul.f32 %v3427, %v3471
        %v3473 = vmul.f32 %v3428, %v3471
        %v3474 = vmul.f32 %v3429, %v3471
        %3478 = vrot.lane.b32.xlu0 %v3472, 112
        %v3479 = vpop.permute.xlu0 %3478
        %3480 = vrot.lane.b32.xlu0 %v3473, 112
        %v3481 = vpop.permute.xlu0 %3480
        %3482 = vrot.lane.b32.xlu0 %v3474, 112
        %v3483 = vpop.permute.xlu0 %3482
        %v3484 = vsel %vm589, %v3479, %v3481
        %v3485 = vsel %vm589, %v3481, %v3483
        %v3488 = vadd.f32 %v3405, %v3484
        %v3489 = vadd.f32 %v3406, %v3485
        %s3490 = sld [smem:[#allocation9 + $0x6f]]
        %v3491 = vstv %s3490
        %v3492 = vmul.f32 %v3427, %v3491
        %v3493 = vmul.f32 %v3428, %v3491
        %v3494 = vmul.f32 %v3429, %v3491
        %3498 = vrot.lane.b32.xlu0 %v3492, 112
        %v3499 = vpop.permute.xlu0 %3498
        %3500 = vrot.lane.b32.xlu0 %v3493, 112
        %v3501 = vpop.permute.xlu0 %3500
        %3502 = vrot.lane.b32.xlu0 %v3494, 112
        %v3503 = vpop.permute.xlu0 %3502
        %v3504 = vsel %vm589, %v3499, %v3501
        %v3505 = vsel %vm589, %v3501, %v3503
        %v3508 = vadd.f32 %v3425, %v3504
        %v3509 = vadd.f32 %v3426, %v3505
        %s3510 = sld [smem:[#allocation9 + $0x4]]
        %v3511 = vstv %s3510
        %v3512 = vmul.f32 %v3236, %v3511
        %v3513 = vmul.f32 %v3232, %v3511
        %v3514 = vmul.f32 %v3237, %v3511
        %3518 = vrot.lane.b32.xlu0 %v3512, 111
        %v3519 = vpop.permute.xlu0 %3518
        %3520 = vrot.lane.b32.xlu0 %v3513, 111
        %v3521 = vpop.permute.xlu0 %3520
        %3522 = vrot.lane.b32.xlu0 %v3514, 111
        %v3523 = vpop.permute.xlu0 %3522
        %v3524 = vsel %vm670, %v3519, %v3521
        %v3525 = vsel %vm670, %v3521, %v3523
        %v3528 = vadd.f32 %v3448, %v3524
        %v3529 = vadd.f32 %v3449, %v3525
        %s3530 = sld [smem:[#allocation9 + $0x28]]
        %v3531 = vstv %s3530
        %v3532 = vmul.f32 %v3236, %v3531
        %v3533 = vmul.f32 %v3232, %v3531
        %v3534 = vmul.f32 %v3237, %v3531
        %3538 = vrot.lane.b32.xlu0 %v3532, 111
        %v3539 = vpop.permute.xlu0 %3538
        %3540 = vrot.lane.b32.xlu0 %v3533, 111
        %v3541 = vpop.permute.xlu0 %3540
        %3542 = vrot.lane.b32.xlu0 %v3534, 111
        %v3543 = vpop.permute.xlu0 %3542
        %v3544 = vsel %vm670, %v3539, %v3541
        %v3545 = vsel %vm670, %v3541, %v3543
        %v3548 = vadd.f32 %v3468, %v3544
        %v3549 = vadd.f32 %v3469, %v3545
        %s3550 = sld [smem:[#allocation9 + $0x4c]]
        %v3551 = vstv %s3550
        %v3552 = vmul.f32 %v3236, %v3551
        %v3553 = vmul.f32 %v3232, %v3551
        %v3554 = vmul.f32 %v3237, %v3551
        %3558 = vrot.lane.b32.xlu0 %v3552, 111
        %v3559 = vpop.permute.xlu0 %3558
        %3560 = vrot.lane.b32.xlu0 %v3553, 111
        %v3561 = vpop.permute.xlu0 %3560
        %3562 = vrot.lane.b32.xlu0 %v3554, 111
        %v3563 = vpop.permute.xlu0 %3562
        %v3564 = vsel %vm670, %v3559, %v3561
        %v3565 = vsel %vm670, %v3561, %v3563
        %v3568 = vadd.f32 %v3488, %v3564
        %v3569 = vadd.f32 %v3489, %v3565
        %s3570 = sld [smem:[#allocation9 + $0x70]]
        %v3571 = vstv %s3570
        %v3572 = vmul.f32 %v3236, %v3571
        %v3573 = vmul.f32 %v3232, %v3571
        %v3574 = vmul.f32 %v3237, %v3571
        %3578 = vrot.lane.b32.xlu0 %v3572, 111
        %v3579 = vpop.permute.xlu0 %3578
        %3580 = vrot.lane.b32.xlu0 %v3573, 111
        %v3581 = vpop.permute.xlu0 %3580
        %3582 = vrot.lane.b32.xlu0 %v3574, 111
        %v3583 = vpop.permute.xlu0 %3582
        %v3584 = vsel %vm670, %v3579, %v3581
        %v3585 = vsel %vm670, %v3581, %v3583
        %v3588 = vadd.f32 %v3508, %v3584
        %v3589 = vadd.f32 %v3509, %v3585
        %v3590 = vmul.f32 %v3236, %v738
        %v3591 = vmul.f32 %v3232, %v742
        %v3592 = vmul.f32 %v3237, %v740
        %s3593 = sld [smem:[#allocation9 + $0x5]]
        %v3594 = vstv %s3593
        %v3595 = vmul.f32 %v3590, %v3594
        %v3596 = vmul.f32 %v3591, %v3594
        %v3597 = vmul.f32 %v3592, %v3594
        %3601 = vrot.lane.b32.xlu0 %v3595, 110
        %v3602 = vpop.permute.xlu0 %3601
        %3603 = vrot.lane.b32.xlu0 %v3596, 110
        %v3604 = vpop.permute.xlu0 %3603
        %3605 = vrot.lane.b32.xlu0 %v3597, 110
        %v3606 = vpop.permute.xlu0 %3605
        %v3607 = vsel %vm763, %v3602, %v3604
        %v3608 = vsel %vm763, %v3604, %v3606
        %v3611 = vadd.f32 %v3528, %v3607
        %v3612 = vadd.f32 %v3529, %v3608
        %s3613 = sld [smem:[#allocation9 + $0x29]]
        %v3614 = vstv %s3613
        %v3615 = vmul.f32 %v3590, %v3614
        %v3616 = vmul.f32 %v3591, %v3614
        %v3617 = vmul.f32 %v3592, %v3614
        %3621 = vrot.lane.b32.xlu0 %v3615, 110
        %v3622 = vpop.permute.xlu0 %3621
        %3623 = vrot.lane.b32.xlu0 %v3616, 110
        %v3624 = vpop.permute.xlu0 %3623
        %3625 = vrot.lane.b32.xlu0 %v3617, 110
        %v3626 = vpop.permute.xlu0 %3625
        %v3627 = vsel %vm763, %v3622, %v3624
        %v3628 = vsel %vm763, %v3624, %v3626
        %v3631 = vadd.f32 %v3548, %v3627
        %v3632 = vadd.f32 %v3549, %v3628
        %s3633 = sld [smem:[#allocation9 + $0x4d]]
        %v3634 = vstv %s3633
        %v3635 = vmul.f32 %v3590, %v3634
        %v3636 = vmul.f32 %v3591, %v3634
        %v3637 = vmul.f32 %v3592, %v3634
        %3641 = vrot.lane.b32.xlu0 %v3635, 110
        %v3642 = vpop.permute.xlu0 %3641
        %3643 = vrot.lane.b32.xlu0 %v3636, 110
        %v3644 = vpop.permute.xlu0 %3643
        %3645 = vrot.lane.b32.xlu0 %v3637, 110
        %v3646 = vpop.permute.xlu0 %3645
        %v3647 = vsel %vm763, %v3642, %v3644
        %v3648 = vsel %vm763, %v3644, %v3646
        %v3651 = vadd.f32 %v3568, %v3647
        %v3652 = vadd.f32 %v3569, %v3648
        %s3653 = sld [smem:[#allocation9 + $0x71]]
        %v3654 = vstv %s3653
        %v3655 = vmul.f32 %v3590, %v3654
        %v3656 = vmul.f32 %v3591, %v3654
        %v3657 = vmul.f32 %v3592, %v3654
        %3661 = vrot.lane.b32.xlu0 %v3655, 110
        %v3662 = vpop.permute.xlu0 %3661
        %3663 = vrot.lane.b32.xlu0 %v3656, 110
        %v3664 = vpop.permute.xlu0 %3663
        %3665 = vrot.lane.b32.xlu0 %v3657, 110
        %v3666 = vpop.permute.xlu0 %3665
        %v3667 = vsel %vm763, %v3662, %v3664
        %v3668 = vsel %vm763, %v3664, %v3666
        %v3671 = vadd.f32 %v3588, %v3667
        %v3672 = vadd.f32 %v3589, %v3668
        %v3673 = vmul.f32 %v3236, %v831
        %v3674 = vmul.f32 %v3232, %v835
        %v3675 = vmul.f32 %v3237, %v833
        %s3676 = sld [smem:[#allocation9 + $0x6]]
        %v3677 = vstv %s3676
        %v3678 = vmul.f32 %v3673, %v3677
        %v3679 = vmul.f32 %v3674, %v3677
        %v3680 = vmul.f32 %v3675, %v3677
        %3684 = vrot.lane.b32.xlu0 %v3678, 96
        %v3685 = vpop.permute.xlu0 %3684
        %3686 = vrot.lane.b32.xlu0 %v3679, 96
        %v3687 = vpop.permute.xlu0 %3686
        %3688 = vrot.lane.b32.xlu0 %v3680, 96
        %v3689 = vpop.permute.xlu0 %3688
        %v3690 = vsel %vm856, %v3685, %v3687
        %v3691 = vsel %vm856, %v3687, %v3689
        %v3694 = vadd.f32 %v3611, %v3690
        %v3695 = vadd.f32 %v3612, %v3691
        %s3696 = sld [smem:[#allocation9 + $0x2a]]
        %v3697 = vstv %s3696
        %v3698 = vmul.f32 %v3673, %v3697
        %v3699 = vmul.f32 %v3674, %v3697
        %v3700 = vmul.f32 %v3675, %v3697
        %3704 = vrot.lane.b32.xlu0 %v3698, 96
        %v3705 = vpop.permute.xlu0 %3704
        %3706 = vrot.lane.b32.xlu0 %v3699, 96
        %v3707 = vpop.permute.xlu0 %3706
        %3708 = vrot.lane.b32.xlu0 %v3700, 96
        %v3709 = vpop.permute.xlu0 %3708
        %v3710 = vsel %vm856, %v3705, %v3707
        %v3711 = vsel %vm856, %v3707, %v3709
        %v3714 = vadd.f32 %v3631, %v3710
        %v3715 = vadd.f32 %v3632, %v3711
        %s3716 = sld [smem:[#allocation9 + $0x4e]]
        %v3717 = vstv %s3716
        %v3718 = vmul.f32 %v3673, %v3717
        %v3719 = vmul.f32 %v3674, %v3717
        %v3720 = vmul.f32 %v3675, %v3717
        %3724 = vrot.lane.b32.xlu0 %v3718, 96
        %v3725 = vpop.permute.xlu0 %3724
        %3726 = vrot.lane.b32.xlu0 %v3719, 96
        %v3727 = vpop.permute.xlu0 %3726
        %3728 = vrot.lane.b32.xlu0 %v3720, 96
        %v3729 = vpop.permute.xlu0 %3728
        %v3730 = vsel %vm856, %v3725, %v3727
        %v3731 = vsel %vm856, %v3727, %v3729
        %v3734 = vadd.f32 %v3651, %v3730
        %v3735 = vadd.f32 %v3652, %v3731
        %s3736 = sld [smem:[#allocation9 + $0x72]]
        %v3737 = vstv %s3736
        %v3738 = vmul.f32 %v3673, %v3737
        %v3739 = vmul.f32 %v3674, %v3737
        %v3740 = vmul.f32 %v3675, %v3737
        %3744 = vrot.lane.b32.xlu0 %v3738, 96
        %v3745 = vpop.permute.xlu0 %3744
        %3746 = vrot.lane.b32.xlu0 %v3739, 96
        %v3747 = vpop.permute.xlu0 %3746
        %3748 = vrot.lane.b32.xlu0 %v3740, 96
        %v3749 = vpop.permute.xlu0 %3748
        %v3750 = vsel %vm856, %v3745, %v3747
        %v3751 = vsel %vm856, %v3747, %v3749
        %v3754 = vadd.f32 %v3671, %v3750
        %v3755 = vadd.f32 %v3672, %v3751
        %s3756 = sld [smem:[#allocation9 + $0x7]]
        %v3757 = vstv %s3756
        %v3758 = vmul.f32 %v3236, %v3757
        %v3759 = vmul.f32 %v3232, %v3757
        %v3760 = vmul.f32 %v3237, %v3757
        %3764 = vrot.lane.b32.xlu0 %v3758, 95
        %v3765 = vpop.permute.xlu0 %3764
        %3766 = vrot.lane.b32.xlu0 %v3759, 95
        %v3767 = vpop.permute.xlu0 %3766
        %3768 = vrot.lane.b32.xlu0 %v3760, 95
        %v3769 = vpop.permute.xlu0 %3768
        %v3770 = vsel %vm937, %v3765, %v3767
        %v3771 = vsel %vm937, %v3767, %v3769
        %v3774 = vadd.f32 %v3694, %v3770
        %v3775 = vadd.f32 %v3695, %v3771
        %s3776 = sld [smem:[#allocation9 + $0x2b]]
        %v3777 = vstv %s3776
        %v3778 = vmul.f32 %v3236, %v3777
        %v3779 = vmul.f32 %v3232, %v3777
        %v3780 = vmul.f32 %v3237, %v3777
        %3784 = vrot.lane.b32.xlu0 %v3778, 95
        %v3785 = vpop.permute.xlu0 %3784
        %3786 = vrot.lane.b32.xlu0 %v3779, 95
        %v3787 = vpop.permute.xlu0 %3786
        %3788 = vrot.lane.b32.xlu0 %v3780, 95
        %v3789 = vpop.permute.xlu0 %3788
        %v3790 = vsel %vm937, %v3785, %v3787
        %v3791 = vsel %vm937, %v3787, %v3789
        %v3794 = vadd.f32 %v3714, %v3790
        %v3795 = vadd.f32 %v3715, %v3791
        %s3796 = sld [smem:[#allocation9 + $0x4f]]
        %v3797 = vstv %s3796
        %v3798 = vmul.f32 %v3236, %v3797
        %v3799 = vmul.f32 %v3232, %v3797
        %v3800 = vmul.f32 %v3237, %v3797
        %3804 = vrot.lane.b32.xlu0 %v3798, 95
        %v3805 = vpop.permute.xlu0 %3804
        %3806 = vrot.lane.b32.xlu0 %v3799, 95
        %v3807 = vpop.permute.xlu0 %3806
        %3808 = vrot.lane.b32.xlu0 %v3800, 95
        %v3809 = vpop.permute.xlu0 %3808
        %v3810 = vsel %vm937, %v3805, %v3807
        %v3811 = vsel %vm937, %v3807, %v3809
        %v3814 = vadd.f32 %v3734, %v3810
        %v3815 = vadd.f32 %v3735, %v3811
        %s3816 = sld [smem:[#allocation9 + $0x73]]
        %v3817 = vstv %s3816
        %v3818 = vmul.f32 %v3236, %v3817
        %v3819 = vmul.f32 %v3232, %v3817
        %v3820 = vmul.f32 %v3237, %v3817
        %3824 = vrot.lane.b32.xlu0 %v3818, 95
        %v3825 = vpop.permute.xlu0 %3824
        %3826 = vrot.lane.b32.xlu0 %v3819, 95
        %v3827 = vpop.permute.xlu0 %3826
        %3828 = vrot.lane.b32.xlu0 %v3820, 95
        %v3829 = vpop.permute.xlu0 %3828
        %v3830 = vsel %vm937, %v3825, %v3827
        %v3831 = vsel %vm937, %v3827, %v3829
        %v3834 = vadd.f32 %v3754, %v3830
        %v3835 = vadd.f32 %v3755, %v3831
        %v3836 = vmul.f32 %v3236, %v1005
        %v3837 = vmul.f32 %v3232, %v1009
        %v3838 = vmul.f32 %v3237, %v1007
        %s3839 = sld [smem:[#allocation9 + $0x8]]
        %v3840 = vstv %s3839
        %v3841 = vmul.f32 %v3836, %v3840
        %v3842 = vmul.f32 %v3837, %v3840
        %v3843 = vmul.f32 %v3838, %v3840
        %3847 = vrot.lane.b32.xlu0 %v3841, 94
        %v3848 = vpop.permute.xlu0 %3847
        %3849 = vrot.lane.b32.xlu0 %v3842, 94
        %v3850 = vpop.permute.xlu0 %3849
        %3851 = vrot.lane.b32.xlu0 %v3843, 94
        %v3852 = vpop.permute.xlu0 %3851
        %v3853 = vsel %vm1030, %v3848, %v3850
        %v3854 = vsel %vm1030, %v3850, %v3852
        %v3857 = vadd.f32 %v3774, %v3853
        %v3858 = vadd.f32 %v3775, %v3854
        %s3859 = sld [smem:[#allocation9 + $0x2c]]
        %v3860 = vstv %s3859
        %v3861 = vmul.f32 %v3836, %v3860
        %v3862 = vmul.f32 %v3837, %v3860
        %v3863 = vmul.f32 %v3838, %v3860
        %3867 = vrot.lane.b32.xlu0 %v3861, 94
        %v3868 = vpop.permute.xlu0 %3867
        %3869 = vrot.lane.b32.xlu0 %v3862, 94
        %v3870 = vpop.permute.xlu0 %3869
        %3871 = vrot.lane.b32.xlu0 %v3863, 94
        %v3872 = vpop.permute.xlu0 %3871
        %v3873 = vsel %vm1030, %v3868, %v3870
        %v3874 = vsel %vm1030, %v3870, %v3872
        %v3877 = vadd.f32 %v3794, %v3873
        %v3878 = vadd.f32 %v3795, %v3874
        %s3879 = sld [smem:[#allocation9 + $0x50]]
        %v3880 = vstv %s3879
        %v3881 = vmul.f32 %v3836, %v3880
        %v3882 = vmul.f32 %v3837, %v3880
        %v3883 = vmul.f32 %v3838, %v3880
        %3887 = vrot.lane.b32.xlu0 %v3881, 94
        %v3888 = vpop.permute.xlu0 %3887
        %3889 = vrot.lane.b32.xlu0 %v3882, 94
        %v3890 = vpop.permute.xlu0 %3889
        %3891 = vrot.lane.b32.xlu0 %v3883, 94
        %v3892 = vpop.permute.xlu0 %3891
        %v3893 = vsel %vm1030, %v3888, %v3890
        %v3894 = vsel %vm1030, %v3890, %v3892
        %v3897 = vadd.f32 %v3814, %v3893
        %v3898 = vadd.f32 %v3815, %v3894
        %s3899 = sld [smem:[#allocation9 + $0x74]]
        %v3900 = vstv %s3899
        %v3901 = vmul.f32 %v3836, %v3900
        %v3902 = vmul.f32 %v3837, %v3900
        %v3903 = vmul.f32 %v3838, %v3900
        %3907 = vrot.lane.b32.xlu0 %v3901, 94
        %v3908 = vpop.permute.xlu0 %3907
        %3909 = vrot.lane.b32.xlu0 %v3902, 94
        %v3910 = vpop.permute.xlu0 %3909
        %3911 = vrot.lane.b32.xlu0 %v3903, 94
        %v3912 = vpop.permute.xlu0 %3911
        %v3913 = vsel %vm1030, %v3908, %v3910
        %v3914 = vsel %vm1030, %v3910, %v3912
        %v3917 = vadd.f32 %v3834, %v3913
        %v3918 = vadd.f32 %v3835, %v3914
        %3921 = vrot.lane.b32.xlu0 %v3204, 17
        %v3922 = vpop.permute.xlu0 %3921
        %3923 = vrot.lane.b32.xlu0 %v3205, 17
        %v3924 = vpop.permute.xlu0 %3923
        %v3925 = vsel %vm352, %v3922, %v3924
        %v3929 = vsel %vm352, 0.0, %v3922
        %v3930 = vsel %vm352, %v3924, 0.0
        %v3931 = vmul.f32 %v3929, %v322
        %v3932 = vmul.f32 %v3925, %v323
        %s3933 = sld [smem:[#allocation9 + $0x9]]
        %v3934 = vstv %s3933
        %v3935 = vmul.f32 %v3931, %v3934
        %v3936 = vmul.f32 %v3932, %v3934
        %v3937 = vadd.f32 %v3857, %v3935
        %v3938 = vadd.f32 %v3858, %v3936
        %s3939 = sld [smem:[#allocation9 + $0x2d]]
        %v3940 = vstv %s3939
        %v3941 = vmul.f32 %v3931, %v3940
        %v3942 = vmul.f32 %v3932, %v3940
        %v3943 = vadd.f32 %v3877, %v3941
        %v3944 = vadd.f32 %v3878, %v3942
        %s3945 = sld [smem:[#allocation9 + $0x51]]
        %v3946 = vstv %s3945
        %v3947 = vmul.f32 %v3931, %v3946
        %v3948 = vmul.f32 %v3932, %v3946
        %v3949 = vadd.f32 %v3897, %v3947
        %v3950 = vadd.f32 %v3898, %v3948
        %s3951 = sld [smem:[#allocation9 + $0x75]]
        %v3952 = vstv %s3951
        %v3953 = vmul.f32 %v3931, %v3952
        %v3954 = vmul.f32 %v3932, %v3952
        %v3955 = vadd.f32 %v3917, %v3953
        %v3956 = vadd.f32 %v3918, %v3954
        %s3957 = sld [smem:[#allocation9 + $0xa]]
        %v3958 = vstv %s3957
        %v3959 = vmul.f32 %v3929, %v3958
        %v3960 = vmul.f32 %v3925, %v3958
        %v3961 = vmul.f32 %v3930, %v3958
        %3965 = vrot.lane.b32.xlu0 %v3959, 127
        %v3966 = vpop.permute.xlu0 %3965
        %3967 = vrot.lane.b32.xlu0 %v3960, 127
        %v3968 = vpop.permute.xlu0 %3967
        %3969 = vrot.lane.b32.xlu0 %v3961, 127
        %v3970 = vpop.permute.xlu0 %3969
        %v3971 = vsel %vm399, %v3966, %v3968
        %v3972 = vsel %vm399, %v3968, %v3970
        %v3975 = vadd.f32 %v3937, %v3971
        %v3976 = vadd.f32 %v3938, %v3972
        %s3977 = sld [smem:[#allocation9 + $0x2e]]
        %v3978 = vstv %s3977
        %v3979 = vmul.f32 %v3929, %v3978
        %v3980 = vmul.f32 %v3925, %v3978
        %v3981 = vmul.f32 %v3930, %v3978
        %3985 = vrot.lane.b32.xlu0 %v3979, 127
        %v3986 = vpop.permute.xlu0 %3985
        %3987 = vrot.lane.b32.xlu0 %v3980, 127
        %v3988 = vpop.permute.xlu0 %3987
        %3989 = vrot.lane.b32.xlu0 %v3981, 127
        %v3990 = vpop.permute.xlu0 %3989
        %v3991 = vsel %vm399, %v3986, %v3988
        %v3992 = vsel %vm399, %v3988, %v3990
        %v3995 = vadd.f32 %v3943, %v3991
        %v3996 = vadd.f32 %v3944, %v3992
        %s3997 = sld [smem:[#allocation9 + $0x52]]
        %v3998 = vstv %s3997
        %v3999 = vmul.f32 %v3929, %v3998
        %v4000 = vmul.f32 %v3925, %v3998
        %v4001 = vmul.f32 %v3930, %v3998
        %4005 = vrot.lane.b32.xlu0 %v3999, 127
        %v4006 = vpop.permute.xlu0 %4005
        %4007 = vrot.lane.b32.xlu0 %v4000, 127
        %v4008 = vpop.permute.xlu0 %4007
        %4009 = vrot.lane.b32.xlu0 %v4001, 127
        %v4010 = vpop.permute.xlu0 %4009
        %v4011 = vsel %vm399, %v4006, %v4008
        %v4012 = vsel %vm399, %v4008, %v4010
        %v4015 = vadd.f32 %v3949, %v4011
        %v4016 = vadd.f32 %v3950, %v4012
        %s4017 = sld [smem:[#allocation9 + $0x76]]
        %v4018 = vstv %s4017
        %v4019 = vmul.f32 %v3929, %v4018
        %v4020 = vmul.f32 %v3925, %v4018
        %v4021 = vmul.f32 %v3930, %v4018
        %4025 = vrot.lane.b32.xlu0 %v4019, 127
        %v4026 = vpop.permute.xlu0 %4025
        %4027 = vrot.lane.b32.xlu0 %v4020, 127
        %v4028 = vpop.permute.xlu0 %4027
        %4029 = vrot.lane.b32.xlu0 %v4021, 127
        %v4030 = vpop.permute.xlu0 %4029
        %v4031 = vsel %vm399, %v4026, %v4028
        %v4032 = vsel %vm399, %v4028, %v4030
        %v4035 = vadd.f32 %v3955, %v4031
        %v4036 = vadd.f32 %v3956, %v4032
        %v4037 = vmul.f32 %v3929, %v469
        %v4038 = vmul.f32 %v3925, %v473
        %v4039 = vmul.f32 %v3930, %v471
        %s4040 = sld [smem:[#allocation9 + $0xb]]
        %v4041 = vstv %s4040
        %v4042 = vmul.f32 %v4037, %v4041
        %v4043 = vmul.f32 %v4038, %v4041
        %v4044 = vmul.f32 %v4039, %v4041
        %4048 = vrot.lane.b32.xlu0 %v4042, 126
        %v4049 = vpop.permute.xlu0 %4048
        %4050 = vrot.lane.b32.xlu0 %v4043, 126
        %v4051 = vpop.permute.xlu0 %4050
        %4052 = vrot.lane.b32.xlu0 %v4044, 126
        %v4053 = vpop.permute.xlu0 %4052
        %v4054 = vsel %vm494, %v4049, %v4051
        %v4055 = vsel %vm494, %v4051, %v4053
        %v4058 = vadd.f32 %v3975, %v4054
        %v4059 = vadd.f32 %v3976, %v4055
        %s4060 = sld [smem:[#allocation9 + $0x2f]]
        %v4061 = vstv %s4060
        %v4062 = vmul.f32 %v4037, %v4061
        %v4063 = vmul.f32 %v4038, %v4061
        %v4064 = vmul.f32 %v4039, %v4061
        %4068 = vrot.lane.b32.xlu0 %v4062, 126
        %v4069 = vpop.permute.xlu0 %4068
        %4070 = vrot.lane.b32.xlu0 %v4063, 126
        %v4071 = vpop.permute.xlu0 %4070
        %4072 = vrot.lane.b32.xlu0 %v4064, 126
        %v4073 = vpop.permute.xlu0 %4072
        %v4074 = vsel %vm494, %v4069, %v4071
        %v4075 = vsel %vm494, %v4071, %v4073
        %v4078 = vadd.f32 %v3995, %v4074
        %v4079 = vadd.f32 %v3996, %v4075
        %s4080 = sld [smem:[#allocation9 + $0x53]]
        %v4081 = vstv %s4080
        %v4082 = vmul.f32 %v4037, %v4081
        %v4083 = vmul.f32 %v4038, %v4081
        %v4084 = vmul.f32 %v4039, %v4081
        %4088 = vrot.lane.b32.xlu0 %v4082, 126
        %v4089 = vpop.permute.xlu0 %4088
        %4090 = vrot.lane.b32.xlu0 %v4083, 126
        %v4091 = vpop.permute.xlu0 %4090
        %4092 = vrot.lane.b32.xlu0 %v4084, 126
        %v4093 = vpop.permute.xlu0 %4092
        %v4094 = vsel %vm494, %v4089, %v4091
        %v4095 = vsel %vm494, %v4091, %v4093
        %v4098 = vadd.f32 %v4015, %v4094
        %v4099 = vadd.f32 %v4016, %v4095
        %s4100 = sld [smem:[#allocation9 + $0x77]]
        %v4101 = vstv %s4100
        %v4102 = vmul.f32 %v4037, %v4101
        %v4103 = vmul.f32 %v4038, %v4101
        %v4104 = vmul.f32 %v4039, %v4101
        %4108 = vrot.lane.b32.xlu0 %v4102, 126
        %v4109 = vpop.permute.xlu0 %4108
        %4110 = vrot.lane.b32.xlu0 %v4103, 126
        %v4111 = vpop.permute.xlu0 %4110
        %4112 = vrot.lane.b32.xlu0 %v4104, 126
        %v4113 = vpop.permute.xlu0 %4112
        %v4114 = vsel %vm494, %v4109, %v4111
        %v4115 = vsel %vm494, %v4111, %v4113
        %v4118 = vadd.f32 %v4035, %v4114
        %v4119 = vadd.f32 %v4036, %v4115
        %v4120 = vmul.f32 %v3929, %v564
        %v4121 = vmul.f32 %v3925, %v568
        %v4122 = vmul.f32 %v3930, %v566
        %s4123 = sld [smem:[#allocation9 + $0xc]]
        %v4124 = vstv %s4123
        %v4125 = vmul.f32 %v4120, %v4124
        %v4126 = vmul.f32 %v4121, %v4124
        %v4127 = vmul.f32 %v4122, %v4124
        %4131 = vrot.lane.b32.xlu0 %v4125, 112
        %v4132 = vpop.permute.xlu0 %4131
        %4133 = vrot.lane.b32.xlu0 %v4126, 112
        %v4134 = vpop.permute.xlu0 %4133
        %4135 = vrot.lane.b32.xlu0 %v4127, 112
        %v4136 = vpop.permute.xlu0 %4135
        %v4137 = vsel %vm589, %v4132, %v4134
        %v4138 = vsel %vm589, %v4134, %v4136
        %v4141 = vadd.f32 %v4058, %v4137
        %v4142 = vadd.f32 %v4059, %v4138
        %s4143 = sld [smem:[#allocation9 + $0x30]]
        %v4144 = vstv %s4143
        %v4145 = vmul.f32 %v4120, %v4144
        %v4146 = vmul.f32 %v4121, %v4144
        %v4147 = vmul.f32 %v4122, %v4144
        %4151 = vrot.lane.b32.xlu0 %v4145, 112
        %v4152 = vpop.permute.xlu0 %4151
        %4153 = vrot.lane.b32.xlu0 %v4146, 112
        %v4154 = vpop.permute.xlu0 %4153
        %4155 = vrot.lane.b32.xlu0 %v4147, 112
        %v4156 = vpop.permute.xlu0 %4155
        %v4157 = vsel %vm589, %v4152, %v4154
        %v4158 = vsel %vm589, %v4154, %v4156
        %v4161 = vadd.f32 %v4078, %v4157
        %v4162 = vadd.f32 %v4079, %v4158
        %s4163 = sld [smem:[#allocation9 + $0x54]]
        %v4164 = vstv %s4163
        %v4165 = vmul.f32 %v4120, %v4164
        %v4166 = vmul.f32 %v4121, %v4164
        %v4167 = vmul.f32 %v4122, %v4164
        %4171 = vrot.lane.b32.xlu0 %v4165, 112
        %v4172 = vpop.permute.xlu0 %4171
        %4173 = vrot.lane.b32.xlu0 %v4166, 112
        %v4174 = vpop.permute.xlu0 %4173
        %4175 = vrot.lane.b32.xlu0 %v4167, 112
        %v4176 = vpop.permute.xlu0 %4175
        %v4177 = vsel %vm589, %v4172, %v4174
        %v4178 = vsel %vm589, %v4174, %v4176
        %v4181 = vadd.f32 %v4098, %v4177
        %v4182 = vadd.f32 %v4099, %v4178
        %s4183 = sld [smem:[#allocation9 + $0x78]]
        %v4184 = vstv %s4183
        %v4185 = vmul.f32 %v4120, %v4184
        %v4186 = vmul.f32 %v4121, %v4184
        %v4187 = vmul.f32 %v4122, %v4184
        %4191 = vrot.lane.b32.xlu0 %v4185, 112
        %v4192 = vpop.permute.xlu0 %4191
        %4193 = vrot.lane.b32.xlu0 %v4186, 112
        %v4194 = vpop.permute.xlu0 %4193
        %4195 = vrot.lane.b32.xlu0 %v4187, 112
        %v4196 = vpop.permute.xlu0 %4195
        %v4197 = vsel %vm589, %v4192, %v4194
        %v4198 = vsel %vm589, %v4194, %v4196
        %v4201 = vadd.f32 %v4118, %v4197
        %v4202 = vadd.f32 %v4119, %v4198
        %s4203 = sld [smem:[#allocation9 + $0xd]]
        %v4204 = vstv %s4203
        %v4205 = vmul.f32 %v3929, %v4204
        %v4206 = vmul.f32 %v3925, %v4204
        %v4207 = vmul.f32 %v3930, %v4204
        %4211 = vrot.lane.b32.xlu0 %v4205, 111
        %v4212 = vpop.permute.xlu0 %4211
        %4213 = vrot.lane.b32.xlu0 %v4206, 111
        %v4214 = vpop.permute.xlu0 %4213
        %4215 = vrot.lane.b32.xlu0 %v4207, 111
        %v4216 = vpop.permute.xlu0 %4215
        %v4217 = vsel %vm670, %v4212, %v4214
        %v4218 = vsel %vm670, %v4214, %v4216
        %v4221 = vadd.f32 %v4141, %v4217
        %v4222 = vadd.f32 %v4142, %v4218
        %s4223 = sld [smem:[#allocation9 + $0x31]]
        %v4224 = vstv %s4223
        %v4225 = vmul.f32 %v3929, %v4224
        %v4226 = vmul.f32 %v3925, %v4224
        %v4227 = vmul.f32 %v3930, %v4224
        %4231 = vrot.lane.b32.xlu0 %v4225, 111
        %v4232 = vpop.permute.xlu0 %4231
        %4233 = vrot.lane.b32.xlu0 %v4226, 111
        %v4234 = vpop.permute.xlu0 %4233
        %4235 = vrot.lane.b32.xlu0 %v4227, 111
        %v4236 = vpop.permute.xlu0 %4235
        %v4237 = vsel %vm670, %v4232, %v4234
        %v4238 = vsel %vm670, %v4234, %v4236
        %v4241 = vadd.f32 %v4161, %v4237
        %v4242 = vadd.f32 %v4162, %v4238
        %s4243 = sld [smem:[#allocation9 + $0x55]]
        %v4244 = vstv %s4243
        %v4245 = vmul.f32 %v3929, %v4244
        %v4246 = vmul.f32 %v3925, %v4244
        %v4247 = vmul.f32 %v3930, %v4244
        %4251 = vrot.lane.b32.xlu0 %v4245, 111
        %v4252 = vpop.permute.xlu0 %4251
        %4253 = vrot.lane.b32.xlu0 %v4246, 111
        %v4254 = vpop.permute.xlu0 %4253
        %4255 = vrot.lane.b32.xlu0 %v4247, 111
        %v4256 = vpop.permute.xlu0 %4255
        %v4257 = vsel %vm670, %v4252, %v4254
        %v4258 = vsel %vm670, %v4254, %v4256
        %v4261 = vadd.f32 %v4181, %v4257
        %v4262 = vadd.f32 %v4182, %v4258
        %s4263 = sld [smem:[#allocation9 + $0x79]]
        %v4264 = vstv %s4263
        %v4265 = vmul.f32 %v3929, %v4264
        %v4266 = vmul.f32 %v3925, %v4264
        %v4267 = vmul.f32 %v3930, %v4264
        %4271 = vrot.lane.b32.xlu0 %v4265, 111
        %v4272 = vpop.permute.xlu0 %4271
        %4273 = vrot.lane.b32.xlu0 %v4266, 111
        %v4274 = vpop.permute.xlu0 %4273
        %4275 = vrot.lane.b32.xlu0 %v4267, 111
        %v4276 = vpop.permute.xlu0 %4275
        %v4277 = vsel %vm670, %v4272, %v4274
        %v4278 = vsel %vm670, %v4274, %v4276
        %v4281 = vadd.f32 %v4201, %v4277
        %v4282 = vadd.f32 %v4202, %v4278
        %v4283 = vmul.f32 %v3929, %v738
        %v4284 = vmul.f32 %v3925, %v742
        %v4285 = vmul.f32 %v3930, %v740
        %s4286 = sld [smem:[#allocation9 + $0xe]]
        %v4287 = vstv %s4286
        %v4288 = vmul.f32 %v4283, %v4287
        %v4289 = vmul.f32 %v4284, %v4287
        %v4290 = vmul.f32 %v4285, %v4287
        %4294 = vrot.lane.b32.xlu0 %v4288, 110
        %v4295 = vpop.permute.xlu0 %4294
        %4296 = vrot.lane.b32.xlu0 %v4289, 110
        %v4297 = vpop.permute.xlu0 %4296
        %4298 = vrot.lane.b32.xlu0 %v4290, 110
        %v4299 = vpop.permute.xlu0 %4298
        %v4300 = vsel %vm763, %v4295, %v4297
        %v4301 = vsel %vm763, %v4297, %v4299
        %v4304 = vadd.f32 %v4221, %v4300
        %v4305 = vadd.f32 %v4222, %v4301
        %s4306 = sld [smem:[#allocation9 + $0x32]]
        %v4307 = vstv %s4306
        %v4308 = vmul.f32 %v4283, %v4307
        %v4309 = vmul.f32 %v4284, %v4307
        %v4310 = vmul.f32 %v4285, %v4307
        %4314 = vrot.lane.b32.xlu0 %v4308, 110
        %v4315 = vpop.permute.xlu0 %4314
        %4316 = vrot.lane.b32.xlu0 %v4309, 110
        %v4317 = vpop.permute.xlu0 %4316
        %4318 = vrot.lane.b32.xlu0 %v4310, 110
        %v4319 = vpop.permute.xlu0 %4318
        %v4320 = vsel %vm763, %v4315, %v4317
        %v4321 = vsel %vm763, %v4317, %v4319
        %v4324 = vadd.f32 %v4241, %v4320
        %v4325 = vadd.f32 %v4242, %v4321
        %s4326 = sld [smem:[#allocation9 + $0x56]]
        %v4327 = vstv %s4326
        %v4328 = vmul.f32 %v4283, %v4327
        %v4329 = vmul.f32 %v4284, %v4327
        %v4330 = vmul.f32 %v4285, %v4327
        %4334 = vrot.lane.b32.xlu0 %v4328, 110
        %v4335 = vpop.permute.xlu0 %4334
        %4336 = vrot.lane.b32.xlu0 %v4329, 110
        %v4337 = vpop.permute.xlu0 %4336
        %4338 = vrot.lane.b32.xlu0 %v4330, 110
        %v4339 = vpop.permute.xlu0 %4338
        %v4340 = vsel %vm763, %v4335, %v4337
        %v4341 = vsel %vm763, %v4337, %v4339
        %v4344 = vadd.f32 %v4261, %v4340
        %v4345 = vadd.f32 %v4262, %v4341
        %s4346 = sld [smem:[#allocation9 + $0x7a]]
        %v4347 = vstv %s4346
        %v4348 = vmul.f32 %v4283, %v4347
        %v4349 = vmul.f32 %v4284, %v4347
        %v4350 = vmul.f32 %v4285, %v4347
        %4354 = vrot.lane.b32.xlu0 %v4348, 110
        %v4355 = vpop.permute.xlu0 %4354
        %4356 = vrot.lane.b32.xlu0 %v4349, 110
        %v4357 = vpop.permute.xlu0 %4356
        %4358 = vrot.lane.b32.xlu0 %v4350, 110
        %v4359 = vpop.permute.xlu0 %4358
        %v4360 = vsel %vm763, %v4355, %v4357
        %v4361 = vsel %vm763, %v4357, %v4359
        %v4364 = vadd.f32 %v4281, %v4360
        %v4365 = vadd.f32 %v4282, %v4361
        %v4366 = vmul.f32 %v3929, %v831
        %v4367 = vmul.f32 %v3925, %v835
        %v4368 = vmul.f32 %v3930, %v833
        %s4369 = sld [smem:[#allocation9 + $0xf]]
        %v4370 = vstv %s4369
        %v4371 = vmul.f32 %v4366, %v4370
        %v4372 = vmul.f32 %v4367, %v4370
        %v4373 = vmul.f32 %v4368, %v4370
        %4377 = vrot.lane.b32.xlu0 %v4371, 96
        %v4378 = vpop.permute.xlu0 %4377
        %4379 = vrot.lane.b32.xlu0 %v4372, 96
        %v4380 = vpop.permute.xlu0 %4379
        %4381 = vrot.lane.b32.xlu0 %v4373, 96
        %v4382 = vpop.permute.xlu0 %4381
        %v4383 = vsel %vm856, %v4378, %v4380
        %v4384 = vsel %vm856, %v4380, %v4382
        %v4387 = vadd.f32 %v4304, %v4383
        %v4388 = vadd.f32 %v4305, %v4384
        %s4389 = sld [smem:[#allocation9 + $0x33]]
        %v4390 = vstv %s4389
        %v4391 = vmul.f32 %v4366, %v4390
        %v4392 = vmul.f32 %v4367, %v4390
        %v4393 = vmul.f32 %v4368, %v4390
        %4397 = vrot.lane.b32.xlu0 %v4391, 96
        %v4398 = vpop.permute.xlu0 %4397
        %4399 = vrot.lane.b32.xlu0 %v4392, 96
        %v4400 = vpop.permute.xlu0 %4399
        %4401 = vrot.lane.b32.xlu0 %v4393, 96
        %v4402 = vpop.permute.xlu0 %4401
        %v4403 = vsel %vm856, %v4398, %v4400
        %v4404 = vsel %vm856, %v4400, %v4402
        %v4407 = vadd.f32 %v4324, %v4403
        %v4408 = vadd.f32 %v4325, %v4404
        %s4409 = sld [smem:[#allocation9 + $0x57]]
        %v4410 = vstv %s4409
        %v4411 = vmul.f32 %v4366, %v4410
        %v4412 = vmul.f32 %v4367, %v4410
        %v4413 = vmul.f32 %v4368, %v4410
        %4417 = vrot.lane.b32.xlu0 %v4411, 96
        %v4418 = vpop.permute.xlu0 %4417
        %4419 = vrot.lane.b32.xlu0 %v4412, 96
        %v4420 = vpop.permute.xlu0 %4419
        %4421 = vrot.lane.b32.xlu0 %v4413, 96
        %v4422 = vpop.permute.xlu0 %4421
        %v4423 = vsel %vm856, %v4418, %v4420
        %v4424 = vsel %vm856, %v4420, %v4422
        %v4427 = vadd.f32 %v4344, %v4423
        %v4428 = vadd.f32 %v4345, %v4424
        %s4429 = sld [smem:[#allocation9 + $0x7b]]
        %v4430 = vstv %s4429
        %v4431 = vmul.f32 %v4366, %v4430
        %v4432 = vmul.f32 %v4367, %v4430
        %v4433 = vmul.f32 %v4368, %v4430
        %4437 = vrot.lane.b32.xlu0 %v4431, 96
        %v4438 = vpop.permute.xlu0 %4437
        %4439 = vrot.lane.b32.xlu0 %v4432, 96
        %v4440 = vpop.permute.xlu0 %4439
        %4441 = vrot.lane.b32.xlu0 %v4433, 96
        %v4442 = vpop.permute.xlu0 %4441
        %v4443 = vsel %vm856, %v4438, %v4440
        %v4444 = vsel %vm856, %v4440, %v4442
        %v4447 = vadd.f32 %v4364, %v4443
        %v4448 = vadd.f32 %v4365, %v4444
        %s4449 = sld [smem:[#allocation9 + $0x10]]
        %v4450 = vstv %s4449
        %v4451 = vmul.f32 %v3929, %v4450
        %v4452 = vmul.f32 %v3925, %v4450
        %v4453 = vmul.f32 %v3930, %v4450
        %4457 = vrot.lane.b32.xlu0 %v4451, 95
        %v4458 = vpop.permute.xlu0 %4457
        %4459 = vrot.lane.b32.xlu0 %v4452, 95
        %v4460 = vpop.permute.xlu0 %4459
        %4461 = vrot.lane.b32.xlu0 %v4453, 95
        %v4462 = vpop.permute.xlu0 %4461
        %v4463 = vsel %vm937, %v4458, %v4460
        %v4464 = vsel %vm937, %v4460, %v4462
        %v4467 = vadd.f32 %v4387, %v4463
        %v4468 = vadd.f32 %v4388, %v4464
        %s4469 = sld [smem:[#allocation9 + $0x34]]
        %v4470 = vstv %s4469
        %v4471 = vmul.f32 %v3929, %v4470
        %v4472 = vmul.f32 %v3925, %v4470
        %v4473 = vmul.f32 %v3930, %v4470
        %4477 = vrot.lane.b32.xlu0 %v4471, 95
        %v4478 = vpop.permute.xlu0 %4477
        %4479 = vrot.lane.b32.xlu0 %v4472, 95
        %v4480 = vpop.permute.xlu0 %4479
        %4481 = vrot.lane.b32.xlu0 %v4473, 95
        %v4482 = vpop.permute.xlu0 %4481
        %v4483 = vsel %vm937, %v4478, %v4480
        %v4484 = vsel %vm937, %v4480, %v4482
        %v4487 = vadd.f32 %v4407, %v4483
        %v4488 = vadd.f32 %v4408, %v4484
        %s4489 = sld [smem:[#allocation9 + $0x58]]
        %v4490 = vstv %s4489
        %v4491 = vmul.f32 %v3929, %v4490
        %v4492 = vmul.f32 %v3925, %v4490
        %v4493 = vmul.f32 %v3930, %v4490
        %4497 = vrot.lane.b32.xlu0 %v4491, 95
        %v4498 = vpop.permute.xlu0 %4497
        %4499 = vrot.lane.b32.xlu0 %v4492, 95
        %v4500 = vpop.permute.xlu0 %4499
        %4501 = vrot.lane.b32.xlu0 %v4493, 95
        %v4502 = vpop.permute.xlu0 %4501
        %v4503 = vsel %vm937, %v4498, %v4500
        %v4504 = vsel %vm937, %v4500, %v4502
        %v4507 = vadd.f32 %v4427, %v4503
        %v4508 = vadd.f32 %v4428, %v4504
        %s4509 = sld [smem:[#allocation9 + $0x7c]]
        %v4510 = vstv %s4509
        %v4511 = vmul.f32 %v3929, %v4510
        %v4512 = vmul.f32 %v3925, %v4510
        %v4513 = vmul.f32 %v3930, %v4510
        %4517 = vrot.lane.b32.xlu0 %v4511, 95
        %v4518 = vpop.permute.xlu0 %4517
        %4519 = vrot.lane.b32.xlu0 %v4512, 95
        %v4520 = vpop.permute.xlu0 %4519
        %4521 = vrot.lane.b32.xlu0 %v4513, 95
        %v4522 = vpop.permute.xlu0 %4521
        %v4523 = vsel %vm937, %v4518, %v4520
        %v4524 = vsel %vm937, %v4520, %v4522
        %v4527 = vadd.f32 %v4447, %v4523
        %v4528 = vadd.f32 %v4448, %v4524
        %v4529 = vmul.f32 %v3929, %v1005
        %v4530 = vmul.f32 %v3925, %v1009
        %v4531 = vmul.f32 %v3930, %v1007
        %s4532 = sld [smem:[#allocation9 + $0x11]]
        %v4533 = vstv %s4532
        %v4534 = vmul.f32 %v4529, %v4533
        %v4535 = vmul.f32 %v4530, %v4533
        %v4536 = vmul.f32 %v4531, %v4533
        %4540 = vrot.lane.b32.xlu0 %v4534, 94
        %v4541 = vpop.permute.xlu0 %4540
        %4542 = vrot.lane.b32.xlu0 %v4535, 94
        %v4543 = vpop.permute.xlu0 %4542
        %4544 = vrot.lane.b32.xlu0 %v4536, 94
        %v4545 = vpop.permute.xlu0 %4544
        %v4546 = vsel %vm1030, %v4541, %v4543
        %v4547 = vsel %vm1030, %v4543, %v4545
        %v4550 = vadd.f32 %v4467, %v4546
        %v4551 = vadd.f32 %v4468, %v4547
        %s4552 = sld [smem:[#allocation9 + $0x35]]
        %v4553 = vstv %s4552
        %v4554 = vmul.f32 %v4529, %v4553
        %v4555 = vmul.f32 %v4530, %v4553
        %v4556 = vmul.f32 %v4531, %v4553
        %4560 = vrot.lane.b32.xlu0 %v4554, 94
        %v4561 = vpop.permute.xlu0 %4560
        %4562 = vrot.lane.b32.xlu0 %v4555, 94
        %v4563 = vpop.permute.xlu0 %4562
        %4564 = vrot.lane.b32.xlu0 %v4556, 94
        %v4565 = vpop.permute.xlu0 %4564
        %v4566 = vsel %vm1030, %v4561, %v4563
        %v4567 = vsel %vm1030, %v4563, %v4565
        %v4570 = vadd.f32 %v4487, %v4566
        %v4571 = vadd.f32 %v4488, %v4567
        %s4572 = sld [smem:[#allocation9 + $0x59]]
        %v4573 = vstv %s4572
        %v4574 = vmul.f32 %v4529, %v4573
        %v4575 = vmul.f32 %v4530, %v4573
        %v4576 = vmul.f32 %v4531, %v4573
        %4580 = vrot.lane.b32.xlu0 %v4574, 94
        %v4581 = vpop.permute.xlu0 %4580
        %4582 = vrot.lane.b32.xlu0 %v4575, 94
        %v4583 = vpop.permute.xlu0 %4582
        %4584 = vrot.lane.b32.xlu0 %v4576, 94
        %v4585 = vpop.permute.xlu0 %4584
        %v4586 = vsel %vm1030, %v4581, %v4583
        %v4587 = vsel %vm1030, %v4583, %v4585
        %v4590 = vadd.f32 %v4507, %v4586
        %v4591 = vadd.f32 %v4508, %v4587
        %s4592 = sld [smem:[#allocation9 + $0x7d]]
        %v4593 = vstv %s4592
        %v4594 = vmul.f32 %v4529, %v4593
        %v4595 = vmul.f32 %v4530, %v4593
        %v4596 = vmul.f32 %v4531, %v4593
        %4600 = vrot.lane.b32.xlu0 %v4594, 94
        %v4601 = vpop.permute.xlu0 %4600
        %4602 = vrot.lane.b32.xlu0 %v4595, 94
        %v4603 = vpop.permute.xlu0 %4602
        %4604 = vrot.lane.b32.xlu0 %v4596, 94
        %v4605 = vpop.permute.xlu0 %4604
        %v4606 = vsel %vm1030, %v4601, %v4603
        %v4607 = vsel %vm1030, %v4603, %v4605
        %v4610 = vadd.f32 %v4527, %v4606
        %v4611 = vadd.f32 %v4528, %v4607
        %4614 = vrot.lane.b32.xlu0 %v3210, 17
        %v4615 = vpop.permute.xlu0 %4614
        %4616 = vrot.lane.b32.xlu0 %v3211, 17
        %v4617 = vpop.permute.xlu0 %4616
        %v4618 = vsel %vm352, %v4615, %v4617
        %v4622 = vsel %vm352, 0.0, %v4615
        %v4623 = vsel %vm352, %v4617, 0.0
        %v4624 = vmul.f32 %v4622, %v322
        %v4625 = vmul.f32 %v4618, %v323
        %s4626 = sld [smem:[#allocation9 + $0x12]]
        %v4627 = vstv %s4626
        %v4628 = vmul.f32 %v4624, %v4627
        %v4629 = vmul.f32 %v4625, %v4627
        %v4630 = vadd.f32 %v4550, %v4628
        %v4631 = vadd.f32 %v4551, %v4629
        %s4632 = sld [smem:[#allocation9 + $0x36]]
        %v4633 = vstv %s4632
        %v4634 = vmul.f32 %v4624, %v4633
        %v4635 = vmul.f32 %v4625, %v4633
        %v4636 = vadd.f32 %v4570, %v4634
        %v4637 = vadd.f32 %v4571, %v4635
        %s4638 = sld [smem:[#allocation9 + $0x5a]]
        %v4639 = vstv %s4638
        %v4640 = vmul.f32 %v4624, %v4639
        %v4641 = vmul.f32 %v4625, %v4639
        %v4642 = vadd.f32 %v4590, %v4640
        %v4643 = vadd.f32 %v4591, %v4641
        %s4644 = sld [smem:[#allocation9 + $0x7e]]
        %v4645 = vstv %s4644
        %v4646 = vmul.f32 %v4624, %v4645
        %v4647 = vmul.f32 %v4625, %v4645
        %v4648 = vadd.f32 %v4610, %v4646
        %v4649 = vadd.f32 %v4611, %v4647
        %s4650 = sld [smem:[#allocation9 + $0x13]]
        %v4651 = vstv %s4650
        %v4652 = vmul.f32 %v4622, %v4651
        %v4653 = vmul.f32 %v4618, %v4651
        %v4654 = vmul.f32 %v4623, %v4651
        %4658 = vrot.lane.b32.xlu0 %v4652, 127
        %v4659 = vpop.permute.xlu0 %4658
        %4660 = vrot.lane.b32.xlu0 %v4653, 127
        %v4661 = vpop.permute.xlu0 %4660
        %4662 = vrot.lane.b32.xlu0 %v4654, 127
        %v4663 = vpop.permute.xlu0 %4662
        %v4664 = vsel %vm399, %v4659, %v4661
        %v4665 = vsel %vm399, %v4661, %v4663
        %v4668 = vadd.f32 %v4630, %v4664
        %v4669 = vadd.f32 %v4631, %v4665
        %s4670 = sld [smem:[#allocation9 + $0x37]]
        %v4671 = vstv %s4670
        %v4672 = vmul.f32 %v4622, %v4671
        %v4673 = vmul.f32 %v4618, %v4671
        %v4674 = vmul.f32 %v4623, %v4671
        %4678 = vrot.lane.b32.xlu0 %v4672, 127
        %v4679 = vpop.permute.xlu0 %4678
        %4680 = vrot.lane.b32.xlu0 %v4673, 127
        %v4681 = vpop.permute.xlu0 %4680
        %4682 = vrot.lane.b32.xlu0 %v4674, 127
        %v4683 = vpop.permute.xlu0 %4682
        %v4684 = vsel %vm399, %v4679, %v4681
        %v4685 = vsel %vm399, %v4681, %v4683
        %v4688 = vadd.f32 %v4636, %v4684
        %v4689 = vadd.f32 %v4637, %v4685
        %s4690 = sld [smem:[#allocation9 + $0x5b]]
        %v4691 = vstv %s4690
        %v4692 = vmul.f32 %v4622, %v4691
        %v4693 = vmul.f32 %v4618, %v4691
        %v4694 = vmul.f32 %v4623, %v4691
        %4698 = vrot.lane.b32.xlu0 %v4692, 127
        %v4699 = vpop.permute.xlu0 %4698
        %4700 = vrot.lane.b32.xlu0 %v4693, 127
        %v4701 = vpop.permute.xlu0 %4700
        %4702 = vrot.lane.b32.xlu0 %v4694, 127
        %v4703 = vpop.permute.xlu0 %4702
        %v4704 = vsel %vm399, %v4699, %v4701
        %v4705 = vsel %vm399, %v4701, %v4703
        %v4708 = vadd.f32 %v4642, %v4704
        %v4709 = vadd.f32 %v4643, %v4705
        %s4710 = sld [smem:[#allocation9 + $0x7f]]
        %v4711 = vstv %s4710
        %v4712 = vmul.f32 %v4622, %v4711
        %v4713 = vmul.f32 %v4618, %v4711
        %v4714 = vmul.f32 %v4623, %v4711
        %4718 = vrot.lane.b32.xlu0 %v4712, 127
        %v4719 = vpop.permute.xlu0 %4718
        %4720 = vrot.lane.b32.xlu0 %v4713, 127
        %v4721 = vpop.permute.xlu0 %4720
        %4722 = vrot.lane.b32.xlu0 %v4714, 127
        %v4723 = vpop.permute.xlu0 %4722
        %v4724 = vsel %vm399, %v4719, %v4721
        %v4725 = vsel %vm399, %v4721, %v4723
        %v4728 = vadd.f32 %v4648, %v4724
        %v4729 = vadd.f32 %v4649, %v4725
        %v4730 = vmul.f32 %v4622, %v469
        %v4731 = vmul.f32 %v4618, %v473
        %v4732 = vmul.f32 %v4623, %v471
        %s4733 = sld [smem:[#allocation9 + $0x14]]
        %v4734 = vstv %s4733
        %v4735 = vmul.f32 %v4730, %v4734
        %v4736 = vmul.f32 %v4731, %v4734
        %v4737 = vmul.f32 %v4732, %v4734
        %4741 = vrot.lane.b32.xlu0 %v4735, 126
        %v4742 = vpop.permute.xlu0 %4741
        %4743 = vrot.lane.b32.xlu0 %v4736, 126
        %v4744 = vpop.permute.xlu0 %4743
        %4745 = vrot.lane.b32.xlu0 %v4737, 126
        %v4746 = vpop.permute.xlu0 %4745
        %v4747 = vsel %vm494, %v4742, %v4744
        %v4748 = vsel %vm494, %v4744, %v4746
        %v4751 = vadd.f32 %v4668, %v4747
        %v4752 = vadd.f32 %v4669, %v4748
        %s4753 = sld [smem:[#allocation9 + $0x38]]
        %v4754 = vstv %s4753
        %v4755 = vmul.f32 %v4730, %v4754
        %v4756 = vmul.f32 %v4731, %v4754
        %v4757 = vmul.f32 %v4732, %v4754
        %4761 = vrot.lane.b32.xlu0 %v4755, 126
        %v4762 = vpop.permute.xlu0 %4761
        %4763 = vrot.lane.b32.xlu0 %v4756, 126
        %v4764 = vpop.permute.xlu0 %4763
        %4765 = vrot.lane.b32.xlu0 %v4757, 126
        %v4766 = vpop.permute.xlu0 %4765
        %v4767 = vsel %vm494, %v4762, %v4764
        %v4768 = vsel %vm494, %v4764, %v4766
        %v4771 = vadd.f32 %v4688, %v4767
        %v4772 = vadd.f32 %v4689, %v4768
        %s4773 = sld [smem:[#allocation9 + $0x5c]]
        %v4774 = vstv %s4773
        %v4775 = vmul.f32 %v4730, %v4774
        %v4776 = vmul.f32 %v4731, %v4774
        %v4777 = vmul.f32 %v4732, %v4774
        %4781 = vrot.lane.b32.xlu0 %v4775, 126
        %v4782 = vpop.permute.xlu0 %4781
        %4783 = vrot.lane.b32.xlu0 %v4776, 126
        %v4784 = vpop.permute.xlu0 %4783
        %4785 = vrot.lane.b32.xlu0 %v4777, 126
        %v4786 = vpop.permute.xlu0 %4785
        %v4787 = vsel %vm494, %v4782, %v4784
        %v4788 = vsel %vm494, %v4784, %v4786
        %v4791 = vadd.f32 %v4708, %v4787
        %v4792 = vadd.f32 %v4709, %v4788
        %s4793 = sld [smem:[#allocation9 + $0x80]]
        %v4794 = vstv %s4793
        %v4795 = vmul.f32 %v4730, %v4794
        %v4796 = vmul.f32 %v4731, %v4794
        %v4797 = vmul.f32 %v4732, %v4794
        %4801 = vrot.lane.b32.xlu0 %v4795, 126
        %v4802 = vpop.permute.xlu0 %4801
        %4803 = vrot.lane.b32.xlu0 %v4796, 126
        %v4804 = vpop.permute.xlu0 %4803
        %4805 = vrot.lane.b32.xlu0 %v4797, 126
        %v4806 = vpop.permute.xlu0 %4805
        %v4807 = vsel %vm494, %v4802, %v4804
        %v4808 = vsel %vm494, %v4804, %v4806
        %v4811 = vadd.f32 %v4728, %v4807
        %v4812 = vadd.f32 %v4729, %v4808
        %v4813 = vmul.f32 %v4622, %v564
        %v4814 = vmul.f32 %v4618, %v568
        %v4815 = vmul.f32 %v4623, %v566
        %s4816 = sld [smem:[#allocation9 + $0x15]]
        %v4817 = vstv %s4816
        %v4818 = vmul.f32 %v4813, %v4817
        %v4819 = vmul.f32 %v4814, %v4817
        %v4820 = vmul.f32 %v4815, %v4817
        %4824 = vrot.lane.b32.xlu0 %v4818, 112
        %v4825 = vpop.permute.xlu0 %4824
        %4826 = vrot.lane.b32.xlu0 %v4819, 112
        %v4827 = vpop.permute.xlu0 %4826
        %4828 = vrot.lane.b32.xlu0 %v4820, 112
        %v4829 = vpop.permute.xlu0 %4828
        %v4830 = vsel %vm589, %v4825, %v4827
        %v4831 = vsel %vm589, %v4827, %v4829
        %v4834 = vadd.f32 %v4751, %v4830
        %v4835 = vadd.f32 %v4752, %v4831
        %s4836 = sld [smem:[#allocation9 + $0x39]]
        %v4837 = vstv %s4836
        %v4838 = vmul.f32 %v4813, %v4837
        %v4839 = vmul.f32 %v4814, %v4837
        %v4840 = vmul.f32 %v4815, %v4837
        %4844 = vrot.lane.b32.xlu0 %v4838, 112
        %v4845 = vpop.permute.xlu0 %4844
        %4846 = vrot.lane.b32.xlu0 %v4839, 112
        %v4847 = vpop.permute.xlu0 %4846
        %4848 = vrot.lane.b32.xlu0 %v4840, 112
        %v4849 = vpop.permute.xlu0 %4848
        %v4850 = vsel %vm589, %v4845, %v4847
        %v4851 = vsel %vm589, %v4847, %v4849
        %v4854 = vadd.f32 %v4771, %v4850
        %v4855 = vadd.f32 %v4772, %v4851
        %s4856 = sld [smem:[#allocation9 + $0x5d]]
        %v4857 = vstv %s4856
        %v4858 = vmul.f32 %v4813, %v4857
        %v4859 = vmul.f32 %v4814, %v4857
        %v4860 = vmul.f32 %v4815, %v4857
        %4864 = vrot.lane.b32.xlu0 %v4858, 112
        %v4865 = vpop.permute.xlu0 %4864
        %4866 = vrot.lane.b32.xlu0 %v4859, 112
        %v4867 = vpop.permute.xlu0 %4866
        %4868 = vrot.lane.b32.xlu0 %v4860, 112
        %v4869 = vpop.permute.xlu0 %4868
        %v4870 = vsel %vm589, %v4865, %v4867
        %v4871 = vsel %vm589, %v4867, %v4869
        %v4874 = vadd.f32 %v4791, %v4870
        %v4875 = vadd.f32 %v4792, %v4871
        %s4876 = sld [smem:[#allocation9 + $0x81]]
        %v4877 = vstv %s4876
        %v4878 = vmul.f32 %v4813, %v4877
        %v4879 = vmul.f32 %v4814, %v4877
        %v4880 = vmul.f32 %v4815, %v4877
        %4884 = vrot.lane.b32.xlu0 %v4878, 112
        %v4885 = vpop.permute.xlu0 %4884
        %4886 = vrot.lane.b32.xlu0 %v4879, 112
        %v4887 = vpop.permute.xlu0 %4886
        %4888 = vrot.lane.b32.xlu0 %v4880, 112
        %v4889 = vpop.permute.xlu0 %4888
        %v4890 = vsel %vm589, %v4885, %v4887
        %v4891 = vsel %vm589, %v4887, %v4889
        %v4894 = vadd.f32 %v4811, %v4890
        %v4895 = vadd.f32 %v4812, %v4891
        %s4896 = sld [smem:[#allocation9 + $0x16]]
        %v4897 = vstv %s4896
        %v4898 = vmul.f32 %v4622, %v4897
        %v4899 = vmul.f32 %v4618, %v4897
        %v4900 = vmul.f32 %v4623, %v4897
        %4904 = vrot.lane.b32.xlu0 %v4898, 111
        %v4905 = vpop.permute.xlu0 %4904
        %4906 = vrot.lane.b32.xlu0 %v4899, 111
        %v4907 = vpop.permute.xlu0 %4906
        %4908 = vrot.lane.b32.xlu0 %v4900, 111
        %v4909 = vpop.permute.xlu0 %4908
        %v4910 = vsel %vm670, %v4905, %v4907
        %v4911 = vsel %vm670, %v4907, %v4909
        %v4914 = vadd.f32 %v4834, %v4910
        %v4915 = vadd.f32 %v4835, %v4911
        %s4916 = sld [smem:[#allocation9 + $0x3a]]
        %v4917 = vstv %s4916
        %v4918 = vmul.f32 %v4622, %v4917
        %v4919 = vmul.f32 %v4618, %v4917
        %v4920 = vmul.f32 %v4623, %v4917
        %4924 = vrot.lane.b32.xlu0 %v4918, 111
        %v4925 = vpop.permute.xlu0 %4924
        %4926 = vrot.lane.b32.xlu0 %v4919, 111
        %v4927 = vpop.permute.xlu0 %4926
        %4928 = vrot.lane.b32.xlu0 %v4920, 111
        %v4929 = vpop.permute.xlu0 %4928
        %v4930 = vsel %vm670, %v4925, %v4927
        %v4931 = vsel %vm670, %v4927, %v4929
        %v4934 = vadd.f32 %v4854, %v4930
        %v4935 = vadd.f32 %v4855, %v4931
        %s4936 = sld [smem:[#allocation9 + $0x5e]]
        %v4937 = vstv %s4936
        %v4938 = vmul.f32 %v4622, %v4937
        %v4939 = vmul.f32 %v4618, %v4937
        %v4940 = vmul.f32 %v4623, %v4937
        %4944 = vrot.lane.b32.xlu0 %v4938, 111
        %v4945 = vpop.permute.xlu0 %4944
        %4946 = vrot.lane.b32.xlu0 %v4939, 111
        %v4947 = vpop.permute.xlu0 %4946
        %4948 = vrot.lane.b32.xlu0 %v4940, 111
        %v4949 = vpop.permute.xlu0 %4948
        %v4950 = vsel %vm670, %v4945, %v4947
        %v4951 = vsel %vm670, %v4947, %v4949
        %v4954 = vadd.f32 %v4874, %v4950
        %v4955 = vadd.f32 %v4875, %v4951
        %s4956 = sld [smem:[#allocation9 + $0x82]]
        %v4957 = vstv %s4956
        %v4958 = vmul.f32 %v4622, %v4957
        %v4959 = vmul.f32 %v4618, %v4957
        %v4960 = vmul.f32 %v4623, %v4957
        %4964 = vrot.lane.b32.xlu0 %v4958, 111
        %v4965 = vpop.permute.xlu0 %4964
        %4966 = vrot.lane.b32.xlu0 %v4959, 111
        %v4967 = vpop.permute.xlu0 %4966
        %4968 = vrot.lane.b32.xlu0 %v4960, 111
        %v4969 = vpop.permute.xlu0 %4968
        %v4970 = vsel %vm670, %v4965, %v4967
        %v4971 = vsel %vm670, %v4967, %v4969
        %v4974 = vadd.f32 %v4894, %v4970
        %v4975 = vadd.f32 %v4895, %v4971
        %v4976 = vmul.f32 %v4622, %v738
        %v4977 = vmul.f32 %v4618, %v742
        %v4978 = vmul.f32 %v4623, %v740
        %s4979 = sld [smem:[#allocation9 + $0x17]]
        %v4980 = vstv %s4979
        %v4981 = vmul.f32 %v4976, %v4980
        %v4982 = vmul.f32 %v4977, %v4980
        %v4983 = vmul.f32 %v4978, %v4980
        %4987 = vrot.lane.b32.xlu0 %v4981, 110
        %v4988 = vpop.permute.xlu0 %4987
        %4989 = vrot.lane.b32.xlu0 %v4982, 110
        %v4990 = vpop.permute.xlu0 %4989
        %4991 = vrot.lane.b32.xlu0 %v4983, 110
        %v4992 = vpop.permute.xlu0 %4991
        %v4993 = vsel %vm763, %v4988, %v4990
        %v4994 = vsel %vm763, %v4990, %v4992
        %v4997 = vadd.f32 %v4914, %v4993
        %v4998 = vadd.f32 %v4915, %v4994
        %s4999 = sld [smem:[#allocation9 + $0x3b]]
        %v5000 = vstv %s4999
        %v5001 = vmul.f32 %v4976, %v5000
        %v5002 = vmul.f32 %v4977, %v5000
        %v5003 = vmul.f32 %v4978, %v5000
        %5007 = vrot.lane.b32.xlu0 %v5001, 110
        %v5008 = vpop.permute.xlu0 %5007
        %5009 = vrot.lane.b32.xlu0 %v5002, 110
        %v5010 = vpop.permute.xlu0 %5009
        %5011 = vrot.lane.b32.xlu0 %v5003, 110
        %v5012 = vpop.permute.xlu0 %5011
        %v5013 = vsel %vm763, %v5008, %v5010
        %v5014 = vsel %vm763, %v5010, %v5012
        %v5017 = vadd.f32 %v4934, %v5013
        %v5018 = vadd.f32 %v4935, %v5014
        %s5019 = sld [smem:[#allocation9 + $0x5f]]
        %v5020 = vstv %s5019
        %v5021 = vmul.f32 %v4976, %v5020
        %v5022 = vmul.f32 %v4977, %v5020
        %v5023 = vmul.f32 %v4978, %v5020
        %5027 = vrot.lane.b32.xlu0 %v5021, 110
        %v5028 = vpop.permute.xlu0 %5027
        %5029 = vrot.lane.b32.xlu0 %v5022, 110
        %v5030 = vpop.permute.xlu0 %5029
        %5031 = vrot.lane.b32.xlu0 %v5023, 110
        %v5032 = vpop.permute.xlu0 %5031
        %v5033 = vsel %vm763, %v5028, %v5030
        %v5034 = vsel %vm763, %v5030, %v5032
        %v5037 = vadd.f32 %v4954, %v5033
        %v5038 = vadd.f32 %v4955, %v5034
        %s5039 = sld [smem:[#allocation9 + $0x83]]
        %v5040 = vstv %s5039
        %v5041 = vmul.f32 %v4976, %v5040
        %v5042 = vmul.f32 %v4977, %v5040
        %v5043 = vmul.f32 %v4978, %v5040
        %5047 = vrot.lane.b32.xlu0 %v5041, 110
        %v5048 = vpop.permute.xlu0 %5047
        %5049 = vrot.lane.b32.xlu0 %v5042, 110
        %v5050 = vpop.permute.xlu0 %5049
        %5051 = vrot.lane.b32.xlu0 %v5043, 110
        %v5052 = vpop.permute.xlu0 %5051
        %v5053 = vsel %vm763, %v5048, %v5050
        %v5054 = vsel %vm763, %v5050, %v5052
        %v5057 = vadd.f32 %v4974, %v5053
        %v5058 = vadd.f32 %v4975, %v5054
        %v5059 = vmul.f32 %v4622, %v831
        %v5060 = vmul.f32 %v4618, %v835
        %v5061 = vmul.f32 %v4623, %v833
        %s5062 = sld [smem:[#allocation9 + $0x18]]
        %v5063 = vstv %s5062
        %v5064 = vmul.f32 %v5059, %v5063
        %v5065 = vmul.f32 %v5060, %v5063
        %v5066 = vmul.f32 %v5061, %v5063
        %5070 = vrot.lane.b32.xlu0 %v5064, 96
        %v5071 = vpop.permute.xlu0 %5070
        %5072 = vrot.lane.b32.xlu0 %v5065, 96
        %v5073 = vpop.permute.xlu0 %5072
        %5074 = vrot.lane.b32.xlu0 %v5066, 96
        %v5075 = vpop.permute.xlu0 %5074
        %v5076 = vsel %vm856, %v5071, %v5073
        %v5077 = vsel %vm856, %v5073, %v5075
        %v5080 = vadd.f32 %v4997, %v5076
        %v5081 = vadd.f32 %v4998, %v5077
        %s5082 = sld [smem:[#allocation9 + $0x3c]]
        %v5083 = vstv %s5082
        %v5084 = vmul.f32 %v5059, %v5083
        %v5085 = vmul.f32 %v5060, %v5083
        %v5086 = vmul.f32 %v5061, %v5083
        %5090 = vrot.lane.b32.xlu0 %v5084, 96
        %v5091 = vpop.permute.xlu0 %5090
        %5092 = vrot.lane.b32.xlu0 %v5085, 96
        %v5093 = vpop.permute.xlu0 %5092
        %5094 = vrot.lane.b32.xlu0 %v5086, 96
        %v5095 = vpop.permute.xlu0 %5094
        %v5096 = vsel %vm856, %v5091, %v5093
        %v5097 = vsel %vm856, %v5093, %v5095
        %v5100 = vadd.f32 %v5017, %v5096
        %v5101 = vadd.f32 %v5018, %v5097
        %s5102 = sld [smem:[#allocation9 + $0x60]]
        %v5103 = vstv %s5102
        %v5104 = vmul.f32 %v5059, %v5103
        %v5105 = vmul.f32 %v5060, %v5103
        %v5106 = vmul.f32 %v5061, %v5103
        %5110 = vrot.lane.b32.xlu0 %v5104, 96
        %v5111 = vpop.permute.xlu0 %5110
        %5112 = vrot.lane.b32.xlu0 %v5105, 96
        %v5113 = vpop.permute.xlu0 %5112
        %5114 = vrot.lane.b32.xlu0 %v5106, 96
        %v5115 = vpop.permute.xlu0 %5114
        %v5116 = vsel %vm856, %v5111, %v5113
        %v5117 = vsel %vm856, %v5113, %v5115
        %v5120 = vadd.f32 %v5037, %v5116
        %v5121 = vadd.f32 %v5038, %v5117
        %s5122 = sld [smem:[#allocation9 + $0x84]]
        %v5123 = vstv %s5122
        %v5124 = vmul.f32 %v5059, %v5123
        %v5125 = vmul.f32 %v5060, %v5123
        %v5126 = vmul.f32 %v5061, %v5123
        %5130 = vrot.lane.b32.xlu0 %v5124, 96
        %v5131 = vpop.permute.xlu0 %5130
        %5132 = vrot.lane.b32.xlu0 %v5125, 96
        %v5133 = vpop.permute.xlu0 %5132
        %5134 = vrot.lane.b32.xlu0 %v5126, 96
        %v5135 = vpop.permute.xlu0 %5134
        %v5136 = vsel %vm856, %v5131, %v5133
        %v5137 = vsel %vm856, %v5133, %v5135
        %v5140 = vadd.f32 %v5057, %v5136
        %v5141 = vadd.f32 %v5058, %v5137
        %s5142 = sld [smem:[#allocation9 + $0x19]]
        %v5143 = vstv %s5142
        %v5144 = vmul.f32 %v4622, %v5143
        %v5145 = vmul.f32 %v4618, %v5143
        %v5146 = vmul.f32 %v4623, %v5143
        %5150 = vrot.lane.b32.xlu0 %v5144, 95
        %v5151 = vpop.permute.xlu0 %5150
        %5152 = vrot.lane.b32.xlu0 %v5145, 95
        %v5153 = vpop.permute.xlu0 %5152
        %5154 = vrot.lane.b32.xlu0 %v5146, 95
        %v5155 = vpop.permute.xlu0 %5154
        %v5156 = vsel %vm937, %v5151, %v5153
        %v5157 = vsel %vm937, %v5153, %v5155
        %v5160 = vadd.f32 %v5080, %v5156
        %v5161 = vadd.f32 %v5081, %v5157
        %s5162 = sld [smem:[#allocation9 + $0x3d]]
        %v5163 = vstv %s5162
        %v5164 = vmul.f32 %v4622, %v5163
        %v5165 = vmul.f32 %v4618, %v5163
        %v5166 = vmul.f32 %v4623, %v5163
        %5170 = vrot.lane.b32.xlu0 %v5164, 95
        %v5171 = vpop.permute.xlu0 %5170
        %5172 = vrot.lane.b32.xlu0 %v5165, 95
        %v5173 = vpop.permute.xlu0 %5172
        %5174 = vrot.lane.b32.xlu0 %v5166, 95
        %v5175 = vpop.permute.xlu0 %5174
        %v5176 = vsel %vm937, %v5171, %v5173
        %v5177 = vsel %vm937, %v5173, %v5175
        %v5180 = vadd.f32 %v5100, %v5176
        %v5181 = vadd.f32 %v5101, %v5177
        %s5182 = sld [smem:[#allocation9 + $0x61]]
        %v5183 = vstv %s5182
        %v5184 = vmul.f32 %v4622, %v5183
        %v5185 = vmul.f32 %v4618, %v5183
        %v5186 = vmul.f32 %v4623, %v5183
        %5190 = vrot.lane.b32.xlu0 %v5184, 95
        %v5191 = vpop.permute.xlu0 %5190
        %5192 = vrot.lane.b32.xlu0 %v5185, 95
        %v5193 = vpop.permute.xlu0 %5192
        %5194 = vrot.lane.b32.xlu0 %v5186, 95
        %v5195 = vpop.permute.xlu0 %5194
        %v5196 = vsel %vm937, %v5191, %v5193
        %v5197 = vsel %vm937, %v5193, %v5195
        %v5200 = vadd.f32 %v5120, %v5196
        %v5201 = vadd.f32 %v5121, %v5197
        %s5202 = sld [smem:[#allocation9 + $0x85]]
        %v5203 = vstv %s5202
        %v5204 = vmul.f32 %v4622, %v5203
        %v5205 = vmul.f32 %v4618, %v5203
        %v5206 = vmul.f32 %v4623, %v5203
        %5210 = vrot.lane.b32.xlu0 %v5204, 95
        %v5211 = vpop.permute.xlu0 %5210
        %5212 = vrot.lane.b32.xlu0 %v5205, 95
        %v5213 = vpop.permute.xlu0 %5212
        %5214 = vrot.lane.b32.xlu0 %v5206, 95
        %v5215 = vpop.permute.xlu0 %5214
        %v5216 = vsel %vm937, %v5211, %v5213
        %v5217 = vsel %vm937, %v5213, %v5215
        %v5220 = vadd.f32 %v5140, %v5216
        %v5221 = vadd.f32 %v5141, %v5217
        %v5222 = vmul.f32 %v4622, %v1005
        %v5223 = vmul.f32 %v4618, %v1009
        %v5224 = vmul.f32 %v4623, %v1007
        %s5225 = sld [smem:[#allocation9 + $0x1a]]
        %v5226 = vstv %s5225
        %v5227 = vmul.f32 %v5222, %v5226
        %v5228 = vmul.f32 %v5223, %v5226
        %v5229 = vmul.f32 %v5224, %v5226
        %5233 = vrot.lane.b32.xlu0 %v5227, 94
        %v5234 = vpop.permute.xlu0 %5233
        %5235 = vrot.lane.b32.xlu0 %v5228, 94
        %v5236 = vpop.permute.xlu0 %5235
        %5237 = vrot.lane.b32.xlu0 %v5229, 94
        %v5238 = vpop.permute.xlu0 %5237
        %v5239 = vsel %vm1030, %v5234, %v5236
        %v5240 = vsel %vm1030, %v5236, %v5238
        %v5243 = vadd.f32 %v5160, %v5239
        %v5244 = vadd.f32 %v5161, %v5240
        %s5245 = sld [smem:[#allocation9 + $0x3e]]
        %v5246 = vstv %s5245
        %v5247 = vmul.f32 %v5222, %v5246
        %v5248 = vmul.f32 %v5223, %v5246
        %v5249 = vmul.f32 %v5224, %v5246
        %5253 = vrot.lane.b32.xlu0 %v5247, 94
        %v5254 = vpop.permute.xlu0 %5253
        %5255 = vrot.lane.b32.xlu0 %v5248, 94
        %v5256 = vpop.permute.xlu0 %5255
        %5257 = vrot.lane.b32.xlu0 %v5249, 94
        %v5258 = vpop.permute.xlu0 %5257
        %v5259 = vsel %vm1030, %v5254, %v5256
        %v5260 = vsel %vm1030, %v5256, %v5258
        %v5263 = vadd.f32 %v5180, %v5259
        %v5264 = vadd.f32 %v5181, %v5260
        %s5265 = sld [smem:[#allocation9 + $0x62]]
        %v5266 = vstv %s5265
        %v5267 = vmul.f32 %v5222, %v5266
        %v5268 = vmul.f32 %v5223, %v5266
        %v5269 = vmul.f32 %v5224, %v5266
        %5273 = vrot.lane.b32.xlu0 %v5267, 94
        %v5274 = vpop.permute.xlu0 %5273
        %5275 = vrot.lane.b32.xlu0 %v5268, 94
        %v5276 = vpop.permute.xlu0 %5275
        %5277 = vrot.lane.b32.xlu0 %v5269, 94
        %v5278 = vpop.permute.xlu0 %5277
        %v5279 = vsel %vm1030, %v5274, %v5276
        %v5280 = vsel %vm1030, %v5276, %v5278
        %v5283 = vadd.f32 %v5200, %v5279
        %v5284 = vadd.f32 %v5201, %v5280
        %s5285 = sld [smem:[#allocation9 + $0x86]]
        %v5286 = vstv %s5285
        %v5287 = vmul.f32 %v5222, %v5286
        %v5288 = vmul.f32 %v5223, %v5286
        %v5289 = vmul.f32 %v5224, %v5286
        %5293 = vrot.lane.b32.xlu0 %v5287, 94
        %v5294 = vpop.permute.xlu0 %5293
        %5295 = vrot.lane.b32.xlu0 %v5288, 94
        %v5296 = vpop.permute.xlu0 %5295
        %5297 = vrot.lane.b32.xlu0 %v5289, 94
        %v5298 = vpop.permute.xlu0 %5297
        %v5299 = vsel %vm1030, %v5294, %v5296
        %v5300 = vsel %vm1030, %v5296, %v5298
        %v5303 = vadd.f32 %v5220, %v5299
        %v5304 = vadd.f32 %v5221, %v5300
        %5307 = vrot.lane.b32.xlu0 %v3216, 17
        %v5308 = vpop.permute.xlu0 %5307
        %5309 = vrot.lane.b32.xlu0 %v3217, 17
        %v5310 = vpop.permute.xlu0 %5309
        %v5311 = vsel %vm352, %v5308, %v5310
        %v5315 = vsel %vm352, 0.0, %v5308
        %v5316 = vsel %vm352, %v5310, 0.0
        %v5317 = vmul.f32 %v5315, %v322
        %v5318 = vmul.f32 %v5311, %v323
        %s5319 = sld [smem:[#allocation9 + $0x1b]]
        %v5320 = vstv %s5319
        %v5321 = vmul.f32 %v5317, %v5320
        %v5322 = vmul.f32 %v5318, %v5320
        %v5323 = vadd.f32 %v5243, %v5321
        %v5324 = vadd.f32 %v5244, %v5322
        %s5325 = sld [smem:[#allocation9 + $0x3f]]
        %v5326 = vstv %s5325
        %v5327 = vmul.f32 %v5317, %v5326
        %v5328 = vmul.f32 %v5318, %v5326
        %v5329 = vadd.f32 %v5263, %v5327
        %v5330 = vadd.f32 %v5264, %v5328
        %s5331 = sld [smem:[#allocation9 + $0x63]]
        %v5332 = vstv %s5331
        %v5333 = vmul.f32 %v5317, %v5332
        %v5334 = vmul.f32 %v5318, %v5332
        %v5335 = vadd.f32 %v5283, %v5333
        %v5336 = vadd.f32 %v5284, %v5334
        %s5337 = sld [smem:[#allocation9 + $0x87]]
        %v5338 = vstv %s5337
        %v5339 = vmul.f32 %v5317, %v5338
        %v5340 = vmul.f32 %v5318, %v5338
        %v5341 = vadd.f32 %v5303, %v5339
        %v5342 = vadd.f32 %v5304, %v5340
        %s5343 = sld [smem:[#allocation9 + $0x1c]]
        %v5344 = vstv %s5343
        %v5345 = vmul.f32 %v5315, %v5344
        %v5346 = vmul.f32 %v5311, %v5344
        %v5347 = vmul.f32 %v5316, %v5344
        %5351 = vrot.lane.b32.xlu0 %v5345, 127
        %v5352 = vpop.permute.xlu0 %5351
        %5353 = vrot.lane.b32.xlu0 %v5346, 127
        %v5354 = vpop.permute.xlu0 %5353
        %5355 = vrot.lane.b32.xlu0 %v5347, 127
        %v5356 = vpop.permute.xlu0 %5355
        %v5357 = vsel %vm399, %v5352, %v5354
        %v5358 = vsel %vm399, %v5354, %v5356
        %v5361 = vadd.f32 %v5323, %v5357
        %v5362 = vadd.f32 %v5324, %v5358
        %s5363 = sld [smem:[#allocation9 + $0x40]]
        %v5364 = vstv %s5363
        %v5365 = vmul.f32 %v5315, %v5364
        %v5366 = vmul.f32 %v5311, %v5364
        %v5367 = vmul.f32 %v5316, %v5364
        %5371 = vrot.lane.b32.xlu0 %v5365, 127
        %v5372 = vpop.permute.xlu0 %5371
        %5373 = vrot.lane.b32.xlu0 %v5366, 127
        %v5374 = vpop.permute.xlu0 %5373
        %5375 = vrot.lane.b32.xlu0 %v5367, 127
        %v5376 = vpop.permute.xlu0 %5375
        %v5377 = vsel %vm399, %v5372, %v5374
        %v5378 = vsel %vm399, %v5374, %v5376
        %v5381 = vadd.f32 %v5329, %v5377
        %v5382 = vadd.f32 %v5330, %v5378
        %s5383 = sld [smem:[#allocation9 + $0x64]]
        %v5384 = vstv %s5383
        %v5385 = vmul.f32 %v5315, %v5384
        %v5386 = vmul.f32 %v5311, %v5384
        %v5387 = vmul.f32 %v5316, %v5384
        %5391 = vrot.lane.b32.xlu0 %v5385, 127
        %v5392 = vpop.permute.xlu0 %5391
        %5393 = vrot.lane.b32.xlu0 %v5386, 127
        %v5394 = vpop.permute.xlu0 %5393
        %5395 = vrot.lane.b32.xlu0 %v5387, 127
        %v5396 = vpop.permute.xlu0 %5395
        %v5397 = vsel %vm399, %v5392, %v5394
        %v5398 = vsel %vm399, %v5394, %v5396
        %v5401 = vadd.f32 %v5335, %v5397
        %v5402 = vadd.f32 %v5336, %v5398
        %s5403 = sld [smem:[#allocation9 + $0x88]]
        %v5404 = vstv %s5403
        %v5405 = vmul.f32 %v5315, %v5404
        %v5406 = vmul.f32 %v5311, %v5404
        %v5407 = vmul.f32 %v5316, %v5404
        %5411 = vrot.lane.b32.xlu0 %v5405, 127
        %v5412 = vpop.permute.xlu0 %5411
        %5413 = vrot.lane.b32.xlu0 %v5406, 127
        %v5414 = vpop.permute.xlu0 %5413
        %5415 = vrot.lane.b32.xlu0 %v5407, 127
        %v5416 = vpop.permute.xlu0 %5415
        %v5417 = vsel %vm399, %v5412, %v5414
        %v5418 = vsel %vm399, %v5414, %v5416
        %v5421 = vadd.f32 %v5341, %v5417
        %v5422 = vadd.f32 %v5342, %v5418
        %v5423 = vmul.f32 %v5315, %v469
        %v5424 = vmul.f32 %v5311, %v473
        %v5425 = vmul.f32 %v5316, %v471
        %s5426 = sld [smem:[#allocation9 + $0x1d]]
        %v5427 = vstv %s5426
        %v5428 = vmul.f32 %v5423, %v5427
        %v5429 = vmul.f32 %v5424, %v5427
        %v5430 = vmul.f32 %v5425, %v5427
        %5434 = vrot.lane.b32.xlu0 %v5428, 126
        %v5435 = vpop.permute.xlu0 %5434
        %5436 = vrot.lane.b32.xlu0 %v5429, 126
        %v5437 = vpop.permute.xlu0 %5436
        %5438 = vrot.lane.b32.xlu0 %v5430, 126
        %v5439 = vpop.permute.xlu0 %5438
        %v5440 = vsel %vm494, %v5435, %v5437
        %v5441 = vsel %vm494, %v5437, %v5439
        %v5444 = vadd.f32 %v5361, %v5440
        %v5445 = vadd.f32 %v5362, %v5441
        %s5446 = sld [smem:[#allocation9 + $0x41]]
        %v5447 = vstv %s5446
        %v5448 = vmul.f32 %v5423, %v5447
        %v5449 = vmul.f32 %v5424, %v5447
        %v5450 = vmul.f32 %v5425, %v5447
        %5454 = vrot.lane.b32.xlu0 %v5448, 126
        %v5455 = vpop.permute.xlu0 %5454
        %5456 = vrot.lane.b32.xlu0 %v5449, 126
        %v5457 = vpop.permute.xlu0 %5456
        %5458 = vrot.lane.b32.xlu0 %v5450, 126
        %v5459 = vpop.permute.xlu0 %5458
        %v5460 = vsel %vm494, %v5455, %v5457
        %v5461 = vsel %vm494, %v5457, %v5459
        %v5464 = vadd.f32 %v5381, %v5460
        %v5465 = vadd.f32 %v5382, %v5461
        %s5466 = sld [smem:[#allocation9 + $0x65]]
        %v5467 = vstv %s5466
        %v5468 = vmul.f32 %v5423, %v5467
        %v5469 = vmul.f32 %v5424, %v5467
        %v5470 = vmul.f32 %v5425, %v5467
        %5474 = vrot.lane.b32.xlu0 %v5468, 126
        %v5475 = vpop.permute.xlu0 %5474
        %5476 = vrot.lane.b32.xlu0 %v5469, 126
        %v5477 = vpop.permute.xlu0 %5476
        %5478 = vrot.lane.b32.xlu0 %v5470, 126
        %v5479 = vpop.permute.xlu0 %5478
        %v5480 = vsel %vm494, %v5475, %v5477
        %v5481 = vsel %vm494, %v5477, %v5479
        %v5484 = vadd.f32 %v5401, %v5480
        %v5485 = vadd.f32 %v5402, %v5481
        %s5486 = sld [smem:[#allocation9 + $0x89]]
        %v5487 = vstv %s5486
        %v5488 = vmul.f32 %v5423, %v5487
        %v5489 = vmul.f32 %v5424, %v5487
        %v5490 = vmul.f32 %v5425, %v5487
        %5494 = vrot.lane.b32.xlu0 %v5488, 126
        %v5495 = vpop.permute.xlu0 %5494
        %5496 = vrot.lane.b32.xlu0 %v5489, 126
        %v5497 = vpop.permute.xlu0 %5496
        %5498 = vrot.lane.b32.xlu0 %v5490, 126
        %v5499 = vpop.permute.xlu0 %5498
        %v5500 = vsel %vm494, %v5495, %v5497
        %v5501 = vsel %vm494, %v5497, %v5499
        %v5504 = vadd.f32 %v5421, %v5500
        %v5505 = vadd.f32 %v5422, %v5501
        %v5506 = vmul.f32 %v5315, %v564
        %v5507 = vmul.f32 %v5311, %v568
        %v5508 = vmul.f32 %v5316, %v566
        %s5509 = sld [smem:[#allocation9 + $0x1e]]
        %v5510 = vstv %s5509
        %v5511 = vmul.f32 %v5506, %v5510
        %v5512 = vmul.f32 %v5507, %v5510
        %v5513 = vmul.f32 %v5508, %v5510
        %5517 = vrot.lane.b32.xlu0 %v5511, 112
        %v5518 = vpop.permute.xlu0 %5517
        %5519 = vrot.lane.b32.xlu0 %v5512, 112
        %v5520 = vpop.permute.xlu0 %5519
        %5521 = vrot.lane.b32.xlu0 %v5513, 112
        %v5522 = vpop.permute.xlu0 %5521
        %v5523 = vsel %vm589, %v5518, %v5520
        %v5524 = vsel %vm589, %v5520, %v5522
        %v5527 = vadd.f32 %v5444, %v5523
        %v5528 = vadd.f32 %v5445, %v5524
        %s5529 = sld [smem:[#allocation9 + $0x42]]
        %v5530 = vstv %s5529
        %v5531 = vmul.f32 %v5506, %v5530
        %v5532 = vmul.f32 %v5507, %v5530
        %v5533 = vmul.f32 %v5508, %v5530
        %5537 = vrot.lane.b32.xlu0 %v5531, 112
        %v5538 = vpop.permute.xlu0 %5537
        %5539 = vrot.lane.b32.xlu0 %v5532, 112
        %v5540 = vpop.permute.xlu0 %5539
        %5541 = vrot.lane.b32.xlu0 %v5533, 112
        %v5542 = vpop.permute.xlu0 %5541
        %v5543 = vsel %vm589, %v5538, %v5540
        %v5544 = vsel %vm589, %v5540, %v5542
        %v5547 = vadd.f32 %v5464, %v5543
        %v5548 = vadd.f32 %v5465, %v5544
        %s5549 = sld [smem:[#allocation9 + $0x66]]
        %v5550 = vstv %s5549
        %v5551 = vmul.f32 %v5506, %v5550
        %v5552 = vmul.f32 %v5507, %v5550
        %v5553 = vmul.f32 %v5508, %v5550
        %5557 = vrot.lane.b32.xlu0 %v5551, 112
        %v5558 = vpop.permute.xlu0 %5557
        %5559 = vrot.lane.b32.xlu0 %v5552, 112
        %v5560 = vpop.permute.xlu0 %5559
        %5561 = vrot.lane.b32.xlu0 %v5553, 112
        %v5562 = vpop.permute.xlu0 %5561
        %v5563 = vsel %vm589, %v5558, %v5560
        %v5564 = vsel %vm589, %v5560, %v5562
        %v5567 = vadd.f32 %v5484, %v5563
        %v5568 = vadd.f32 %v5485, %v5564
        %s5569 = sld [smem:[#allocation9 + $0x8a]]
        %v5570 = vstv %s5569
        %v5571 = vmul.f32 %v5506, %v5570
        %v5572 = vmul.f32 %v5507, %v5570
        %v5573 = vmul.f32 %v5508, %v5570
        %5577 = vrot.lane.b32.xlu0 %v5571, 112
        %v5578 = vpop.permute.xlu0 %5577
        %5579 = vrot.lane.b32.xlu0 %v5572, 112
        %v5580 = vpop.permute.xlu0 %5579
        %5581 = vrot.lane.b32.xlu0 %v5573, 112
        %v5582 = vpop.permute.xlu0 %5581
        %v5583 = vsel %vm589, %v5578, %v5580
        %v5584 = vsel %vm589, %v5580, %v5582
        %v5587 = vadd.f32 %v5504, %v5583
        %v5588 = vadd.f32 %v5505, %v5584
        %s5589 = sld [smem:[#allocation9 + $0x1f]]
        %v5590 = vstv %s5589
        %v5591 = vmul.f32 %v5315, %v5590
        %v5592 = vmul.f32 %v5311, %v5590
        %v5593 = vmul.f32 %v5316, %v5590
        %5597 = vrot.lane.b32.xlu0 %v5591, 111
        %v5598 = vpop.permute.xlu0 %5597
        %5599 = vrot.lane.b32.xlu0 %v5592, 111
        %v5600 = vpop.permute.xlu0 %5599
        %5601 = vrot.lane.b32.xlu0 %v5593, 111
        %v5602 = vpop.permute.xlu0 %5601
        %v5603 = vsel %vm670, %v5598, %v5600
        %v5604 = vsel %vm670, %v5600, %v5602
        %v5607 = vadd.f32 %v5527, %v5603
        %v5608 = vadd.f32 %v5528, %v5604
        %s5609 = sld [smem:[#allocation9 + $0x43]]
        %v5610 = vstv %s5609
        %v5611 = vmul.f32 %v5315, %v5610
        %v5612 = vmul.f32 %v5311, %v5610
        %v5613 = vmul.f32 %v5316, %v5610
        %5617 = vrot.lane.b32.xlu0 %v5611, 111
        %v5618 = vpop.permute.xlu0 %5617
        %5619 = vrot.lane.b32.xlu0 %v5612, 111
        %v5620 = vpop.permute.xlu0 %5619
        %5621 = vrot.lane.b32.xlu0 %v5613, 111
        %v5622 = vpop.permute.xlu0 %5621
        %v5623 = vsel %vm670, %v5618, %v5620
        %v5624 = vsel %vm670, %v5620, %v5622
        %v5627 = vadd.f32 %v5547, %v5623
        %v5628 = vadd.f32 %v5548, %v5624
        %s5629 = sld [smem:[#allocation9 + $0x67]]
        %v5630 = vstv %s5629
        %v5631 = vmul.f32 %v5315, %v5630
        %v5632 = vmul.f32 %v5311, %v5630
        %v5633 = vmul.f32 %v5316, %v5630
        %5637 = vrot.lane.b32.xlu0 %v5631, 111
        %v5638 = vpop.permute.xlu0 %5637
        %5639 = vrot.lane.b32.xlu0 %v5632, 111
        %v5640 = vpop.permute.xlu0 %5639
        %5641 = vrot.lane.b32.xlu0 %v5633, 111
        %v5642 = vpop.permute.xlu0 %5641
        %v5643 = vsel %vm670, %v5638, %v5640
        %v5644 = vsel %vm670, %v5640, %v5642
        %v5647 = vadd.f32 %v5567, %v5643
        %v5648 = vadd.f32 %v5568, %v5644
        %s5649 = sld [smem:[#allocation9 + $0x8b]]
        %v5650 = vstv %s5649
        %v5651 = vmul.f32 %v5315, %v5650
        %v5652 = vmul.f32 %v5311, %v5650
        %v5653 = vmul.f32 %v5316, %v5650
        %5657 = vrot.lane.b32.xlu0 %v5651, 111
        %v5658 = vpop.permute.xlu0 %5657
        %5659 = vrot.lane.b32.xlu0 %v5652, 111
        %v5660 = vpop.permute.xlu0 %5659
        %5661 = vrot.lane.b32.xlu0 %v5653, 111
        %v5662 = vpop.permute.xlu0 %5661
        %v5663 = vsel %vm670, %v5658, %v5660
        %v5664 = vsel %vm670, %v5660, %v5662
        %v5667 = vadd.f32 %v5587, %v5663
        %v5668 = vadd.f32 %v5588, %v5664
        %v5669 = vmul.f32 %v5315, %v738
        %v5670 = vmul.f32 %v5311, %v742
        %v5671 = vmul.f32 %v5316, %v740
        %s5672 = sld [smem:[#allocation9 + $0x20]]
        %v5673 = vstv %s5672
        %v5674 = vmul.f32 %v5669, %v5673
        %v5675 = vmul.f32 %v5670, %v5673
        %v5676 = vmul.f32 %v5671, %v5673
        %5680 = vrot.lane.b32.xlu0 %v5674, 110
        %v5681 = vpop.permute.xlu0 %5680
        %5682 = vrot.lane.b32.xlu0 %v5675, 110
        %v5683 = vpop.permute.xlu0 %5682
        %5684 = vrot.lane.b32.xlu0 %v5676, 110
        %v5685 = vpop.permute.xlu0 %5684
        %v5686 = vsel %vm763, %v5681, %v5683
        %v5687 = vsel %vm763, %v5683, %v5685
        %v5690 = vadd.f32 %v5607, %v5686
        %v5691 = vadd.f32 %v5608, %v5687
        %s5692 = sld [smem:[#allocation9 + $0x44]]
        %v5693 = vstv %s5692
        %v5694 = vmul.f32 %v5669, %v5693
        %v5695 = vmul.f32 %v5670, %v5693
        %v5696 = vmul.f32 %v5671, %v5693
        %5700 = vrot.lane.b32.xlu0 %v5694, 110
        %v5701 = vpop.permute.xlu0 %5700
        %5702 = vrot.lane.b32.xlu0 %v5695, 110
        %v5703 = vpop.permute.xlu0 %5702
        %5704 = vrot.lane.b32.xlu0 %v5696, 110
        %v5705 = vpop.permute.xlu0 %5704
        %v5706 = vsel %vm763, %v5701, %v5703
        %v5707 = vsel %vm763, %v5703, %v5705
        %v5710 = vadd.f32 %v5627, %v5706
        %v5711 = vadd.f32 %v5628, %v5707
        %s5712 = sld [smem:[#allocation9 + $0x68]]
        %v5713 = vstv %s5712
        %v5714 = vmul.f32 %v5669, %v5713
        %v5715 = vmul.f32 %v5670, %v5713
        %v5716 = vmul.f32 %v5671, %v5713
        %5720 = vrot.lane.b32.xlu0 %v5714, 110
        %v5721 = vpop.permute.xlu0 %5720
        %5722 = vrot.lane.b32.xlu0 %v5715, 110
        %v5723 = vpop.permute.xlu0 %5722
        %5724 = vrot.lane.b32.xlu0 %v5716, 110
        %v5725 = vpop.permute.xlu0 %5724
        %v5726 = vsel %vm763, %v5721, %v5723
        %v5727 = vsel %vm763, %v5723, %v5725
        %v5730 = vadd.f32 %v5647, %v5726
        %v5731 = vadd.f32 %v5648, %v5727
        %s5732 = sld [smem:[#allocation9 + $0x8c]]
        %v5733 = vstv %s5732
        %v5734 = vmul.f32 %v5669, %v5733
        %v5735 = vmul.f32 %v5670, %v5733
        %v5736 = vmul.f32 %v5671, %v5733
        %5740 = vrot.lane.b32.xlu0 %v5734, 110
        %v5741 = vpop.permute.xlu0 %5740
        %5742 = vrot.lane.b32.xlu0 %v5735, 110
        %v5743 = vpop.permute.xlu0 %5742
        %5744 = vrot.lane.b32.xlu0 %v5736, 110
        %v5745 = vpop.permute.xlu0 %5744
        %v5746 = vsel %vm763, %v5741, %v5743
        %v5747 = vsel %vm763, %v5743, %v5745
        %v5750 = vadd.f32 %v5667, %v5746
        %v5751 = vadd.f32 %v5668, %v5747
        %v5752 = vmul.f32 %v5315, %v831
        %v5753 = vmul.f32 %v5311, %v835
        %v5754 = vmul.f32 %v5316, %v833
        %s5755 = sld [smem:[#allocation9 + $0x21]]
        %v5756 = vstv %s5755
        %v5757 = vmul.f32 %v5752, %v5756
        %v5758 = vmul.f32 %v5753, %v5756
        %v5759 = vmul.f32 %v5754, %v5756
        %5763 = vrot.lane.b32.xlu0 %v5757, 96
        %v5764 = vpop.permute.xlu0 %5763
        %5765 = vrot.lane.b32.xlu0 %v5758, 96
        %v5766 = vpop.permute.xlu0 %5765
        %5767 = vrot.lane.b32.xlu0 %v5759, 96
        %v5768 = vpop.permute.xlu0 %5767
        %v5769 = vsel %vm856, %v5764, %v5766
        %v5770 = vsel %vm856, %v5766, %v5768
        %v5773 = vadd.f32 %v5690, %v5769
        %v5774 = vadd.f32 %v5691, %v5770
        %s5775 = sld [smem:[#allocation9 + $0x45]]
        %v5776 = vstv %s5775
        %v5777 = vmul.f32 %v5752, %v5776
        %v5778 = vmul.f32 %v5753, %v5776
        %v5779 = vmul.f32 %v5754, %v5776
        %5783 = vrot.lane.b32.xlu0 %v5777, 96
        %v5784 = vpop.permute.xlu0 %5783
        %5785 = vrot.lane.b32.xlu0 %v5778, 96
        %v5786 = vpop.permute.xlu0 %5785
        %5787 = vrot.lane.b32.xlu0 %v5779, 96
        %v5788 = vpop.permute.xlu0 %5787
        %v5789 = vsel %vm856, %v5784, %v5786
        %v5790 = vsel %vm856, %v5786, %v5788
        %v5793 = vadd.f32 %v5710, %v5789
        %v5794 = vadd.f32 %v5711, %v5790
        %s5795 = sld [smem:[#allocation9 + $0x69]]
        %v5796 = vstv %s5795
        %v5797 = vmul.f32 %v5752, %v5796
        %v5798 = vmul.f32 %v5753, %v5796
        %v5799 = vmul.f32 %v5754, %v5796
        %5803 = vrot.lane.b32.xlu0 %v5797, 96
        %v5804 = vpop.permute.xlu0 %5803
        %5805 = vrot.lane.b32.xlu0 %v5798, 96
        %v5806 = vpop.permute.xlu0 %5805
        %5807 = vrot.lane.b32.xlu0 %v5799, 96
        %v5808 = vpop.permute.xlu0 %5807
        %v5809 = vsel %vm856, %v5804, %v5806
        %v5810 = vsel %vm856, %v5806, %v5808
        %v5813 = vadd.f32 %v5730, %v5809
        %v5814 = vadd.f32 %v5731, %v5810
        %s5815 = sld [smem:[#allocation9 + $0x8d]]
        %v5816 = vstv %s5815
        %v5817 = vmul.f32 %v5752, %v5816
        %v5818 = vmul.f32 %v5753, %v5816
        %v5819 = vmul.f32 %v5754, %v5816
        %5823 = vrot.lane.b32.xlu0 %v5817, 96
        %v5824 = vpop.permute.xlu0 %5823
        %5825 = vrot.lane.b32.xlu0 %v5818, 96
        %v5826 = vpop.permute.xlu0 %5825
        %5827 = vrot.lane.b32.xlu0 %v5819, 96
        %v5828 = vpop.permute.xlu0 %5827
        %v5829 = vsel %vm856, %v5824, %v5826
        %v5830 = vsel %vm856, %v5826, %v5828
        %v5833 = vadd.f32 %v5750, %v5829
        %v5834 = vadd.f32 %v5751, %v5830
        %s5835 = sld [smem:[#allocation9 + $0x22]]
        %v5836 = vstv %s5835
        %v5837 = vmul.f32 %v5315, %v5836
        %v5838 = vmul.f32 %v5311, %v5836
        %v5839 = vmul.f32 %v5316, %v5836
        %5843 = vrot.lane.b32.xlu0 %v5837, 95
        %v5844 = vpop.permute.xlu0 %5843
        %5845 = vrot.lane.b32.xlu0 %v5838, 95
        %v5846 = vpop.permute.xlu0 %5845
        %5847 = vrot.lane.b32.xlu0 %v5839, 95
        %v5848 = vpop.permute.xlu0 %5847
        %v5849 = vsel %vm937, %v5844, %v5846
        %v5850 = vsel %vm937, %v5846, %v5848
        %v5853 = vadd.f32 %v5773, %v5849
        %v5854 = vadd.f32 %v5774, %v5850
        %s5855 = sld [smem:[#allocation9 + $0x46]]
        %v5856 = vstv %s5855
        %v5857 = vmul.f32 %v5315, %v5856
        %v5858 = vmul.f32 %v5311, %v5856
        %v5859 = vmul.f32 %v5316, %v5856
        %5863 = vrot.lane.b32.xlu0 %v5857, 95
        %v5864 = vpop.permute.xlu0 %5863
        %5865 = vrot.lane.b32.xlu0 %v5858, 95
        %v5866 = vpop.permute.xlu0 %5865
        %5867 = vrot.lane.b32.xlu0 %v5859, 95
        %v5868 = vpop.permute.xlu0 %5867
        %v5869 = vsel %vm937, %v5864, %v5866
        %v5870 = vsel %vm937, %v5866, %v5868
        %v5873 = vadd.f32 %v5793, %v5869
        %v5874 = vadd.f32 %v5794, %v5870
        %s5875 = sld [smem:[#allocation9 + $0x6a]]
        %v5876 = vstv %s5875
        %v5877 = vmul.f32 %v5315, %v5876
        %v5878 = vmul.f32 %v5311, %v5876
        %v5879 = vmul.f32 %v5316, %v5876
        %5883 = vrot.lane.b32.xlu0 %v5877, 95
        %v5884 = vpop.permute.xlu0 %5883
        %5885 = vrot.lane.b32.xlu0 %v5878, 95
        %v5886 = vpop.permute.xlu0 %5885
        %5887 = vrot.lane.b32.xlu0 %v5879, 95
        %v5888 = vpop.permute.xlu0 %5887
        %v5889 = vsel %vm937, %v5884, %v5886
        %v5890 = vsel %vm937, %v5886, %v5888
        %v5893 = vadd.f32 %v5813, %v5889
        %v5894 = vadd.f32 %v5814, %v5890
        %s5895 = sld [smem:[#allocation9 + $0x8e]]
        %v5896 = vstv %s5895
        %v5897 = vmul.f32 %v5315, %v5896
        %v5898 = vmul.f32 %v5311, %v5896
        %v5899 = vmul.f32 %v5316, %v5896
        %5903 = vrot.lane.b32.xlu0 %v5897, 95
        %v5904 = vpop.permute.xlu0 %5903
        %5905 = vrot.lane.b32.xlu0 %v5898, 95
        %v5906 = vpop.permute.xlu0 %5905
        %5907 = vrot.lane.b32.xlu0 %v5899, 95
        %v5908 = vpop.permute.xlu0 %5907
        %v5909 = vsel %vm937, %v5904, %v5906
        %v5910 = vsel %vm937, %v5906, %v5908
        %v5913 = vadd.f32 %v5833, %v5909
        %v5914 = vadd.f32 %v5834, %v5910
        %v5915 = vmul.f32 %v5315, %v1005
        %v5916 = vmul.f32 %v5311, %v1009
        %v5917 = vmul.f32 %v5316, %v1007
        %s5918 = sld [smem:[#allocation9 + $0x23]]
        %v5919 = vstv %s5918
        %v5920 = vmul.f32 %v5915, %v5919
        %v5921 = vmul.f32 %v5916, %v5919
        %v5922 = vmul.f32 %v5917, %v5919
        %5926 = vrot.lane.b32.xlu0 %v5920, 94
        %v5927 = vpop.permute.xlu0 %5926
        %5928 = vrot.lane.b32.xlu0 %v5921, 94
        %v5929 = vpop.permute.xlu0 %5928
        %5930 = vrot.lane.b32.xlu0 %v5922, 94
        %v5931 = vpop.permute.xlu0 %5930
        %v5932 = vsel %vm1030, %v5927, %v5929
        %v5933 = vsel %vm1030, %v5929, %v5931
        %v5936 = vadd.f32 %v5853, %v5932
        %v5937 = vadd.f32 %v5854, %v5933
        %s5938 = sld [smem:[#allocation9 + $0x47]]
        %v5939 = vstv %s5938
        %v5940 = vmul.f32 %v5915, %v5939
        %v5941 = vmul.f32 %v5916, %v5939
        %v5942 = vmul.f32 %v5917, %v5939
        %5946 = vrot.lane.b32.xlu0 %v5940, 94
        %v5947 = vpop.permute.xlu0 %5946
        %5948 = vrot.lane.b32.xlu0 %v5941, 94
        %v5949 = vpop.permute.xlu0 %5948
        %5950 = vrot.lane.b32.xlu0 %v5942, 94
        %v5951 = vpop.permute.xlu0 %5950
        %v5952 = vsel %vm1030, %v5947, %v5949
        %v5953 = vsel %vm1030, %v5949, %v5951
        %v5956 = vadd.f32 %v5873, %v5952
        %v5957 = vadd.f32 %v5874, %v5953
        %s5958 = sld [smem:[#allocation9 + $0x6b]]
        %v5959 = vstv %s5958
        %v5960 = vmul.f32 %v5915, %v5959
        %v5961 = vmul.f32 %v5916, %v5959
        %v5962 = vmul.f32 %v5917, %v5959
        %5966 = vrot.lane.b32.xlu0 %v5960, 94
        %v5967 = vpop.permute.xlu0 %5966
        %5968 = vrot.lane.b32.xlu0 %v5961, 94
        %v5969 = vpop.permute.xlu0 %5968
        %5970 = vrot.lane.b32.xlu0 %v5962, 94
        %v5971 = vpop.permute.xlu0 %5970
        %v5972 = vsel %vm1030, %v5967, %v5969
        %v5973 = vsel %vm1030, %v5969, %v5971
        %v5976 = vadd.f32 %v5893, %v5972
        %v5977 = vadd.f32 %v5894, %v5973
        %s5978 = sld [smem:[#allocation9 + $0x8f]]
        %v5979 = vstv %s5978
        %v5980 = vmul.f32 %v5915, %v5979
        %v5981 = vmul.f32 %v5916, %v5979
        %v5982 = vmul.f32 %v5917, %v5979
        %5986 = vrot.lane.b32.xlu0 %v5980, 94
        %v5987 = vpop.permute.xlu0 %5986
        %5988 = vrot.lane.b32.xlu0 %v5981, 94
        %v5989 = vpop.permute.xlu0 %5988
        %5990 = vrot.lane.b32.xlu0 %v5982, 94
        %v5991 = vpop.permute.xlu0 %5990
        %v5992 = vsel %vm1030, %v5987, %v5989
        %v5993 = vsel %vm1030, %v5989, %v5991
        %v5996 = vadd.f32 %v5913, %v5992
        %v5997 = vadd.f32 %v5914, %v5993
        %vm5998 = vcmp.gt.f32.partialorder %v5936, 0.0
        %vm5999 = vcmp.gt.f32.partialorder %v5937, 0.0
        %v6000 = vmul.f32 %v5936, 0.1
        %v6001 = vmul.f32 %v5937, 0.1
        %v6002 = vsel %vm5998, %v5936, %v6000
        %v6003 = vsel %vm5999, %v5937, %v6001
        %vm6004 = vcmp.gt.f32.partialorder %v5956, 0.0
        %vm6005 = vcmp.gt.f32.partialorder %v5957, 0.0
        %v6006 = vmul.f32 %v5956, 0.1
        %v6007 = vmul.f32 %v5957, 0.1
        %v6008 = vsel %vm6004, %v5956, %v6006
        %v6009 = vsel %vm6005, %v5957, %v6007
        %vm6010 = vcmp.gt.f32.partialorder %v5976, 0.0
        %vm6011 = vcmp.gt.f32.partialorder %v5977, 0.0
        %v6012 = vmul.f32 %v5976, 0.1
        %v6013 = vmul.f32 %v5977, 0.1
        %v6014 = vsel %vm6010, %v5976, %v6012
        %v6015 = vsel %vm6011, %v5977, %v6013
        %vm6016 = vcmp.gt.f32.partialorder %v5996, 0.0
        %vm6017 = vcmp.gt.f32.partialorder %v5997, 0.0
        %v6018 = vmul.f32 %v5996, 0.1
        %v6019 = vmul.f32 %v5997, 0.1
        %v6020 = vsel %vm6016, %v5996, %v6018
        %v6021 = vsel %vm6017, %v5997, %v6019
        %v6024 = vadd.f32 %v6002, %v343
        %v6025 = vadd.f32 %v6003, %v347
        %v6028 = vadd.f32 %v6008, %v1100
        %v6029 = vadd.f32 %v6009, %v1104
        %v6032 = vadd.f32 %v6014, %v1799
        %v6033 = vadd.f32 %v6015, %v1803
        %v6036 = vadd.f32 %v6020, %v2498
        %v6037 = vadd.f32 %v6021, %v2502
        %v6040 = vrot.slane %v6028, 7
        %v6041 = vrot.slane %v6029, 7
        %v6046 = vrot.slane %v6032, 6
        %v6047 = vrot.slane %v6033, 6
        %v6052 = vrot.slane %v6036, 5
        %v6053 = vrot.slane %v6037, 5
        %vm6056 = vcmask 1040384
        %v6057 = vsel %vm6056, %v6024, %v6040
        %v6058 = vsel %vm6056, %v6025, %v6041
        %vm6059 = vcmask 1041408
        %v6060 = vsel %vm6059, %v6057, %v6046
        %v6061 = vsel %vm6059, %v6058, %v6047
        %vm6062 = vcmask 1042432
        %v6063 = vsel %vm6062, %v6060, %v6052
        %v6064 = vsel %vm6062, %v6061, %v6053
        %v6067 = vcombine.low %v6063, %v6064
        %6069 = vst [vmem:[%s290] sm:$0xff] %v6067
        %s6070 = sand.u32 %s143, 1
        %s6071 = scalar_lea.sflag [#allocation4], %s6070
        %s6072 = sand.u32 %s143, 1
        %s6073 = smul.addr %s6072, 8
        %s6074 = scalar_lea.vmem [#allocation12], %s6073
        // Predicated region
        $region61: #{tpu_custom_call.1} parent=39 // pred_check
          %p6075 = pneg %p153
        $region62: #{tpu_custom_call.1} parent=39 // pred_check_branch
          %6077 = sbr.rel (%p6075) target = $region64
        $region63: #{tpu_custom_call.1} parent=39 // pred_region
          %s6079 = ssub.s32 128, 128
          %6080 = vsyncadd %s6071, %s6079
          %s6081 = smul.addr %s25, 2
          %s6082 = smul.addr %s6081, 64
          %s6083 = scalar_lea.hbm %s5, %s6082
          %s6085 = sshll.u32 %s6074, 4
          %s6086 = int_to_ptr.vmem [resolvable:$true] %s6085
          %6088 = dma.vmem_to_hbm [thread:$0]  %s6086, 128, %s6083, %s6071
        $region64: #{tpu_custom_call.1} parent=39 // pred_fallthru
          _
      $region40: #{tpu_custom_call.1} parent=5 // pred_fallthru
        _
      %p6089 = scmp.le.s32.totalorder 2, %s20
      // Predicated region
      $region65: #{tpu_custom_call.1} parent=5 // pred_check
        %p6090 = pneg %p6089
      $region66: #{tpu_custom_call.1} parent=5 // pred_check_branch
        %6092 = sbr.rel (%p6090) target = $region68
      $region67: #{tpu_custom_call.1} parent=5 // pred_region
        %s6093 = ssub.s32 %s20, 2
        // Predicated region
        $region69: #{tpu_custom_call.1} parent=67 // pred_check
          %p6094 = pneg %p159
        $region70: #{tpu_custom_call.1} parent=67 // pred_check_branch
          %6096 = sbr.rel (%p6094) target = $region72
        $region71: #{tpu_custom_call.1} parent=67 // pred_region
          %s6097 = sand.u32 %s144, 1
          %s6098 = scalar_lea.sflag [#allocation4], %s6097
          %s6099 = sand.u32 %s144, 1
          %s6100 = smul.addr %s6099, 8
          %s6101 = scalar_lea.vmem [#allocation12], %s6100
          %6102 = dma.done %s6098, 128
        $region72: #{tpu_custom_call.1} parent=67 // pred_fallthru
          _
      $region68: #{tpu_custom_call.1} parent=5 // pred_fallthru
        _
    $region6: #{tpu_custom_call.1} parent=1 // loop_footer
      %s24 = sadd.s32 1, %s20
    $region7: #{tpu_custom_call.1} parent=1 // loop_footer_branch
      %19 = sbr.rel target = $region3
    $region8: #{tpu_custom_call.1} parent=1 // loop_exit
      _
    %6103 = vsyncpa [#allocation3], 1
    %s6104 = scalar_lea.sflag [#allocation3], 1
    %6105 = vsyncpa %s6104, 1
    %6106 = vsyncpa [#allocation4], 1
    %s6107 = scalar_lea.sflag [#allocation4], 1
    %6108 = vsyncpa %s6107, 1
    %6109 = vsyncpa [#allocation5], 1
    %s6110 = scalar_lea.sflag [#allocation5], 1
    %6111 = vsyncpa %s6110, 1
    %6112 = vsyncpa [#allocation6], 1
    %s6113 = scalar_lea.sflag [#allocation6], 1
    %6114 = vsyncpa %s6113, 1
    %6115 = vsyncpa [#allocation10], 1

</llo_original>
